<compile_context>
chip_gen: v7x
topology: tpu7x:2x2x1
jax: 0.10.0
libtpu: 0.0.40
codegen_flags: <defaults>
</compile_context>

<pallas_src>
import jax
import jax.numpy as jnp
from jax.experimental import pallas as pl
from jax.experimental.pallas import tpu as pltpu

_PADW = 8        # left zero-pad on the W (sublane) axis -> aligned interior stores
_EPS = 1e-5


def _vmem():
    return pl.BlockSpec(memory_space=pltpu.MemorySpace.VMEM)


# ----------------------------------------------------------------------------
# Parameters (deterministic synthetic init; conv weights stored as HWIO,
# fc weight stored in PyTorch (C*H*W, classes) row order).
# ----------------------------------------------------------------------------
def init_params(key, num_classes=3, hw=16):
    keys = jax.random.split(key, 16)

    def conv_w(k, cin, cout):
        return (jax.random.normal(k, (3, 3, cin, cout), jnp.float32)
                / jnp.sqrt(9.0 * cin))

    p = {}
    p["w1"] = conv_w(keys[0], 3, 12)
    p["b1"] = 0.05 * jax.random.normal(keys[1], (12,), jnp.float32)
    p["g1"] = 1.0 + 0.1 * jax.random.normal(keys[2], (12,), jnp.float32)
    p["beta1"] = 0.1 * jax.random.normal(keys[3], (12,), jnp.float32)
    p["m1"] = 0.1 * jax.random.normal(keys[4], (12,), jnp.float32)
    p["v1"] = jax.random.uniform(keys[5], (12,), jnp.float32, 0.5, 1.5)

    p["w2"] = conv_w(keys[6], 12, 20)
    p["b2"] = 0.05 * jax.random.normal(keys[7], (20,), jnp.float32)

    p["w3"] = conv_w(keys[8], 20, 32)
    p["b3"] = 0.05 * jax.random.normal(keys[9], (32,), jnp.float32)
    p["g2"] = 1.0 + 0.1 * jax.random.normal(keys[10], (32,), jnp.float32)
    p["beta2"] = 0.1 * jax.random.normal(keys[11], (32,), jnp.float32)
    p["m2"] = 0.1 * jax.random.normal(keys[12], (32,), jnp.float32)
    p["v2"] = jax.random.uniform(keys[13], (32,), jnp.float32, 0.5, 1.5)

    fc_in = 32 * (hw // 2) * (hw // 2)
    p["wfc"] = (jax.random.normal(keys[14], (fc_in, num_classes), jnp.float32)
                / jnp.sqrt(fc_in))
    p["bfc"] = 0.05 * jax.random.normal(keys[15], (num_classes,), jnp.float32)
    return p


# ----------------------------------------------------------------------------
# One-time parameter transform for the fused kernel (done once at init time,
# zero runtime cost):
#   * conv weights HWIO -> (9*Cin, Cout) im2col layout,
#   * eval-mode BN folded into conv1/conv3 weight + bias,
#   * torch.flatten(NCHW) row order folded into the FC weight, stored as
#     (classes, H*W, C) so the kernel never transposes activations.
# ----------------------------------------------------------------------------
def prepare_params(p, eps=_EPS):
    def fold_bn(w_hwio, b, g, beta, m, v):
        s = g * jax.lax.rsqrt(v + eps)          # per-output-channel scale
        return w_hwio * s, (b - m) * s + beta   # scaled weight, folded bias

    w1, b1 = fold_bn(p["w1"], p["b1"], p["g1"], p["beta1"], p["m1"], p["v1"])
    w3, b3 = fold_bn(p["w3"], p["b3"], p["g2"], p["beta2"], p["m2"], p["v2"])

    c1 = p["w1"].shape[-1]
    c2 = p["w2"].shape[-1]
    c3 = p["w3"].shape[-1]
    num_classes = p["wfc"].shape[-1]
    sp = p["wfc"].shape[0] // c3                # H*W after the pool

    return {
        "w1": w1.reshape(9 * p["w1"].shape[2], c1),
        "b1": b1.reshape(1, c1),
        "w2": p["w2"].reshape(9 * p["w2"].shape[2], c2),
        "b2": p["b2"].reshape(1, c2),
        "w3": w3.reshape(9 * p["w3"].shape[2], c3),
        "b3": b3.reshape(1, c3),
        # torch flatten order is (c, h, w); kernel activations are (h*w, c).
        "wfc": p["wfc"].reshape(c3, sp, num_classes).transpose(2, 1, 0),  # (M,S,C)
        "bfc": p["bfc"].reshape(num_classes, 1),
    }


# ----------------------------------------------------------------------------
# Fused forward pass: one pallas_call, everything resident in VMEM.
# ----------------------------------------------------------------------------
def ourcnn_forward(q, x_nchw):
    n, c0, h, w = x_nchw.shape
    ho, wo = h // 2, w // 2
    c1 = q["b1"].shape[-1]
    c2 = q["b2"].shape[-1]
    c3 = q["b3"].shape[-1]
    m = q["bfc"].shape[0]
    sp = ho * wo

    x_nhwc = jnp.transpose(x_nchw.astype(jnp.float32), (0, 2, 3, 1))  # tiny, once

    def kernel(x_ref, w1_ref, b1_ref, w2_ref, b2_ref, w3_ref, b3_ref,
               wfc_ref, bfc_ref, out_ref,
               pad1_ref, act1_ref, pad2_ref, pad3_ref):

        def conv3x3(pad_ref, w_ref, b_ref, hh, ww, cin):
            # im2col: 9 shifted windows concatenated on the channel (lane)
            # axis -> one MXU matmul with K = 9*cin, fused bias + ReLU.
            taps = []
            for dy in range(3):
                for dx in range(3):
                    off = _PADW - 1 + dx
                    win = pad_ref[:, dy:dy + hh, off:off + ww, :]
                    taps.append(win.reshape(n * hh * ww, cin))
            col = jnp.concatenate(taps, axis=-1)                 # (rows, 9*cin)
            acc = jnp.dot(col, w_ref[...],
                          preferred_element_type=jnp.float32)    # (rows, cout)
            return jnp.maximum(acc + b_ref[...], 0.0)

        # ---- conv1 (+ folded bn1) + relu; zero-pad built in VMEM ----------
        pad1_ref[...] = jnp.zeros_like(pad1_ref)
        pad1_ref[:, 1:h + 1, _PADW:_PADW + w, :] = x_ref[...]
        a1 = conv3x3(pad1_ref, w1_ref, b1_ref, h, w, c0)          # (n*h*w, c1)

        # ---- 2x2 max pool in VMEM (strided loads over W, halves over H) ---
        act1_ref[...] = a1.reshape(n * h, w, c1)
        wmax = jnp.maximum(act1_ref[:, pl.ds(0, wo, stride=2), :],
                           act1_ref[:, pl.ds(1, wo, stride=2), :])  # (n*h, wo, c1)
        wmax = wmax.reshape(n * ho, 2 * wo, c1)
        pooled = jnp.maximum(wmax[:, :wo, :], wmax[:, wo:, :])      # (n*ho, wo, c1)

        # ---- conv2 + relu (no BN -> plain bias epilogue) -------------------
        pad2_ref[...] = jnp.zeros_like(pad2_ref)
        pad2_ref[:, 1:ho + 1, _PADW:_PADW + wo, :] = pooled.reshape(n, ho, wo, c1)
        a2 = conv3x3(pad2_ref, w2_ref, b2_ref, ho, wo, c1)          # (n*ho*wo, c2)

        # ---- conv3 (+ folded bn2) + relu -----------------------------------
        pad3_ref[...] = jnp.zeros_like(pad3_ref)
        pad3_ref[:, 1:ho + 1, _PADW:_PADW + wo, :] = a2.reshape(n, ho, wo, c2)
        a3 = conv3x3(pad3_ref, w3_ref, b3_ref, ho, wo, c2)          # (n*ho*wo, c3)

        # ---- flatten (ordering folded into wfc) + fc -----------------------
        # Tiny (2x3) output: per (batch, class) dot done on the VPU; written
        # as (classes, batch) and transposed (6 elements) in the wrapper.
        for bi in range(n):
            a_b = a3[bi * sp:(bi + 1) * sp, :]                      # (sp, c3)
            for mi in range(m):
                prod = a_b * wfc_ref[mi]                            # (sp, c3)
                red = jnp.sum(prod, axis=1, keepdims=True)          # (sp, 1)
                val = jnp.sum(red, axis=0, keepdims=True)           # (1, 1)
                out_ref[mi:mi + 1, bi:bi + 1] = val + bfc_ref[mi:mi + 1, :]

    out_mn = pl.pallas_call(
        kernel,
        out_shape=jax.ShapeDtypeStruct((m, n), jnp.float32),
        in_specs=[_vmem()] * 9,
        out_specs=_vmem(),
        scratch_shapes=[
            pltpu.VMEM((n, h + 2, _PADW + w + 1, c0), jnp.float32),    # padded input
            pltpu.VMEM((n * h, w, c1), jnp.float32),                   # conv1 out
            pltpu.VMEM((n, ho + 2, _PADW + wo + 1, c1), jnp.float32),  # padded pooled
            pltpu.VMEM((n, ho + 2, _PADW + wo + 1, c2), jnp.float32),  # padded conv2
        ],
    )(x_nhwc, q["w1"], q["b1"], q["w2"], q["b2"], q["w3"], q["b3"],
      q["wfc"], q["bfc"])

    return out_mn.T                                                  # (batch, classes)


# ----------------------------------------------------------------------------
# Pure-JAX reference (uses the *raw* params: explicit conv, BN, pool, flatten).
# ----------------------------------------------------------------------------
def reference_forward(p, x_nchw, eps=_EPS):
    hi = jax.lax.Precision.HIGHEST

    def conv(x, w_hwio, b):
        y = jax.lax.conv_general_dilated(
            x, w_hwio, (1, 1), ((1, 1), (1, 1)),
            dimension_numbers=("NCHW", "HWIO", "NCHW"), precision=hi)
        return y + b[None, :, None, None]

    def bn(x, g, be, mm, v):
        s = g * jax.lax.rsqrt(v + eps)
        return (x - mm[None, :, None, None]) * s[None, :, None, None] \
            + be[None, :, None, None]

    x = x_nchw.astype(jnp.float32)
    y = jnp.maximum(bn(conv(x, p["w1"], p["b1"]),
                       p["g1"], p["beta1"], p["m1"], p["v1"]), 0.0)
    nb, c, hh, ww = y.shape
    y = y.reshape(nb, c, hh // 2, 2, ww // 2, 2).max(axis=(3, 5))
    y = jnp.maximum(conv(y, p["w2"], p["b2"]), 0.0)
    y = jnp.maximum(bn(conv(y, p["w3"], p["b3"]),
                       p["g2"], p["beta2"], p["m2"], p["v2"]), 0.0)
    y = y.reshape(nb, -1)
    return jnp.dot(y, p["wfc"], precision=hi) + p["bfc"]


if __name__ == "__main__":
    key = jax.random.PRNGKey(0)
    kx, kp = jax.random.split(key)

    x = jax.random.normal(kx, (2, 3, 16, 16), jnp.float32)   # NCHW, like PyTorch
    params = init_params(kp, num_classes=3, hw=16)
    prepared = prepare_params(params)                        # one-time weight prep

    fwd = jax.jit(ourcnn_forward)
    out = jax.block_until_ready(fwd(prepared, x))
    assert out.shape == (2, 3), out.shape

    ref = jax.block_until_ready(reference_forward(params, x))
    assert jnp.allclose(out, ref, atol=5e-2, rtol=5e-2), \
        ("mismatch", float(jnp.max(jnp.abs(out - ref))))

    print("KERNEL_OK")
</pallas_src>

<mosaic_0001>
module attributes {stable_mosaic.version = 11 : i64} {
  func.func @kernel(%arg0: memref<2x16x16x3xf32, #tpu.memory_space<vmem>>, %arg1: memref<27x12xf32, #tpu.memory_space<vmem>>, %arg2: memref<1x12xf32, #tpu.memory_space<vmem>>, %arg3: memref<108x20xf32, #tpu.memory_space<vmem>>, %arg4: memref<1x20xf32, #tpu.memory_space<vmem>>, %arg5: memref<180x32xf32, #tpu.memory_space<vmem>>, %arg6: memref<1x32xf32, #tpu.memory_space<vmem>>, %arg7: memref<3x64x32xf32, #tpu.memory_space<vmem>>, %arg8: memref<3x1xf32, #tpu.memory_space<vmem>>, %arg9: memref<3x2xf32, #tpu.memory_space<vmem>>, %arg10: memref<2x18x25x3xf32, #tpu.memory_space<vmem>>, %arg11: memref<32x16x12xf32, #tpu.memory_space<vmem>>, %arg12: memref<2x10x17x12xf32, #tpu.memory_space<vmem>>, %arg13: memref<2x10x17x20xf32, #tpu.memory_space<vmem>>) attributes {dimension_semantics = [], scalar_prefetch = 0 : i64, scratch_operands = 4 : i64, tpu.core_type = #tpu.core_type<tc>} {
    %cst = arith.constant 0.000000e+00 : f32
    %0 = vector.broadcast %cst : f32 to vector<2x18x25x3xf32>
    %c0 = arith.constant 0 : index
    %c0_0 = arith.constant 0 : index
    %c0_1 = arith.constant 0 : index
    %c0_2 = arith.constant 0 : index
    %1 = vector.load %arg10[%c0, %c0_0, %c0_1, %c0_2] : memref<2x18x25x3xf32, #tpu.memory_space<vmem>>, vector<2x18x25x3xf32>
    tpu.vector_store %arg10[%c0, %c0_0, %c0_1, %c0_2], %0 {strides = array<i32>} : memref<2x18x25x3xf32, #tpu.memory_space<vmem>>, vector<2x18x25x3xf32>,
    %c0_3 = arith.constant 0 : index
    %c0_4 = arith.constant 0 : index
    %c0_5 = arith.constant 0 : index
    %c0_6 = arith.constant 0 : index
    %2 = vector.load %arg0[%c0_3, %c0_4, %c0_5, %c0_6] : memref<2x16x16x3xf32, #tpu.memory_space<vmem>>, vector<2x16x16x3xf32>
    %c0_7 = arith.constant 0 : index
    %c1 = arith.constant 1 : index
    %c8 = arith.constant 8 : index
    %c0_8 = arith.constant 0 : index
    %3 = vector.load %arg10[%c0_7, %c1, %c8, %c0_8] : memref<2x18x25x3xf32, #tpu.memory_space<vmem>>, vector<2x16x16x3xf32>
    tpu.vector_store %arg10[%c0_7, %c1, %c8, %c0_8], %2 {strides = array<i32>} : memref<2x18x25x3xf32, #tpu.memory_space<vmem>>, vector<2x16x16x3xf32>,
    %c0_9 = arith.constant 0 : index
    %c0_10 = arith.constant 0 : index
    %c7 = arith.constant 7 : index
    %c0_11 = arith.constant 0 : index
    %4 = vector.load %arg10[%c0_9, %c0_10, %c7, %c0_11] : memref<2x18x25x3xf32, #tpu.memory_space<vmem>>, vector<2x16x16x3xf32>
    %5 = vector.shape_cast %4 : vector<2x16x16x3xf32> to vector<512x3xf32>
    %c0_12 = arith.constant 0 : index
    %c0_13 = arith.constant 0 : index
    %c8_14 = arith.constant 8 : index
    %c0_15 = arith.constant 0 : index
    %6 = vector.load %arg10[%c0_12, %c0_13, %c8_14, %c0_15] : memref<2x18x25x3xf32, #tpu.memory_space<vmem>>, vector<2x16x16x3xf32>
    %7 = vector.shape_cast %6 : vector<2x16x16x3xf32> to vector<512x3xf32>
    %c0_16 = arith.constant 0 : index
    %c0_17 = arith.constant 0 : index
    %c9 = arith.constant 9 : index
    %c0_18 = arith.constant 0 : index
    %8 = vector.load %arg10[%c0_16, %c0_17, %c9, %c0_18] : memref<2x18x25x3xf32, #tpu.memory_space<vmem>>, vector<2x16x16x3xf32>
    %9 = vector.shape_cast %8 : vector<2x16x16x3xf32> to vector<512x3xf32>
    %c0_19 = arith.constant 0 : index
    %c1_20 = arith.constant 1 : index
    %c7_21 = arith.constant 7 : index
    %c0_22 = arith.constant 0 : index
    %10 = vector.load %arg10[%c0_19, %c1_20, %c7_21, %c0_22] : memref<2x18x25x3xf32, #tpu.memory_space<vmem>>, vector<2x16x16x3xf32>
    %11 = vector.shape_cast %10 : vector<2x16x16x3xf32> to vector<512x3xf32>
    %c0_23 = arith.constant 0 : index
    %c1_24 = arith.constant 1 : index
    %c8_25 = arith.constant 8 : index
    %c0_26 = arith.constant 0 : index
    %12 = vector.load %arg10[%c0_23, %c1_24, %c8_25, %c0_26] : memref<2x18x25x3xf32, #tpu.memory_space<vmem>>, vector<2x16x16x3xf32>
    %13 = vector.shape_cast %12 : vector<2x16x16x3xf32> to vector<512x3xf32>
    %c0_27 = arith.constant 0 : index
    %c1_28 = arith.constant 1 : index
    %c9_29 = arith.constant 9 : index
    %c0_30 = arith.constant 0 : index
    %14 = vector.load %arg10[%c0_27, %c1_28, %c9_29, %c0_30] : memref<2x18x25x3xf32, #tpu.memory_space<vmem>>, vector<2x16x16x3xf32>
    %15 = vector.shape_cast %14 : vector<2x16x16x3xf32> to vector<512x3xf32>
    %c0_31 = arith.constant 0 : index
    %c2 = arith.constant 2 : index
    %c7_32 = arith.constant 7 : index
    %c0_33 = arith.constant 0 : index
    %16 = vector.load %arg10[%c0_31, %c2, %c7_32, %c0_33] : memref<2x18x25x3xf32, #tpu.memory_space<vmem>>, vector<2x16x16x3xf32>
    %17 = vector.shape_cast %16 : vector<2x16x16x3xf32> to vector<512x3xf32>
    %c0_34 = arith.constant 0 : index
    %c2_35 = arith.constant 2 : index
    %c8_36 = arith.constant 8 : index
    %c0_37 = arith.constant 0 : index
    %18 = vector.load %arg10[%c0_34, %c2_35, %c8_36, %c0_37] : memref<2x18x25x3xf32, #tpu.memory_space<vmem>>, vector<2x16x16x3xf32>
    %19 = vector.shape_cast %18 : vector<2x16x16x3xf32> to vector<512x3xf32>
    %c0_38 = arith.constant 0 : index
    %c2_39 = arith.constant 2 : index
    %c9_40 = arith.constant 9 : index
    %c0_41 = arith.constant 0 : index
    %20 = vector.load %arg10[%c0_38, %c2_39, %c9_40, %c0_41] : memref<2x18x25x3xf32, #tpu.memory_space<vmem>>, vector<2x16x16x3xf32>
    %21 = vector.shape_cast %20 : vector<2x16x16x3xf32> to vector<512x3xf32>
    %22 = tpu.concatenate %5, %7, %9, %11, %13, %15, %17, %19, %21 in 1 : vector<512x3xf32>, vector<512x3xf32>, vector<512x3xf32>, vector<512x3xf32>, vector<512x3xf32>, vector<512x3xf32>, vector<512x3xf32>, vector<512x3xf32>, vector<512x3xf32> -> vector<512x27xf32>
    %c0_42 = arith.constant 0 : index
    %c0_43 = arith.constant 0 : index
    %23 = vector.load %arg1[%c0_42, %c0_43] : memref<27x12xf32, #tpu.memory_space<vmem>>, vector<27x12xf32>
    %cst_44 = arith.constant dense<0.000000e+00> : vector<512x12xf32>
    %24 = tpu.matmul %22, %23, %cst_44 {dimension_numbers = #tpu.dot_dimension_numbers<[1], [0], [0], [1], [0, 0, 1, 1], [], []>} : vector<512x27xf32>, vector<27x12xf32>, vector<512x12xf32> -> vector<512x12xf32>
    %c0_45 = arith.constant 0 : index
    %c0_46 = arith.constant 0 : index
    %25 = vector.load %arg2[%c0_45, %c0_46] : memref<1x12xf32, #tpu.memory_space<vmem>>, vector<1x12xf32>
    %26 = vector.broadcast %25 : vector<1x12xf32> to vector<512x12xf32>
    %27 = arith.addf %24, %26 : vector<512x12xf32>
    %cst_47 = arith.constant 0.000000e+00 : f32
    %28 = vector.broadcast %cst_47 : f32 to vector<512x12xf32>
    %29 = arith.maximumf %27, %28 : vector<512x12xf32>
    %30 = vector.shape_cast %29 : vector<512x12xf32> to vector<32x16x12xf32>
    %c0_48 = arith.constant 0 : index
    %c0_49 = arith.constant 0 : index
    %c0_50 = arith.constant 0 : index
    %31 = vector.load %arg11[%c0_48, %c0_49, %c0_50] : memref<32x16x12xf32, #tpu.memory_space<vmem>>, vector<32x16x12xf32>
    tpu.vector_store %arg11[%c0_48, %c0_49, %c0_50], %30 {strides = array<i32>} : memref<32x16x12xf32, #tpu.memory_space<vmem>>, vector<32x16x12xf32>,
    %c0_51 = arith.constant 0 : index
    %c0_52 = arith.constant 0 : index
    %c0_53 = arith.constant 0 : index
    %32 = tpu.strided_load %arg11[%c0_51, %c0_52, %c0_53] {strides = array<i32: 1, 2, 1>} : memref<32x16x12xf32, #tpu.memory_space<vmem>>, vector<32x8x12xf32>
    %c0_54 = arith.constant 0 : index
    %c1_55 = arith.constant 1 : index
    %c0_56 = arith.constant 0 : index
    %33 = tpu.strided_load %arg11[%c0_54, %c1_55, %c0_56] {strides = array<i32: 1, 2, 1>} : memref<32x16x12xf32, #tpu.memory_space<vmem>>, vector<32x8x12xf32>
    %34 = arith.maximumf %32, %33 : vector<32x8x12xf32>
    %35 = vector.shape_cast %34 : vector<32x8x12xf32> to vector<16x16x12xf32>
    %36 = vector.extract_strided_slice %35 {offsets = [0, 0, 0], sizes = [16, 8, 12], strides = [1, 1, 1]} : vector<16x16x12xf32> to vector<16x8x12xf32>
    %37 = vector.extract_strided_slice %35 {offsets = [0, 8, 0], sizes = [16, 8, 12], strides = [1, 1, 1]} : vector<16x16x12xf32> to vector<16x8x12xf32>
    %38 = arith.maximumf %36, %37 : vector<16x8x12xf32>
    %cst_57 = arith.constant 0.000000e+00 : f32
    %39 = vector.broadcast %cst_57 : f32 to vector<2x10x17x12xf32>
    %c0_58 = arith.constant 0 : index
    %c0_59 = arith.constant 0 : index
    %c0_60 = arith.constant 0 : index
    %c0_61 = arith.constant 0 : index
    %40 = vector.load %arg12[%c0_58, %c0_59, %c0_60, %c0_61] : memref<2x10x17x12xf32, #tpu.memory_space<vmem>>, vector<2x10x17x12xf32>
    tpu.vector_store %arg12[%c0_58, %c0_59, %c0_60, %c0_61], %39 {strides = array<i32>} : memref<2x10x17x12xf32, #tpu.memory_space<vmem>>, vector<2x10x17x12xf32>,
    %41 = vector.shape_cast %38 : vector<16x8x12xf32> to vector<2x8x8x12xf32>
    %c0_62 = arith.constant 0 : index
    %c1_63 = arith.constant 1 : index
    %c8_64 = arith.constant 8 : index
    %c0_65 = arith.constant 0 : index
    %42 = vector.load %arg12[%c0_62, %c1_63, %c8_64, %c0_65] : memref<2x10x17x12xf32, #tpu.memory_space<vmem>>, vector<2x8x8x12xf32>
    tpu.vector_store %arg12[%c0_62, %c1_63, %c8_64, %c0_65], %41 {strides = array<i32>} : memref<2x10x17x12xf32, #tpu.memory_space<vmem>>, vector<2x8x8x12xf32>,
    %c0_66 = arith.constant 0 : index
    %c0_67 = arith.constant 0 : index
    %c7_68 = arith.constant 7 : index
    %c0_69 = arith.constant 0 : index
    %43 = vector.load %arg12[%c0_66, %c0_67, %c7_68, %c0_69] : memref<2x10x17x12xf32, #tpu.memory_space<vmem>>, vector<2x8x8x12xf32>
    %44 = vector.shape_cast %43 : vector<2x8x8x12xf32> to vector<128x12xf32>
    %c0_70 = arith.constant 0 : index
    %c0_71 = arith.constant 0 : index
    %c8_72 = arith.constant 8 : index
    %c0_73 = arith.constant 0 : index
    %45 = vector.load %arg12[%c0_70, %c0_71, %c8_72, %c0_73] : memref<2x10x17x12xf32, #tpu.memory_space<vmem>>, vector<2x8x8x12xf32>
    %46 = vector.shape_cast %45 : vector<2x8x8x12xf32> to vector<128x12xf32>
    %c0_74 = arith.constant 0 : index
    %c0_75 = arith.constant 0 : index
    %c9_76 = arith.constant 9 : index
    %c0_77 = arith.constant 0 : index
    %47 = vector.load %arg12[%c0_74, %c0_75, %c9_76, %c0_77] : memref<2x10x17x12xf32, #tpu.memory_space<vmem>>, vector<2x8x8x12xf32>
    %48 = vector.shape_cast %47 : vector<2x8x8x12xf32> to vector<128x12xf32>
    %c0_78 = arith.constant 0 : index
    %c1_79 = arith.constant 1 : index
    %c7_80 = arith.constant 7 : index
    %c0_81 = arith.constant 0 : index
    %49 = vector.load %arg12[%c0_78, %c1_79, %c7_80, %c0_81] : memref<2x10x17x12xf32, #tpu.memory_space<vmem>>, vector<2x8x8x12xf32>
    %50 = vector.shape_cast %49 : vector<2x8x8x12xf32> to vector<128x12xf32>
    %c0_82 = arith.constant 0 : index
    %c1_83 = arith.constant 1 : index
    %c8_84 = arith.constant 8 : index
    %c0_85 = arith.constant 0 : index
    %51 = vector.load %arg12[%c0_82, %c1_83, %c8_84, %c0_85] : memref<2x10x17x12xf32, #tpu.memory_space<vmem>>, vector<2x8x8x12xf32>
    %52 = vector.shape_cast %51 : vector<2x8x8x12xf32> to vector<128x12xf32>
    %c0_86 = arith.constant 0 : index
    %c1_87 = arith.constant 1 : index
    %c9_88 = arith.constant 9 : index
    %c0_89 = arith.constant 0 : index
    %53 = vector.load %arg12[%c0_86, %c1_87, %c9_88, %c0_89] : memref<2x10x17x12xf32, #tpu.memory_space<vmem>>, vector<2x8x8x12xf32>
    %54 = vector.shape_cast %53 : vector<2x8x8x12xf32> to vector<128x12xf32>
    %c0_90 = arith.constant 0 : index
    %c2_91 = arith.constant 2 : index
    %c7_92 = arith.constant 7 : index
    %c0_93 = arith.constant 0 : index
    %55 = vector.load %arg12[%c0_90, %c2_91, %c7_92, %c0_93] : memref<2x10x17x12xf32, #tpu.memory_space<vmem>>, vector<2x8x8x12xf32>
    %56 = vector.shape_cast %55 : vector<2x8x8x12xf32> to vector<128x12xf32>
    %c0_94 = arith.constant 0 : index
    %c2_95 = arith.constant 2 : index
    %c8_96 = arith.constant 8 : index
    %c0_97 = arith.constant 0 : index
    %57 = vector.load %arg12[%c0_94, %c2_95, %c8_96, %c0_97] : memref<2x10x17x12xf32, #tpu.memory_space<vmem>>, vector<2x8x8x12xf32>
    %58 = vector.shape_cast %57 : vector<2x8x8x12xf32> to vector<128x12xf32>
    %c0_98 = arith.constant 0 : index
    %c2_99 = arith.constant 2 : index
    %c9_100 = arith.constant 9 : index
    %c0_101 = arith.constant 0 : index
    %59 = vector.load %arg12[%c0_98, %c2_99, %c9_100, %c0_101] : memref<2x10x17x12xf32, #tpu.memory_space<vmem>>, vector<2x8x8x12xf32>
    %60 = vector.shape_cast %59 : vector<2x8x8x12xf32> to vector<128x12xf32>
    %61 = tpu.concatenate %44, %46, %48, %50, %52, %54, %56, %58, %60 in 1 : vector<128x12xf32>, vector<128x12xf32>, vector<128x12xf32>, vector<128x12xf32>, vector<128x12xf32>, vector<128x12xf32>, vector<128x12xf32>, vector<128x12xf32>, vector<128x12xf32> -> vector<128x108xf32>
    %c0_102 = arith.constant 0 : index
    %c0_103 = arith.constant 0 : index
    %62 = vector.load %arg3[%c0_102, %c0_103] : memref<108x20xf32, #tpu.memory_space<vmem>>, vector<108x20xf32>
    %cst_104 = arith.constant dense<0.000000e+00> : vector<128x20xf32>
    %63 = tpu.matmul %61, %62, %cst_104 {dimension_numbers = #tpu.dot_dimension_numbers<[1], [0], [0], [1], [0, 0, 1, 1], [], []>} : vector<128x108xf32>, vector<108x20xf32>, vector<128x20xf32> -> vector<128x20xf32>
    %c0_105 = arith.constant 0 : index
    %c0_106 = arith.constant 0 : index
    %64 = vector.load %arg4[%c0_105, %c0_106] : memref<1x20xf32, #tpu.memory_space<vmem>>, vector<1x20xf32>
    %65 = vector.broadcast %64 : vector<1x20xf32> to vector<128x20xf32>
    %66 = arith.addf %63, %65 : vector<128x20xf32>
    %cst_107 = arith.constant 0.000000e+00 : f32
    %67 = vector.broadcast %cst_107 : f32 to vector<128x20xf32>
    %68 = arith.maximumf %66, %67 : vector<128x20xf32>
    %cst_108 = arith.constant 0.000000e+00 : f32
    %69 = vector.broadcast %cst_108 : f32 to vector<2x10x17x20xf32>
    %c0_109 = arith.constant 0 : index
    %c0_110 = arith.constant 0 : index
    %c0_111 = arith.constant 0 : index
    %c0_112 = arith.constant 0 : index
    %70 = vector.load %arg13[%c0_109, %c0_110, %c0_111, %c0_112] : memref<2x10x17x20xf32, #tpu.memory_space<vmem>>, vector<2x10x17x20xf32>
    tpu.vector_store %arg13[%c0_109, %c0_110, %c0_111, %c0_112], %69 {strides = array<i32>} : memref<2x10x17x20xf32, #tpu.memory_space<vmem>>, vector<2x10x17x20xf32>,
    %71 = vector.shape_cast %68 : vector<128x20xf32> to vector<2x8x8x20xf32>
    %c0_113 = arith.constant 0 : index
    %c1_114 = arith.constant 1 : index
    %c8_115 = arith.constant 8 : index
    %c0_116 = arith.constant 0 : index
    %72 = vector.load %arg13[%c0_113, %c1_114, %c8_115, %c0_116] : memref<2x10x17x20xf32, #tpu.memory_space<vmem>>, vector<2x8x8x20xf32>
    tpu.vector_store %arg13[%c0_113, %c1_114, %c8_115, %c0_116], %71 {strides = array<i32>} : memref<2x10x17x20xf32, #tpu.memory_space<vmem>>, vector<2x8x8x20xf32>,
    %c0_117 = arith.constant 0 : index
    %c0_118 = arith.constant 0 : index
    %c7_119 = arith.constant 7 : index
    %c0_120 = arith.constant 0 : index
    %73 = vector.load %arg13[%c0_117, %c0_118, %c7_119, %c0_120] : memref<2x10x17x20xf32, #tpu.memory_space<vmem>>, vector<2x8x8x20xf32>
    %74 = vector.shape_cast %73 : vector<2x8x8x20xf32> to vector<128x20xf32>
    %c0_121 = arith.constant 0 : index
    %c0_122 = arith.constant 0 : index
    %c8_123 = arith.constant 8 : index
    %c0_124 = arith.constant 0 : index
    %75 = vector.load %arg13[%c0_121, %c0_122, %c8_123, %c0_124] : memref<2x10x17x20xf32, #tpu.memory_space<vmem>>, vector<2x8x8x20xf32>
    %76 = vector.shape_cast %75 : vector<2x8x8x20xf32> to vector<128x20xf32>
    %c0_125 = arith.constant 0 : index
    %c0_126 = arith.constant 0 : index
    %c9_127 = arith.constant 9 : index
    %c0_128 = arith.constant 0 : index
    %77 = vector.load %arg13[%c0_125, %c0_126, %c9_127, %c0_128] : memref<2x10x17x20xf32, #tpu.memory_space<vmem>>, vector<2x8x8x20xf32>
    %78 = vector.shape_cast %77 : vector<2x8x8x20xf32> to vector<128x20xf32>
    %c0_129 = arith.constant 0 : index
    %c1_130 = arith.constant 1 : index
    %c7_131 = arith.constant 7 : index
    %c0_132 = arith.constant 0 : index
    %79 = vector.load %arg13[%c0_129, %c1_130, %c7_131, %c0_132] : memref<2x10x17x20xf32, #tpu.memory_space<vmem>>, vector<2x8x8x20xf32>
    %80 = vector.shape_cast %79 : vector<2x8x8x20xf32> to vector<128x20xf32>
    %c0_133 = arith.constant 0 : index
    %c1_134 = arith.constant 1 : index
    %c8_135 = arith.constant 8 : index
    %c0_136 = arith.constant 0 : index
    %81 = vector.load %arg13[%c0_133, %c1_134, %c8_135, %c0_136] : memref<2x10x17x20xf32, #tpu.memory_space<vmem>>, vector<2x8x8x20xf32>
    %82 = vector.shape_cast %81 : vector<2x8x8x20xf32> to vector<128x20xf32>
    %c0_137 = arith.constant 0 : index
    %c1_138 = arith.constant 1 : index
    %c9_139 = arith.constant 9 : index
    %c0_140 = arith.constant 0 : index
    %83 = vector.load %arg13[%c0_137, %c1_138, %c9_139, %c0_140] : memref<2x10x17x20xf32, #tpu.memory_space<vmem>>, vector<2x8x8x20xf32>
    %84 = vector.shape_cast %83 : vector<2x8x8x20xf32> to vector<128x20xf32>
    %c0_141 = arith.constant 0 : index
    %c2_142 = arith.constant 2 : index
    %c7_143 = arith.constant 7 : index
    %c0_144 = arith.constant 0 : index
    %85 = vector.load %arg13[%c0_141, %c2_142, %c7_143, %c0_144] : memref<2x10x17x20xf32, #tpu.memory_space<vmem>>, vector<2x8x8x20xf32>
    %86 = vector.shape_cast %85 : vector<2x8x8x20xf32> to vector<128x20xf32>
    %c0_145 = arith.constant 0 : index
    %c2_146 = arith.constant 2 : index
    %c8_147 = arith.constant 8 : index
    %c0_148 = arith.constant 0 : index
    %87 = vector.load %arg13[%c0_145, %c2_146, %c8_147, %c0_148] : memref<2x10x17x20xf32, #tpu.memory_space<vmem>>, vector<2x8x8x20xf32>
    %88 = vector.shape_cast %87 : vector<2x8x8x20xf32> to vector<128x20xf32>
    %c0_149 = arith.constant 0 : index
    %c2_150 = arith.constant 2 : index
    %c9_151 = arith.constant 9 : index
    %c0_152 = arith.constant 0 : index
    %89 = vector.load %arg13[%c0_149, %c2_150, %c9_151, %c0_152] : memref<2x10x17x20xf32, #tpu.memory_space<vmem>>, vector<2x8x8x20xf32>
    %90 = vector.shape_cast %89 : vector<2x8x8x20xf32> to vector<128x20xf32>
    %91 = tpu.concatenate %74, %76, %78, %80, %82, %84, %86, %88, %90 in 1 : vector<128x20xf32>, vector<128x20xf32>, vector<128x20xf32>, vector<128x20xf32>, vector<128x20xf32>, vector<128x20xf32>, vector<128x20xf32>, vector<128x20xf32>, vector<128x20xf32> -> vector<128x180xf32>
    %c0_153 = arith.constant 0 : index
    %c0_154 = arith.constant 0 : index
    %92 = vector.load %arg5[%c0_153, %c0_154] : memref<180x32xf32, #tpu.memory_space<vmem>>, vector<180x32xf32>
    %cst_155 = arith.constant dense<0.000000e+00> : vector<128x32xf32>
    %93 = tpu.matmul %91, %92, %cst_155 {dimension_numbers = #tpu.dot_dimension_numbers<[1], [0], [0], [1], [0, 0, 1, 1], [], []>} : vector<128x180xf32>, vector<180x32xf32>, vector<128x32xf32> -> vector<128x32xf32>
    %c0_156 = arith.constant 0 : index
    %c0_157 = arith.constant 0 : index
    %94 = vector.load %arg6[%c0_156, %c0_157] : memref<1x32xf32, #tpu.memory_space<vmem>>, vector<1x32xf32>
    %95 = vector.broadcast %94 : vector<1x32xf32> to vector<128x32xf32>
    %96 = arith.addf %93, %95 : vector<128x32xf32>
    %cst_158 = arith.constant 0.000000e+00 : f32
    %97 = vector.broadcast %cst_158 : f32 to vector<128x32xf32>
    %98 = arith.maximumf %96, %97 : vector<128x32xf32>
    %99 = vector.extract_strided_slice %98 {offsets = [0, 0], sizes = [64, 32], strides = [1, 1]} : vector<128x32xf32> to vector<64x32xf32>
    %c0_159 = arith.constant 0 : index
    %c0_160 = arith.constant 0 : index
    %c0_161 = arith.constant 0 : index
    %100 = vector.load %arg7[%c0_159, %c0_160, %c0_161] : memref<3x64x32xf32, #tpu.memory_space<vmem>>, vector<1x64x32xf32>
    %101 = vector.shape_cast %100 : vector<1x64x32xf32> to vector<64x32xf32>
    %102 = arith.mulf %99, %101 : vector<64x32xf32>
    %cst_162 = arith.constant dense<0.000000e+00> : vector<64xf32>
    %103 = vector.multi_reduction <add>, %102, %cst_162 [1] : vector<64x32xf32> to vector<64xf32>
    %104 = vector.shape_cast %103 : vector<64xf32> to vector<64x1xf32>
    %cst_163 = arith.constant dense<0.000000e+00> : vector<1xf32>
    %105 = vector.multi_reduction <add>, %104, %cst_163 [0] : vector<64x1xf32> to vector<1xf32>
    %106 = vector.shape_cast %105 : vector<1xf32> to vector<1x1xf32>
    %c0_164 = arith.constant 0 : index
    %c0_165 = arith.constant 0 : index
    %107 = vector.load %arg8[%c0_164, %c0_165] : memref<3x1xf32, #tpu.memory_space<vmem>>, vector<1x1xf32>
    %108 = arith.addf %106, %107 : vector<1x1xf32>
    %c0_166 = arith.constant 0 : index
    %c0_167 = arith.constant 0 : index
    %109 = vector.load %arg9[%c0_166, %c0_167] : memref<3x2xf32, #tpu.memory_space<vmem>>, vector<1x1xf32>
    tpu.vector_store %arg9[%c0_166, %c0_167], %108 {strides = array<i32>} : memref<3x2xf32, #tpu.memory_space<vmem>>, vector<1x1xf32>,
    %c1_168 = arith.constant 1 : index
    %c0_169 = arith.constant 0 : index
    %c0_170 = arith.constant 0 : index
    %110 = vector.load %arg7[%c1_168, %c0_169, %c0_170] : memref<3x64x32xf32, #tpu.memory_space<vmem>>, vector<1x64x32xf32>
    %111 = vector.shape_cast %110 : vector<1x64x32xf32> to vector<64x32xf32>
    %112 = arith.mulf %99, %111 : vector<64x32xf32>
    %cst_171 = arith.constant dense<0.000000e+00> : vector<64xf32>
    %113 = vector.multi_reduction <add>, %112, %cst_171 [1] : vector<64x32xf32> to vector<64xf32>
    %114 = vector.shape_cast %113 : vector<64xf32> to vector<64x1xf32>
    %cst_172 = arith.constant dense<0.000000e+00> : vector<1xf32>
    %115 = vector.multi_reduction <add>, %114, %cst_172 [0] : vector<64x1xf32> to vector<1xf32>
    %116 = vector.shape_cast %115 : vector<1xf32> to vector<1x1xf32>
    %c1_173 = arith.constant 1 : index
    %c0_174 = arith.constant 0 : index
    %117 = vector.load %arg8[%c1_173, %c0_174] : memref<3x1xf32, #tpu.memory_space<vmem>>, vector<1x1xf32>
    %118 = arith.addf %116, %117 : vector<1x1xf32>
    %c1_175 = arith.constant 1 : index
    %c0_176 = arith.constant 0 : index
    %119 = vector.load %arg9[%c1_175, %c0_176] : memref<3x2xf32, #tpu.memory_space<vmem>>, vector<1x1xf32>
    tpu.vector_store %arg9[%c1_175, %c0_176], %118 {strides = array<i32>} : memref<3x2xf32, #tpu.memory_space<vmem>>, vector<1x1xf32>,
    %c2_177 = arith.constant 2 : index
    %c0_178 = arith.constant 0 : index
    %c0_179 = arith.constant 0 : index
    %120 = vector.load %arg7[%c2_177, %c0_178, %c0_179] : memref<3x64x32xf32, #tpu.memory_space<vmem>>, vector<1x64x32xf32>
    %121 = vector.shape_cast %120 : vector<1x64x32xf32> to vector<64x32xf32>
    %122 = arith.mulf %99, %121 : vector<64x32xf32>
    %cst_180 = arith.constant dense<0.000000e+00> : vector<64xf32>
    %123 = vector.multi_reduction <add>, %122, %cst_180 [1] : vector<64x32xf32> to vector<64xf32>
    %124 = vector.shape_cast %123 : vector<64xf32> to vector<64x1xf32>
    %cst_181 = arith.constant dense<0.000000e+00> : vector<1xf32>
    %125 = vector.multi_reduction <add>, %124, %cst_181 [0] : vector<64x1xf32> to vector<1xf32>
    %126 = vector.shape_cast %125 : vector<1xf32> to vector<1x1xf32>
    %c2_182 = arith.constant 2 : index
    %c0_183 = arith.constant 0 : index
    %127 = vector.load %arg8[%c2_182, %c0_183] : memref<3x1xf32, #tpu.memory_space<vmem>>, vector<1x1xf32>
    %128 = arith.addf %126, %127 : vector<1x1xf32>
    %c2_184 = arith.constant 2 : index
    %c0_185 = arith.constant 0 : index
    %129 = vector.load %arg9[%c2_184, %c0_185] : memref<3x2xf32, #tpu.memory_space<vmem>>, vector<1x1xf32>
    tpu.vector_store %arg9[%c2_184, %c0_185], %128 {strides = array<i32>} : memref<3x2xf32, #tpu.memory_space<vmem>>, vector<1x1xf32>,
    %130 = vector.extract_strided_slice %98 {offsets = [64, 0], sizes = [64, 32], strides = [1, 1]} : vector<128x32xf32> to vector<64x32xf32>
    %c0_186 = arith.constant 0 : index
    %c0_187 = arith.constant 0 : index
    %c0_188 = arith.constant 0 : index
    %131 = vector.load %arg7[%c0_186, %c0_187, %c0_188] : memref<3x64x32xf32, #tpu.memory_space<vmem>>, vector<1x64x32xf32>
    %132 = vector.shape_cast %131 : vector<1x64x32xf32> to vector<64x32xf32>
    %133 = arith.mulf %130, %132 : vector<64x32xf32>
    %cst_189 = arith.constant dense<0.000000e+00> : vector<64xf32>
    %134 = vector.multi_reduction <add>, %133, %cst_189 [1] : vector<64x32xf32> to vector<64xf32>
    %135 = vector.shape_cast %134 : vector<64xf32> to vector<64x1xf32>
    %cst_190 = arith.constant dense<0.000000e+00> : vector<1xf32>
    %136 = vector.multi_reduction <add>, %135, %cst_190 [0] : vector<64x1xf32> to vector<1xf32>
    %137 = vector.shape_cast %136 : vector<1xf32> to vector<1x1xf32>
    %c0_191 = arith.constant 0 : index
    %c0_192 = arith.constant 0 : index
    %138 = vector.load %arg8[%c0_191, %c0_192] : memref<3x1xf32, #tpu.memory_space<vmem>>, vector<1x1xf32>
    %139 = arith.addf %137, %138 : vector<1x1xf32>
    %c0_193 = arith.constant 0 : index
    %c1_194 = arith.constant 1 : index
    %140 = vector.load %arg9[%c0_193, %c1_194] : memref<3x2xf32, #tpu.memory_space<vmem>>, vector<1x1xf32>
    tpu.vector_store %arg9[%c0_193, %c1_194], %139 {strides = array<i32>} : memref<3x2xf32, #tpu.memory_space<vmem>>, vector<1x1xf32>,
    %c1_195 = arith.constant 1 : index
    %c0_196 = arith.constant 0 : index
    %c0_197 = arith.constant 0 : index
    %141 = vector.load %arg7[%c1_195, %c0_196, %c0_197] : memref<3x64x32xf32, #tpu.memory_space<vmem>>, vector<1x64x32xf32>
    %142 = vector.shape_cast %141 : vector<1x64x32xf32> to vector<64x32xf32>
    %143 = arith.mulf %130, %142 : vector<64x32xf32>
    %cst_198 = arith.constant dense<0.000000e+00> : vector<64xf32>
    %144 = vector.multi_reduction <add>, %143, %cst_198 [1] : vector<64x32xf32> to vector<64xf32>
    %145 = vector.shape_cast %144 : vector<64xf32> to vector<64x1xf32>
    %cst_199 = arith.constant dense<0.000000e+00> : vector<1xf32>
    %146 = vector.multi_reduction <add>, %145, %cst_199 [0] : vector<64x1xf32> to vector<1xf32>
    %147 = vector.shape_cast %146 : vector<1xf32> to vector<1x1xf32>
    %c1_200 = arith.constant 1 : index
    %c0_201 = arith.constant 0 : index
    %148 = vector.load %arg8[%c1_200, %c0_201] : memref<3x1xf32, #tpu.memory_space<vmem>>, vector<1x1xf32>
    %149 = arith.addf %147, %148 : vector<1x1xf32>
    %c1_202 = arith.constant 1 : index
    %c1_203 = arith.constant 1 : index
    %150 = vector.load %arg9[%c1_202, %c1_203] : memref<3x2xf32, #tpu.memory_space<vmem>>, vector<1x1xf32>
    tpu.vector_store %arg9[%c1_202, %c1_203], %149 {strides = array<i32>} : memref<3x2xf32, #tpu.memory_space<vmem>>, vector<1x1xf32>,
    %c2_204 = arith.constant 2 : index
    %c0_205 = arith.constant 0 : index
    %c0_206 = arith.constant 0 : index
    %151 = vector.load %arg7[%c2_204, %c0_205, %c0_206] : memref<3x64x32xf32, #tpu.memory_space<vmem>>, vector<1x64x32xf32>
    %152 = vector.shape_cast %151 : vector<1x64x32xf32> to vector<64x32xf32>
    %153 = arith.mulf %130, %152 : vector<64x32xf32>
    %cst_207 = arith.constant dense<0.000000e+00> : vector<64xf32>
    %154 = vector.multi_reduction <add>, %153, %cst_207 [1] : vector<64x32xf32> to vector<64xf32>
    %155 = vector.shape_cast %154 : vector<64xf32> to vector<64x1xf32>
    %cst_208 = arith.constant dense<0.000000e+00> : vector<1xf32>
    %156 = vector.multi_reduction <add>, %155, %cst_208 [0] : vector<64x1xf32> to vector<1xf32>
    %157 = vector.shape_cast %156 : vector<1xf32> to vector<1x1xf32>
    %c2_209 = arith.constant 2 : index
    %c0_210 = arith.constant 0 : index
    %158 = vector.load %arg8[%c2_209, %c0_210] : memref<3x1xf32, #tpu.memory_space<vmem>>, vector<1x1xf32>
    %159 = arith.addf %157, %158 : vector<1x1xf32>
    %c2_211 = arith.constant 2 : index
    %c1_212 = arith.constant 1 : index
    %160 = vector.load %arg9[%c2_211, %c1_212] : memref<3x2xf32, #tpu.memory_space<vmem>>, vector<1x1xf32>
    tpu.vector_store %arg9[%c2_211, %c1_212], %159 {strides = array<i32>} : memref<3x2xf32, #tpu.memory_space<vmem>>, vector<1x1xf32>,
    return
  }
}

</mosaic_0001>

<llo_original>
// kernel: ourcnn_forward.1
$region0: #{ourcnn_forward.1}
  #allocation0 [shape = 'u32[]', space=smem, size = 0x4, offset = 0x4, fixed_abs, tag = 'smem constant byte address 0x4 - core index']
  #allocation1 [shape = 'u32[144,128]{1,0:T(1,128)}', space=vmem, size = 0x12000, scoped, tag = 'internal scratch']
  #allocation2 [shape = 'f32[2,18,25,3]{3,2,1,0:T(8,128)}', space=vmem, size = 0x90000, scoped, tag = 'scratch operand']
  #allocation3 [shape = 'f32[32,16,12]{2,1,0:T(8,128)}', space=vmem, size = 0x40000, scoped, tag = 'scratch operand']
  #allocation4 [shape = 'f32[2,10,17,12]{3,2,1,0:T(8,128)}', space=vmem, size = 0x3c000, scoped, tag = 'scratch operand']
  #allocation5 [shape = 'f32[2,10,17,20]{3,2,1,0:T(8,128)}', space=vmem, size = 0x3c000, scoped, tag = 'scratch operand']
  %s0 = inlined_call_operand.vmem [shape: f32[2,16,16,3], index: 0, kind: input, shape index: {}]
  %s1 = inlined_call_operand.vmem [shape: f32[27,12], index: 1, kind: input, shape index: {}]
  %s2 = inlined_call_operand.vmem [shape: f32[1,12], index: 2, kind: input, shape index: {}]
  %s3 = inlined_call_operand.vmem [shape: f32[108,20], index: 3, kind: input, shape index: {}]
  %s4 = inlined_call_operand.vmem [shape: f32[1,20], index: 4, kind: input, shape index: {}]
  %s5 = inlined_call_operand.vmem [shape: f32[180,32], index: 5, kind: input, shape index: {}]
  %s6 = inlined_call_operand.vmem [shape: f32[1,32], index: 6, kind: input, shape index: {}]
  %s7 = inlined_call_operand.vmem [shape: f32[3,64,32], index: 7, kind: input, shape index: {}]
  %s8 = inlined_call_operand.vmem [shape: f32[3,1], index: 8, kind: input, shape index: {}]
  %s9 = inlined_call_operand.vmem [shape: f32[3,2], index: 9, kind: output, shape index: {}]
  %s10 = sld [smem:[#allocation0]]
  $region46: #{ourcnn_forward.1} parent=0
    _
  %s12 = ssub.s32 1, %s10
  %s13 = scalar_select 0, %s12, %s10
  // Predicated region
  $region2: #{ourcnn_forward.1} parent=0 // pred_check
    _
  $region3: #{ourcnn_forward.1} parent=0 // pred_check_branch
    %15 = sbr.rel (0) target = $region5
  $region4: #{ourcnn_forward.1} parent=0 // pred_region
    _
  $region5: #{ourcnn_forward.1} parent=0 // pred_fallthru
    _
  // Predicated region
  $region6: #{ourcnn_forward.1} parent=0 // pred_check
    _
  $region7: #{ourcnn_forward.1} parent=0 // pred_check_branch
    %17 = sbr.rel (0) target = $region9
  $region8: #{ourcnn_forward.1} parent=0 // pred_region
    _
  $region9: #{ourcnn_forward.1} parent=0 // pred_fallthru
    _
  // Predicated region
  $region10: #{ourcnn_forward.1} parent=0 // pred_check
    _
  $region11: #{ourcnn_forward.1} parent=0 // pred_check_branch
    %19 = sbr.rel (0) target = $region13
  $region12: #{ourcnn_forward.1} parent=0 // pred_region
    _
  $region13: #{ourcnn_forward.1} parent=0 // pred_fallthru
    _
  // Predicated region
  $region14: #{ourcnn_forward.1} parent=0 // pred_check
    _
  $region15: #{ourcnn_forward.1} parent=0 // pred_check_branch
    %21 = sbr.rel (0) target = $region17
  $region16: #{ourcnn_forward.1} parent=0 // pred_region
    _
  $region17: #{ourcnn_forward.1} parent=0 // pred_fallthru
    _
  // Predicated region
  $region18: #{ourcnn_forward.1} parent=0 // pred_check
    _
  $region19: #{ourcnn_forward.1} parent=0 // pred_check_branch
    %23 = sbr.rel (0) target = $region21
  $region20: #{ourcnn_forward.1} parent=0 // pred_region
    _
  $region21: #{ourcnn_forward.1} parent=0 // pred_fallthru
    _
  // Predicated region
  $region22: #{ourcnn_forward.1} parent=0 // pred_check
    _
  $region23: #{ourcnn_forward.1} parent=0 // pred_check_branch
    %25 = sbr.rel (0) target = $region25
  $region24: #{ourcnn_forward.1} parent=0 // pred_region
    _
  $region25: #{ourcnn_forward.1} parent=0 // pred_fallthru
    _
  // Predicated region
  $region26: #{ourcnn_forward.1} parent=0 // pred_check
    _
  $region27: #{ourcnn_forward.1} parent=0 // pred_check_branch
    %27 = sbr.rel (0) target = $region29
  $region28: #{ourcnn_forward.1} parent=0 // pred_region
    _
  $region29: #{ourcnn_forward.1} parent=0 // pred_fallthru
    _
  // Predicated region
  $region30: #{ourcnn_forward.1} parent=0 // pred_check
    _
  $region31: #{ourcnn_forward.1} parent=0 // pred_check_branch
    %29 = sbr.rel (0) target = $region33
  $region32: #{ourcnn_forward.1} parent=0 // pred_region
    _
  $region33: #{ourcnn_forward.1} parent=0 // pred_fallthru
    _
  // Predicated region
  $region34: #{ourcnn_forward.1} parent=0 // pred_check
    _
  $region35: #{ourcnn_forward.1} parent=0 // pred_check_branch
    %31 = sbr.rel (0) target = $region37
  $region36: #{ourcnn_forward.1} parent=0 // pred_region
    _
  $region37: #{ourcnn_forward.1} parent=0 // pred_fallthru
    _
  %vm32 = vcmask 23552
  %33 = vst.msk [vmem:[#allocation2] sm:$0xff] %vm32, 0.0
  %34 = vst.msk [vmem:[#allocation2 + $0x8] sm:$0xff] %vm32, 0.0
  %35 = vst.msk [vmem:[#allocation2 + $0x10] sm:$0xff] %vm32, 0.0
  %vm36 = vcmask 16384
  %37 = vst.msk [vmem:[#allocation2 + $0x18] sm:$0x1] %vm36, 0.0
  %38 = vst.msk [vmem:[#allocation2 + $0x20] sm:$0xff] %vm32, 0.0
  %39 = vst.msk [vmem:[#allocation2 + $0x28] sm:$0xff] %vm32, 0.0
  %40 = vst.msk [vmem:[#allocation2 + $0x30] sm:$0xff] %vm32, 0.0
  %41 = vst.msk [vmem:[#allocation2 + $0x38] sm:$0x1] %vm36, 0.0
  %42 = vst.msk [vmem:[#allocation2 + $0x40] sm:$0xff] %vm32, 0.0
  %43 = vst.msk [vmem:[#allocation2 + $0x48] sm:$0xff] %vm32, 0.0
  %44 = vst.msk [vmem:[#allocation2 + $0x50] sm:$0xff] %vm32, 0.0
  %45 = vst.msk [vmem:[#allocation2 + $0x58] sm:$0x1] %vm36, 0.0
  %46 = vst.msk [vmem:[#allocation2 + $0x60] sm:$0xff] %vm32, 0.0
  %47 = vst.msk [vmem:[#allocation2 + $0x68] sm:$0xff] %vm32, 0.0
  %48 = vst.msk [vmem:[#allocation2 + $0x70] sm:$0xff] %vm32, 0.0
  %49 = vst.msk [vmem:[#allocation2 + $0x78] sm:$0x1] %vm36, 0.0
  %50 = vst.msk [vmem:[#allocation2 + $0x80] sm:$0xff] %vm32, 0.0
  %51 = vst.msk [vmem:[#allocation2 + $0x88] sm:$0xff] %vm32, 0.0
  %52 = vst.msk [vmem:[#allocation2 + $0x90] sm:$0xff] %vm32, 0.0
  %53 = vst.msk [vmem:[#allocation2 + $0x98] sm:$0x1] %vm36, 0.0
  %54 = vst.msk [vmem:[#allocation2 + $0xa0] sm:$0xff] %vm32, 0.0
  %55 = vst.msk [vmem:[#allocation2 + $0xa8] sm:$0xff] %vm32, 0.0
  %56 = vst.msk [vmem:[#allocation2 + $0xb0] sm:$0xff] %vm32, 0.0
  %57 = vst.msk [vmem:[#allocation2 + $0xb8] sm:$0x1] %vm36, 0.0
  %58 = vst.msk [vmem:[#allocation2 + $0xc0] sm:$0xff] %vm32, 0.0
  %59 = vst.msk [vmem:[#allocation2 + $0xc8] sm:$0xff] %vm32, 0.0
  %60 = vst.msk [vmem:[#allocation2 + $0xd0] sm:$0xff] %vm32, 0.0
  %61 = vst.msk [vmem:[#allocation2 + $0xd8] sm:$0x1] %vm36, 0.0
  %62 = vst.msk [vmem:[#allocation2 + $0xe0] sm:$0xff] %vm32, 0.0
  %63 = vst.msk [vmem:[#allocation2 + $0xe8] sm:$0xff] %vm32, 0.0
  %64 = vst.msk [vmem:[#allocation2 + $0xf0] sm:$0xff] %vm32, 0.0
  %65 = vst.msk [vmem:[#allocation2 + $0xf8] sm:$0x1] %vm36, 0.0
  %66 = vst.msk [vmem:[#allocation2 + $0x100] sm:$0xff] %vm32, 0.0
  %67 = vst.msk [vmem:[#allocation2 + $0x108] sm:$0xff] %vm32, 0.0
  %68 = vst.msk [vmem:[#allocation2 + $0x110] sm:$0xff] %vm32, 0.0
  %69 = vst.msk [vmem:[#allocation2 + $0x118] sm:$0x1] %vm36, 0.0
  %70 = vst.msk [vmem:[#allocation2 + $0x120] sm:$0xff] %vm32, 0.0
  %71 = vst.msk [vmem:[#allocation2 + $0x128] sm:$0xff] %vm32, 0.0
  %72 = vst.msk [vmem:[#allocation2 + $0x130] sm:$0xff] %vm32, 0.0
  %73 = vst.msk [vmem:[#allocation2 + $0x138] sm:$0x1] %vm36, 0.0
  %74 = vst.msk [vmem:[#allocation2 + $0x140] sm:$0xff] %vm32, 0.0
  %75 = vst.msk [vmem:[#allocation2 + $0x148] sm:$0xff] %vm32, 0.0
  %76 = vst.msk [vmem:[#allocation2 + $0x150] sm:$0xff] %vm32, 0.0
  %77 = vst.msk [vmem:[#allocation2 + $0x158] sm:$0x1] %vm36, 0.0
  %78 = vst.msk [vmem:[#allocation2 + $0x160] sm:$0xff] %vm32, 0.0
  %79 = vst.msk [vmem:[#allocation2 + $0x168] sm:$0xff] %vm32, 0.0
  %80 = vst.msk [vmem:[#allocation2 + $0x170] sm:$0xff] %vm32, 0.0
  %81 = vst.msk [vmem:[#allocation2 + $0x178] sm:$0x1] %vm36, 0.0
  %82 = vst.msk [vmem:[#allocation2 + $0x180] sm:$0xff] %vm32, 0.0
  %83 = vst.msk [vmem:[#allocation2 + $0x188] sm:$0xff] %vm32, 0.0
  %84 = vst.msk [vmem:[#allocation2 + $0x190] sm:$0xff] %vm32, 0.0
  %85 = vst.msk [vmem:[#allocation2 + $0x198] sm:$0x1] %vm36, 0.0
  %86 = vst.msk [vmem:[#allocation2 + $0x1a0] sm:$0xff] %vm32, 0.0
  %87 = vst.msk [vmem:[#allocation2 + $0x1a8] sm:$0xff] %vm32, 0.0
  %88 = vst.msk [vmem:[#allocation2 + $0x1b0] sm:$0xff] %vm32, 0.0
  %89 = vst.msk [vmem:[#allocation2 + $0x1b8] sm:$0x1] %vm36, 0.0
  %90 = vst.msk [vmem:[#allocation2 + $0x1c0] sm:$0xff] %vm32, 0.0
  %91 = vst.msk [vmem:[#allocation2 + $0x1c8] sm:$0xff] %vm32, 0.0
  %92 = vst.msk [vmem:[#allocation2 + $0x1d0] sm:$0xff] %vm32, 0.0
  %93 = vst.msk [vmem:[#allocation2 + $0x1d8] sm:$0x1] %vm36, 0.0
  %94 = vst.msk [vmem:[#allocation2 + $0x1e0] sm:$0xff] %vm32, 0.0
  %95 = vst.msk [vmem:[#allocation2 + $0x1e8] sm:$0xff] %vm32, 0.0
  %96 = vst.msk [vmem:[#allocation2 + $0x1f0] sm:$0xff] %vm32, 0.0
  %97 = vst.msk [vmem:[#allocation2 + $0x1f8] sm:$0x1] %vm36, 0.0
  %98 = vst.msk [vmem:[#allocation2 + $0x200] sm:$0xff] %vm32, 0.0
  %99 = vst.msk [vmem:[#allocation2 + $0x208] sm:$0xff] %vm32, 0.0
  %100 = vst.msk [vmem:[#allocation2 + $0x210] sm:$0xff] %vm32, 0.0
  %101 = vst.msk [vmem:[#allocation2 + $0x218] sm:$0x1] %vm36, 0.0
  %102 = vst.msk [vmem:[#allocation2 + $0x220] sm:$0xff] %vm32, 0.0
  %103 = vst.msk [vmem:[#allocation2 + $0x228] sm:$0xff] %vm32, 0.0
  %104 = vst.msk [vmem:[#allocation2 + $0x230] sm:$0xff] %vm32, 0.0
  %105 = vst.msk [vmem:[#allocation2 + $0x238] sm:$0x1] %vm36, 0.0
  %106 = vst.msk [vmem:[#allocation2 + $0x240] sm:$0xff] %vm32, 0.0
  %107 = vst.msk [vmem:[#allocation2 + $0x248] sm:$0xff] %vm32, 0.0
  %108 = vst.msk [vmem:[#allocation2 + $0x250] sm:$0xff] %vm32, 0.0
  %109 = vst.msk [vmem:[#allocation2 + $0x258] sm:$0x1] %vm36, 0.0
  %110 = vst.msk [vmem:[#allocation2 + $0x260] sm:$0xff] %vm32, 0.0
  %111 = vst.msk [vmem:[#allocation2 + $0x268] sm:$0xff] %vm32, 0.0
  %112 = vst.msk [vmem:[#allocation2 + $0x270] sm:$0xff] %vm32, 0.0
  %113 = vst.msk [vmem:[#allocation2 + $0x278] sm:$0x1] %vm36, 0.0
  %114 = vst.msk [vmem:[#allocation2 + $0x280] sm:$0xff] %vm32, 0.0
  %115 = vst.msk [vmem:[#allocation2 + $0x288] sm:$0xff] %vm32, 0.0
  %116 = vst.msk [vmem:[#allocation2 + $0x290] sm:$0xff] %vm32, 0.0
  %117 = vst.msk [vmem:[#allocation2 + $0x298] sm:$0x1] %vm36, 0.0
  %118 = vst.msk [vmem:[#allocation2 + $0x2a0] sm:$0xff] %vm32, 0.0
  %119 = vst.msk [vmem:[#allocation2 + $0x2a8] sm:$0xff] %vm32, 0.0
  %120 = vst.msk [vmem:[#allocation2 + $0x2b0] sm:$0xff] %vm32, 0.0
  %121 = vst.msk [vmem:[#allocation2 + $0x2b8] sm:$0x1] %vm36, 0.0
  %122 = vst.msk [vmem:[#allocation2 + $0x2c0] sm:$0xff] %vm32, 0.0
  %123 = vst.msk [vmem:[#allocation2 + $0x2c8] sm:$0xff] %vm32, 0.0
  %124 = vst.msk [vmem:[#allocation2 + $0x2d0] sm:$0xff] %vm32, 0.0
  %125 = vst.msk [vmem:[#allocation2 + $0x2d8] sm:$0x1] %vm36, 0.0
  %126 = vst.msk [vmem:[#allocation2 + $0x2e0] sm:$0xff] %vm32, 0.0
  %127 = vst.msk [vmem:[#allocation2 + $0x2e8] sm:$0xff] %vm32, 0.0
  %128 = vst.msk [vmem:[#allocation2 + $0x2f0] sm:$0xff] %vm32, 0.0
  %129 = vst.msk [vmem:[#allocation2 + $0x2f8] sm:$0x1] %vm36, 0.0
  %130 = vst.msk [vmem:[#allocation2 + $0x300] sm:$0xff] %vm32, 0.0
  %131 = vst.msk [vmem:[#allocation2 + $0x308] sm:$0xff] %vm32, 0.0
  %132 = vst.msk [vmem:[#allocation2 + $0x310] sm:$0xff] %vm32, 0.0
  %133 = vst.msk [vmem:[#allocation2 + $0x318] sm:$0x1] %vm36, 0.0
  %134 = vst.msk [vmem:[#allocation2 + $0x320] sm:$0xff] %vm32, 0.0
  %135 = vst.msk [vmem:[#allocation2 + $0x328] sm:$0xff] %vm32, 0.0
  %136 = vst.msk [vmem:[#allocation2 + $0x330] sm:$0xff] %vm32, 0.0
  %137 = vst.msk [vmem:[#allocation2 + $0x338] sm:$0x1] %vm36, 0.0
  %138 = vst.msk [vmem:[#allocation2 + $0x340] sm:$0xff] %vm32, 0.0
  %139 = vst.msk [vmem:[#allocation2 + $0x348] sm:$0xff] %vm32, 0.0
  %140 = vst.msk [vmem:[#allocation2 + $0x350] sm:$0xff] %vm32, 0.0
  %141 = vst.msk [vmem:[#allocation2 + $0x358] sm:$0x1] %vm36, 0.0
  %142 = vst.msk [vmem:[#allocation2 + $0x360] sm:$0xff] %vm32, 0.0
  %143 = vst.msk [vmem:[#allocation2 + $0x368] sm:$0xff] %vm32, 0.0
  %144 = vst.msk [vmem:[#allocation2 + $0x370] sm:$0xff] %vm32, 0.0
  %145 = vst.msk [vmem:[#allocation2 + $0x378] sm:$0x1] %vm36, 0.0
  %146 = vst.msk [vmem:[#allocation2 + $0x380] sm:$0xff] %vm32, 0.0
  %147 = vst.msk [vmem:[#allocation2 + $0x388] sm:$0xff] %vm32, 0.0
  %148 = vst.msk [vmem:[#allocation2 + $0x390] sm:$0xff] %vm32, 0.0
  %149 = vst.msk [vmem:[#allocation2 + $0x398] sm:$0x1] %vm36, 0.0
  %150 = vst.msk [vmem:[#allocation2 + $0x3a0] sm:$0xff] %vm32, 0.0
  %151 = vst.msk [vmem:[#allocation2 + $0x3a8] sm:$0xff] %vm32, 0.0
  %152 = vst.msk [vmem:[#allocation2 + $0x3b0] sm:$0xff] %vm32, 0.0
  %153 = vst.msk [vmem:[#allocation2 + $0x3b8] sm:$0x1] %vm36, 0.0
  %154 = vst.msk [vmem:[#allocation2 + $0x3c0] sm:$0xff] %vm32, 0.0
  %155 = vst.msk [vmem:[#allocation2 + $0x3c8] sm:$0xff] %vm32, 0.0
  %156 = vst.msk [vmem:[#allocation2 + $0x3d0] sm:$0xff] %vm32, 0.0
  %157 = vst.msk [vmem:[#allocation2 + $0x3d8] sm:$0x1] %vm36, 0.0
  %158 = vst.msk [vmem:[#allocation2 + $0x3e0] sm:$0xff] %vm32, 0.0
  %159 = vst.msk [vmem:[#allocation2 + $0x3e8] sm:$0xff] %vm32, 0.0
  %160 = vst.msk [vmem:[#allocation2 + $0x3f0] sm:$0xff] %vm32, 0.0
  %161 = vst.msk [vmem:[#allocation2 + $0x3f8] sm:$0x1] %vm36, 0.0
  %162 = vst.msk [vmem:[#allocation2 + $0x400] sm:$0xff] %vm32, 0.0
  %163 = vst.msk [vmem:[#allocation2 + $0x408] sm:$0xff] %vm32, 0.0
  %164 = vst.msk [vmem:[#allocation2 + $0x410] sm:$0xff] %vm32, 0.0
  %165 = vst.msk [vmem:[#allocation2 + $0x418] sm:$0x1] %vm36, 0.0
  %166 = vst.msk [vmem:[#allocation2 + $0x420] sm:$0xff] %vm32, 0.0
  %167 = vst.msk [vmem:[#allocation2 + $0x428] sm:$0xff] %vm32, 0.0
  %168 = vst.msk [vmem:[#allocation2 + $0x430] sm:$0xff] %vm32, 0.0
  %169 = vst.msk [vmem:[#allocation2 + $0x438] sm:$0x1] %vm36, 0.0
  %170 = vst.msk [vmem:[#allocation2 + $0x440] sm:$0xff] %vm32, 0.0
  %171 = vst.msk [vmem:[#allocation2 + $0x448] sm:$0xff] %vm32, 0.0
  %172 = vst.msk [vmem:[#allocation2 + $0x450] sm:$0xff] %vm32, 0.0
  %173 = vst.msk [vmem:[#allocation2 + $0x458] sm:$0x1] %vm36, 0.0
  %174 = vst.msk [vmem:[#allocation2 + $0x460] sm:$0xff] %vm32, 0.0
  %175 = vst.msk [vmem:[#allocation2 + $0x468] sm:$0xff] %vm32, 0.0
  %176 = vst.msk [vmem:[#allocation2 + $0x470] sm:$0xff] %vm32, 0.0
  %177 = vst.msk [vmem:[#allocation2 + $0x478] sm:$0x1] %vm36, 0.0
  %v178 = vld [vmem:[%s0] sm:$0xff]
  %v179 = vld [vmem:[%s0 + $0x8] sm:$0xff]
  %v180 = vld [vmem:[%s0 + $0x10] sm:$0xff]
  %v181 = vld [vmem:[%s0 + $0x18] sm:$0xff]
  %v182 = vld [vmem:[%s0 + $0x20] sm:$0xff]
  %v183 = vld [vmem:[%s0 + $0x28] sm:$0xff]
  %v184 = vld [vmem:[%s0 + $0x30] sm:$0xff]
  %v185 = vld [vmem:[%s0 + $0x38] sm:$0xff]
  %v186 = vld [vmem:[%s0 + $0x40] sm:$0xff]
  %v187 = vld [vmem:[%s0 + $0x48] sm:$0xff]
  %v188 = vld [vmem:[%s0 + $0x50] sm:$0xff]
  %v189 = vld [vmem:[%s0 + $0x58] sm:$0xff]
  %v190 = vld [vmem:[%s0 + $0x60] sm:$0xff]
  %v191 = vld [vmem:[%s0 + $0x68] sm:$0xff]
  %v192 = vld [vmem:[%s0 + $0x70] sm:$0xff]
  %v193 = vld [vmem:[%s0 + $0x78] sm:$0xff]
  %v194 = vld [vmem:[%s0 + $0x80] sm:$0xff]
  %v195 = vld [vmem:[%s0 + $0x88] sm:$0xff]
  %v196 = vld [vmem:[%s0 + $0x90] sm:$0xff]
  %v197 = vld [vmem:[%s0 + $0x98] sm:$0xff]
  %v198 = vld [vmem:[%s0 + $0xa0] sm:$0xff]
  %v199 = vld [vmem:[%s0 + $0xa8] sm:$0xff]
  %v200 = vld [vmem:[%s0 + $0xb0] sm:$0xff]
  %v201 = vld [vmem:[%s0 + $0xb8] sm:$0xff]
  %v202 = vld [vmem:[%s0 + $0xc0] sm:$0xff]
  %v203 = vld [vmem:[%s0 + $0xc8] sm:$0xff]
  %v204 = vld [vmem:[%s0 + $0xd0] sm:$0xff]
  %v205 = vld [vmem:[%s0 + $0xd8] sm:$0xff]
  %v206 = vld [vmem:[%s0 + $0xe0] sm:$0xff]
  %v207 = vld [vmem:[%s0 + $0xe8] sm:$0xff]
  %v208 = vld [vmem:[%s0 + $0xf0] sm:$0xff]
  %v209 = vld [vmem:[%s0 + $0xf8] sm:$0xff]
  %v210 = vld [vmem:[%s0 + $0x100] sm:$0xff]
  %v211 = vld [vmem:[%s0 + $0x108] sm:$0xff]
  %v212 = vld [vmem:[%s0 + $0x110] sm:$0xff]
  %v213 = vld [vmem:[%s0 + $0x118] sm:$0xff]
  %v214 = vld [vmem:[%s0 + $0x120] sm:$0xff]
  %v215 = vld [vmem:[%s0 + $0x128] sm:$0xff]
  %v216 = vld [vmem:[%s0 + $0x130] sm:$0xff]
  %v217 = vld [vmem:[%s0 + $0x138] sm:$0xff]
  %v218 = vld [vmem:[%s0 + $0x140] sm:$0xff]
  %v219 = vld [vmem:[%s0 + $0x148] sm:$0xff]
  %v220 = vld [vmem:[%s0 + $0x150] sm:$0xff]
  %v221 = vld [vmem:[%s0 + $0x158] sm:$0xff]
  %v222 = vld [vmem:[%s0 + $0x160] sm:$0xff]
  %v223 = vld [vmem:[%s0 + $0x168] sm:$0xff]
  %v224 = vld [vmem:[%s0 + $0x170] sm:$0xff]
  %v225 = vld [vmem:[%s0 + $0x178] sm:$0xff]
  %v226 = vld [vmem:[%s0 + $0x180] sm:$0xff]
  %v227 = vld [vmem:[%s0 + $0x188] sm:$0xff]
  %v228 = vld [vmem:[%s0 + $0x190] sm:$0xff]
  %v229 = vld [vmem:[%s0 + $0x198] sm:$0xff]
  %v230 = vld [vmem:[%s0 + $0x1a0] sm:$0xff]
  %v231 = vld [vmem:[%s0 + $0x1a8] sm:$0xff]
  %v232 = vld [vmem:[%s0 + $0x1b0] sm:$0xff]
  %v233 = vld [vmem:[%s0 + $0x1b8] sm:$0xff]
  %v234 = vld [vmem:[%s0 + $0x1c0] sm:$0xff]
  %v235 = vld [vmem:[%s0 + $0x1c8] sm:$0xff]
  %v236 = vld [vmem:[%s0 + $0x1d0] sm:$0xff]
  %v237 = vld [vmem:[%s0 + $0x1d8] sm:$0xff]
  %v238 = vld [vmem:[%s0 + $0x1e0] sm:$0xff]
  %v239 = vld [vmem:[%s0 + $0x1e8] sm:$0xff]
  %v240 = vld [vmem:[%s0 + $0x1f0] sm:$0xff]
  %v241 = vld [vmem:[%s0 + $0x1f8] sm:$0xff]
  %s242 = scalar_lea.vmem [#allocation2], 32
  %243 = vst.msk [vmem:[%s242 + $0x8] sm:$0xff] %vm32, %v178
  %244 = vst.msk [vmem:[%s242 + $0x10] sm:$0xff] %vm32, %v179
  %245 = vst.msk [vmem:[%s242 + $0x28] sm:$0xff] %vm32, %v180
  %246 = vst.msk [vmem:[%s242 + $0x30] sm:$0xff] %vm32, %v181
  %247 = vst.msk [vmem:[%s242 + $0x48] sm:$0xff] %vm32, %v182
  %248 = vst.msk [vmem:[%s242 + $0x50] sm:$0xff] %vm32, %v183
  %249 = vst.msk [vmem:[%s242 + $0x68] sm:$0xff] %vm32, %v184
  %250 = vst.msk [vmem:[%s242 + $0x70] sm:$0xff] %vm32, %v185
  %251 = vst.msk [vmem:[%s242 + $0x88] sm:$0xff] %vm32, %v186
  %252 = vst.msk [vmem:[%s242 + $0x90] sm:$0xff] %vm32, %v187
  %253 = vst.msk [vmem:[%s242 + $0xa8] sm:$0xff] %vm32, %v188
  %254 = vst.msk [vmem:[%s242 + $0xb0] sm:$0xff] %vm32, %v189
  %255 = vst.msk [vmem:[%s242 + $0xc8] sm:$0xff] %vm32, %v190
  %256 = vst.msk [vmem:[%s242 + $0xd0] sm:$0xff] %vm32, %v191
  %257 = vst.msk [vmem:[%s242 + $0xe8] sm:$0xff] %vm32, %v192
  %258 = vst.msk [vmem:[%s242 + $0xf0] sm:$0xff] %vm32, %v193
  %259 = vst.msk [vmem:[%s242 + $0x108] sm:$0xff] %vm32, %v194
  %260 = vst.msk [vmem:[%s242 + $0x110] sm:$0xff] %vm32, %v195
  %261 = vst.msk [vmem:[%s242 + $0x128] sm:$0xff] %vm32, %v196
  %262 = vst.msk [vmem:[%s242 + $0x130] sm:$0xff] %vm32, %v197
  %263 = vst.msk [vmem:[%s242 + $0x148] sm:$0xff] %vm32, %v198
  %264 = vst.msk [vmem:[%s242 + $0x150] sm:$0xff] %vm32, %v199
  %265 = vst.msk [vmem:[%s242 + $0x168] sm:$0xff] %vm32, %v200
  %266 = vst.msk [vmem:[%s242 + $0x170] sm:$0xff] %vm32, %v201
  %267 = vst.msk [vmem:[%s242 + $0x188] sm:$0xff] %vm32, %v202
  %268 = vst.msk [vmem:[%s242 + $0x190] sm:$0xff] %vm32, %v203
  %269 = vst.msk [vmem:[%s242 + $0x1a8] sm:$0xff] %vm32, %v204
  %270 = vst.msk [vmem:[%s242 + $0x1b0] sm:$0xff] %vm32, %v205
  %271 = vst.msk [vmem:[%s242 + $0x1c8] sm:$0xff] %vm32, %v206
  %272 = vst.msk [vmem:[%s242 + $0x1d0] sm:$0xff] %vm32, %v207
  %273 = vst.msk [vmem:[%s242 + $0x1e8] sm:$0xff] %vm32, %v208
  %274 = vst.msk [vmem:[%s242 + $0x1f0] sm:$0xff] %vm32, %v209
  %275 = vst.msk [vmem:[%s242 + $0x248] sm:$0xff] %vm32, %v210
  %276 = vst.msk [vmem:[%s242 + $0x250] sm:$0xff] %vm32, %v211
  %277 = vst.msk [vmem:[%s242 + $0x268] sm:$0xff] %vm32, %v212
  %278 = vst.msk [vmem:[%s242 + $0x270] sm:$0xff] %vm32, %v213
  %279 = vst.msk [vmem:[%s242 + $0x288] sm:$0xff] %vm32, %v214
  %280 = vst.msk [vmem:[%s242 + $0x290] sm:$0xff] %vm32, %v215
  %281 = vst.msk [vmem:[%s242 + $0x2a8] sm:$0xff] %vm32, %v216
  %282 = vst.msk [vmem:[%s242 + $0x2b0] sm:$0xff] %vm32, %v217
  %283 = vst.msk [vmem:[%s242 + $0x2c8] sm:$0xff] %vm32, %v218
  %284 = vst.msk [vmem:[%s242 + $0x2d0] sm:$0xff] %vm32, %v219
  %285 = vst.msk [vmem:[%s242 + $0x2e8] sm:$0xff] %vm32, %v220
  %286 = vst.msk [vmem:[%s242 + $0x2f0] sm:$0xff] %vm32, %v221
  %287 = vst.msk [vmem:[%s242 + $0x308] sm:$0xff] %vm32, %v222
  %288 = vst.msk [vmem:[%s242 + $0x310] sm:$0xff] %vm32, %v223
  %289 = vst.msk [vmem:[%s242 + $0x328] sm:$0xff] %vm32, %v224
  %290 = vst.msk [vmem:[%s242 + $0x330] sm:$0xff] %vm32, %v225
  %291 = vst.msk [vmem:[%s242 + $0x348] sm:$0xff] %vm32, %v226
  %292 = vst.msk [vmem:[%s242 + $0x350] sm:$0xff] %vm32, %v227
  %293 = vst.msk [vmem:[%s242 + $0x368] sm:$0xff] %vm32, %v228
  %294 = vst.msk [vmem:[%s242 + $0x370] sm:$0xff] %vm32, %v229
  %295 = vst.msk [vmem:[%s242 + $0x388] sm:$0xff] %vm32, %v230
  %296 = vst.msk [vmem:[%s242 + $0x390] sm:$0xff] %vm32, %v231
  %297 = vst.msk [vmem:[%s242 + $0x3a8] sm:$0xff] %vm32, %v232
  %298 = vst.msk [vmem:[%s242 + $0x3b0] sm:$0xff] %vm32, %v233
  %299 = vst.msk [vmem:[%s242 + $0x3c8] sm:$0xff] %vm32, %v234
  %300 = vst.msk [vmem:[%s242 + $0x3d0] sm:$0xff] %vm32, %v235
  %301 = vst.msk [vmem:[%s242 + $0x3e8] sm:$0xff] %vm32, %v236
  %302 = vst.msk [vmem:[%s242 + $0x3f0] sm:$0xff] %vm32, %v237
  %303 = vst.msk [vmem:[%s242 + $0x408] sm:$0xff] %vm32, %v238
  %304 = vst.msk [vmem:[%s242 + $0x410] sm:$0xff] %vm32, %v239
  %305 = vst.msk [vmem:[%s242 + $0x428] sm:$0xff] %vm32, %v240
  %306 = vst.msk [vmem:[%s242 + $0x430] sm:$0xff] %vm32, %v241
  %v307 = vld [vmem:[#allocation2 + $0x7] sm:$0xff]
  %v308 = vld [vmem:[#allocation2 + $0xf] sm:$0xff]
  %v309 = vld [vmem:[#allocation2 + $0x27] sm:$0xff]
  %v310 = vld [vmem:[#allocation2 + $0x2f] sm:$0xff]
  %v311 = vld [vmem:[#allocation2 + $0x47] sm:$0xff]
  %v312 = vld [vmem:[#allocation2 + $0x4f] sm:$0xff]
  %v313 = vld [vmem:[#allocation2 + $0x67] sm:$0xff]
  %v314 = vld [vmem:[#allocation2 + $0x6f] sm:$0xff]
  %v315 = vld [vmem:[#allocation2 + $0x87] sm:$0xff]
  %v316 = vld [vmem:[#allocation2 + $0x8f] sm:$0xff]
  %v317 = vld [vmem:[#allocation2 + $0xa7] sm:$0xff]
  %v318 = vld [vmem:[#allocation2 + $0xaf] sm:$0xff]
  %v319 = vld [vmem:[#allocation2 + $0xc7] sm:$0xff]
  %v320 = vld [vmem:[#allocation2 + $0xcf] sm:$0xff]
  %v321 = vld [vmem:[#allocation2 + $0xe7] sm:$0xff]
  %v322 = vld [vmem:[#allocation2 + $0xef] sm:$0xff]
  %v323 = vld [vmem:[#allocation2 + $0x107] sm:$0xff]
  %v324 = vld [vmem:[#allocation2 + $0x10f] sm:$0xff]
  %v325 = vld [vmem:[#allocation2 + $0x127] sm:$0xff]
  %v326 = vld [vmem:[#allocation2 + $0x12f] sm:$0xff]
  %v327 = vld [vmem:[#allocation2 + $0x147] sm:$0xff]
  %v328 = vld [vmem:[#allocation2 + $0x14f] sm:$0xff]
  %v329 = vld [vmem:[#allocation2 + $0x167] sm:$0xff]
  %v330 = vld [vmem:[#allocation2 + $0x16f] sm:$0xff]
  %v331 = vld [vmem:[#allocation2 + $0x187] sm:$0xff]
  %v332 = vld [vmem:[#allocation2 + $0x18f] sm:$0xff]
  %v333 = vld [vmem:[#allocation2 + $0x1a7] sm:$0xff]
  %v334 = vld [vmem:[#allocation2 + $0x1af] sm:$0xff]
  %v335 = vld [vmem:[#allocation2 + $0x1c7] sm:$0xff]
  %v336 = vld [vmem:[#allocation2 + $0x1cf] sm:$0xff]
  %v337 = vld [vmem:[#allocation2 + $0x1e7] sm:$0xff]
  %v338 = vld [vmem:[#allocation2 + $0x1ef] sm:$0xff]
  %v339 = vld [vmem:[#allocation2 + $0x247] sm:$0xff]
  %v340 = vld [vmem:[#allocation2 + $0x24f] sm:$0xff]
  %v341 = vld [vmem:[#allocation2 + $0x267] sm:$0xff]
  %v342 = vld [vmem:[#allocation2 + $0x26f] sm:$0xff]
  %v343 = vld [vmem:[#allocation2 + $0x287] sm:$0xff]
  %v344 = vld [vmem:[#allocation2 + $0x28f] sm:$0xff]
  %v345 = vld [vmem:[#allocation2 + $0x2a7] sm:$0xff]
  %v346 = vld [vmem:[#allocation2 + $0x2af] sm:$0xff]
  %v347 = vld [vmem:[#allocation2 + $0x2c7] sm:$0xff]
  %v348 = vld [vmem:[#allocation2 + $0x2cf] sm:$0xff]
  %v349 = vld [vmem:[#allocation2 + $0x2e7] sm:$0xff]
  %v350 = vld [vmem:[#allocation2 + $0x2ef] sm:$0xff]
  %v351 = vld [vmem:[#allocation2 + $0x307] sm:$0xff]
  %v352 = vld [vmem:[#allocation2 + $0x30f] sm:$0xff]
  %v353 = vld [vmem:[#allocation2 + $0x327] sm:$0xff]
  %v354 = vld [vmem:[#allocation2 + $0x32f] sm:$0xff]
  %v355 = vld [vmem:[#allocation2 + $0x347] sm:$0xff]
  %v356 = vld [vmem:[#allocation2 + $0x34f] sm:$0xff]
  %v357 = vld [vmem:[#allocation2 + $0x367] sm:$0xff]
  %v358 = vld [vmem:[#allocation2 + $0x36f] sm:$0xff]
  %v359 = vld [vmem:[#allocation2 + $0x387] sm:$0xff]
  %v360 = vld [vmem:[#allocation2 + $0x38f] sm:$0xff]
  %v361 = vld [vmem:[#allocation2 + $0x3a7] sm:$0xff]
  %v362 = vld [vmem:[#allocation2 + $0x3af] sm:$0xff]
  %v363 = vld [vmem:[#allocation2 + $0x3c7] sm:$0xff]
  %v364 = vld [vmem:[#allocation2 + $0x3cf] sm:$0xff]
  %v365 = vld [vmem:[#allocation2 + $0x3e7] sm:$0xff]
  %v366 = vld [vmem:[#allocation2 + $0x3ef] sm:$0xff]
  %v367 = vld [vmem:[#allocation2 + $0x407] sm:$0xff]
  %v368 = vld [vmem:[#allocation2 + $0x40f] sm:$0xff]
  %v369 = vld [vmem:[#allocation2 + $0x427] sm:$0xff]
  %v370 = vld [vmem:[#allocation2 + $0x42f] sm:$0xff]
  %v371 = vld [vmem:[#allocation2 + $0x8] sm:$0xff]
  %v372 = vld [vmem:[#allocation2 + $0x10] sm:$0xff]
  %v373 = vld [vmem:[#allocation2 + $0x28] sm:$0xff]
  %v374 = vld [vmem:[#allocation2 + $0x30] sm:$0xff]
  %v375 = vld [vmem:[#allocation2 + $0x48] sm:$0xff]
  %v376 = vld [vmem:[#allocation2 + $0x50] sm:$0xff]
  %v377 = vld [vmem:[#allocation2 + $0x68] sm:$0xff]
  %v378 = vld [vmem:[#allocation2 + $0x70] sm:$0xff]
  %v379 = vld [vmem:[#allocation2 + $0x88] sm:$0xff]
  %v380 = vld [vmem:[#allocation2 + $0x90] sm:$0xff]
  %v381 = vld [vmem:[#allocation2 + $0xa8] sm:$0xff]
  %v382 = vld [vmem:[#allocation2 + $0xb0] sm:$0xff]
  %v383 = vld [vmem:[#allocation2 + $0xc8] sm:$0xff]
  %v384 = vld [vmem:[#allocation2 + $0xd0] sm:$0xff]
  %v385 = vld [vmem:[#allocation2 + $0xe8] sm:$0xff]
  %v386 = vld [vmem:[#allocation2 + $0xf0] sm:$0xff]
  %v387 = vld [vmem:[#allocation2 + $0x108] sm:$0xff]
  %v388 = vld [vmem:[#allocation2 + $0x110] sm:$0xff]
  %v389 = vld [vmem:[#allocation2 + $0x128] sm:$0xff]
  %v390 = vld [vmem:[#allocation2 + $0x130] sm:$0xff]
  %v391 = vld [vmem:[#allocation2 + $0x148] sm:$0xff]
  %v392 = vld [vmem:[#allocation2 + $0x150] sm:$0xff]
  %v393 = vld [vmem:[#allocation2 + $0x168] sm:$0xff]
  %v394 = vld [vmem:[#allocation2 + $0x170] sm:$0xff]
  %v395 = vld [vmem:[#allocation2 + $0x188] sm:$0xff]
  %v396 = vld [vmem:[#allocation2 + $0x190] sm:$0xff]
  %v397 = vld [vmem:[#allocation2 + $0x1a8] sm:$0xff]
  %v398 = vld [vmem:[#allocation2 + $0x1b0] sm:$0xff]
  %v399 = vld [vmem:[#allocation2 + $0x1c8] sm:$0xff]
  %v400 = vld [vmem:[#allocation2 + $0x1d0] sm:$0xff]
  %v401 = vld [vmem:[#allocation2 + $0x1e8] sm:$0xff]
  %v402 = vld [vmem:[#allocation2 + $0x1f0] sm:$0xff]
  %v403 = vld [vmem:[#allocation2 + $0x248] sm:$0xff]
  %v404 = vld [vmem:[#allocation2 + $0x250] sm:$0xff]
  %v405 = vld [vmem:[#allocation2 + $0x268] sm:$0xff]
  %v406 = vld [vmem:[#allocation2 + $0x270] sm:$0xff]
  %v407 = vld [vmem:[#allocation2 + $0x288] sm:$0xff]
  %v408 = vld [vmem:[#allocation2 + $0x290] sm:$0xff]
  %v409 = vld [vmem:[#allocation2 + $0x2a8] sm:$0xff]
  %v410 = vld [vmem:[#allocation2 + $0x2b0] sm:$0xff]
  %v411 = vld [vmem:[#allocation2 + $0x2c8] sm:$0xff]
  %v412 = vld [vmem:[#allocation2 + $0x2d0] sm:$0xff]
  %v413 = vld [vmem:[#allocation2 + $0x2e8] sm:$0xff]
  %v414 = vld [vmem:[#allocation2 + $0x2f0] sm:$0xff]
  %v415 = vld [vmem:[#allocation2 + $0x308] sm:$0xff]
  %v416 = vld [vmem:[#allocation2 + $0x310] sm:$0xff]
  %v417 = vld [vmem:[#allocation2 + $0x328] sm:$0xff]
  %v418 = vld [vmem:[#allocation2 + $0x330] sm:$0xff]
  %v419 = vld [vmem:[#allocation2 + $0x348] sm:$0xff]
  %v420 = vld [vmem:[#allocation2 + $0x350] sm:$0xff]
  %v421 = vld [vmem:[#allocation2 + $0x368] sm:$0xff]
  %v422 = vld [vmem:[#allocation2 + $0x370] sm:$0xff]
  %v423 = vld [vmem:[#allocation2 + $0x388] sm:$0xff]
  %v424 = vld [vmem:[#allocation2 + $0x390] sm:$0xff]
  %v425 = vld [vmem:[#allocation2 + $0x3a8] sm:$0xff]
  %v426 = vld [vmem:[#allocation2 + $0x3b0] sm:$0xff]
  %v427 = vld [vmem:[#allocation2 + $0x3c8] sm:$0xff]
  %v428 = vld [vmem:[#allocation2 + $0x3d0] sm:$0xff]
  %v429 = vld [vmem:[#allocation2 + $0x3e8] sm:$0xff]
  %v430 = vld [vmem:[#allocation2 + $0x3f0] sm:$0xff]
  %v431 = vld [vmem:[#allocation2 + $0x408] sm:$0xff]
  %v432 = vld [vmem:[#allocation2 + $0x410] sm:$0xff]
  %v433 = vld [vmem:[#allocation2 + $0x428] sm:$0xff]
  %v434 = vld [vmem:[#allocation2 + $0x430] sm:$0xff]
  %v435 = vld [vmem:[#allocation2 + $0x9] sm:$0xff]
  %v436 = vld [vmem:[#allocation2 + $0x11] sm:$0xff]
  %v437 = vld [vmem:[#allocation2 + $0x29] sm:$0xff]
  %v438 = vld [vmem:[#allocation2 + $0x31] sm:$0xff]
  %v439 = vld [vmem:[#allocation2 + $0x49] sm:$0xff]
  %v440 = vld [vmem:[#allocation2 + $0x51] sm:$0xff]
  %v441 = vld [vmem:[#allocation2 + $0x69] sm:$0xff]
  %v442 = vld [vmem:[#allocation2 + $0x71] sm:$0xff]
  %v443 = vld [vmem:[#allocation2 + $0x89] sm:$0xff]
  %v444 = vld [vmem:[#allocation2 + $0x91] sm:$0xff]
  %v445 = vld [vmem:[#allocation2 + $0xa9] sm:$0xff]
  %v446 = vld [vmem:[#allocation2 + $0xb1] sm:$0xff]
  %v447 = vld [vmem:[#allocation2 + $0xc9] sm:$0xff]
  %v448 = vld [vmem:[#allocation2 + $0xd1] sm:$0xff]
  %v449 = vld [vmem:[#allocation2 + $0xe9] sm:$0xff]
  %v450 = vld [vmem:[#allocation2 + $0xf1] sm:$0xff]
  %v451 = vld [vmem:[#allocation2 + $0x109] sm:$0xff]
  %v452 = vld [vmem:[#allocation2 + $0x111] sm:$0xff]
  %v453 = vld [vmem:[#allocation2 + $0x129] sm:$0xff]
  %v454 = vld [vmem:[#allocation2 + $0x131] sm:$0xff]
  %v455 = vld [vmem:[#allocation2 + $0x149] sm:$0xff]
  %v456 = vld [vmem:[#allocation2 + $0x151] sm:$0xff]
  %v457 = vld [vmem:[#allocation2 + $0x169] sm:$0xff]
  %v458 = vld [vmem:[#allocation2 + $0x171] sm:$0xff]
  %v459 = vld [vmem:[#allocation2 + $0x189] sm:$0xff]
  %v460 = vld [vmem:[#allocation2 + $0x191] sm:$0xff]
  %v461 = vld [vmem:[#allocation2 + $0x1a9] sm:$0xff]
  %v462 = vld [vmem:[#allocation2 + $0x1b1] sm:$0xff]
  %v463 = vld [vmem:[#allocation2 + $0x1c9] sm:$0xff]
  %v464 = vld [vmem:[#allocation2 + $0x1d1] sm:$0xff]
  %v465 = vld [vmem:[#allocation2 + $0x1e9] sm:$0xff]
  %v466 = vld [vmem:[#allocation2 + $0x1f1] sm:$0xff]
  %v467 = vld [vmem:[#allocation2 + $0x249] sm:$0xff]
  %v468 = vld [vmem:[#allocation2 + $0x251] sm:$0xff]
  %v469 = vld [vmem:[#allocation2 + $0x269] sm:$0xff]
  %v470 = vld [vmem:[#allocation2 + $0x271] sm:$0xff]
  %v471 = vld [vmem:[#allocation2 + $0x289] sm:$0xff]
  %v472 = vld [vmem:[#allocation2 + $0x291] sm:$0xff]
  %v473 = vld [vmem:[#allocation2 + $0x2a9] sm:$0xff]
  %v474 = vld [vmem:[#allocation2 + $0x2b1] sm:$0xff]
  %v475 = vld [vmem:[#allocation2 + $0x2c9] sm:$0xff]
  %v476 = vld [vmem:[#allocation2 + $0x2d1] sm:$0xff]
  %v477 = vld [vmem:[#allocation2 + $0x2e9] sm:$0xff]
  %v478 = vld [vmem:[#allocation2 + $0x2f1] sm:$0xff]
  %v479 = vld [vmem:[#allocation2 + $0x309] sm:$0xff]
  %v480 = vld [vmem:[#allocation2 + $0x311] sm:$0xff]
  %v481 = vld [vmem:[#allocation2 + $0x329] sm:$0xff]
  %v482 = vld [vmem:[#allocation2 + $0x331] sm:$0xff]
  %v483 = vld [vmem:[#allocation2 + $0x349] sm:$0xff]
  %v484 = vld [vmem:[#allocation2 + $0x351] sm:$0xff]
  %v485 = vld [vmem:[#allocation2 + $0x369] sm:$0xff]
  %v486 = vld [vmem:[#allocation2 + $0x371] sm:$0xff]
  %v487 = vld [vmem:[#allocation2 + $0x389] sm:$0xff]
  %v488 = vld [vmem:[#allocation2 + $0x391] sm:$0xff]
  %v489 = vld [vmem:[#allocation2 + $0x3a9] sm:$0xff]
  %v490 = vld [vmem:[#allocation2 + $0x3b1] sm:$0xff]
  %v491 = vld [vmem:[#allocation2 + $0x3c9] sm:$0xff]
  %v492 = vld [vmem:[#allocation2 + $0x3d1] sm:$0xff]
  %v493 = vld [vmem:[#allocation2 + $0x3e9] sm:$0xff]
  %v494 = vld [vmem:[#allocation2 + $0x3f1] sm:$0xff]
  %v495 = vld [vmem:[#allocation2 + $0x409] sm:$0xff]
  %v496 = vld [vmem:[#allocation2 + $0x411] sm:$0xff]
  %v497 = vld [vmem:[#allocation2 + $0x429] sm:$0xff]
  %v498 = vld [vmem:[#allocation2 + $0x431] sm:$0xff]
  %v499 = vld [vmem:[%s242 + $0x7] sm:$0xff]
  %v500 = vld [vmem:[%s242 + $0xf] sm:$0xff]
  %v501 = vld [vmem:[%s242 + $0x27] sm:$0xff]
  %v502 = vld [vmem:[%s242 + $0x2f] sm:$0xff]
  %v503 = vld [vmem:[%s242 + $0x47] sm:$0xff]
  %v504 = vld [vmem:[%s242 + $0x4f] sm:$0xff]
  %v505 = vld [vmem:[%s242 + $0x67] sm:$0xff]
  %v506 = vld [vmem:[%s242 + $0x6f] sm:$0xff]
  %v507 = vld [vmem:[%s242 + $0x87] sm:$0xff]
  %v508 = vld [vmem:[%s242 + $0x8f] sm:$0xff]
  %v509 = vld [vmem:[%s242 + $0xa7] sm:$0xff]
  %v510 = vld [vmem:[%s242 + $0xaf] sm:$0xff]
  %v511 = vld [vmem:[%s242 + $0xc7] sm:$0xff]
  %v512 = vld [vmem:[%s242 + $0xcf] sm:$0xff]
  %v513 = vld [vmem:[%s242 + $0xe7] sm:$0xff]
  %v514 = vld [vmem:[%s242 + $0xef] sm:$0xff]
  %v515 = vld [vmem:[%s242 + $0x107] sm:$0xff]
  %v516 = vld [vmem:[%s242 + $0x10f] sm:$0xff]
  %v517 = vld [vmem:[%s242 + $0x127] sm:$0xff]
  %v518 = vld [vmem:[%s242 + $0x12f] sm:$0xff]
  %v519 = vld [vmem:[%s242 + $0x147] sm:$0xff]
  %v520 = vld [vmem:[%s242 + $0x14f] sm:$0xff]
  %v521 = vld [vmem:[%s242 + $0x167] sm:$0xff]
  %v522 = vld [vmem:[%s242 + $0x16f] sm:$0xff]
  %v523 = vld [vmem:[%s242 + $0x187] sm:$0xff]
  %v524 = vld [vmem:[%s242 + $0x18f] sm:$0xff]
  %v525 = vld [vmem:[%s242 + $0x1a7] sm:$0xff]
  %v526 = vld [vmem:[%s242 + $0x1af] sm:$0xff]
  %v527 = vld [vmem:[%s242 + $0x1c7] sm:$0xff]
  %v528 = vld [vmem:[%s242 + $0x1cf] sm:$0xff]
  %v529 = vld [vmem:[%s242 + $0x1e7] sm:$0xff]
  %v530 = vld [vmem:[%s242 + $0x1ef] sm:$0xff]
  %v531 = vld [vmem:[%s242 + $0x247] sm:$0xff]
  %v532 = vld [vmem:[%s242 + $0x24f] sm:$0xff]
  %v533 = vld [vmem:[%s242 + $0x267] sm:$0xff]
  %v534 = vld [vmem:[%s242 + $0x26f] sm:$0xff]
  %v535 = vld [vmem:[%s242 + $0x287] sm:$0xff]
  %v536 = vld [vmem:[%s242 + $0x28f] sm:$0xff]
  %v537 = vld [vmem:[%s242 + $0x2a7] sm:$0xff]
  %v538 = vld [vmem:[%s242 + $0x2af] sm:$0xff]
  %v539 = vld [vmem:[%s242 + $0x2c7] sm:$0xff]
  %v540 = vld [vmem:[%s242 + $0x2cf] sm:$0xff]
  %v541 = vld [vmem:[%s242 + $0x2e7] sm:$0xff]
  %v542 = vld [vmem:[%s242 + $0x2ef] sm:$0xff]
  %v543 = vld [vmem:[%s242 + $0x307] sm:$0xff]
  %v544 = vld [vmem:[%s242 + $0x30f] sm:$0xff]
  %v545 = vld [vmem:[%s242 + $0x327] sm:$0xff]
  %v546 = vld [vmem:[%s242 + $0x32f] sm:$0xff]
  %v547 = vld [vmem:[%s242 + $0x347] sm:$0xff]
  %v548 = vld [vmem:[%s242 + $0x34f] sm:$0xff]
  %v549 = vld [vmem:[%s242 + $0x367] sm:$0xff]
  %v550 = vld [vmem:[%s242 + $0x36f] sm:$0xff]
  %v551 = vld [vmem:[%s242 + $0x387] sm:$0xff]
  %v552 = vld [vmem:[%s242 + $0x38f] sm:$0xff]
  %v553 = vld [vmem:[%s242 + $0x3a7] sm:$0xff]
  %v554 = vld [vmem:[%s242 + $0x3af] sm:$0xff]
  %v555 = vld [vmem:[%s242 + $0x3c7] sm:$0xff]
  %v556 = vld [vmem:[%s242 + $0x3cf] sm:$0xff]
  %v557 = vld [vmem:[%s242 + $0x3e7] sm:$0xff]
  %v558 = vld [vmem:[%s242 + $0x3ef] sm:$0xff]
  %v559 = vld [vmem:[%s242 + $0x407] sm:$0xff]
  %v560 = vld [vmem:[%s242 + $0x40f] sm:$0xff]
  %v561 = vld [vmem:[%s242 + $0x427] sm:$0xff]
  %v562 = vld [vmem:[%s242 + $0x42f] sm:$0xff]
  %v563 = vld [vmem:[%s242 + $0x8] sm:$0xff]
  %v564 = vld [vmem:[%s242 + $0x10] sm:$0xff]
  %v565 = vld [vmem:[%s242 + $0x28] sm:$0xff]
  %v566 = vld [vmem:[%s242 + $0x30] sm:$0xff]
  %v567 = vld [vmem:[%s242 + $0x48] sm:$0xff]
  %v568 = vld [vmem:[%s242 + $0x50] sm:$0xff]
  %v569 = vld [vmem:[%s242 + $0x68] sm:$0xff]
  %v570 = vld [vmem:[%s242 + $0x70] sm:$0xff]
  %v571 = vld [vmem:[%s242 + $0x88] sm:$0xff]
  %v572 = vld [vmem:[%s242 + $0x90] sm:$0xff]
  %v573 = vld [vmem:[%s242 + $0xa8] sm:$0xff]
  %v574 = vld [vmem:[%s242 + $0xb0] sm:$0xff]
  %v575 = vld [vmem:[%s242 + $0xc8] sm:$0xff]
  %v576 = vld [vmem:[%s242 + $0xd0] sm:$0xff]
  %v577 = vld [vmem:[%s242 + $0xe8] sm:$0xff]
  %v578 = vld [vmem:[%s242 + $0xf0] sm:$0xff]
  %v579 = vld [vmem:[%s242 + $0x108] sm:$0xff]
  %v580 = vld [vmem:[%s242 + $0x110] sm:$0xff]
  %v581 = vld [vmem:[%s242 + $0x128] sm:$0xff]
  %v582 = vld [vmem:[%s242 + $0x130] sm:$0xff]
  %v583 = vld [vmem:[%s242 + $0x148] sm:$0xff]
  %v584 = vld [vmem:[%s242 + $0x150] sm:$0xff]
  %v585 = vld [vmem:[%s242 + $0x168] sm:$0xff]
  %v586 = vld [vmem:[%s242 + $0x170] sm:$0xff]
  %v587 = vld [vmem:[%s242 + $0x188] sm:$0xff]
  %v588 = vld [vmem:[%s242 + $0x190] sm:$0xff]
  %v589 = vld [vmem:[%s242 + $0x1a8] sm:$0xff]
  %v590 = vld [vmem:[%s242 + $0x1b0] sm:$0xff]
  %v591 = vld [vmem:[%s242 + $0x1c8] sm:$0xff]
  %v592 = vld [vmem:[%s242 + $0x1d0] sm:$0xff]
  %v593 = vld [vmem:[%s242 + $0x1e8] sm:$0xff]
  %v594 = vld [vmem:[%s242 + $0x1f0] sm:$0xff]
  %v595 = vld [vmem:[%s242 + $0x248] sm:$0xff]
  %v596 = vld [vmem:[%s242 + $0x250] sm:$0xff]
  %v597 = vld [vmem:[%s242 + $0x268] sm:$0xff]
  %v598 = vld [vmem:[%s242 + $0x270] sm:$0xff]
  %v599 = vld [vmem:[%s242 + $0x288] sm:$0xff]
  %v600 = vld [vmem:[%s242 + $0x290] sm:$0xff]
  %v601 = vld [vmem:[%s242 + $0x2a8] sm:$0xff]
  %v602 = vld [vmem:[%s242 + $0x2b0] sm:$0xff]
  %v603 = vld [vmem:[%s242 + $0x2c8] sm:$0xff]
  %v604 = vld [vmem:[%s242 + $0x2d0] sm:$0xff]
  %v605 = vld [vmem:[%s242 + $0x2e8] sm:$0xff]
  %v606 = vld [vmem:[%s242 + $0x2f0] sm:$0xff]
  %v607 = vld [vmem:[%s242 + $0x308] sm:$0xff]
  %v608 = vld [vmem:[%s242 + $0x310] sm:$0xff]
  %v609 = vld [vmem:[%s242 + $0x328] sm:$0xff]
  %v610 = vld [vmem:[%s242 + $0x330] sm:$0xff]
  %v611 = vld [vmem:[%s242 + $0x348] sm:$0xff]
  %v612 = vld [vmem:[%s242 + $0x350] sm:$0xff]
  %v613 = vld [vmem:[%s242 + $0x368] sm:$0xff]
  %v614 = vld [vmem:[%s242 + $0x370] sm:$0xff]
  %v615 = vld [vmem:[%s242 + $0x388] sm:$0xff]
  %v616 = vld [vmem:[%s242 + $0x390] sm:$0xff]
  %v617 = vld [vmem:[%s242 + $0x3a8] sm:$0xff]
  %v618 = vld [vmem:[%s242 + $0x3b0] sm:$0xff]
  %v619 = vld [vmem:[%s242 + $0x3c8] sm:$0xff]
  %v620 = vld [vmem:[%s242 + $0x3d0] sm:$0xff]
  %v621 = vld [vmem:[%s242 + $0x3e8] sm:$0xff]
  %v622 = vld [vmem:[%s242 + $0x3f0] sm:$0xff]
  %v623 = vld [vmem:[%s242 + $0x408] sm:$0xff]
  %v624 = vld [vmem:[%s242 + $0x410] sm:$0xff]
  %v625 = vld [vmem:[%s242 + $0x428] sm:$0xff]
  %v626 = vld [vmem:[%s242 + $0x430] sm:$0xff]
  %v627 = vld [vmem:[%s242 + $0x9] sm:$0xff]
  %v628 = vld [vmem:[%s242 + $0x11] sm:$0xff]
  %v629 = vld [vmem:[%s242 + $0x29] sm:$0xff]
  %v630 = vld [vmem:[%s242 + $0x31] sm:$0xff]
  %v631 = vld [vmem:[%s242 + $0x49] sm:$0xff]
  %v632 = vld [vmem:[%s242 + $0x51] sm:$0xff]
  %v633 = vld [vmem:[%s242 + $0x69] sm:$0xff]
  %v634 = vld [vmem:[%s242 + $0x71] sm:$0xff]
  %v635 = vld [vmem:[%s242 + $0x89] sm:$0xff]
  %v636 = vld [vmem:[%s242 + $0x91] sm:$0xff]
  %v637 = vld [vmem:[%s242 + $0xa9] sm:$0xff]
  %v638 = vld [vmem:[%s242 + $0xb1] sm:$0xff]
  %v639 = vld [vmem:[%s242 + $0xc9] sm:$0xff]
  %v640 = vld [vmem:[%s242 + $0xd1] sm:$0xff]
  %v641 = vld [vmem:[%s242 + $0xe9] sm:$0xff]
  %v642 = vld [vmem:[%s242 + $0xf1] sm:$0xff]
  %v643 = vld [vmem:[%s242 + $0x109] sm:$0xff]
  %v644 = vld [vmem:[%s242 + $0x111] sm:$0xff]
  %v645 = vld [vmem:[%s242 + $0x129] sm:$0xff]
  %v646 = vld [vmem:[%s242 + $0x131] sm:$0xff]
  %v647 = vld [vmem:[%s242 + $0x149] sm:$0xff]
  %v648 = vld [vmem:[%s242 + $0x151] sm:$0xff]
  %v649 = vld [vmem:[%s242 + $0x169] sm:$0xff]
  %v650 = vld [vmem:[%s242 + $0x171] sm:$0xff]
  %v651 = vld [vmem:[%s242 + $0x189] sm:$0xff]
  %v652 = vld [vmem:[%s242 + $0x191] sm:$0xff]
  %v653 = vld [vmem:[%s242 + $0x1a9] sm:$0xff]
  %v654 = vld [vmem:[%s242 + $0x1b1] sm:$0xff]
  %v655 = vld [vmem:[%s242 + $0x1c9] sm:$0xff]
  %v656 = vld [vmem:[%s242 + $0x1d1] sm:$0xff]
  %v657 = vld [vmem:[%s242 + $0x1e9] sm:$0xff]
  %v658 = vld [vmem:[%s242 + $0x1f1] sm:$0xff]
  %v659 = vld [vmem:[%s242 + $0x249] sm:$0xff]
  %v660 = vld [vmem:[%s242 + $0x251] sm:$0xff]
  %v661 = vld [vmem:[%s242 + $0x269] sm:$0xff]
  %v662 = vld [vmem:[%s242 + $0x271] sm:$0xff]
  %v663 = vld [vmem:[%s242 + $0x289] sm:$0xff]
  %v664 = vld [vmem:[%s242 + $0x291] sm:$0xff]
  %v665 = vld [vmem:[%s242 + $0x2a9] sm:$0xff]
  %v666 = vld [vmem:[%s242 + $0x2b1] sm:$0xff]
  %v667 = vld [vmem:[%s242 + $0x2c9] sm:$0xff]
  %v668 = vld [vmem:[%s242 + $0x2d1] sm:$0xff]
  %v669 = vld [vmem:[%s242 + $0x2e9] sm:$0xff]
  %v670 = vld [vmem:[%s242 + $0x2f1] sm:$0xff]
  %v671 = vld [vmem:[%s242 + $0x309] sm:$0xff]
  %v672 = vld [vmem:[%s242 + $0x311] sm:$0xff]
  %v673 = vld [vmem:[%s242 + $0x329] sm:$0xff]
  %v674 = vld [vmem:[%s242 + $0x331] sm:$0xff]
  %v675 = vld [vmem:[%s242 + $0x349] sm:$0xff]
  %v676 = vld [vmem:[%s242 + $0x351] sm:$0xff]
  %v677 = vld [vmem:[%s242 + $0x369] sm:$0xff]
  %v678 = vld [vmem:[%s242 + $0x371] sm:$0xff]
  %v679 = vld [vmem:[%s242 + $0x389] sm:$0xff]
  %v680 = vld [vmem:[%s242 + $0x391] sm:$0xff]
  %v681 = vld [vmem:[%s242 + $0x3a9] sm:$0xff]
  %v682 = vld [vmem:[%s242 + $0x3b1] sm:$0xff]
  %v683 = vld [vmem:[%s242 + $0x3c9] sm:$0xff]
  %v684 = vld [vmem:[%s242 + $0x3d1] sm:$0xff]
  %v685 = vld [vmem:[%s242 + $0x3e9] sm:$0xff]
  %v686 = vld [vmem:[%s242 + $0x3f1] sm:$0xff]
  %v687 = vld [vmem:[%s242 + $0x409] sm:$0xff]
  %v688 = vld [vmem:[%s242 + $0x411] sm:$0xff]
  %v689 = vld [vmem:[%s242 + $0x429] sm:$0xff]
  %v690 = vld [vmem:[%s242 + $0x431] sm:$0xff]
  %s691 = scalar_lea.vmem [#allocation2], 64
  %v692 = vld [vmem:[%s691 + $0x7] sm:$0xff]
  %v693 = vld [vmem:[%s691 + $0xf] sm:$0xff]
  %v694 = vld [vmem:[%s691 + $0x27] sm:$0xff]
  %v695 = vld [vmem:[%s691 + $0x2f] sm:$0xff]
  %v696 = vld [vmem:[%s691 + $0x47] sm:$0xff]
  %v697 = vld [vmem:[%s691 + $0x4f] sm:$0xff]
  %v698 = vld [vmem:[%s691 + $0x67] sm:$0xff]
  %v699 = vld [vmem:[%s691 + $0x6f] sm:$0xff]
  %v700 = vld [vmem:[%s691 + $0x87] sm:$0xff]
  %v701 = vld [vmem:[%s691 + $0x8f] sm:$0xff]
  %v702 = vld [vmem:[%s691 + $0xa7] sm:$0xff]
  %v703 = vld [vmem:[%s691 + $0xaf] sm:$0xff]
  %v704 = vld [vmem:[%s691 + $0xc7] sm:$0xff]
  %v705 = vld [vmem:[%s691 + $0xcf] sm:$0xff]
  %v706 = vld [vmem:[%s691 + $0xe7] sm:$0xff]
  %v707 = vld [vmem:[%s691 + $0xef] sm:$0xff]
  %v708 = vld [vmem:[%s691 + $0x107] sm:$0xff]
  %v709 = vld [vmem:[%s691 + $0x10f] sm:$0xff]
  %v710 = vld [vmem:[%s691 + $0x127] sm:$0xff]
  %v711 = vld [vmem:[%s691 + $0x12f] sm:$0xff]
  %v712 = vld [vmem:[%s691 + $0x147] sm:$0xff]
  %v713 = vld [vmem:[%s691 + $0x14f] sm:$0xff]
  %v714 = vld [vmem:[%s691 + $0x167] sm:$0xff]
  %v715 = vld [vmem:[%s691 + $0x16f] sm:$0xff]
  %v716 = vld [vmem:[%s691 + $0x187] sm:$0xff]
  %v717 = vld [vmem:[%s691 + $0x18f] sm:$0xff]
  %v718 = vld [vmem:[%s691 + $0x1a7] sm:$0xff]
  %v719 = vld [vmem:[%s691 + $0x1af] sm:$0xff]
  %v720 = vld [vmem:[%s691 + $0x1c7] sm:$0xff]
  %v721 = vld [vmem:[%s691 + $0x1cf] sm:$0xff]
  %v722 = vld [vmem:[%s691 + $0x1e7] sm:$0xff]
  %v723 = vld [vmem:[%s691 + $0x1ef] sm:$0xff]
  %v724 = vld [vmem:[%s691 + $0x247] sm:$0xff]
  %v725 = vld [vmem:[%s691 + $0x24f] sm:$0xff]
  %v726 = vld [vmem:[%s691 + $0x267] sm:$0xff]
  %v727 = vld [vmem:[%s691 + $0x26f] sm:$0xff]
  %v728 = vld [vmem:[%s691 + $0x287] sm:$0xff]
  %v729 = vld [vmem:[%s691 + $0x28f] sm:$0xff]
  %v730 = vld [vmem:[%s691 + $0x2a7] sm:$0xff]
  %v731 = vld [vmem:[%s691 + $0x2af] sm:$0xff]
  %v732 = vld [vmem:[%s691 + $0x2c7] sm:$0xff]
  %v733 = vld [vmem:[%s691 + $0x2cf] sm:$0xff]
  %v734 = vld [vmem:[%s691 + $0x2e7] sm:$0xff]
  %v735 = vld [vmem:[%s691 + $0x2ef] sm:$0xff]
  %v736 = vld [vmem:[%s691 + $0x307] sm:$0xff]
  %v737 = vld [vmem:[%s691 + $0x30f] sm:$0xff]
  %v738 = vld [vmem:[%s691 + $0x327] sm:$0xff]
  %v739 = vld [vmem:[%s691 + $0x32f] sm:$0xff]
  %v740 = vld [vmem:[%s691 + $0x347] sm:$0xff]
  %v741 = vld [vmem:[%s691 + $0x34f] sm:$0xff]
  %v742 = vld [vmem:[%s691 + $0x367] sm:$0xff]
  %v743 = vld [vmem:[%s691 + $0x36f] sm:$0xff]
  %v744 = vld [vmem:[%s691 + $0x387] sm:$0xff]
  %v745 = vld [vmem:[%s691 + $0x38f] sm:$0xff]
  %v746 = vld [vmem:[%s691 + $0x3a7] sm:$0xff]
  %v747 = vld [vmem:[%s691 + $0x3af] sm:$0xff]
  %v748 = vld [vmem:[%s691 + $0x3c7] sm:$0xff]
  %v749 = vld [vmem:[%s691 + $0x3cf] sm:$0xff]
  %v750 = vld [vmem:[%s691 + $0x3e7] sm:$0xff]
  %v751 = vld [vmem:[%s691 + $0x3ef] sm:$0xff]
  %v752 = vld [vmem:[%s691 + $0x407] sm:$0xff]
  %v753 = vld [vmem:[%s691 + $0x40f] sm:$0xff]
  %v754 = vld [vmem:[%s691 + $0x427] sm:$0xff]
  %v755 = vld [vmem:[%s691 + $0x42f] sm:$0xff]
  %v756 = vld [vmem:[%s691 + $0x8] sm:$0xff]
  %v757 = vld [vmem:[%s691 + $0x10] sm:$0xff]
  %v758 = vld [vmem:[%s691 + $0x28] sm:$0xff]
  %v759 = vld [vmem:[%s691 + $0x30] sm:$0xff]
  %v760 = vld [vmem:[%s691 + $0x48] sm:$0xff]
  %v761 = vld [vmem:[%s691 + $0x50] sm:$0xff]
  %v762 = vld [vmem:[%s691 + $0x68] sm:$0xff]
  %v763 = vld [vmem:[%s691 + $0x70] sm:$0xff]
  %v764 = vld [vmem:[%s691 + $0x88] sm:$0xff]
  %v765 = vld [vmem:[%s691 + $0x90] sm:$0xff]
  %v766 = vld [vmem:[%s691 + $0xa8] sm:$0xff]
  %v767 = vld [vmem:[%s691 + $0xb0] sm:$0xff]
  %v768 = vld [vmem:[%s691 + $0xc8] sm:$0xff]
  %v769 = vld [vmem:[%s691 + $0xd0] sm:$0xff]
  %v770 = vld [vmem:[%s691 + $0xe8] sm:$0xff]
  %v771 = vld [vmem:[%s691 + $0xf0] sm:$0xff]
  %v772 = vld [vmem:[%s691 + $0x108] sm:$0xff]
  %v773 = vld [vmem:[%s691 + $0x110] sm:$0xff]
  %v774 = vld [vmem:[%s691 + $0x128] sm:$0xff]
  %v775 = vld [vmem:[%s691 + $0x130] sm:$0xff]
  %v776 = vld [vmem:[%s691 + $0x148] sm:$0xff]
  %v777 = vld [vmem:[%s691 + $0x150] sm:$0xff]
  %v778 = vld [vmem:[%s691 + $0x168] sm:$0xff]
  %v779 = vld [vmem:[%s691 + $0x170] sm:$0xff]
  %v780 = vld [vmem:[%s691 + $0x188] sm:$0xff]
  %v781 = vld [vmem:[%s691 + $0x190] sm:$0xff]
  %v782 = vld [vmem:[%s691 + $0x1a8] sm:$0xff]
  %v783 = vld [vmem:[%s691 + $0x1b0] sm:$0xff]
  %v784 = vld [vmem:[%s691 + $0x1c8] sm:$0xff]
  %v785 = vld [vmem:[%s691 + $0x1d0] sm:$0xff]
  %v786 = vld [vmem:[%s691 + $0x1e8] sm:$0xff]
  %v787 = vld [vmem:[%s691 + $0x1f0] sm:$0xff]
  %v788 = vld [vmem:[%s691 + $0x248] sm:$0xff]
  %v789 = vld [vmem:[%s691 + $0x250] sm:$0xff]
  %v790 = vld [vmem:[%s691 + $0x268] sm:$0xff]
  %v791 = vld [vmem:[%s691 + $0x270] sm:$0xff]
  %v792 = vld [vmem:[%s691 + $0x288] sm:$0xff]
  %v793 = vld [vmem:[%s691 + $0x290] sm:$0xff]
  %v794 = vld [vmem:[%s691 + $0x2a8] sm:$0xff]
  %v795 = vld [vmem:[%s691 + $0x2b0] sm:$0xff]
  %v796 = vld [vmem:[%s691 + $0x2c8] sm:$0xff]
  %v797 = vld [vmem:[%s691 + $0x2d0] sm:$0xff]
  %v798 = vld [vmem:[%s691 + $0x2e8] sm:$0xff]
  %v799 = vld [vmem:[%s691 + $0x2f0] sm:$0xff]
  %v800 = vld [vmem:[%s691 + $0x308] sm:$0xff]
  %v801 = vld [vmem:[%s691 + $0x310] sm:$0xff]
  %v802 = vld [vmem:[%s691 + $0x328] sm:$0xff]
  %v803 = vld [vmem:[%s691 + $0x330] sm:$0xff]
  %v804 = vld [vmem:[%s691 + $0x348] sm:$0xff]
  %v805 = vld [vmem:[%s691 + $0x350] sm:$0xff]
  %v806 = vld [vmem:[%s691 + $0x368] sm:$0xff]
  %v807 = vld [vmem:[%s691 + $0x370] sm:$0xff]
  %v808 = vld [vmem:[%s691 + $0x388] sm:$0xff]
  %v809 = vld [vmem:[%s691 + $0x390] sm:$0xff]
  %v810 = vld [vmem:[%s691 + $0x3a8] sm:$0xff]
  %v811 = vld [vmem:[%s691 + $0x3b0] sm:$0xff]
  %v812 = vld [vmem:[%s691 + $0x3c8] sm:$0xff]
  %v813 = vld [vmem:[%s691 + $0x3d0] sm:$0xff]
  %v814 = vld [vmem:[%s691 + $0x3e8] sm:$0xff]
  %v815 = vld [vmem:[%s691 + $0x3f0] sm:$0xff]
  %v816 = vld [vmem:[%s691 + $0x408] sm:$0xff]
  %v817 = vld [vmem:[%s691 + $0x410] sm:$0xff]
  %v818 = vld [vmem:[%s691 + $0x428] sm:$0xff]
  %v819 = vld [vmem:[%s691 + $0x430] sm:$0xff]
  %v820 = vld [vmem:[%s691 + $0x9] sm:$0xff]
  %v821 = vld [vmem:[%s691 + $0x11] sm:$0xff]
  %v822 = vld [vmem:[%s691 + $0x29] sm:$0xff]
  %v823 = vld [vmem:[%s691 + $0x31] sm:$0xff]
  %v824 = vld [vmem:[%s691 + $0x49] sm:$0xff]
  %v825 = vld [vmem:[%s691 + $0x51] sm:$0xff]
  %v826 = vld [vmem:[%s691 + $0x69] sm:$0xff]
  %v827 = vld [vmem:[%s691 + $0x71] sm:$0xff]
  %v828 = vld [vmem:[%s691 + $0x89] sm:$0xff]
  %v829 = vld [vmem:[%s691 + $0x91] sm:$0xff]
  %v830 = vld [vmem:[%s691 + $0xa9] sm:$0xff]
  %v831 = vld [vmem:[%s691 + $0xb1] sm:$0xff]
  %v832 = vld [vmem:[%s691 + $0xc9] sm:$0xff]
  %v833 = vld [vmem:[%s691 + $0xd1] sm:$0xff]
  %v834 = vld [vmem:[%s691 + $0xe9] sm:$0xff]
  %v835 = vld [vmem:[%s691 + $0xf1] sm:$0xff]
  %v836 = vld [vmem:[%s691 + $0x109] sm:$0xff]
  %v837 = vld [vmem:[%s691 + $0x111] sm:$0xff]
  %v838 = vld [vmem:[%s691 + $0x129] sm:$0xff]
  %v839 = vld [vmem:[%s691 + $0x131] sm:$0xff]
  %v840 = vld [vmem:[%s691 + $0x149] sm:$0xff]
  %v841 = vld [vmem:[%s691 + $0x151] sm:$0xff]
  %v842 = vld [vmem:[%s691 + $0x169] sm:$0xff]
  %v843 = vld [vmem:[%s691 + $0x171] sm:$0xff]
  %v844 = vld [vmem:[%s691 + $0x189] sm:$0xff]
  %v845 = vld [vmem:[%s691 + $0x191] sm:$0xff]
  %v846 = vld [vmem:[%s691 + $0x1a9] sm:$0xff]
  %v847 = vld [vmem:[%s691 + $0x1b1] sm:$0xff]
  %v848 = vld [vmem:[%s691 + $0x1c9] sm:$0xff]
  %v849 = vld [vmem:[%s691 + $0x1d1] sm:$0xff]
  %v850 = vld [vmem:[%s691 + $0x1e9] sm:$0xff]
  %v851 = vld [vmem:[%s691 + $0x1f1] sm:$0xff]
  %v852 = vld [vmem:[%s691 + $0x249] sm:$0xff]
  %v853 = vld [vmem:[%s691 + $0x251] sm:$0xff]
  %v854 = vld [vmem:[%s691 + $0x269] sm:$0xff]
  %v855 = vld [vmem:[%s691 + $0x271] sm:$0xff]
  %v856 = vld [vmem:[%s691 + $0x289] sm:$0xff]
  %v857 = vld [vmem:[%s691 + $0x291] sm:$0xff]
  %v858 = vld [vmem:[%s691 + $0x2a9] sm:$0xff]
  %v859 = vld [vmem:[%s691 + $0x2b1] sm:$0xff]
  %v860 = vld [vmem:[%s691 + $0x2c9] sm:$0xff]
  %v861 = vld [vmem:[%s691 + $0x2d1] sm:$0xff]
  %v862 = vld [vmem:[%s691 + $0x2e9] sm:$0xff]
  %v863 = vld [vmem:[%s691 + $0x2f1] sm:$0xff]
  %v864 = vld [vmem:[%s691 + $0x309] sm:$0xff]
  %v865 = vld [vmem:[%s691 + $0x311] sm:$0xff]
  %v866 = vld [vmem:[%s691 + $0x329] sm:$0xff]
  %v867 = vld [vmem:[%s691 + $0x331] sm:$0xff]
  %v868 = vld [vmem:[%s691 + $0x349] sm:$0xff]
  %v869 = vld [vmem:[%s691 + $0x351] sm:$0xff]
  %v870 = vld [vmem:[%s691 + $0x369] sm:$0xff]
  %v871 = vld [vmem:[%s691 + $0x371] sm:$0xff]
  %v872 = vld [vmem:[%s691 + $0x389] sm:$0xff]
  %v873 = vld [vmem:[%s691 + $0x391] sm:$0xff]
  %v874 = vld [vmem:[%s691 + $0x3a9] sm:$0xff]
  %v875 = vld [vmem:[%s691 + $0x3b1] sm:$0xff]
  %v876 = vld [vmem:[%s691 + $0x3c9] sm:$0xff]
  %v877 = vld [vmem:[%s691 + $0x3d1] sm:$0xff]
  %v878 = vld [vmem:[%s691 + $0x3e9] sm:$0xff]
  %v879 = vld [vmem:[%s691 + $0x3f1] sm:$0xff]
  %v880 = vld [vmem:[%s691 + $0x409] sm:$0xff]
  %v881 = vld [vmem:[%s691 + $0x411] sm:$0xff]
  %v882 = vld [vmem:[%s691 + $0x429] sm:$0xff]
  %v883 = vld [vmem:[%s691 + $0x431] sm:$0xff]
  %948 = vrot.lane.b32.xlu0 %v371, 3
  %v949 = vpop.permute.xlu0 %948
  %950 = vrot.lane.b32.xlu0 %v372, 3
  %v951 = vpop.permute.xlu0 %950
  %952 = vrot.lane.b32.xlu0 %v373, 3
  %v953 = vpop.permute.xlu0 %952
  %954 = vrot.lane.b32.xlu0 %v374, 3
  %v955 = vpop.permute.xlu0 %954
  %956 = vrot.lane.b32.xlu0 %v375, 3
  %v957 = vpop.permute.xlu0 %956
  %958 = vrot.lane.b32.xlu0 %v376, 3
  %v959 = vpop.permute.xlu0 %958
  %960 = vrot.lane.b32.xlu0 %v377, 3
  %v961 = vpop.permute.xlu0 %960
  %962 = vrot.lane.b32.xlu0 %v378, 3
  %v963 = vpop.permute.xlu0 %962
  %964 = vrot.lane.b32.xlu0 %v379, 3
  %v965 = vpop.permute.xlu0 %964
  %966 = vrot.lane.b32.xlu0 %v380, 3
  %v967 = vpop.permute.xlu0 %966
  %968 = vrot.lane.b32.xlu0 %v381, 3
  %v969 = vpop.permute.xlu0 %968
  %970 = vrot.lane.b32.xlu0 %v382, 3
  %v971 = vpop.permute.xlu0 %970
  %972 = vrot.lane.b32.xlu0 %v383, 3
  %v973 = vpop.permute.xlu0 %972
  %974 = vrot.lane.b32.xlu0 %v384, 3
  %v975 = vpop.permute.xlu0 %974
  %976 = vrot.lane.b32.xlu0 %v385, 3
  %v977 = vpop.permute.xlu0 %976
  %978 = vrot.lane.b32.xlu0 %v386, 3
  %v979 = vpop.permute.xlu0 %978
  %980 = vrot.lane.b32.xlu0 %v387, 3
  %v981 = vpop.permute.xlu0 %980
  %982 = vrot.lane.b32.xlu0 %v388, 3
  %v983 = vpop.permute.xlu0 %982
  %984 = vrot.lane.b32.xlu0 %v389, 3
  %v985 = vpop.permute.xlu0 %984
  %986 = vrot.lane.b32.xlu0 %v390, 3
  %v987 = vpop.permute.xlu0 %986
  %988 = vrot.lane.b32.xlu0 %v391, 3
  %v989 = vpop.permute.xlu0 %988
  %990 = vrot.lane.b32.xlu0 %v392, 3
  %v991 = vpop.permute.xlu0 %990
  %992 = vrot.lane.b32.xlu0 %v393, 3
  %v993 = vpop.permute.xlu0 %992
  %994 = vrot.lane.b32.xlu0 %v394, 3
  %v995 = vpop.permute.xlu0 %994
  %996 = vrot.lane.b32.xlu0 %v395, 3
  %v997 = vpop.permute.xlu0 %996
  %998 = vrot.lane.b32.xlu0 %v396, 3
  %v999 = vpop.permute.xlu0 %998
  %1000 = vrot.lane.b32.xlu0 %v397, 3
  %v1001 = vpop.permute.xlu0 %1000
  %1002 = vrot.lane.b32.xlu0 %v398, 3
  %v1003 = vpop.permute.xlu0 %1002
  %1004 = vrot.lane.b32.xlu0 %v399, 3
  %v1005 = vpop.permute.xlu0 %1004
  %1006 = vrot.lane.b32.xlu0 %v400, 3
  %v1007 = vpop.permute.xlu0 %1006
  %1008 = vrot.lane.b32.xlu0 %v401, 3
  %v1009 = vpop.permute.xlu0 %1008
  %1010 = vrot.lane.b32.xlu0 %v402, 3
  %v1011 = vpop.permute.xlu0 %1010
  %1012 = vrot.lane.b32.xlu0 %v403, 3
  %v1013 = vpop.permute.xlu0 %1012
  %1014 = vrot.lane.b32.xlu0 %v404, 3
  %v1015 = vpop.permute.xlu0 %1014
  %1016 = vrot.lane.b32.xlu0 %v405, 3
  %v1017 = vpop.permute.xlu0 %1016
  %1018 = vrot.lane.b32.xlu0 %v406, 3
  %v1019 = vpop.permute.xlu0 %1018
  %1020 = vrot.lane.b32.xlu0 %v407, 3
  %v1021 = vpop.permute.xlu0 %1020
  %1022 = vrot.lane.b32.xlu0 %v408, 3
  %v1023 = vpop.permute.xlu0 %1022
  %1024 = vrot.lane.b32.xlu0 %v409, 3
  %v1025 = vpop.permute.xlu0 %1024
  %1026 = vrot.lane.b32.xlu0 %v410, 3
  %v1027 = vpop.permute.xlu0 %1026
  %1028 = vrot.lane.b32.xlu0 %v411, 3
  %v1029 = vpop.permute.xlu0 %1028
  %1030 = vrot.lane.b32.xlu0 %v412, 3
  %v1031 = vpop.permute.xlu0 %1030
  %1032 = vrot.lane.b32.xlu0 %v413, 3
  %v1033 = vpop.permute.xlu0 %1032
  %1034 = vrot.lane.b32.xlu0 %v414, 3
  %v1035 = vpop.permute.xlu0 %1034
  %1036 = vrot.lane.b32.xlu0 %v415, 3
  %v1037 = vpop.permute.xlu0 %1036
  %1038 = vrot.lane.b32.xlu0 %v416, 3
  %v1039 = vpop.permute.xlu0 %1038
  %1040 = vrot.lane.b32.xlu0 %v417, 3
  %v1041 = vpop.permute.xlu0 %1040
  %1042 = vrot.lane.b32.xlu0 %v418, 3
  %v1043 = vpop.permute.xlu0 %1042
  %1044 = vrot.lane.b32.xlu0 %v419, 3
  %v1045 = vpop.permute.xlu0 %1044
  %1046 = vrot.lane.b32.xlu0 %v420, 3
  %v1047 = vpop.permute.xlu0 %1046
  %1048 = vrot.lane.b32.xlu0 %v421, 3
  %v1049 = vpop.permute.xlu0 %1048
  %1050 = vrot.lane.b32.xlu0 %v422, 3
  %v1051 = vpop.permute.xlu0 %1050
  %1052 = vrot.lane.b32.xlu0 %v423, 3
  %v1053 = vpop.permute.xlu0 %1052
  %1054 = vrot.lane.b32.xlu0 %v424, 3
  %v1055 = vpop.permute.xlu0 %1054
  %1056 = vrot.lane.b32.xlu0 %v425, 3
  %v1057 = vpop.permute.xlu0 %1056
  %1058 = vrot.lane.b32.xlu0 %v426, 3
  %v1059 = vpop.permute.xlu0 %1058
  %1060 = vrot.lane.b32.xlu0 %v427, 3
  %v1061 = vpop.permute.xlu0 %1060
  %1062 = vrot.lane.b32.xlu0 %v428, 3
  %v1063 = vpop.permute.xlu0 %1062
  %1064 = vrot.lane.b32.xlu0 %v429, 3
  %v1065 = vpop.permute.xlu0 %1064
  %1066 = vrot.lane.b32.xlu0 %v430, 3
  %v1067 = vpop.permute.xlu0 %1066
  %1068 = vrot.lane.b32.xlu0 %v431, 3
  %v1069 = vpop.permute.xlu0 %1068
  %1070 = vrot.lane.b32.xlu0 %v432, 3
  %v1071 = vpop.permute.xlu0 %1070
  %1072 = vrot.lane.b32.xlu0 %v433, 3
  %v1073 = vpop.permute.xlu0 %1072
  %1074 = vrot.lane.b32.xlu0 %v434, 3
  %v1075 = vpop.permute.xlu0 %1074
  %1204 = vrot.lane.b32.xlu0 %v435, 6
  %v1205 = vpop.permute.xlu0 %1204
  %1206 = vrot.lane.b32.xlu0 %v436, 6
  %v1207 = vpop.permute.xlu0 %1206
  %1208 = vrot.lane.b32.xlu0 %v437, 6
  %v1209 = vpop.permute.xlu0 %1208
  %1210 = vrot.lane.b32.xlu0 %v438, 6
  %v1211 = vpop.permute.xlu0 %1210
  %1212 = vrot.lane.b32.xlu0 %v439, 6
  %v1213 = vpop.permute.xlu0 %1212
  %1214 = vrot.lane.b32.xlu0 %v440, 6
  %v1215 = vpop.permute.xlu0 %1214
  %1216 = vrot.lane.b32.xlu0 %v441, 6
  %v1217 = vpop.permute.xlu0 %1216
  %1218 = vrot.lane.b32.xlu0 %v442, 6
  %v1219 = vpop.permute.xlu0 %1218
  %1220 = vrot.lane.b32.xlu0 %v443, 6
  %v1221 = vpop.permute.xlu0 %1220
  %1222 = vrot.lane.b32.xlu0 %v444, 6
  %v1223 = vpop.permute.xlu0 %1222
  %1224 = vrot.lane.b32.xlu0 %v445, 6
  %v1225 = vpop.permute.xlu0 %1224
  %1226 = vrot.lane.b32.xlu0 %v446, 6
  %v1227 = vpop.permute.xlu0 %1226
  %1228 = vrot.lane.b32.xlu0 %v447, 6
  %v1229 = vpop.permute.xlu0 %1228
  %1230 = vrot.lane.b32.xlu0 %v448, 6
  %v1231 = vpop.permute.xlu0 %1230
  %1232 = vrot.lane.b32.xlu0 %v449, 6
  %v1233 = vpop.permute.xlu0 %1232
  %1234 = vrot.lane.b32.xlu0 %v450, 6
  %v1235 = vpop.permute.xlu0 %1234
  %1236 = vrot.lane.b32.xlu0 %v451, 6
  %v1237 = vpop.permute.xlu0 %1236
  %1238 = vrot.lane.b32.xlu0 %v452, 6
  %v1239 = vpop.permute.xlu0 %1238
  %1240 = vrot.lane.b32.xlu0 %v453, 6
  %v1241 = vpop.permute.xlu0 %1240
  %1242 = vrot.lane.b32.xlu0 %v454, 6
  %v1243 = vpop.permute.xlu0 %1242
  %1244 = vrot.lane.b32.xlu0 %v455, 6
  %v1245 = vpop.permute.xlu0 %1244
  %1246 = vrot.lane.b32.xlu0 %v456, 6
  %v1247 = vpop.permute.xlu0 %1246
  %1248 = vrot.lane.b32.xlu0 %v457, 6
  %v1249 = vpop.permute.xlu0 %1248
  %1250 = vrot.lane.b32.xlu0 %v458, 6
  %v1251 = vpop.permute.xlu0 %1250
  %1252 = vrot.lane.b32.xlu0 %v459, 6
  %v1253 = vpop.permute.xlu0 %1252
  %1254 = vrot.lane.b32.xlu0 %v460, 6
  %v1255 = vpop.permute.xlu0 %1254
  %1256 = vrot.lane.b32.xlu0 %v461, 6
  %v1257 = vpop.permute.xlu0 %1256
  %1258 = vrot.lane.b32.xlu0 %v462, 6
  %v1259 = vpop.permute.xlu0 %1258
  %1260 = vrot.lane.b32.xlu0 %v463, 6
  %v1261 = vpop.permute.xlu0 %1260
  %1262 = vrot.lane.b32.xlu0 %v464, 6
  %v1263 = vpop.permute.xlu0 %1262
  %1264 = vrot.lane.b32.xlu0 %v465, 6
  %v1265 = vpop.permute.xlu0 %1264
  %1266 = vrot.lane.b32.xlu0 %v466, 6
  %v1267 = vpop.permute.xlu0 %1266
  %1268 = vrot.lane.b32.xlu0 %v467, 6
  %v1269 = vpop.permute.xlu0 %1268
  %1270 = vrot.lane.b32.xlu0 %v468, 6
  %v1271 = vpop.permute.xlu0 %1270
  %1272 = vrot.lane.b32.xlu0 %v469, 6
  %v1273 = vpop.permute.xlu0 %1272
  %1274 = vrot.lane.b32.xlu0 %v470, 6
  %v1275 = vpop.permute.xlu0 %1274
  %1276 = vrot.lane.b32.xlu0 %v471, 6
  %v1277 = vpop.permute.xlu0 %1276
  %1278 = vrot.lane.b32.xlu0 %v472, 6
  %v1279 = vpop.permute.xlu0 %1278
  %1280 = vrot.lane.b32.xlu0 %v473, 6
  %v1281 = vpop.permute.xlu0 %1280
  %1282 = vrot.lane.b32.xlu0 %v474, 6
  %v1283 = vpop.permute.xlu0 %1282
  %1284 = vrot.lane.b32.xlu0 %v475, 6
  %v1285 = vpop.permute.xlu0 %1284
  %1286 = vrot.lane.b32.xlu0 %v476, 6
  %v1287 = vpop.permute.xlu0 %1286
  %1288 = vrot.lane.b32.xlu0 %v477, 6
  %v1289 = vpop.permute.xlu0 %1288
  %1290 = vrot.lane.b32.xlu0 %v478, 6
  %v1291 = vpop.permute.xlu0 %1290
  %1292 = vrot.lane.b32.xlu0 %v479, 6
  %v1293 = vpop.permute.xlu0 %1292
  %1294 = vrot.lane.b32.xlu0 %v480, 6
  %v1295 = vpop.permute.xlu0 %1294
  %1296 = vrot.lane.b32.xlu0 %v481, 6
  %v1297 = vpop.permute.xlu0 %1296
  %1298 = vrot.lane.b32.xlu0 %v482, 6
  %v1299 = vpop.permute.xlu0 %1298
  %1300 = vrot.lane.b32.xlu0 %v483, 6
  %v1301 = vpop.permute.xlu0 %1300
  %1302 = vrot.lane.b32.xlu0 %v484, 6
  %v1303 = vpop.permute.xlu0 %1302
  %1304 = vrot.lane.b32.xlu0 %v485, 6
  %v1305 = vpop.permute.xlu0 %1304
  %1306 = vrot.lane.b32.xlu0 %v486, 6
  %v1307 = vpop.permute.xlu0 %1306
  %1308 = vrot.lane.b32.xlu0 %v487, 6
  %v1309 = vpop.permute.xlu0 %1308
  %1310 = vrot.lane.b32.xlu0 %v488, 6
  %v1311 = vpop.permute.xlu0 %1310
  %1312 = vrot.lane.b32.xlu0 %v489, 6
  %v1313 = vpop.permute.xlu0 %1312
  %1314 = vrot.lane.b32.xlu0 %v490, 6
  %v1315 = vpop.permute.xlu0 %1314
  %1316 = vrot.lane.b32.xlu0 %v491, 6
  %v1317 = vpop.permute.xlu0 %1316
  %1318 = vrot.lane.b32.xlu0 %v492, 6
  %v1319 = vpop.permute.xlu0 %1318
  %1320 = vrot.lane.b32.xlu0 %v493, 6
  %v1321 = vpop.permute.xlu0 %1320
  %1322 = vrot.lane.b32.xlu0 %v494, 6
  %v1323 = vpop.permute.xlu0 %1322
  %1324 = vrot.lane.b32.xlu0 %v495, 6
  %v1325 = vpop.permute.xlu0 %1324
  %1326 = vrot.lane.b32.xlu0 %v496, 6
  %v1327 = vpop.permute.xlu0 %1326
  %1328 = vrot.lane.b32.xlu0 %v497, 6
  %v1329 = vpop.permute.xlu0 %1328
  %1330 = vrot.lane.b32.xlu0 %v498, 6
  %v1331 = vpop.permute.xlu0 %1330
  %1460 = vrot.lane.b32.xlu0 %v499, 9
  %v1461 = vpop.permute.xlu0 %1460
  %1462 = vrot.lane.b32.xlu0 %v500, 9
  %v1463 = vpop.permute.xlu0 %1462
  %1464 = vrot.lane.b32.xlu0 %v501, 9
  %v1465 = vpop.permute.xlu0 %1464
  %1466 = vrot.lane.b32.xlu0 %v502, 9
  %v1467 = vpop.permute.xlu0 %1466
  %1468 = vrot.lane.b32.xlu0 %v503, 9
  %v1469 = vpop.permute.xlu0 %1468
  %1470 = vrot.lane.b32.xlu0 %v504, 9
  %v1471 = vpop.permute.xlu0 %1470
  %1472 = vrot.lane.b32.xlu0 %v505, 9
  %v1473 = vpop.permute.xlu0 %1472
  %1474 = vrot.lane.b32.xlu0 %v506, 9
  %v1475 = vpop.permute.xlu0 %1474
  %1476 = vrot.lane.b32.xlu0 %v507, 9
  %v1477 = vpop.permute.xlu0 %1476
  %1478 = vrot.lane.b32.xlu0 %v508, 9
  %v1479 = vpop.permute.xlu0 %1478
  %1480 = vrot.lane.b32.xlu0 %v509, 9
  %v1481 = vpop.permute.xlu0 %1480
  %1482 = vrot.lane.b32.xlu0 %v510, 9
  %v1483 = vpop.permute.xlu0 %1482
  %1484 = vrot.lane.b32.xlu0 %v511, 9
  %v1485 = vpop.permute.xlu0 %1484
  %1486 = vrot.lane.b32.xlu0 %v512, 9
  %v1487 = vpop.permute.xlu0 %1486
  %1488 = vrot.lane.b32.xlu0 %v513, 9
  %v1489 = vpop.permute.xlu0 %1488
  %1490 = vrot.lane.b32.xlu0 %v514, 9
  %v1491 = vpop.permute.xlu0 %1490
  %1492 = vrot.lane.b32.xlu0 %v515, 9
  %v1493 = vpop.permute.xlu0 %1492
  %1494 = vrot.lane.b32.xlu0 %v516, 9
  %v1495 = vpop.permute.xlu0 %1494
  %1496 = vrot.lane.b32.xlu0 %v517, 9
  %v1497 = vpop.permute.xlu0 %1496
  %1498 = vrot.lane.b32.xlu0 %v518, 9
  %v1499 = vpop.permute.xlu0 %1498
  %1500 = vrot.lane.b32.xlu0 %v519, 9
  %v1501 = vpop.permute.xlu0 %1500
  %1502 = vrot.lane.b32.xlu0 %v520, 9
  %v1503 = vpop.permute.xlu0 %1502
  %1504 = vrot.lane.b32.xlu0 %v521, 9
  %v1505 = vpop.permute.xlu0 %1504
  %1506 = vrot.lane.b32.xlu0 %v522, 9
  %v1507 = vpop.permute.xlu0 %1506
  %1508 = vrot.lane.b32.xlu0 %v523, 9
  %v1509 = vpop.permute.xlu0 %1508
  %1510 = vrot.lane.b32.xlu0 %v524, 9
  %v1511 = vpop.permute.xlu0 %1510
  %1512 = vrot.lane.b32.xlu0 %v525, 9
  %v1513 = vpop.permute.xlu0 %1512
  %1514 = vrot.lane.b32.xlu0 %v526, 9
  %v1515 = vpop.permute.xlu0 %1514
  %1516 = vrot.lane.b32.xlu0 %v527, 9
  %v1517 = vpop.permute.xlu0 %1516
  %1518 = vrot.lane.b32.xlu0 %v528, 9
  %v1519 = vpop.permute.xlu0 %1518
  %1520 = vrot.lane.b32.xlu0 %v529, 9
  %v1521 = vpop.permute.xlu0 %1520
  %1522 = vrot.lane.b32.xlu0 %v530, 9
  %v1523 = vpop.permute.xlu0 %1522
  %1524 = vrot.lane.b32.xlu0 %v531, 9
  %v1525 = vpop.permute.xlu0 %1524
  %1526 = vrot.lane.b32.xlu0 %v532, 9
  %v1527 = vpop.permute.xlu0 %1526
  %1528 = vrot.lane.b32.xlu0 %v533, 9
  %v1529 = vpop.permute.xlu0 %1528
  %1530 = vrot.lane.b32.xlu0 %v534, 9
  %v1531 = vpop.permute.xlu0 %1530
  %1532 = vrot.lane.b32.xlu0 %v535, 9
  %v1533 = vpop.permute.xlu0 %1532
  %1534 = vrot.lane.b32.xlu0 %v536, 9
  %v1535 = vpop.permute.xlu0 %1534
  %1536 = vrot.lane.b32.xlu0 %v537, 9
  %v1537 = vpop.permute.xlu0 %1536
  %1538 = vrot.lane.b32.xlu0 %v538, 9
  %v1539 = vpop.permute.xlu0 %1538
  %1540 = vrot.lane.b32.xlu0 %v539, 9
  %v1541 = vpop.permute.xlu0 %1540
  %1542 = vrot.lane.b32.xlu0 %v540, 9
  %v1543 = vpop.permute.xlu0 %1542
  %1544 = vrot.lane.b32.xlu0 %v541, 9
  %v1545 = vpop.permute.xlu0 %1544
  %1546 = vrot.lane.b32.xlu0 %v542, 9
  %v1547 = vpop.permute.xlu0 %1546
  %1548 = vrot.lane.b32.xlu0 %v543, 9
  %v1549 = vpop.permute.xlu0 %1548
  %1550 = vrot.lane.b32.xlu0 %v544, 9
  %v1551 = vpop.permute.xlu0 %1550
  %1552 = vrot.lane.b32.xlu0 %v545, 9
  %v1553 = vpop.permute.xlu0 %1552
  %1554 = vrot.lane.b32.xlu0 %v546, 9
  %v1555 = vpop.permute.xlu0 %1554
  %1556 = vrot.lane.b32.xlu0 %v547, 9
  %v1557 = vpop.permute.xlu0 %1556
  %1558 = vrot.lane.b32.xlu0 %v548, 9
  %v1559 = vpop.permute.xlu0 %1558
  %1560 = vrot.lane.b32.xlu0 %v549, 9
  %v1561 = vpop.permute.xlu0 %1560
  %1562 = vrot.lane.b32.xlu0 %v550, 9
  %v1563 = vpop.permute.xlu0 %1562
  %1564 = vrot.lane.b32.xlu0 %v551, 9
  %v1565 = vpop.permute.xlu0 %1564
  %1566 = vrot.lane.b32.xlu0 %v552, 9
  %v1567 = vpop.permute.xlu0 %1566
  %1568 = vrot.lane.b32.xlu0 %v553, 9
  %v1569 = vpop.permute.xlu0 %1568
  %1570 = vrot.lane.b32.xlu0 %v554, 9
  %v1571 = vpop.permute.xlu0 %1570
  %1572 = vrot.lane.b32.xlu0 %v555, 9
  %v1573 = vpop.permute.xlu0 %1572
  %1574 = vrot.lane.b32.xlu0 %v556, 9
  %v1575 = vpop.permute.xlu0 %1574
  %1576 = vrot.lane.b32.xlu0 %v557, 9
  %v1577 = vpop.permute.xlu0 %1576
  %1578 = vrot.lane.b32.xlu0 %v558, 9
  %v1579 = vpop.permute.xlu0 %1578
  %1580 = vrot.lane.b32.xlu0 %v559, 9
  %v1581 = vpop.permute.xlu0 %1580
  %1582 = vrot.lane.b32.xlu0 %v560, 9
  %v1583 = vpop.permute.xlu0 %1582
  %1584 = vrot.lane.b32.xlu0 %v561, 9
  %v1585 = vpop.permute.xlu0 %1584
  %1586 = vrot.lane.b32.xlu0 %v562, 9
  %v1587 = vpop.permute.xlu0 %1586
  %1716 = vrot.lane.b32.xlu0 %v563, 12
  %v1717 = vpop.permute.xlu0 %1716
  %1718 = vrot.lane.b32.xlu0 %v564, 12
  %v1719 = vpop.permute.xlu0 %1718
  %1720 = vrot.lane.b32.xlu0 %v565, 12
  %v1721 = vpop.permute.xlu0 %1720
  %1722 = vrot.lane.b32.xlu0 %v566, 12
  %v1723 = vpop.permute.xlu0 %1722
  %1724 = vrot.lane.b32.xlu0 %v567, 12
  %v1725 = vpop.permute.xlu0 %1724
  %1726 = vrot.lane.b32.xlu0 %v568, 12
  %v1727 = vpop.permute.xlu0 %1726
  %1728 = vrot.lane.b32.xlu0 %v569, 12
  %v1729 = vpop.permute.xlu0 %1728
  %1730 = vrot.lane.b32.xlu0 %v570, 12
  %v1731 = vpop.permute.xlu0 %1730
  %1732 = vrot.lane.b32.xlu0 %v571, 12
  %v1733 = vpop.permute.xlu0 %1732
  %1734 = vrot.lane.b32.xlu0 %v572, 12
  %v1735 = vpop.permute.xlu0 %1734
  %1736 = vrot.lane.b32.xlu0 %v573, 12
  %v1737 = vpop.permute.xlu0 %1736
  %1738 = vrot.lane.b32.xlu0 %v574, 12
  %v1739 = vpop.permute.xlu0 %1738
  %1740 = vrot.lane.b32.xlu0 %v575, 12
  %v1741 = vpop.permute.xlu0 %1740
  %1742 = vrot.lane.b32.xlu0 %v576, 12
  %v1743 = vpop.permute.xlu0 %1742
  %1744 = vrot.lane.b32.xlu0 %v577, 12
  %v1745 = vpop.permute.xlu0 %1744
  %1746 = vrot.lane.b32.xlu0 %v578, 12
  %v1747 = vpop.permute.xlu0 %1746
  %1748 = vrot.lane.b32.xlu0 %v579, 12
  %v1749 = vpop.permute.xlu0 %1748
  %1750 = vrot.lane.b32.xlu0 %v580, 12
  %v1751 = vpop.permute.xlu0 %1750
  %1752 = vrot.lane.b32.xlu0 %v581, 12
  %v1753 = vpop.permute.xlu0 %1752
  %1754 = vrot.lane.b32.xlu0 %v582, 12
  %v1755 = vpop.permute.xlu0 %1754
  %1756 = vrot.lane.b32.xlu0 %v583, 12
  %v1757 = vpop.permute.xlu0 %1756
  %1758 = vrot.lane.b32.xlu0 %v584, 12
  %v1759 = vpop.permute.xlu0 %1758
  %1760 = vrot.lane.b32.xlu0 %v585, 12
  %v1761 = vpop.permute.xlu0 %1760
  %1762 = vrot.lane.b32.xlu0 %v586, 12
  %v1763 = vpop.permute.xlu0 %1762
  %1764 = vrot.lane.b32.xlu0 %v587, 12
  %v1765 = vpop.permute.xlu0 %1764
  %1766 = vrot.lane.b32.xlu0 %v588, 12
  %v1767 = vpop.permute.xlu0 %1766
  %1768 = vrot.lane.b32.xlu0 %v589, 12
  %v1769 = vpop.permute.xlu0 %1768
  %1770 = vrot.lane.b32.xlu0 %v590, 12
  %v1771 = vpop.permute.xlu0 %1770
  %1772 = vrot.lane.b32.xlu0 %v591, 12
  %v1773 = vpop.permute.xlu0 %1772
  %1774 = vrot.lane.b32.xlu0 %v592, 12
  %v1775 = vpop.permute.xlu0 %1774
  %1776 = vrot.lane.b32.xlu0 %v593, 12
  %v1777 = vpop.permute.xlu0 %1776
  %1778 = vrot.lane.b32.xlu0 %v594, 12
  %v1779 = vpop.permute.xlu0 %1778
  %1780 = vrot.lane.b32.xlu0 %v595, 12
  %v1781 = vpop.permute.xlu0 %1780
  %1782 = vrot.lane.b32.xlu0 %v596, 12
  %v1783 = vpop.permute.xlu0 %1782
  %1784 = vrot.lane.b32.xlu0 %v597, 12
  %v1785 = vpop.permute.xlu0 %1784
  %1786 = vrot.lane.b32.xlu0 %v598, 12
  %v1787 = vpop.permute.xlu0 %1786
  %1788 = vrot.lane.b32.xlu0 %v599, 12
  %v1789 = vpop.permute.xlu0 %1788
  %1790 = vrot.lane.b32.xlu0 %v600, 12
  %v1791 = vpop.permute.xlu0 %1790
  %1792 = vrot.lane.b32.xlu0 %v601, 12
  %v1793 = vpop.permute.xlu0 %1792
  %1794 = vrot.lane.b32.xlu0 %v602, 12
  %v1795 = vpop.permute.xlu0 %1794
  %1796 = vrot.lane.b32.xlu0 %v603, 12
  %v1797 = vpop.permute.xlu0 %1796
  %1798 = vrot.lane.b32.xlu0 %v604, 12
  %v1799 = vpop.permute.xlu0 %1798
  %1800 = vrot.lane.b32.xlu0 %v605, 12
  %v1801 = vpop.permute.xlu0 %1800
  %1802 = vrot.lane.b32.xlu0 %v606, 12
  %v1803 = vpop.permute.xlu0 %1802
  %1804 = vrot.lane.b32.xlu0 %v607, 12
  %v1805 = vpop.permute.xlu0 %1804
  %1806 = vrot.lane.b32.xlu0 %v608, 12
  %v1807 = vpop.permute.xlu0 %1806
  %1808 = vrot.lane.b32.xlu0 %v609, 12
  %v1809 = vpop.permute.xlu0 %1808
  %1810 = vrot.lane.b32.xlu0 %v610, 12
  %v1811 = vpop.permute.xlu0 %1810
  %1812 = vrot.lane.b32.xlu0 %v611, 12
  %v1813 = vpop.permute.xlu0 %1812
  %1814 = vrot.lane.b32.xlu0 %v612, 12
  %v1815 = vpop.permute.xlu0 %1814
  %1816 = vrot.lane.b32.xlu0 %v613, 12
  %v1817 = vpop.permute.xlu0 %1816
  %1818 = vrot.lane.b32.xlu0 %v614, 12
  %v1819 = vpop.permute.xlu0 %1818
  %1820 = vrot.lane.b32.xlu0 %v615, 12
  %v1821 = vpop.permute.xlu0 %1820
  %1822 = vrot.lane.b32.xlu0 %v616, 12
  %v1823 = vpop.permute.xlu0 %1822
  %1824 = vrot.lane.b32.xlu0 %v617, 12
  %v1825 = vpop.permute.xlu0 %1824
  %1826 = vrot.lane.b32.xlu0 %v618, 12
  %v1827 = vpop.permute.xlu0 %1826
  %1828 = vrot.lane.b32.xlu0 %v619, 12
  %v1829 = vpop.permute.xlu0 %1828
  %1830 = vrot.lane.b32.xlu0 %v620, 12
  %v1831 = vpop.permute.xlu0 %1830
  %1832 = vrot.lane.b32.xlu0 %v621, 12
  %v1833 = vpop.permute.xlu0 %1832
  %1834 = vrot.lane.b32.xlu0 %v622, 12
  %v1835 = vpop.permute.xlu0 %1834
  %1836 = vrot.lane.b32.xlu0 %v623, 12
  %v1837 = vpop.permute.xlu0 %1836
  %1838 = vrot.lane.b32.xlu0 %v624, 12
  %v1839 = vpop.permute.xlu0 %1838
  %1840 = vrot.lane.b32.xlu0 %v625, 12
  %v1841 = vpop.permute.xlu0 %1840
  %1842 = vrot.lane.b32.xlu0 %v626, 12
  %v1843 = vpop.permute.xlu0 %1842
  %1972 = vrot.lane.b32.xlu0 %v627, 15
  %v1973 = vpop.permute.xlu0 %1972
  %1974 = vrot.lane.b32.xlu0 %v628, 15
  %v1975 = vpop.permute.xlu0 %1974
  %1976 = vrot.lane.b32.xlu0 %v629, 15
  %v1977 = vpop.permute.xlu0 %1976
  %1978 = vrot.lane.b32.xlu0 %v630, 15
  %v1979 = vpop.permute.xlu0 %1978
  %1980 = vrot.lane.b32.xlu0 %v631, 15
  %v1981 = vpop.permute.xlu0 %1980
  %1982 = vrot.lane.b32.xlu0 %v632, 15
  %v1983 = vpop.permute.xlu0 %1982
  %1984 = vrot.lane.b32.xlu0 %v633, 15
  %v1985 = vpop.permute.xlu0 %1984
  %1986 = vrot.lane.b32.xlu0 %v634, 15
  %v1987 = vpop.permute.xlu0 %1986
  %1988 = vrot.lane.b32.xlu0 %v635, 15
  %v1989 = vpop.permute.xlu0 %1988
  %1990 = vrot.lane.b32.xlu0 %v636, 15
  %v1991 = vpop.permute.xlu0 %1990
  %1992 = vrot.lane.b32.xlu0 %v637, 15
  %v1993 = vpop.permute.xlu0 %1992
  %1994 = vrot.lane.b32.xlu0 %v638, 15
  %v1995 = vpop.permute.xlu0 %1994
  %1996 = vrot.lane.b32.xlu0 %v639, 15
  %v1997 = vpop.permute.xlu0 %1996
  %1998 = vrot.lane.b32.xlu0 %v640, 15
  %v1999 = vpop.permute.xlu0 %1998
  %2000 = vrot.lane.b32.xlu0 %v641, 15
  %v2001 = vpop.permute.xlu0 %2000
  %2002 = vrot.lane.b32.xlu0 %v642, 15
  %v2003 = vpop.permute.xlu0 %2002
  %2004 = vrot.lane.b32.xlu0 %v643, 15
  %v2005 = vpop.permute.xlu0 %2004
  %2006 = vrot.lane.b32.xlu0 %v644, 15
  %v2007 = vpop.permute.xlu0 %2006
  %2008 = vrot.lane.b32.xlu0 %v645, 15
  %v2009 = vpop.permute.xlu0 %2008
  %2010 = vrot.lane.b32.xlu0 %v646, 15
  %v2011 = vpop.permute.xlu0 %2010
  %2012 = vrot.lane.b32.xlu0 %v647, 15
  %v2013 = vpop.permute.xlu0 %2012
  %2014 = vrot.lane.b32.xlu0 %v648, 15
  %v2015 = vpop.permute.xlu0 %2014
  %2016 = vrot.lane.b32.xlu0 %v649, 15
  %v2017 = vpop.permute.xlu0 %2016
  %2018 = vrot.lane.b32.xlu0 %v650, 15
  %v2019 = vpop.permute.xlu0 %2018
  %2020 = vrot.lane.b32.xlu0 %v651, 15
  %v2021 = vpop.permute.xlu0 %2020
  %2022 = vrot.lane.b32.xlu0 %v652, 15
  %v2023 = vpop.permute.xlu0 %2022
  %2024 = vrot.lane.b32.xlu0 %v653, 15
  %v2025 = vpop.permute.xlu0 %2024
  %2026 = vrot.lane.b32.xlu0 %v654, 15
  %v2027 = vpop.permute.xlu0 %2026
  %2028 = vrot.lane.b32.xlu0 %v655, 15
  %v2029 = vpop.permute.xlu0 %2028
  %2030 = vrot.lane.b32.xlu0 %v656, 15
  %v2031 = vpop.permute.xlu0 %2030
  %2032 = vrot.lane.b32.xlu0 %v657, 15
  %v2033 = vpop.permute.xlu0 %2032
  %2034 = vrot.lane.b32.xlu0 %v658, 15
  %v2035 = vpop.permute.xlu0 %2034
  %2036 = vrot.lane.b32.xlu0 %v659, 15
  %v2037 = vpop.permute.xlu0 %2036
  %2038 = vrot.lane.b32.xlu0 %v660, 15
  %v2039 = vpop.permute.xlu0 %2038
  %2040 = vrot.lane.b32.xlu0 %v661, 15
  %v2041 = vpop.permute.xlu0 %2040
  %2042 = vrot.lane.b32.xlu0 %v662, 15
  %v2043 = vpop.permute.xlu0 %2042
  %2044 = vrot.lane.b32.xlu0 %v663, 15
  %v2045 = vpop.permute.xlu0 %2044
  %2046 = vrot.lane.b32.xlu0 %v664, 15
  %v2047 = vpop.permute.xlu0 %2046
  %2048 = vrot.lane.b32.xlu0 %v665, 15
  %v2049 = vpop.permute.xlu0 %2048
  %2050 = vrot.lane.b32.xlu0 %v666, 15
  %v2051 = vpop.permute.xlu0 %2050
  %2052 = vrot.lane.b32.xlu0 %v667, 15
  %v2053 = vpop.permute.xlu0 %2052
  %2054 = vrot.lane.b32.xlu0 %v668, 15
  %v2055 = vpop.permute.xlu0 %2054
  %2056 = vrot.lane.b32.xlu0 %v669, 15
  %v2057 = vpop.permute.xlu0 %2056
  %2058 = vrot.lane.b32.xlu0 %v670, 15
  %v2059 = vpop.permute.xlu0 %2058
  %2060 = vrot.lane.b32.xlu0 %v671, 15
  %v2061 = vpop.permute.xlu0 %2060
  %2062 = vrot.lane.b32.xlu0 %v672, 15
  %v2063 = vpop.permute.xlu0 %2062
  %2064 = vrot.lane.b32.xlu0 %v673, 15
  %v2065 = vpop.permute.xlu0 %2064
  %2066 = vrot.lane.b32.xlu0 %v674, 15
  %v2067 = vpop.permute.xlu0 %2066
  %2068 = vrot.lane.b32.xlu0 %v675, 15
  %v2069 = vpop.permute.xlu0 %2068
  %2070 = vrot.lane.b32.xlu0 %v676, 15
  %v2071 = vpop.permute.xlu0 %2070
  %2072 = vrot.lane.b32.xlu0 %v677, 15
  %v2073 = vpop.permute.xlu0 %2072
  %2074 = vrot.lane.b32.xlu0 %v678, 15
  %v2075 = vpop.permute.xlu0 %2074
  %2076 = vrot.lane.b32.xlu0 %v679, 15
  %v2077 = vpop.permute.xlu0 %2076
  %2078 = vrot.lane.b32.xlu0 %v680, 15
  %v2079 = vpop.permute.xlu0 %2078
  %2080 = vrot.lane.b32.xlu0 %v681, 15
  %v2081 = vpop.permute.xlu0 %2080
  %2082 = vrot.lane.b32.xlu0 %v682, 15
  %v2083 = vpop.permute.xlu0 %2082
  %2084 = vrot.lane.b32.xlu0 %v683, 15
  %v2085 = vpop.permute.xlu0 %2084
  %2086 = vrot.lane.b32.xlu0 %v684, 15
  %v2087 = vpop.permute.xlu0 %2086
  %2088 = vrot.lane.b32.xlu0 %v685, 15
  %v2089 = vpop.permute.xlu0 %2088
  %2090 = vrot.lane.b32.xlu0 %v686, 15
  %v2091 = vpop.permute.xlu0 %2090
  %2092 = vrot.lane.b32.xlu0 %v687, 15
  %v2093 = vpop.permute.xlu0 %2092
  %2094 = vrot.lane.b32.xlu0 %v688, 15
  %v2095 = vpop.permute.xlu0 %2094
  %2096 = vrot.lane.b32.xlu0 %v689, 15
  %v2097 = vpop.permute.xlu0 %2096
  %2098 = vrot.lane.b32.xlu0 %v690, 15
  %v2099 = vpop.permute.xlu0 %2098
  %2228 = vrot.lane.b32.xlu0 %v692, 18
  %v2229 = vpop.permute.xlu0 %2228
  %2230 = vrot.lane.b32.xlu0 %v693, 18
  %v2231 = vpop.permute.xlu0 %2230
  %2232 = vrot.lane.b32.xlu0 %v694, 18
  %v2233 = vpop.permute.xlu0 %2232
  %2234 = vrot.lane.b32.xlu0 %v695, 18
  %v2235 = vpop.permute.xlu0 %2234
  %2236 = vrot.lane.b32.xlu0 %v696, 18
  %v2237 = vpop.permute.xlu0 %2236
  %2238 = vrot.lane.b32.xlu0 %v697, 18
  %v2239 = vpop.permute.xlu0 %2238
  %2240 = vrot.lane.b32.xlu0 %v698, 18
  %v2241 = vpop.permute.xlu0 %2240
  %2242 = vrot.lane.b32.xlu0 %v699, 18
  %v2243 = vpop.permute.xlu0 %2242
  %2244 = vrot.lane.b32.xlu0 %v700, 18
  %v2245 = vpop.permute.xlu0 %2244
  %2246 = vrot.lane.b32.xlu0 %v701, 18
  %v2247 = vpop.permute.xlu0 %2246
  %2248 = vrot.lane.b32.xlu0 %v702, 18
  %v2249 = vpop.permute.xlu0 %2248
  %2250 = vrot.lane.b32.xlu0 %v703, 18
  %v2251 = vpop.permute.xlu0 %2250
  %2252 = vrot.lane.b32.xlu0 %v704, 18
  %v2253 = vpop.permute.xlu0 %2252
  %2254 = vrot.lane.b32.xlu0 %v705, 18
  %v2255 = vpop.permute.xlu0 %2254
  %2256 = vrot.lane.b32.xlu0 %v706, 18
  %v2257 = vpop.permute.xlu0 %2256
  %2258 = vrot.lane.b32.xlu0 %v707, 18
  %v2259 = vpop.permute.xlu0 %2258
  %2260 = vrot.lane.b32.xlu0 %v708, 18
  %v2261 = vpop.permute.xlu0 %2260
  %2262 = vrot.lane.b32.xlu0 %v709, 18
  %v2263 = vpop.permute.xlu0 %2262
  %2264 = vrot.lane.b32.xlu0 %v710, 18
  %v2265 = vpop.permute.xlu0 %2264
  %2266 = vrot.lane.b32.xlu0 %v711, 18
  %v2267 = vpop.permute.xlu0 %2266
  %2268 = vrot.lane.b32.xlu0 %v712, 18
  %v2269 = vpop.permute.xlu0 %2268
  %2270 = vrot.lane.b32.xlu0 %v713, 18
  %v2271 = vpop.permute.xlu0 %2270
  %2272 = vrot.lane.b32.xlu0 %v714, 18
  %v2273 = vpop.permute.xlu0 %2272
  %2274 = vrot.lane.b32.xlu0 %v715, 18
  %v2275 = vpop.permute.xlu0 %2274
  %2276 = vrot.lane.b32.xlu0 %v716, 18
  %v2277 = vpop.permute.xlu0 %2276
  %2278 = vrot.lane.b32.xlu0 %v717, 18
  %v2279 = vpop.permute.xlu0 %2278
  %2280 = vrot.lane.b32.xlu0 %v718, 18
  %v2281 = vpop.permute.xlu0 %2280
  %2282 = vrot.lane.b32.xlu0 %v719, 18
  %v2283 = vpop.permute.xlu0 %2282
  %2284 = vrot.lane.b32.xlu0 %v720, 18
  %v2285 = vpop.permute.xlu0 %2284
  %2286 = vrot.lane.b32.xlu0 %v721, 18
  %v2287 = vpop.permute.xlu0 %2286
  %2288 = vrot.lane.b32.xlu0 %v722, 18
  %v2289 = vpop.permute.xlu0 %2288
  %2290 = vrot.lane.b32.xlu0 %v723, 18
  %v2291 = vpop.permute.xlu0 %2290
  %2292 = vrot.lane.b32.xlu0 %v724, 18
  %v2293 = vpop.permute.xlu0 %2292
  %2294 = vrot.lane.b32.xlu0 %v725, 18
  %v2295 = vpop.permute.xlu0 %2294
  %2296 = vrot.lane.b32.xlu0 %v726, 18
  %v2297 = vpop.permute.xlu0 %2296
  %2298 = vrot.lane.b32.xlu0 %v727, 18
  %v2299 = vpop.permute.xlu0 %2298
  %2300 = vrot.lane.b32.xlu0 %v728, 18
  %v2301 = vpop.permute.xlu0 %2300
  %2302 = vrot.lane.b32.xlu0 %v729, 18
  %v2303 = vpop.permute.xlu0 %2302
  %2304 = vrot.lane.b32.xlu0 %v730, 18
  %v2305 = vpop.permute.xlu0 %2304
  %2306 = vrot.lane.b32.xlu0 %v731, 18
  %v2307 = vpop.permute.xlu0 %2306
  %2308 = vrot.lane.b32.xlu0 %v732, 18
  %v2309 = vpop.permute.xlu0 %2308
  %2310 = vrot.lane.b32.xlu0 %v733, 18
  %v2311 = vpop.permute.xlu0 %2310
  %2312 = vrot.lane.b32.xlu0 %v734, 18
  %v2313 = vpop.permute.xlu0 %2312
  %2314 = vrot.lane.b32.xlu0 %v735, 18
  %v2315 = vpop.permute.xlu0 %2314
  %2316 = vrot.lane.b32.xlu0 %v736, 18
  %v2317 = vpop.permute.xlu0 %2316
  %2318 = vrot.lane.b32.xlu0 %v737, 18
  %v2319 = vpop.permute.xlu0 %2318
  %2320 = vrot.lane.b32.xlu0 %v738, 18
  %v2321 = vpop.permute.xlu0 %2320
  %2322 = vrot.lane.b32.xlu0 %v739, 18
  %v2323 = vpop.permute.xlu0 %2322
  %2324 = vrot.lane.b32.xlu0 %v740, 18
  %v2325 = vpop.permute.xlu0 %2324
  %2326 = vrot.lane.b32.xlu0 %v741, 18
  %v2327 = vpop.permute.xlu0 %2326
  %2328 = vrot.lane.b32.xlu0 %v742, 18
  %v2329 = vpop.permute.xlu0 %2328
  %2330 = vrot.lane.b32.xlu0 %v743, 18
  %v2331 = vpop.permute.xlu0 %2330
  %2332 = vrot.lane.b32.xlu0 %v744, 18
  %v2333 = vpop.permute.xlu0 %2332
  %2334 = vrot.lane.b32.xlu0 %v745, 18
  %v2335 = vpop.permute.xlu0 %2334
  %2336 = vrot.lane.b32.xlu0 %v746, 18
  %v2337 = vpop.permute.xlu0 %2336
  %2338 = vrot.lane.b32.xlu0 %v747, 18
  %v2339 = vpop.permute.xlu0 %2338
  %2340 = vrot.lane.b32.xlu0 %v748, 18
  %v2341 = vpop.permute.xlu0 %2340
  %2342 = vrot.lane.b32.xlu0 %v749, 18
  %v2343 = vpop.permute.xlu0 %2342
  %2344 = vrot.lane.b32.xlu0 %v750, 18
  %v2345 = vpop.permute.xlu0 %2344
  %2346 = vrot.lane.b32.xlu0 %v751, 18
  %v2347 = vpop.permute.xlu0 %2346
  %2348 = vrot.lane.b32.xlu0 %v752, 18
  %v2349 = vpop.permute.xlu0 %2348
  %2350 = vrot.lane.b32.xlu0 %v753, 18
  %v2351 = vpop.permute.xlu0 %2350
  %2352 = vrot.lane.b32.xlu0 %v754, 18
  %v2353 = vpop.permute.xlu0 %2352
  %2354 = vrot.lane.b32.xlu0 %v755, 18
  %v2355 = vpop.permute.xlu0 %2354
  %2484 = vrot.lane.b32.xlu0 %v756, 21
  %v2485 = vpop.permute.xlu0 %2484
  %2486 = vrot.lane.b32.xlu0 %v757, 21
  %v2487 = vpop.permute.xlu0 %2486
  %2488 = vrot.lane.b32.xlu0 %v758, 21
  %v2489 = vpop.permute.xlu0 %2488
  %2490 = vrot.lane.b32.xlu0 %v759, 21
  %v2491 = vpop.permute.xlu0 %2490
  %2492 = vrot.lane.b32.xlu0 %v760, 21
  %v2493 = vpop.permute.xlu0 %2492
  %2494 = vrot.lane.b32.xlu0 %v761, 21
  %v2495 = vpop.permute.xlu0 %2494
  %2496 = vrot.lane.b32.xlu0 %v762, 21
  %v2497 = vpop.permute.xlu0 %2496
  %2498 = vrot.lane.b32.xlu0 %v763, 21
  %v2499 = vpop.permute.xlu0 %2498
  %2500 = vrot.lane.b32.xlu0 %v764, 21
  %v2501 = vpop.permute.xlu0 %2500
  %2502 = vrot.lane.b32.xlu0 %v765, 21
  %v2503 = vpop.permute.xlu0 %2502
  %2504 = vrot.lane.b32.xlu0 %v766, 21
  %v2505 = vpop.permute.xlu0 %2504
  %2506 = vrot.lane.b32.xlu0 %v767, 21
  %v2507 = vpop.permute.xlu0 %2506
  %2508 = vrot.lane.b32.xlu0 %v768, 21
  %v2509 = vpop.permute.xlu0 %2508
  %2510 = vrot.lane.b32.xlu0 %v769, 21
  %v2511 = vpop.permute.xlu0 %2510
  %2512 = vrot.lane.b32.xlu0 %v770, 21
  %v2513 = vpop.permute.xlu0 %2512
  %2514 = vrot.lane.b32.xlu0 %v771, 21
  %v2515 = vpop.permute.xlu0 %2514
  %2516 = vrot.lane.b32.xlu0 %v772, 21
  %v2517 = vpop.permute.xlu0 %2516
  %2518 = vrot.lane.b32.xlu0 %v773, 21
  %v2519 = vpop.permute.xlu0 %2518
  %2520 = vrot.lane.b32.xlu0 %v774, 21
  %v2521 = vpop.permute.xlu0 %2520
  %2522 = vrot.lane.b32.xlu0 %v775, 21
  %v2523 = vpop.permute.xlu0 %2522
  %2524 = vrot.lane.b32.xlu0 %v776, 21
  %v2525 = vpop.permute.xlu0 %2524
  %2526 = vrot.lane.b32.xlu0 %v777, 21
  %v2527 = vpop.permute.xlu0 %2526
  %2528 = vrot.lane.b32.xlu0 %v778, 21
  %v2529 = vpop.permute.xlu0 %2528
  %2530 = vrot.lane.b32.xlu0 %v779, 21
  %v2531 = vpop.permute.xlu0 %2530
  %2532 = vrot.lane.b32.xlu0 %v780, 21
  %v2533 = vpop.permute.xlu0 %2532
  %2534 = vrot.lane.b32.xlu0 %v781, 21
  %v2535 = vpop.permute.xlu0 %2534
  %2536 = vrot.lane.b32.xlu0 %v782, 21
  %v2537 = vpop.permute.xlu0 %2536
  %2538 = vrot.lane.b32.xlu0 %v783, 21
  %v2539 = vpop.permute.xlu0 %2538
  %2540 = vrot.lane.b32.xlu0 %v784, 21
  %v2541 = vpop.permute.xlu0 %2540
  %2542 = vrot.lane.b32.xlu0 %v785, 21
  %v2543 = vpop.permute.xlu0 %2542
  %2544 = vrot.lane.b32.xlu0 %v786, 21
  %v2545 = vpop.permute.xlu0 %2544
  %2546 = vrot.lane.b32.xlu0 %v787, 21
  %v2547 = vpop.permute.xlu0 %2546
  %2548 = vrot.lane.b32.xlu0 %v788, 21
  %v2549 = vpop.permute.xlu0 %2548
  %2550 = vrot.lane.b32.xlu0 %v789, 21
  %v2551 = vpop.permute.xlu0 %2550
  %2552 = vrot.lane.b32.xlu0 %v790, 21
  %v2553 = vpop.permute.xlu0 %2552
  %2554 = vrot.lane.b32.xlu0 %v791, 21
  %v2555 = vpop.permute.xlu0 %2554
  %2556 = vrot.lane.b32.xlu0 %v792, 21
  %v2557 = vpop.permute.xlu0 %2556
  %2558 = vrot.lane.b32.xlu0 %v793, 21
  %v2559 = vpop.permute.xlu0 %2558
  %2560 = vrot.lane.b32.xlu0 %v794, 21
  %v2561 = vpop.permute.xlu0 %2560
  %2562 = vrot.lane.b32.xlu0 %v795, 21
  %v2563 = vpop.permute.xlu0 %2562
  %2564 = vrot.lane.b32.xlu0 %v796, 21
  %v2565 = vpop.permute.xlu0 %2564
  %2566 = vrot.lane.b32.xlu0 %v797, 21
  %v2567 = vpop.permute.xlu0 %2566
  %2568 = vrot.lane.b32.xlu0 %v798, 21
  %v2569 = vpop.permute.xlu0 %2568
  %2570 = vrot.lane.b32.xlu0 %v799, 21
  %v2571 = vpop.permute.xlu0 %2570
  %2572 = vrot.lane.b32.xlu0 %v800, 21
  %v2573 = vpop.permute.xlu0 %2572
  %2574 = vrot.lane.b32.xlu0 %v801, 21
  %v2575 = vpop.permute.xlu0 %2574
  %2576 = vrot.lane.b32.xlu0 %v802, 21
  %v2577 = vpop.permute.xlu0 %2576
  %2578 = vrot.lane.b32.xlu0 %v803, 21
  %v2579 = vpop.permute.xlu0 %2578
  %2580 = vrot.lane.b32.xlu0 %v804, 21
  %v2581 = vpop.permute.xlu0 %2580
  %2582 = vrot.lane.b32.xlu0 %v805, 21
  %v2583 = vpop.permute.xlu0 %2582
  %2584 = vrot.lane.b32.xlu0 %v806, 21
  %v2585 = vpop.permute.xlu0 %2584
  %2586 = vrot.lane.b32.xlu0 %v807, 21
  %v2587 = vpop.permute.xlu0 %2586
  %2588 = vrot.lane.b32.xlu0 %v808, 21
  %v2589 = vpop.permute.xlu0 %2588
  %2590 = vrot.lane.b32.xlu0 %v809, 21
  %v2591 = vpop.permute.xlu0 %2590
  %2592 = vrot.lane.b32.xlu0 %v810, 21
  %v2593 = vpop.permute.xlu0 %2592
  %2594 = vrot.lane.b32.xlu0 %v811, 21
  %v2595 = vpop.permute.xlu0 %2594
  %2596 = vrot.lane.b32.xlu0 %v812, 21
  %v2597 = vpop.permute.xlu0 %2596
  %2598 = vrot.lane.b32.xlu0 %v813, 21
  %v2599 = vpop.permute.xlu0 %2598
  %2600 = vrot.lane.b32.xlu0 %v814, 21
  %v2601 = vpop.permute.xlu0 %2600
  %2602 = vrot.lane.b32.xlu0 %v815, 21
  %v2603 = vpop.permute.xlu0 %2602
  %2604 = vrot.lane.b32.xlu0 %v816, 21
  %v2605 = vpop.permute.xlu0 %2604
  %2606 = vrot.lane.b32.xlu0 %v817, 21
  %v2607 = vpop.permute.xlu0 %2606
  %2608 = vrot.lane.b32.xlu0 %v818, 21
  %v2609 = vpop.permute.xlu0 %2608
  %2610 = vrot.lane.b32.xlu0 %v819, 21
  %v2611 = vpop.permute.xlu0 %2610
  %2740 = vrot.lane.b32.xlu0 %v820, 24
  %v2741 = vpop.permute.xlu0 %2740
  %2742 = vrot.lane.b32.xlu0 %v821, 24
  %v2743 = vpop.permute.xlu0 %2742
  %2744 = vrot.lane.b32.xlu0 %v822, 24
  %v2745 = vpop.permute.xlu0 %2744
  %2746 = vrot.lane.b32.xlu0 %v823, 24
  %v2747 = vpop.permute.xlu0 %2746
  %2748 = vrot.lane.b32.xlu0 %v824, 24
  %v2749 = vpop.permute.xlu0 %2748
  %2750 = vrot.lane.b32.xlu0 %v825, 24
  %v2751 = vpop.permute.xlu0 %2750
  %2752 = vrot.lane.b32.xlu0 %v826, 24
  %v2753 = vpop.permute.xlu0 %2752
  %2754 = vrot.lane.b32.xlu0 %v827, 24
  %v2755 = vpop.permute.xlu0 %2754
  %2756 = vrot.lane.b32.xlu0 %v828, 24
  %v2757 = vpop.permute.xlu0 %2756
  %2758 = vrot.lane.b32.xlu0 %v829, 24
  %v2759 = vpop.permute.xlu0 %2758
  %2760 = vrot.lane.b32.xlu0 %v830, 24
  %v2761 = vpop.permute.xlu0 %2760
  %2762 = vrot.lane.b32.xlu0 %v831, 24
  %v2763 = vpop.permute.xlu0 %2762
  %2764 = vrot.lane.b32.xlu0 %v832, 24
  %v2765 = vpop.permute.xlu0 %2764
  %2766 = vrot.lane.b32.xlu0 %v833, 24
  %v2767 = vpop.permute.xlu0 %2766
  %2768 = vrot.lane.b32.xlu0 %v834, 24
  %v2769 = vpop.permute.xlu0 %2768
  %2770 = vrot.lane.b32.xlu0 %v835, 24
  %v2771 = vpop.permute.xlu0 %2770
  %2772 = vrot.lane.b32.xlu0 %v836, 24
  %v2773 = vpop.permute.xlu0 %2772
  %2774 = vrot.lane.b32.xlu0 %v837, 24
  %v2775 = vpop.permute.xlu0 %2774
  %2776 = vrot.lane.b32.xlu0 %v838, 24
  %v2777 = vpop.permute.xlu0 %2776
  %2778 = vrot.lane.b32.xlu0 %v839, 24
  %v2779 = vpop.permute.xlu0 %2778
  %2780 = vrot.lane.b32.xlu0 %v840, 24
  %v2781 = vpop.permute.xlu0 %2780
  %2782 = vrot.lane.b32.xlu0 %v841, 24
  %v2783 = vpop.permute.xlu0 %2782
  %2784 = vrot.lane.b32.xlu0 %v842, 24
  %v2785 = vpop.permute.xlu0 %2784
  %2786 = vrot.lane.b32.xlu0 %v843, 24
  %v2787 = vpop.permute.xlu0 %2786
  %2788 = vrot.lane.b32.xlu0 %v844, 24
  %v2789 = vpop.permute.xlu0 %2788
  %2790 = vrot.lane.b32.xlu0 %v845, 24
  %v2791 = vpop.permute.xlu0 %2790
  %2792 = vrot.lane.b32.xlu0 %v846, 24
  %v2793 = vpop.permute.xlu0 %2792
  %2794 = vrot.lane.b32.xlu0 %v847, 24
  %v2795 = vpop.permute.xlu0 %2794
  %2796 = vrot.lane.b32.xlu0 %v848, 24
  %v2797 = vpop.permute.xlu0 %2796
  %2798 = vrot.lane.b32.xlu0 %v849, 24
  %v2799 = vpop.permute.xlu0 %2798
  %2800 = vrot.lane.b32.xlu0 %v850, 24
  %v2801 = vpop.permute.xlu0 %2800
  %2802 = vrot.lane.b32.xlu0 %v851, 24
  %v2803 = vpop.permute.xlu0 %2802
  %2804 = vrot.lane.b32.xlu0 %v852, 24
  %v2805 = vpop.permute.xlu0 %2804
  %2806 = vrot.lane.b32.xlu0 %v853, 24
  %v2807 = vpop.permute.xlu0 %2806
  %2808 = vrot.lane.b32.xlu0 %v854, 24
  %v2809 = vpop.permute.xlu0 %2808
  %2810 = vrot.lane.b32.xlu0 %v855, 24
  %v2811 = vpop.permute.xlu0 %2810
  %2812 = vrot.lane.b32.xlu0 %v856, 24
  %v2813 = vpop.permute.xlu0 %2812
  %2814 = vrot.lane.b32.xlu0 %v857, 24
  %v2815 = vpop.permute.xlu0 %2814
  %2816 = vrot.lane.b32.xlu0 %v858, 24
  %v2817 = vpop.permute.xlu0 %2816
  %2818 = vrot.lane.b32.xlu0 %v859, 24
  %v2819 = vpop.permute.xlu0 %2818
  %2820 = vrot.lane.b32.xlu0 %v860, 24
  %v2821 = vpop.permute.xlu0 %2820
  %2822 = vrot.lane.b32.xlu0 %v861, 24
  %v2823 = vpop.permute.xlu0 %2822
  %2824 = vrot.lane.b32.xlu0 %v862, 24
  %v2825 = vpop.permute.xlu0 %2824
  %2826 = vrot.lane.b32.xlu0 %v863, 24
  %v2827 = vpop.permute.xlu0 %2826
  %2828 = vrot.lane.b32.xlu0 %v864, 24
  %v2829 = vpop.permute.xlu0 %2828
  %2830 = vrot.lane.b32.xlu0 %v865, 24
  %v2831 = vpop.permute.xlu0 %2830
  %2832 = vrot.lane.b32.xlu0 %v866, 24
  %v2833 = vpop.permute.xlu0 %2832
  %2834 = vrot.lane.b32.xlu0 %v867, 24
  %v2835 = vpop.permute.xlu0 %2834
  %2836 = vrot.lane.b32.xlu0 %v868, 24
  %v2837 = vpop.permute.xlu0 %2836
  %2838 = vrot.lane.b32.xlu0 %v869, 24
  %v2839 = vpop.permute.xlu0 %2838
  %2840 = vrot.lane.b32.xlu0 %v870, 24
  %v2841 = vpop.permute.xlu0 %2840
  %2842 = vrot.lane.b32.xlu0 %v871, 24
  %v2843 = vpop.permute.xlu0 %2842
  %2844 = vrot.lane.b32.xlu0 %v872, 24
  %v2845 = vpop.permute.xlu0 %2844
  %2846 = vrot.lane.b32.xlu0 %v873, 24
  %v2847 = vpop.permute.xlu0 %2846
  %2848 = vrot.lane.b32.xlu0 %v874, 24
  %v2849 = vpop.permute.xlu0 %2848
  %2850 = vrot.lane.b32.xlu0 %v875, 24
  %v2851 = vpop.permute.xlu0 %2850
  %2852 = vrot.lane.b32.xlu0 %v876, 24
  %v2853 = vpop.permute.xlu0 %2852
  %2854 = vrot.lane.b32.xlu0 %v877, 24
  %v2855 = vpop.permute.xlu0 %2854
  %2856 = vrot.lane.b32.xlu0 %v878, 24
  %v2857 = vpop.permute.xlu0 %2856
  %2858 = vrot.lane.b32.xlu0 %v879, 24
  %v2859 = vpop.permute.xlu0 %2858
  %2860 = vrot.lane.b32.xlu0 %v880, 24
  %v2861 = vpop.permute.xlu0 %2860
  %2862 = vrot.lane.b32.xlu0 %v881, 24
  %v2863 = vpop.permute.xlu0 %2862
  %2864 = vrot.lane.b32.xlu0 %v882, 24
  %v2865 = vpop.permute.xlu0 %2864
  %2866 = vrot.lane.b32.xlu0 %v883, 24
  %v2867 = vpop.permute.xlu0 %2866
  %v2932 = vsel %vm32, %v307, %v949
  %v2933 = vsel %vm32, %v308, %v951
  %v2934 = vsel %vm32, %v309, %v953
  %v2935 = vsel %vm32, %v310, %v955
  %v2936 = vsel %vm32, %v311, %v957
  %v2937 = vsel %vm32, %v312, %v959
  %v2938 = vsel %vm32, %v313, %v961
  %v2939 = vsel %vm32, %v314, %v963
  %v2940 = vsel %vm32, %v315, %v965
  %v2941 = vsel %vm32, %v316, %v967
  %v2942 = vsel %vm32, %v317, %v969
  %v2943 = vsel %vm32, %v318, %v971
  %v2944 = vsel %vm32, %v319, %v973
  %v2945 = vsel %vm32, %v320, %v975
  %v2946 = vsel %vm32, %v321, %v977
  %v2947 = vsel %vm32, %v322, %v979
  %v2948 = vsel %vm32, %v323, %v981
  %v2949 = vsel %vm32, %v324, %v983
  %v2950 = vsel %vm32, %v325, %v985
  %v2951 = vsel %vm32, %v326, %v987
  %v2952 = vsel %vm32, %v327, %v989
  %v2953 = vsel %vm32, %v328, %v991
  %v2954 = vsel %vm32, %v329, %v993
  %v2955 = vsel %vm32, %v330, %v995
  %v2956 = vsel %vm32, %v331, %v997
  %v2957 = vsel %vm32, %v332, %v999
  %v2958 = vsel %vm32, %v333, %v1001
  %v2959 = vsel %vm32, %v334, %v1003
  %v2960 = vsel %vm32, %v335, %v1005
  %v2961 = vsel %vm32, %v336, %v1007
  %v2962 = vsel %vm32, %v337, %v1009
  %v2963 = vsel %vm32, %v338, %v1011
  %v2964 = vsel %vm32, %v339, %v1013
  %v2965 = vsel %vm32, %v340, %v1015
  %v2966 = vsel %vm32, %v341, %v1017
  %v2967 = vsel %vm32, %v342, %v1019
  %v2968 = vsel %vm32, %v343, %v1021
  %v2969 = vsel %vm32, %v344, %v1023
  %v2970 = vsel %vm32, %v345, %v1025
  %v2971 = vsel %vm32, %v346, %v1027
  %v2972 = vsel %vm32, %v347, %v1029
  %v2973 = vsel %vm32, %v348, %v1031
  %v2974 = vsel %vm32, %v349, %v1033
  %v2975 = vsel %vm32, %v350, %v1035
  %v2976 = vsel %vm32, %v351, %v1037
  %v2977 = vsel %vm32, %v352, %v1039
  %v2978 = vsel %vm32, %v353, %v1041
  %v2979 = vsel %vm32, %v354, %v1043
  %v2980 = vsel %vm32, %v355, %v1045
  %v2981 = vsel %vm32, %v356, %v1047
  %v2982 = vsel %vm32, %v357, %v1049
  %v2983 = vsel %vm32, %v358, %v1051
  %v2984 = vsel %vm32, %v359, %v1053
  %v2985 = vsel %vm32, %v360, %v1055
  %v2986 = vsel %vm32, %v361, %v1057
  %v2987 = vsel %vm32, %v362, %v1059
  %v2988 = vsel %vm32, %v363, %v1061
  %v2989 = vsel %vm32, %v364, %v1063
  %v2990 = vsel %vm32, %v365, %v1065
  %v2991 = vsel %vm32, %v366, %v1067
  %v2992 = vsel %vm32, %v367, %v1069
  %v2993 = vsel %vm32, %v368, %v1071
  %v2994 = vsel %vm32, %v369, %v1073
  %v2995 = vsel %vm32, %v370, %v1075
  %vm2996 = vcmask 48128
  %v2997 = vsel %vm2996, %v2932, %v1205
  %v2998 = vsel %vm2996, %v2933, %v1207
  %v2999 = vsel %vm2996, %v2934, %v1209
  %v3000 = vsel %vm2996, %v2935, %v1211
  %v3001 = vsel %vm2996, %v2936, %v1213
  %v3002 = vsel %vm2996, %v2937, %v1215
  %v3003 = vsel %vm2996, %v2938, %v1217
  %v3004 = vsel %vm2996, %v2939, %v1219
  %v3005 = vsel %vm2996, %v2940, %v1221
  %v3006 = vsel %vm2996, %v2941, %v1223
  %v3007 = vsel %vm2996, %v2942, %v1225
  %v3008 = vsel %vm2996, %v2943, %v1227
  %v3009 = vsel %vm2996, %v2944, %v1229
  %v3010 = vsel %vm2996, %v2945, %v1231
  %v3011 = vsel %vm2996, %v2946, %v1233
  %v3012 = vsel %vm2996, %v2947, %v1235
  %v3013 = vsel %vm2996, %v2948, %v1237
  %v3014 = vsel %vm2996, %v2949, %v1239
  %v3015 = vsel %vm2996, %v2950, %v1241
  %v3016 = vsel %vm2996, %v2951, %v1243
  %v3017 = vsel %vm2996, %v2952, %v1245
  %v3018 = vsel %vm2996, %v2953, %v1247
  %v3019 = vsel %vm2996, %v2954, %v1249
  %v3020 = vsel %vm2996, %v2955, %v1251
  %v3021 = vsel %vm2996, %v2956, %v1253
  %v3022 = vsel %vm2996, %v2957, %v1255
  %v3023 = vsel %vm2996, %v2958, %v1257
  %v3024 = vsel %vm2996, %v2959, %v1259
  %v3025 = vsel %vm2996, %v2960, %v1261
  %v3026 = vsel %vm2996, %v2961, %v1263
  %v3027 = vsel %vm2996, %v2962, %v1265
  %v3028 = vsel %vm2996, %v2963, %v1267
  %v3029 = vsel %vm2996, %v2964, %v1269
  %v3030 = vsel %vm2996, %v2965, %v1271
  %v3031 = vsel %vm2996, %v2966, %v1273
  %v3032 = vsel %vm2996, %v2967, %v1275
  %v3033 = vsel %vm2996, %v2968, %v1277
  %v3034 = vsel %vm2996, %v2969, %v1279
  %v3035 = vsel %vm2996, %v2970, %v1281
  %v3036 = vsel %vm2996, %v2971, %v1283
  %v3037 = vsel %vm2996, %v2972, %v1285
  %v3038 = vsel %vm2996, %v2973, %v1287
  %v3039 = vsel %vm2996, %v2974, %v1289
  %v3040 = vsel %vm2996, %v2975, %v1291
  %v3041 = vsel %vm2996, %v2976, %v1293
  %v3042 = vsel %vm2996, %v2977, %v1295
  %v3043 = vsel %vm2996, %v2978, %v1297
  %v3044 = vsel %vm2996, %v2979, %v1299
  %v3045 = vsel %vm2996, %v2980, %v1301
  %v3046 = vsel %vm2996, %v2981, %v1303
  %v3047 = vsel %vm2996, %v2982, %v1305
  %v3048 = vsel %vm2996, %v2983, %v1307
  %v3049 = vsel %vm2996, %v2984, %v1309
  %v3050 = vsel %vm2996, %v2985, %v1311
  %v3051 = vsel %vm2996, %v2986, %v1313
  %v3052 = vsel %vm2996, %v2987, %v1315
  %v3053 = vsel %vm2996, %v2988, %v1317
  %v3054 = vsel %vm2996, %v2989, %v1319
  %v3055 = vsel %vm2996, %v2990, %v1321
  %v3056 = vsel %vm2996, %v2991, %v1323
  %v3057 = vsel %vm2996, %v2992, %v1325
  %v3058 = vsel %vm2996, %v2993, %v1327
  %v3059 = vsel %vm2996, %v2994, %v1329
  %v3060 = vsel %vm2996, %v2995, %v1331
  %vm3061 = vcmask 72704
  %v3062 = vsel %vm3061, %v2997, %v1461
  %v3063 = vsel %vm3061, %v2998, %v1463
  %v3064 = vsel %vm3061, %v2999, %v1465
  %v3065 = vsel %vm3061, %v3000, %v1467
  %v3066 = vsel %vm3061, %v3001, %v1469
  %v3067 = vsel %vm3061, %v3002, %v1471
  %v3068 = vsel %vm3061, %v3003, %v1473
  %v3069 = vsel %vm3061, %v3004, %v1475
  %v3070 = vsel %vm3061, %v3005, %v1477
  %v3071 = vsel %vm3061, %v3006, %v1479
  %v3072 = vsel %vm3061, %v3007, %v1481
  %v3073 = vsel %vm3061, %v3008, %v1483
  %v3074 = vsel %vm3061, %v3009, %v1485
  %v3075 = vsel %vm3061, %v3010, %v1487
  %v3076 = vsel %vm3061, %v3011, %v1489
  %v3077 = vsel %vm3061, %v3012, %v1491
  %v3078 = vsel %vm3061, %v3013, %v1493
  %v3079 = vsel %vm3061, %v3014, %v1495
  %v3080 = vsel %vm3061, %v3015, %v1497
  %v3081 = vsel %vm3061, %v3016, %v1499
  %v3082 = vsel %vm3061, %v3017, %v1501
  %v3083 = vsel %vm3061, %v3018, %v1503
  %v3084 = vsel %vm3061, %v3019, %v1505
  %v3085 = vsel %vm3061, %v3020, %v1507
  %v3086 = vsel %vm3061, %v3021, %v1509
  %v3087 = vsel %vm3061, %v3022, %v1511
  %v3088 = vsel %vm3061, %v3023, %v1513
  %v3089 = vsel %vm3061, %v3024, %v1515
  %v3090 = vsel %vm3061, %v3025, %v1517
  %v3091 = vsel %vm3061, %v3026, %v1519
  %v3092 = vsel %vm3061, %v3027, %v1521
  %v3093 = vsel %vm3061, %v3028, %v1523
  %v3094 = vsel %vm3061, %v3029, %v1525
  %v3095 = vsel %vm3061, %v3030, %v1527
  %v3096 = vsel %vm3061, %v3031, %v1529
  %v3097 = vsel %vm3061, %v3032, %v1531
  %v3098 = vsel %vm3061, %v3033, %v1533
  %v3099 = vsel %vm3061, %v3034, %v1535
  %v3100 = vsel %vm3061, %v3035, %v1537
  %v3101 = vsel %vm3061, %v3036, %v1539
  %v3102 = vsel %vm3061, %v3037, %v1541
  %v3103 = vsel %vm3061, %v3038, %v1543
  %v3104 = vsel %vm3061, %v3039, %v1545
  %v3105 = vsel %vm3061, %v3040, %v1547
  %v3106 = vsel %vm3061, %v3041, %v1549
  %v3107 = vsel %vm3061, %v3042, %v1551
  %v3108 = vsel %vm3061, %v3043, %v1553
  %v3109 = vsel %vm3061, %v3044, %v1555
  %v3110 = vsel %vm3061, %v3045, %v1557
  %v3111 = vsel %vm3061, %v3046, %v1559
  %v3112 = vsel %vm3061, %v3047, %v1561
  %v3113 = vsel %vm3061, %v3048, %v1563
  %v3114 = vsel %vm3061, %v3049, %v1565
  %v3115 = vsel %vm3061, %v3050, %v1567
  %v3116 = vsel %vm3061, %v3051, %v1569
  %v3117 = vsel %vm3061, %v3052, %v1571
  %v3118 = vsel %vm3061, %v3053, %v1573
  %v3119 = vsel %vm3061, %v3054, %v1575
  %v3120 = vsel %vm3061, %v3055, %v1577
  %v3121 = vsel %vm3061, %v3056, %v1579
  %v3122 = vsel %vm3061, %v3057, %v1581
  %v3123 = vsel %vm3061, %v3058, %v1583
  %v3124 = vsel %vm3061, %v3059, %v1585
  %v3125 = vsel %vm3061, %v3060, %v1587
  %vm3126 = vcmask 97280
  %v3127 = vsel %vm3126, %v3062, %v1717
  %v3128 = vsel %vm3126, %v3063, %v1719
  %v3129 = vsel %vm3126, %v3064, %v1721
  %v3130 = vsel %vm3126, %v3065, %v1723
  %v3131 = vsel %vm3126, %v3066, %v1725
  %v3132 = vsel %vm3126, %v3067, %v1727
  %v3133 = vsel %vm3126, %v3068, %v1729
  %v3134 = vsel %vm3126, %v3069, %v1731
  %v3135 = vsel %vm3126, %v3070, %v1733
  %v3136 = vsel %vm3126, %v3071, %v1735
  %v3137 = vsel %vm3126, %v3072, %v1737
  %v3138 = vsel %vm3126, %v3073, %v1739
  %v3139 = vsel %vm3126, %v3074, %v1741
  %v3140 = vsel %vm3126, %v3075, %v1743
  %v3141 = vsel %vm3126, %v3076, %v1745
  %v3142 = vsel %vm3126, %v3077, %v1747
  %v3143 = vsel %vm3126, %v3078, %v1749
  %v3144 = vsel %vm3126, %v3079, %v1751
  %v3145 = vsel %vm3126, %v3080, %v1753
  %v3146 = vsel %vm3126, %v3081, %v1755
  %v3147 = vsel %vm3126, %v3082, %v1757
  %v3148 = vsel %vm3126, %v3083, %v1759
  %v3149 = vsel %vm3126, %v3084, %v1761
  %v3150 = vsel %vm3126, %v3085, %v1763
  %v3151 = vsel %vm3126, %v3086, %v1765
  %v3152 = vsel %vm3126, %v3087, %v1767
  %v3153 = vsel %vm3126, %v3088, %v1769
  %v3154 = vsel %vm3126, %v3089, %v1771
  %v3155 = vsel %vm3126, %v3090, %v1773
  %v3156 = vsel %vm3126, %v3091, %v1775
  %v3157 = vsel %vm3126, %v3092, %v1777
  %v3158 = vsel %vm3126, %v3093, %v1779
  %v3159 = vsel %vm3126, %v3094, %v1781
  %v3160 = vsel %vm3126, %v3095, %v1783
  %v3161 = vsel %vm3126, %v3096, %v1785
  %v3162 = vsel %vm3126, %v3097, %v1787
  %v3163 = vsel %vm3126, %v3098, %v1789
  %v3164 = vsel %vm3126, %v3099, %v1791
  %v3165 = vsel %vm3126, %v3100, %v1793
  %v3166 = vsel %vm3126, %v3101, %v1795
  %v3167 = vsel %vm3126, %v3102, %v1797
  %v3168 = vsel %vm3126, %v3103, %v1799
  %v3169 = vsel %vm3126, %v3104, %v1801
  %v3170 = vsel %vm3126, %v3105, %v1803
  %v3171 = vsel %vm3126, %v3106, %v1805
  %v3172 = vsel %vm3126, %v3107, %v1807
  %v3173 = vsel %vm3126, %v3108, %v1809
  %v3174 = vsel %vm3126, %v3109, %v1811
  %v3175 = vsel %vm3126, %v3110, %v1813
  %v3176 = vsel %vm3126, %v3111, %v1815
  %v3177 = vsel %vm3126, %v3112, %v1817
  %v3178 = vsel %vm3126, %v3113, %v1819
  %v3179 = vsel %vm3126, %v3114, %v1821
  %v3180 = vsel %vm3126, %v3115, %v1823
  %v3181 = vsel %vm3126, %v3116, %v1825
  %v3182 = vsel %vm3126, %v3117, %v1827
  %v3183 = vsel %vm3126, %v3118, %v1829
  %v3184 = vsel %vm3126, %v3119, %v1831
  %v3185 = vsel %vm3126, %v3120, %v1833
  %v3186 = vsel %vm3126, %v3121, %v1835
  %v3187 = vsel %vm3126, %v3122, %v1837
  %v3188 = vsel %vm3126, %v3123, %v1839
  %v3189 = vsel %vm3126, %v3124, %v1841
  %v3190 = vsel %vm3126, %v3125, %v1843
  %vm3191 = vcmask 121856
  %v3192 = vsel %vm3191, %v3127, %v1973
  %v3193 = vsel %vm3191, %v3128, %v1975
  %v3194 = vsel %vm3191, %v3129, %v1977
  %v3195 = vsel %vm3191, %v3130, %v1979
  %v3196 = vsel %vm3191, %v3131, %v1981
  %v3197 = vsel %vm3191, %v3132, %v1983
  %v3198 = vsel %vm3191, %v3133, %v1985
  %v3199 = vsel %vm3191, %v3134, %v1987
  %v3200 = vsel %vm3191, %v3135, %v1989
  %v3201 = vsel %vm3191, %v3136, %v1991
  %v3202 = vsel %vm3191, %v3137, %v1993
  %v3203 = vsel %vm3191, %v3138, %v1995
  %v3204 = vsel %vm3191, %v3139, %v1997
  %v3205 = vsel %vm3191, %v3140, %v1999
  %v3206 = vsel %vm3191, %v3141, %v2001
  %v3207 = vsel %vm3191, %v3142, %v2003
  %v3208 = vsel %vm3191, %v3143, %v2005
  %v3209 = vsel %vm3191, %v3144, %v2007
  %v3210 = vsel %vm3191, %v3145, %v2009
  %v3211 = vsel %vm3191, %v3146, %v2011
  %v3212 = vsel %vm3191, %v3147, %v2013
  %v3213 = vsel %vm3191, %v3148, %v2015
  %v3214 = vsel %vm3191, %v3149, %v2017
  %v3215 = vsel %vm3191, %v3150, %v2019
  %v3216 = vsel %vm3191, %v3151, %v2021
  %v3217 = vsel %vm3191, %v3152, %v2023
  %v3218 = vsel %vm3191, %v3153, %v2025
  %v3219 = vsel %vm3191, %v3154, %v2027
  %v3220 = vsel %vm3191, %v3155, %v2029
  %v3221 = vsel %vm3191, %v3156, %v2031
  %v3222 = vsel %vm3191, %v3157, %v2033
  %v3223 = vsel %vm3191, %v3158, %v2035
  %v3224 = vsel %vm3191, %v3159, %v2037
  %v3225 = vsel %vm3191, %v3160, %v2039
  %v3226 = vsel %vm3191, %v3161, %v2041
  %v3227 = vsel %vm3191, %v3162, %v2043
  %v3228 = vsel %vm3191, %v3163, %v2045
  %v3229 = vsel %vm3191, %v3164, %v2047
  %v3230 = vsel %vm3191, %v3165, %v2049
  %v3231 = vsel %vm3191, %v3166, %v2051
  %v3232 = vsel %vm3191, %v3167, %v2053
  %v3233 = vsel %vm3191, %v3168, %v2055
  %v3234 = vsel %vm3191, %v3169, %v2057
  %v3235 = vsel %vm3191, %v3170, %v2059
  %v3236 = vsel %vm3191, %v3171, %v2061
  %v3237 = vsel %vm3191, %v3172, %v2063
  %v3238 = vsel %vm3191, %v3173, %v2065
  %v3239 = vsel %vm3191, %v3174, %v2067
  %v3240 = vsel %vm3191, %v3175, %v2069
  %v3241 = vsel %vm3191, %v3176, %v2071
  %v3242 = vsel %vm3191, %v3177, %v2073
  %v3243 = vsel %vm3191, %v3178, %v2075
  %v3244 = vsel %vm3191, %v3179, %v2077
  %v3245 = vsel %vm3191, %v3180, %v2079
  %v3246 = vsel %vm3191, %v3181, %v2081
  %v3247 = vsel %vm3191, %v3182, %v2083
  %v3248 = vsel %vm3191, %v3183, %v2085
  %v3249 = vsel %vm3191, %v3184, %v2087
  %v3250 = vsel %vm3191, %v3185, %v2089
  %v3251 = vsel %vm3191, %v3186, %v2091
  %v3252 = vsel %vm3191, %v3187, %v2093
  %v3253 = vsel %vm3191, %v3188, %v2095
  %v3254 = vsel %vm3191, %v3189, %v2097
  %v3255 = vsel %vm3191, %v3190, %v2099
  %vm3256 = vcmask 146432
  %v3257 = vsel %vm3256, %v3192, %v2229
  %v3258 = vsel %vm3256, %v3193, %v2231
  %v3259 = vsel %vm3256, %v3194, %v2233
  %v3260 = vsel %vm3256, %v3195, %v2235
  %v3261 = vsel %vm3256, %v3196, %v2237
  %v3262 = vsel %vm3256, %v3197, %v2239
  %v3263 = vsel %vm3256, %v3198, %v2241
  %v3264 = vsel %vm3256, %v3199, %v2243
  %v3265 = vsel %vm3256, %v3200, %v2245
  %v3266 = vsel %vm3256, %v3201, %v2247
  %v3267 = vsel %vm3256, %v3202, %v2249
  %v3268 = vsel %vm3256, %v3203, %v2251
  %v3269 = vsel %vm3256, %v3204, %v2253
  %v3270 = vsel %vm3256, %v3205, %v2255
  %v3271 = vsel %vm3256, %v3206, %v2257
  %v3272 = vsel %vm3256, %v3207, %v2259
  %v3273 = vsel %vm3256, %v3208, %v2261
  %v3274 = vsel %vm3256, %v3209, %v2263
  %v3275 = vsel %vm3256, %v3210, %v2265
  %v3276 = vsel %vm3256, %v3211, %v2267
  %v3277 = vsel %vm3256, %v3212, %v2269
  %v3278 = vsel %vm3256, %v3213, %v2271
  %v3279 = vsel %vm3256, %v3214, %v2273
  %v3280 = vsel %vm3256, %v3215, %v2275
  %v3281 = vsel %vm3256, %v3216, %v2277
  %v3282 = vsel %vm3256, %v3217, %v2279
  %v3283 = vsel %vm3256, %v3218, %v2281
  %v3284 = vsel %vm3256, %v3219, %v2283
  %v3285 = vsel %vm3256, %v3220, %v2285
  %v3286 = vsel %vm3256, %v3221, %v2287
  %v3287 = vsel %vm3256, %v3222, %v2289
  %v3288 = vsel %vm3256, %v3223, %v2291
  %v3289 = vsel %vm3256, %v3224, %v2293
  %v3290 = vsel %vm3256, %v3225, %v2295
  %v3291 = vsel %vm3256, %v3226, %v2297
  %v3292 = vsel %vm3256, %v3227, %v2299
  %v3293 = vsel %vm3256, %v3228, %v2301
  %v3294 = vsel %vm3256, %v3229, %v2303
  %v3295 = vsel %vm3256, %v3230, %v2305
  %v3296 = vsel %vm3256, %v3231, %v2307
  %v3297 = vsel %vm3256, %v3232, %v2309
  %v3298 = vsel %vm3256, %v3233, %v2311
  %v3299 = vsel %vm3256, %v3234, %v2313
  %v3300 = vsel %vm3256, %v3235, %v2315
  %v3301 = vsel %vm3256, %v3236, %v2317
  %v3302 = vsel %vm3256, %v3237, %v2319
  %v3303 = vsel %vm3256, %v3238, %v2321
  %v3304 = vsel %vm3256, %v3239, %v2323
  %v3305 = vsel %vm3256, %v3240, %v2325
  %v3306 = vsel %vm3256, %v3241, %v2327
  %v3307 = vsel %vm3256, %v3242, %v2329
  %v3308 = vsel %vm3256, %v3243, %v2331
  %v3309 = vsel %vm3256, %v3244, %v2333
  %v3310 = vsel %vm3256, %v3245, %v2335
  %v3311 = vsel %vm3256, %v3246, %v2337
  %v3312 = vsel %vm3256, %v3247, %v2339
  %v3313 = vsel %vm3256, %v3248, %v2341
  %v3314 = vsel %vm3256, %v3249, %v2343
  %v3315 = vsel %vm3256, %v3250, %v2345
  %v3316 = vsel %vm3256, %v3251, %v2347
  %v3317 = vsel %vm3256, %v3252, %v2349
  %v3318 = vsel %vm3256, %v3253, %v2351
  %v3319 = vsel %vm3256, %v3254, %v2353
  %v3320 = vsel %vm3256, %v3255, %v2355
  %vm3321 = vcmask 171008
  %v3322 = vsel %vm3321, %v3257, %v2485
  %v3323 = vsel %vm3321, %v3258, %v2487
  %v3324 = vsel %vm3321, %v3259, %v2489
  %v3325 = vsel %vm3321, %v3260, %v2491
  %v3326 = vsel %vm3321, %v3261, %v2493
  %v3327 = vsel %vm3321, %v3262, %v2495
  %v3328 = vsel %vm3321, %v3263, %v2497
  %v3329 = vsel %vm3321, %v3264, %v2499
  %v3330 = vsel %vm3321, %v3265, %v2501
  %v3331 = vsel %vm3321, %v3266, %v2503
  %v3332 = vsel %vm3321, %v3267, %v2505
  %v3333 = vsel %vm3321, %v3268, %v2507
  %v3334 = vsel %vm3321, %v3269, %v2509
  %v3335 = vsel %vm3321, %v3270, %v2511
  %v3336 = vsel %vm3321, %v3271, %v2513
  %v3337 = vsel %vm3321, %v3272, %v2515
  %v3338 = vsel %vm3321, %v3273, %v2517
  %v3339 = vsel %vm3321, %v3274, %v2519
  %v3340 = vsel %vm3321, %v3275, %v2521
  %v3341 = vsel %vm3321, %v3276, %v2523
  %v3342 = vsel %vm3321, %v3277, %v2525
  %v3343 = vsel %vm3321, %v3278, %v2527
  %v3344 = vsel %vm3321, %v3279, %v2529
  %v3345 = vsel %vm3321, %v3280, %v2531
  %v3346 = vsel %vm3321, %v3281, %v2533
  %v3347 = vsel %vm3321, %v3282, %v2535
  %v3348 = vsel %vm3321, %v3283, %v2537
  %v3349 = vsel %vm3321, %v3284, %v2539
  %v3350 = vsel %vm3321, %v3285, %v2541
  %v3351 = vsel %vm3321, %v3286, %v2543
  %v3352 = vsel %vm3321, %v3287, %v2545
  %v3353 = vsel %vm3321, %v3288, %v2547
  %v3354 = vsel %vm3321, %v3289, %v2549
  %v3355 = vsel %vm3321, %v3290, %v2551
  %v3356 = vsel %vm3321, %v3291, %v2553
  %v3357 = vsel %vm3321, %v3292, %v2555
  %v3358 = vsel %vm3321, %v3293, %v2557
  %v3359 = vsel %vm3321, %v3294, %v2559
  %v3360 = vsel %vm3321, %v3295, %v2561
  %v3361 = vsel %vm3321, %v3296, %v2563
  %v3362 = vsel %vm3321, %v3297, %v2565
  %v3363 = vsel %vm3321, %v3298, %v2567
  %v3364 = vsel %vm3321, %v3299, %v2569
  %v3365 = vsel %vm3321, %v3300, %v2571
  %v3366 = vsel %vm3321, %v3301, %v2573
  %v3367 = vsel %vm3321, %v3302, %v2575
  %v3368 = vsel %vm3321, %v3303, %v2577
  %v3369 = vsel %vm3321, %v3304, %v2579
  %v3370 = vsel %vm3321, %v3305, %v2581
  %v3371 = vsel %vm3321, %v3306, %v2583
  %v3372 = vsel %vm3321, %v3307, %v2585
  %v3373 = vsel %vm3321, %v3308, %v2587
  %v3374 = vsel %vm3321, %v3309, %v2589
  %v3375 = vsel %vm3321, %v3310, %v2591
  %v3376 = vsel %vm3321, %v3311, %v2593
  %v3377 = vsel %vm3321, %v3312, %v2595
  %v3378 = vsel %vm3321, %v3313, %v2597
  %v3379 = vsel %vm3321, %v3314, %v2599
  %v3380 = vsel %vm3321, %v3315, %v2601
  %v3381 = vsel %vm3321, %v3316, %v2603
  %v3382 = vsel %vm3321, %v3317, %v2605
  %v3383 = vsel %vm3321, %v3318, %v2607
  %v3384 = vsel %vm3321, %v3319, %v2609
  %v3385 = vsel %vm3321, %v3320, %v2611
  %vm3386 = vcmask 195584
  %v3387 = vsel %vm3386, %v3322, %v2741
  %v3388 = vsel %vm3386, %v3323, %v2743
  %v3389 = vsel %vm3386, %v3324, %v2745
  %v3390 = vsel %vm3386, %v3325, %v2747
  %v3391 = vsel %vm3386, %v3326, %v2749
  %v3392 = vsel %vm3386, %v3327, %v2751
  %v3393 = vsel %vm3386, %v3328, %v2753
  %v3394 = vsel %vm3386, %v3329, %v2755
  %v3395 = vsel %vm3386, %v3330, %v2757
  %v3396 = vsel %vm3386, %v3331, %v2759
  %v3397 = vsel %vm3386, %v3332, %v2761
  %v3398 = vsel %vm3386, %v3333, %v2763
  %v3399 = vsel %vm3386, %v3334, %v2765
  %v3400 = vsel %vm3386, %v3335, %v2767
  %v3401 = vsel %vm3386, %v3336, %v2769
  %v3402 = vsel %vm3386, %v3337, %v2771
  %v3403 = vsel %vm3386, %v3338, %v2773
  %v3404 = vsel %vm3386, %v3339, %v2775
  %v3405 = vsel %vm3386, %v3340, %v2777
  %v3406 = vsel %vm3386, %v3341, %v2779
  %v3407 = vsel %vm3386, %v3342, %v2781
  %v3408 = vsel %vm3386, %v3343, %v2783
  %v3409 = vsel %vm3386, %v3344, %v2785
  %v3410 = vsel %vm3386, %v3345, %v2787
  %v3411 = vsel %vm3386, %v3346, %v2789
  %v3412 = vsel %vm3386, %v3347, %v2791
  %v3413 = vsel %vm3386, %v3348, %v2793
  %v3414 = vsel %vm3386, %v3349, %v2795
  %v3415 = vsel %vm3386, %v3350, %v2797
  %v3416 = vsel %vm3386, %v3351, %v2799
  %v3417 = vsel %vm3386, %v3352, %v2801
  %v3418 = vsel %vm3386, %v3353, %v2803
  %v3419 = vsel %vm3386, %v3354, %v2805
  %v3420 = vsel %vm3386, %v3355, %v2807
  %v3421 = vsel %vm3386, %v3356, %v2809
  %v3422 = vsel %vm3386, %v3357, %v2811
  %v3423 = vsel %vm3386, %v3358, %v2813
  %v3424 = vsel %vm3386, %v3359, %v2815
  %v3425 = vsel %vm3386, %v3360, %v2817
  %v3426 = vsel %vm3386, %v3361, %v2819
  %v3427 = vsel %vm3386, %v3362, %v2821
  %v3428 = vsel %vm3386, %v3363, %v2823
  %v3429 = vsel %vm3386, %v3364, %v2825
  %v3430 = vsel %vm3386, %v3365, %v2827
  %v3431 = vsel %vm3386, %v3366, %v2829
  %v3432 = vsel %vm3386, %v3367, %v2831
  %v3433 = vsel %vm3386, %v3368, %v2833
  %v3434 = vsel %vm3386, %v3369, %v2835
  %v3435 = vsel %vm3386, %v3370, %v2837
  %v3436 = vsel %vm3386, %v3371, %v2839
  %v3437 = vsel %vm3386, %v3372, %v2841
  %v3438 = vsel %vm3386, %v3373, %v2843
  %v3439 = vsel %vm3386, %v3374, %v2845
  %v3440 = vsel %vm3386, %v3375, %v2847
  %v3441 = vsel %vm3386, %v3376, %v2849
  %v3442 = vsel %vm3386, %v3377, %v2851
  %v3443 = vsel %vm3386, %v3378, %v2853
  %v3444 = vsel %vm3386, %v3379, %v2855
  %v3445 = vsel %vm3386, %v3380, %v2857
  %v3446 = vsel %vm3386, %v3381, %v2859
  %v3447 = vsel %vm3386, %v3382, %v2861
  %v3448 = vsel %vm3386, %v3383, %v2863
  %v3449 = vsel %vm3386, %v3384, %v2865
  %v3450 = vsel %vm3386, %v3385, %v2867
  %v3451 = vld [vmem:[%s1] sm:$0xff]
  %v3452 = vld [vmem:[%s1 + $0x8] sm:$0xff]
  %v3453 = vld [vmem:[%s1 + $0x10] sm:$0xff]
  %v3454 = vld [vmem:[%s1 + $0x18] sm:$0x7]
  %v3455 = vld [vmem:[%s2] sm:$0x1]
  %v3457 = vlaneseq
  %v3458 = vshrl.u32 %v3457, 7
  %v3459 = vsub.s32 0, %v3458
  %v3460 = vrot.slane %v3455, %v3459
  %vm3462 = vcmask 220160
  %v3464 = vsel %vm3462, %v3387, 0
  %v3467 = vsel %vm3462, %v3388, 0
  %v3470 = vsel %vm3462, %v3389, 0
  %v3473 = vsel %vm3462, %v3390, 0
  %v3476 = vsel %vm3462, %v3391, 0
  %v3479 = vsel %vm3462, %v3392, 0
  %v3482 = vsel %vm3462, %v3393, 0
  %v3485 = vsel %vm3462, %v3394, 0
  %v3488 = vsel %vm3462, %v3395, 0
  %v3491 = vsel %vm3462, %v3396, 0
  %v3494 = vsel %vm3462, %v3397, 0
  %v3497 = vsel %vm3462, %v3398, 0
  %v3500 = vsel %vm3462, %v3399, 0
  %v3503 = vsel %vm3462, %v3400, 0
  %v3506 = vsel %vm3462, %v3401, 0
  %v3509 = vsel %vm3462, %v3402, 0
  %v3512 = vsel %vm3462, %v3403, 0
  %v3515 = vsel %vm3462, %v3404, 0
  %v3518 = vsel %vm3462, %v3405, 0
  %v3521 = vsel %vm3462, %v3406, 0
  %v3524 = vsel %vm3462, %v3407, 0
  %v3527 = vsel %vm3462, %v3408, 0
  %v3530 = vsel %vm3462, %v3409, 0
  %v3533 = vsel %vm3462, %v3410, 0
  %v3536 = vsel %vm3462, %v3411, 0
  %v3539 = vsel %vm3462, %v3412, 0
  %v3542 = vsel %vm3462, %v3413, 0
  %v3545 = vsel %vm3462, %v3414, 0
  %v3548 = vsel %vm3462, %v3415, 0
  %v3551 = vsel %vm3462, %v3416, 0
  %v3554 = vsel %vm3462, %v3417, 0
  %v3557 = vsel %vm3462, %v3418, 0
  %v3560 = vsel %vm3462, %v3419, 0
  %v3563 = vsel %vm3462, %v3420, 0
  %v3566 = vsel %vm3462, %v3421, 0
  %v3569 = vsel %vm3462, %v3422, 0
  %v3572 = vsel %vm3462, %v3423, 0
  %v3575 = vsel %vm3462, %v3424, 0
  %v3578 = vsel %vm3462, %v3425, 0
  %v3581 = vsel %vm3462, %v3426, 0
  %v3584 = vsel %vm3462, %v3427, 0
  %v3587 = vsel %vm3462, %v3428, 0
  %v3590 = vsel %vm3462, %v3429, 0
  %v3593 = vsel %vm3462, %v3430, 0
  %v3596 = vsel %vm3462, %v3431, 0
  %v3599 = vsel %vm3462, %v3432, 0
  %v3602 = vsel %vm3462, %v3433, 0
  %v3605 = vsel %vm3462, %v3434, 0
  %v3608 = vsel %vm3462, %v3435, 0
  %v3611 = vsel %vm3462, %v3436, 0
  %v3614 = vsel %vm3462, %v3437, 0
  %v3617 = vsel %vm3462, %v3438, 0
  %v3620 = vsel %vm3462, %v3439, 0
  %v3623 = vsel %vm3462, %v3440, 0
  %v3626 = vsel %vm3462, %v3441, 0
  %v3629 = vsel %vm3462, %v3442, 0
  %v3632 = vsel %vm3462, %v3443, 0
  %v3635 = vsel %vm3462, %v3444, 0
  %v3638 = vsel %vm3462, %v3445, 0
  %v3641 = vsel %vm3462, %v3446, 0
  %v3644 = vsel %vm3462, %v3447, 0
  %v3647 = vsel %vm3462, %v3448, 0
  %v3650 = vsel %vm3462, %v3449, 0
  %v3653 = vsel %vm3462, %v3450, 0
  %vm3655 = vcmask 1042432
  %v3657 = vsel %vm3655, %v3454, 0
  %3659 = vmatprep.subr.mxu0 0.0
  %3660 = vmatpush1.msra.mxu0 %v3451
  %3661 = vmatprep.subr.mxu0 0.0
  %3662 = vmatpush1.msra.mxu0 %v3452
  %3663 = vmatprep.subr.mxu0 0.0
  %3664 = vmatpush1.msra.mxu0 %v3453
  %3665 = vmatprep.subr.mxu0 0.0
  %3666 = vmatpush1.msra.mxu0 %v3657
  %3667 = vmatprep.subr.mxu0 0.0
  %3668 = vmatpush1.msra.mxu0 0.0
  %3669 = vmatprep.subr.mxu0 0.0
  %3670 = vmatpush1.msra.mxu0 0.0
  %3671 = vmatprep.subr.mxu0 0.0
  %3672 = vmatpush1.msra.mxu0 0.0
  %3673 = vmatprep.subr.mxu0 0.0
  %3674 = vmatpush1.msra.mxu0 0.0
  %3675 = vmatprep.subr.mxu0 0.0
  %3676 = vmatpush1.msra.mxu0 0.0
  %3677 = vmatprep.subr.mxu0 0.0
  %3678 = vmatpush1.msra.mxu0 0.0
  %3679 = vmatprep.subr.mxu0 0.0
  %3680 = vmatpush1.msra.mxu0 0.0
  %3681 = vmatprep.subr.mxu0 0.0
  %3682 = vmatpush1.msra.mxu0 0.0
  %3683 = vmatprep.subr.mxu0 0.0
  %3684 = vmatpush1.msra.mxu0 0.0
  %3685 = vmatprep.subr.mxu0 0.0
  %3686 = vmatpush1.msra.mxu0 0.0
  %3687 = vmatprep.subr.mxu0 0.0
  %3688 = vmatpush1.msra.mxu0 0.0
  %3689 = vmatprep.subr.mxu0 0.0
  %3690 = vmatpush1.msra.mxu0 0.0
  %3691 = vmatprep.subr.mxu0 0.0
  %3692 = vmatpush1.msra.mxu0 0.0
  %3693 = vmatprep.subr.mxu0 0.0
  %3694 = vmatpush1.msra.mxu0 0.0
  %3695 = vmatprep.subr.mxu0 0.0
  %3696 = vmatpush1.msra.mxu0 0.0
  %3697 = vmatprep.subr.mxu0 0.0
  %3698 = vmatpush1.msra.mxu0 0.0
  %3699 = vmatprep.subr.mxu0 0.0
  %3700 = vmatpush1.msra.mxu0 0.0
  %3701 = vmatprep.subr.mxu0 0.0
  %3702 = vmatpush1.msra.mxu0 0.0
  %3703 = vmatprep.subr.mxu0 0.0
  %3704 = vmatpush1.msra.mxu0 0.0
  %3705 = vmatprep.subr.mxu0 0.0
  %3706 = vmatpush1.msra.mxu0 0.0
  %3707 = vmatprep.subr.mxu0 0.0
  %3708 = vmatpush1.msra.mxu0 0.0
  %3709 = vmatprep.subr.mxu0 0.0
  %3710 = vmatpush1.msra.mxu0 0.0
  %3711 = vmatprep.subr.mxu0 0.0
  %3712 = vmatpush1.msra.mxu0 0.0
  %3713 = vmatprep.subr.mxu0 0.0
  %3714 = vmatpush1.msra.mxu0 0.0
  %3715 = vmatprep.subr.mxu0 0.0
  %3716 = vmatpush1.msra.mxu0 0.0
  %3717 = vmatprep.subr.mxu0 0.0
  %3718 = vmatpush1.msra.mxu0 0.0
  %3719 = vmatprep.subr.mxu0 0.0
  %3720 = vmatpush1.msra.mxu0 0.0
  %3721 = vmatprep.subr.mxu0 0.0
  %3722 = vmatpush1.msra.mxu0 0.0
  %3723 = vmatprep.mubr.f32.mxu0 0.0
  %3724 = vmatmul.mubr.f32.gmra.mrb[0].mxu0 %v3464
  %v3725 = vpop.f32.mrb[0].mxu0
  %v3726 = vadd.f32 %v3460, %v3725
  %v3727 = vpop.f32.mrb[0].mxu0
  %3728 = vmatprep.mubr.f32.mxu0 0.0
  %3729 = vmatmul.mubr.f32.gmra.mrb[0].mxu0 %v3467
  %v3730 = vpop.f32.mrb[0].mxu0
  %v3731 = vadd.f32 %v3460, %v3730
  %v3732 = vpop.f32.mrb[0].mxu0
  %3733 = vmatprep.mubr.f32.mxu0 0.0
  %3734 = vmatmul.mubr.f32.gmra.mrb[0].mxu0 %v3470
  %v3735 = vpop.f32.mrb[0].mxu0
  %v3736 = vadd.f32 %v3460, %v3735
  %v3737 = vpop.f32.mrb[0].mxu0
  %3738 = vmatprep.mubr.f32.mxu0 0.0
  %3739 = vmatmul.mubr.f32.gmra.mrb[0].mxu0 %v3473
  %v3740 = vpop.f32.mrb[0].mxu0
  %v3741 = vadd.f32 %v3460, %v3740
  %v3742 = vpop.f32.mrb[0].mxu0
  %3743 = vmatprep.mubr.f32.mxu0 0.0
  %3744 = vmatmul.mubr.f32.gmra.mrb[0].mxu0 %v3476
  %v3745 = vpop.f32.mrb[0].mxu0
  %v3746 = vadd.f32 %v3460, %v3745
  %v3747 = vpop.f32.mrb[0].mxu0
  %3748 = vmatprep.mubr.f32.mxu0 0.0
  %3749 = vmatmul.mubr.f32.gmra.mrb[0].mxu0 %v3479
  %v3750 = vpop.f32.mrb[0].mxu0
  %v3751 = vadd.f32 %v3460, %v3750
  %v3752 = vpop.f32.mrb[0].mxu0
  %3753 = vmatprep.mubr.f32.mxu0 0.0
  %3754 = vmatmul.mubr.f32.gmra.mrb[0].mxu0 %v3482
  %v3755 = vpop.f32.mrb[0].mxu0
  %v3756 = vadd.f32 %v3460, %v3755
  %v3757 = vpop.f32.mrb[0].mxu0
  %3758 = vmatprep.mubr.f32.mxu0 0.0
  %3759 = vmatmul.mubr.f32.gmra.mrb[0].mxu0 %v3485
  %v3760 = vpop.f32.mrb[0].mxu0
  %v3761 = vadd.f32 %v3460, %v3760
  %v3762 = vpop.f32.mrb[0].mxu0
  %3763 = vmatprep.mubr.f32.mxu0 0.0
  %3764 = vmatmul.mubr.f32.gmra.mrb[0].mxu0 %v3488
  %v3765 = vpop.f32.mrb[0].mxu0
  %v3766 = vadd.f32 %v3460, %v3765
  %v3767 = vpop.f32.mrb[0].mxu0
  %3768 = vmatprep.mubr.f32.mxu0 0.0
  %3769 = vmatmul.mubr.f32.gmra.mrb[0].mxu0 %v3491
  %v3770 = vpop.f32.mrb[0].mxu0
  %v3771 = vadd.f32 %v3460, %v3770
  %v3772 = vpop.f32.mrb[0].mxu0
  %3773 = vmatprep.mubr.f32.mxu0 0.0
  %3774 = vmatmul.mubr.f32.gmra.mrb[0].mxu0 %v3494
  %v3775 = vpop.f32.mrb[0].mxu0
  %v3776 = vadd.f32 %v3460, %v3775
  %v3777 = vpop.f32.mrb[0].mxu0
  %3778 = vmatprep.mubr.f32.mxu0 0.0
  %3779 = vmatmul.mubr.f32.gmra.mrb[0].mxu0 %v3497
  %v3780 = vpop.f32.mrb[0].mxu0
  %v3781 = vadd.f32 %v3460, %v3780
  %v3782 = vpop.f32.mrb[0].mxu0
  %3783 = vmatprep.mubr.f32.mxu0 0.0
  %3784 = vmatmul.mubr.f32.gmra.mrb[0].mxu0 %v3500
  %v3785 = vpop.f32.mrb[0].mxu0
  %v3786 = vadd.f32 %v3460, %v3785
  %v3787 = vpop.f32.mrb[0].mxu0
  %3788 = vmatprep.mubr.f32.mxu0 0.0
  %3789 = vmatmul.mubr.f32.gmra.mrb[0].mxu0 %v3503
  %v3790 = vpop.f32.mrb[0].mxu0
  %v3791 = vadd.f32 %v3460, %v3790
  %v3792 = vpop.f32.mrb[0].mxu0
  %3793 = vmatprep.mubr.f32.mxu0 0.0
  %3794 = vmatmul.mubr.f32.gmra.mrb[0].mxu0 %v3506
  %v3795 = vpop.f32.mrb[0].mxu0
  %v3796 = vadd.f32 %v3460, %v3795
  %v3797 = vpop.f32.mrb[0].mxu0
  %3798 = vmatprep.mubr.f32.mxu0 0.0
  %3799 = vmatmul.mubr.f32.gmra.mrb[0].mxu0 %v3509
  %v3800 = vpop.f32.mrb[0].mxu0
  %v3801 = vadd.f32 %v3460, %v3800
  %v3802 = vpop.f32.mrb[0].mxu0
  %3803 = vmatprep.mubr.f32.mxu0 0.0
  %3804 = vmatmul.mubr.f32.gmra.mrb[0].mxu0 %v3512
  %v3805 = vpop.f32.mrb[0].mxu0
  %v3806 = vadd.f32 %v3460, %v3805
  %v3807 = vpop.f32.mrb[0].mxu0
  %3808 = vmatprep.mubr.f32.mxu0 0.0
  %3809 = vmatmul.mubr.f32.gmra.mrb[0].mxu0 %v3515
  %v3810 = vpop.f32.mrb[0].mxu0
  %v3811 = vadd.f32 %v3460, %v3810
  %v3812 = vpop.f32.mrb[0].mxu0
  %3813 = vmatprep.mubr.f32.mxu0 0.0
  %3814 = vmatmul.mubr.f32.gmra.mrb[0].mxu0 %v3518
  %v3815 = vpop.f32.mrb[0].mxu0
  %v3816 = vadd.f32 %v3460, %v3815
  %v3817 = vpop.f32.mrb[0].mxu0
  %3818 = vmatprep.mubr.f32.mxu0 0.0
  %3819 = vmatmul.mubr.f32.gmra.mrb[0].mxu0 %v3521
  %v3820 = vpop.f32.mrb[0].mxu0
  %v3821 = vadd.f32 %v3460, %v3820
  %v3822 = vpop.f32.mrb[0].mxu0
  %3823 = vmatprep.mubr.f32.mxu0 0.0
  %3824 = vmatmul.mubr.f32.gmra.mrb[0].mxu0 %v3524
  %v3825 = vpop.f32.mrb[0].mxu0
  %v3826 = vadd.f32 %v3460, %v3825
  %v3827 = vpop.f32.mrb[0].mxu0
  %3828 = vmatprep.mubr.f32.mxu0 0.0
  %3829 = vmatmul.mubr.f32.gmra.mrb[0].mxu0 %v3527
  %v3830 = vpop.f32.mrb[0].mxu0
  %v3831 = vadd.f32 %v3460, %v3830
  %v3832 = vpop.f32.mrb[0].mxu0
  %3833 = vmatprep.mubr.f32.mxu0 0.0
  %3834 = vmatmul.mubr.f32.gmra.mrb[0].mxu0 %v3530
  %v3835 = vpop.f32.mrb[0].mxu0
  %v3836 = vadd.f32 %v3460, %v3835
  %v3837 = vpop.f32.mrb[0].mxu0
  %3838 = vmatprep.mubr.f32.mxu0 0.0
  %3839 = vmatmul.mubr.f32.gmra.mrb[0].mxu0 %v3533
  %v3840 = vpop.f32.mrb[0].mxu0
  %v3841 = vadd.f32 %v3460, %v3840
  %v3842 = vpop.f32.mrb[0].mxu0
  %3843 = vmatprep.mubr.f32.mxu0 0.0
  %3844 = vmatmul.mubr.f32.gmra.mrb[0].mxu0 %v3536
  %v3845 = vpop.f32.mrb[0].mxu0
  %v3846 = vadd.f32 %v3460, %v3845
  %v3847 = vpop.f32.mrb[0].mxu0
  %3848 = vmatprep.mubr.f32.mxu0 0.0
  %3849 = vmatmul.mubr.f32.gmra.mrb[0].mxu0 %v3539
  %v3850 = vpop.f32.mrb[0].mxu0
  %v3851 = vadd.f32 %v3460, %v3850
  %v3852 = vpop.f32.mrb[0].mxu0
  %3853 = vmatprep.mubr.f32.mxu0 0.0
  %3854 = vmatmul.mubr.f32.gmra.mrb[0].mxu0 %v3542
  %v3855 = vpop.f32.mrb[0].mxu0
  %v3856 = vadd.f32 %v3460, %v3855
  %v3857 = vpop.f32.mrb[0].mxu0
  %3858 = vmatprep.mubr.f32.mxu0 0.0
  %3859 = vmatmul.mubr.f32.gmra.mrb[0].mxu0 %v3545
  %v3860 = vpop.f32.mrb[0].mxu0
  %v3861 = vadd.f32 %v3460, %v3860
  %v3862 = vpop.f32.mrb[0].mxu0
  %3863 = vmatprep.mubr.f32.mxu0 0.0
  %3864 = vmatmul.mubr.f32.gmra.mrb[0].mxu0 %v3548
  %v3865 = vpop.f32.mrb[0].mxu0
  %v3866 = vadd.f32 %v3460, %v3865
  %v3867 = vpop.f32.mrb[0].mxu0
  %3868 = vmatprep.mubr.f32.mxu0 0.0
  %3869 = vmatmul.mubr.f32.gmra.mrb[0].mxu0 %v3551
  %v3870 = vpop.f32.mrb[0].mxu0
  %v3871 = vadd.f32 %v3460, %v3870
  %v3872 = vpop.f32.mrb[0].mxu0
  %3873 = vmatprep.mubr.f32.mxu0 0.0
  %3874 = vmatmul.mubr.f32.gmra.mrb[0].mxu0 %v3554
  %v3875 = vpop.f32.mrb[0].mxu0
  %v3876 = vadd.f32 %v3460, %v3875
  %v3877 = vpop.f32.mrb[0].mxu0
  %3878 = vmatprep.mubr.f32.mxu0 0.0
  %3879 = vmatmul.mubr.f32.gmra.mrb[0].mxu0 %v3557
  %v3880 = vpop.f32.mrb[0].mxu0
  %v3881 = vadd.f32 %v3460, %v3880
  %v3882 = vpop.f32.mrb[0].mxu0
  %3883 = vmatprep.mubr.f32.mxu0 0.0
  %3884 = vmatmul.mubr.f32.gmra.mrb[0].mxu0 %v3560
  %v3885 = vpop.f32.mrb[0].mxu0
  %v3886 = vadd.f32 %v3460, %v3885
  %v3887 = vpop.f32.mrb[0].mxu0
  %3888 = vmatprep.mubr.f32.mxu0 0.0
  %3889 = vmatmul.mubr.f32.gmra.mrb[0].mxu0 %v3563
  %v3890 = vpop.f32.mrb[0].mxu0
  %v3891 = vadd.f32 %v3460, %v3890
  %v3892 = vpop.f32.mrb[0].mxu0
  %3893 = vmatprep.mubr.f32.mxu0 0.0
  %3894 = vmatmul.mubr.f32.gmra.mrb[0].mxu0 %v3566
  %v3895 = vpop.f32.mrb[0].mxu0
  %v3896 = vadd.f32 %v3460, %v3895
  %v3897 = vpop.f32.mrb[0].mxu0
  %3898 = vmatprep.mubr.f32.mxu0 0.0
  %3899 = vmatmul.mubr.f32.gmra.mrb[0].mxu0 %v3569
  %v3900 = vpop.f32.mrb[0].mxu0
  %v3901 = vadd.f32 %v3460, %v3900
  %v3902 = vpop.f32.mrb[0].mxu0
  %3903 = vmatprep.mubr.f32.mxu0 0.0
  %3904 = vmatmul.mubr.f32.gmra.mrb[0].mxu0 %v3572
  %v3905 = vpop.f32.mrb[0].mxu0
  %v3906 = vadd.f32 %v3460, %v3905
  %v3907 = vpop.f32.mrb[0].mxu0
  %3908 = vmatprep.mubr.f32.mxu0 0.0
  %3909 = vmatmul.mubr.f32.gmra.mrb[0].mxu0 %v3575
  %v3910 = vpop.f32.mrb[0].mxu0
  %v3911 = vadd.f32 %v3460, %v3910
  %v3912 = vpop.f32.mrb[0].mxu0
  %3913 = vmatprep.mubr.f32.mxu0 0.0
  %3914 = vmatmul.mubr.f32.gmra.mrb[0].mxu0 %v3578
  %v3915 = vpop.f32.mrb[0].mxu0
  %v3916 = vadd.f32 %v3460, %v3915
  %v3917 = vpop.f32.mrb[0].mxu0
  %3918 = vmatprep.mubr.f32.mxu0 0.0
  %3919 = vmatmul.mubr.f32.gmra.mrb[0].mxu0 %v3581
  %v3920 = vpop.f32.mrb[0].mxu0
  %v3921 = vadd.f32 %v3460, %v3920
  %v3922 = vpop.f32.mrb[0].mxu0
  %3923 = vmatprep.mubr.f32.mxu0 0.0
  %3924 = vmatmul.mubr.f32.gmra.mrb[0].mxu0 %v3584
  %v3925 = vpop.f32.mrb[0].mxu0
  %v3926 = vadd.f32 %v3460, %v3925
  %v3927 = vpop.f32.mrb[0].mxu0
  %3928 = vmatprep.mubr.f32.mxu0 0.0
  %3929 = vmatmul.mubr.f32.gmra.mrb[0].mxu0 %v3587
  %v3930 = vpop.f32.mrb[0].mxu0
  %v3931 = vadd.f32 %v3460, %v3930
  %v3932 = vpop.f32.mrb[0].mxu0
  %3933 = vmatprep.mubr.f32.mxu0 0.0
  %3934 = vmatmul.mubr.f32.gmra.mrb[0].mxu0 %v3590
  %v3935 = vpop.f32.mrb[0].mxu0
  %v3936 = vadd.f32 %v3460, %v3935
  %v3937 = vpop.f32.mrb[0].mxu0
  %3938 = vmatprep.mubr.f32.mxu0 0.0
  %3939 = vmatmul.mubr.f32.gmra.mrb[0].mxu0 %v3593
  %v3940 = vpop.f32.mrb[0].mxu0
  %v3941 = vadd.f32 %v3460, %v3940
  %v3942 = vpop.f32.mrb[0].mxu0
  %3943 = vmatprep.mubr.f32.mxu0 0.0
  %3944 = vmatmul.mubr.f32.gmra.mrb[0].mxu0 %v3596
  %v3945 = vpop.f32.mrb[0].mxu0
  %v3946 = vadd.f32 %v3460, %v3945
  %v3947 = vpop.f32.mrb[0].mxu0
  %3948 = vmatprep.mubr.f32.mxu0 0.0
  %3949 = vmatmul.mubr.f32.gmra.mrb[0].mxu0 %v3599
  %v3950 = vpop.f32.mrb[0].mxu0
  %v3951 = vadd.f32 %v3460, %v3950
  %v3952 = vpop.f32.mrb[0].mxu0
  %3953 = vmatprep.mubr.f32.mxu0 0.0
  %3954 = vmatmul.mubr.f32.gmra.mrb[0].mxu0 %v3602
  %v3955 = vpop.f32.mrb[0].mxu0
  %v3956 = vadd.f32 %v3460, %v3955
  %v3957 = vpop.f32.mrb[0].mxu0
  %3958 = vmatprep.mubr.f32.mxu0 0.0
  %3959 = vmatmul.mubr.f32.gmra.mrb[0].mxu0 %v3605
  %v3960 = vpop.f32.mrb[0].mxu0
  %v3961 = vadd.f32 %v3460, %v3960
  %v3962 = vpop.f32.mrb[0].mxu0
  %3963 = vmatprep.mubr.f32.mxu0 0.0
  %3964 = vmatmul.mubr.f32.gmra.mrb[0].mxu0 %v3608
  %v3965 = vpop.f32.mrb[0].mxu0
  %v3966 = vadd.f32 %v3460, %v3965
  %v3967 = vpop.f32.mrb[0].mxu0
  %3968 = vmatprep.mubr.f32.mxu0 0.0
  %3969 = vmatmul.mubr.f32.gmra.mrb[0].mxu0 %v3611
  %v3970 = vpop.f32.mrb[0].mxu0
  %v3971 = vadd.f32 %v3460, %v3970
  %v3972 = vpop.f32.mrb[0].mxu0
  %3973 = vmatprep.mubr.f32.mxu0 0.0
  %3974 = vmatmul.mubr.f32.gmra.mrb[0].mxu0 %v3614
  %v3975 = vpop.f32.mrb[0].mxu0
  %v3976 = vadd.f32 %v3460, %v3975
  %v3977 = vpop.f32.mrb[0].mxu0
  %3978 = vmatprep.mubr.f32.mxu0 0.0
  %3979 = vmatmul.mubr.f32.gmra.mrb[0].mxu0 %v3617
  %v3980 = vpop.f32.mrb[0].mxu0
  %v3981 = vadd.f32 %v3460, %v3980
  %v3982 = vpop.f32.mrb[0].mxu0
  %3983 = vmatprep.mubr.f32.mxu0 0.0
  %3984 = vmatmul.mubr.f32.gmra.mrb[0].mxu0 %v3620
  %v3985 = vpop.f32.mrb[0].mxu0
  %v3986 = vadd.f32 %v3460, %v3985
  %v3987 = vpop.f32.mrb[0].mxu0
  %3988 = vmatprep.mubr.f32.mxu0 0.0
  %3989 = vmatmul.mubr.f32.gmra.mrb[0].mxu0 %v3623
  %v3990 = vpop.f32.mrb[0].mxu0
  %v3991 = vadd.f32 %v3460, %v3990
  %v3992 = vpop.f32.mrb[0].mxu0
  %3993 = vmatprep.mubr.f32.mxu0 0.0
  %3994 = vmatmul.mubr.f32.gmra.mrb[0].mxu0 %v3626
  %v3995 = vpop.f32.mrb[0].mxu0
  %v3996 = vadd.f32 %v3460, %v3995
  %v3997 = vpop.f32.mrb[0].mxu0
  %3998 = vmatprep.mubr.f32.mxu0 0.0
  %3999 = vmatmul.mubr.f32.gmra.mrb[0].mxu0 %v3629
  %v4000 = vpop.f32.mrb[0].mxu0
  %v4001 = vadd.f32 %v3460, %v4000
  %v4002 = vpop.f32.mrb[0].mxu0
  %4003 = vmatprep.mubr.f32.mxu0 0.0
  %4004 = vmatmul.mubr.f32.gmra.mrb[0].mxu0 %v3632
  %v4005 = vpop.f32.mrb[0].mxu0
  %v4006 = vadd.f32 %v3460, %v4005
  %v4007 = vpop.f32.mrb[0].mxu0
  %4008 = vmatprep.mubr.f32.mxu0 0.0
  %4009 = vmatmul.mubr.f32.gmra.mrb[0].mxu0 %v3635
  %v4010 = vpop.f32.mrb[0].mxu0
  %v4011 = vadd.f32 %v3460, %v4010
  %v4012 = vpop.f32.mrb[0].mxu0
  %4013 = vmatprep.mubr.f32.mxu0 0.0
  %4014 = vmatmul.mubr.f32.gmra.mrb[0].mxu0 %v3638
  %v4015 = vpop.f32.mrb[0].mxu0
  %v4016 = vadd.f32 %v3460, %v4015
  %v4017 = vpop.f32.mrb[0].mxu0
  %4018 = vmatprep.mubr.f32.mxu0 0.0
  %4019 = vmatmul.mubr.f32.gmra.mrb[0].mxu0 %v3641
  %v4020 = vpop.f32.mrb[0].mxu0
  %v4021 = vadd.f32 %v3460, %v4020
  %v4022 = vpop.f32.mrb[0].mxu0
  %4023 = vmatprep.mubr.f32.mxu0 0.0
  %4024 = vmatmul.mubr.f32.gmra.mrb[0].mxu0 %v3644
  %v4025 = vpop.f32.mrb[0].mxu0
  %v4026 = vadd.f32 %v3460, %v4025
  %v4027 = vpop.f32.mrb[0].mxu0
  %4028 = vmatprep.mubr.f32.mxu0 0.0
  %4029 = vmatmul.mubr.f32.gmra.mrb[0].mxu0 %v3647
  %v4030 = vpop.f32.mrb[0].mxu0
  %v4031 = vadd.f32 %v3460, %v4030
  %v4032 = vpop.f32.mrb[0].mxu0
  %4033 = vmatprep.mubr.f32.mxu0 0.0
  %4034 = vmatmul.mubr.f32.gmra.mrb[0].mxu0 %v3650
  %v4035 = vpop.f32.mrb[0].mxu0
  %v4036 = vadd.f32 %v3460, %v4035
  %v4037 = vpop.f32.mrb[0].mxu0
  %4038 = vmatprep.mubr.f32.mxu0 0.0
  %4039 = vmatmul.mubr.f32.gmra.mrb[0].mxu0 %v3653
  %v4040 = vpop.f32.mrb[0].mxu0
  %v4041 = vadd.f32 %v3460, %v4040
  %v4042 = vpop.f32.mrb[0].mxu0
  %4043 = vdwg.mxu0
  %v4044 = vmax.f32 %v3726, 0.0
  %v4045 = vmax.f32 %v3731, 0.0
  %v4046 = vmax.f32 %v3736, 0.0
  %v4047 = vmax.f32 %v3741, 0.0
  %v4048 = vmax.f32 %v3746, 0.0
  %v4049 = vmax.f32 %v3751, 0.0
  %v4050 = vmax.f32 %v3756, 0.0
  %v4051 = vmax.f32 %v3761, 0.0
  %v4052 = vmax.f32 %v3766, 0.0
  %v4053 = vmax.f32 %v3771, 0.0
  %v4054 = vmax.f32 %v3776, 0.0
  %v4055 = vmax.f32 %v3781, 0.0
  %v4056 = vmax.f32 %v3786, 0.0
  %v4057 = vmax.f32 %v3791, 0.0
  %v4058 = vmax.f32 %v3796, 0.0
  %v4059 = vmax.f32 %v3801, 0.0
  %v4060 = vmax.f32 %v3806, 0.0
  %v4061 = vmax.f32 %v3811, 0.0
  %v4062 = vmax.f32 %v3816, 0.0
  %v4063 = vmax.f32 %v3821, 0.0
  %v4064 = vmax.f32 %v3826, 0.0
  %v4065 = vmax.f32 %v3831, 0.0
  %v4066 = vmax.f32 %v3836, 0.0
  %v4067 = vmax.f32 %v3841, 0.0
  %v4068 = vmax.f32 %v3846, 0.0
  %v4069 = vmax.f32 %v3851, 0.0
  %v4070 = vmax.f32 %v3856, 0.0
  %v4071 = vmax.f32 %v3861, 0.0
  %v4072 = vmax.f32 %v3866, 0.0
  %v4073 = vmax.f32 %v3871, 0.0
  %v4074 = vmax.f32 %v3876, 0.0
  %v4075 = vmax.f32 %v3881, 0.0
  %v4076 = vmax.f32 %v3886, 0.0
  %v4077 = vmax.f32 %v3891, 0.0
  %v4078 = vmax.f32 %v3896, 0.0
  %v4079 = vmax.f32 %v3901, 0.0
  %v4080 = vmax.f32 %v3906, 0.0
  %v4081 = vmax.f32 %v3911, 0.0
  %v4082 = vmax.f32 %v3916, 0.0
  %v4083 = vmax.f32 %v3921, 0.0
  %v4084 = vmax.f32 %v3926, 0.0
  %v4085 = vmax.f32 %v3931, 0.0
  %v4086 = vmax.f32 %v3936, 0.0
  %v4087 = vmax.f32 %v3941, 0.0
  %v4088 = vmax.f32 %v3946, 0.0
  %v4089 = vmax.f32 %v3951, 0.0
  %v4090 = vmax.f32 %v3956, 0.0
  %v4091 = vmax.f32 %v3961, 0.0
  %v4092 = vmax.f32 %v3966, 0.0
  %v4093 = vmax.f32 %v3971, 0.0
  %v4094 = vmax.f32 %v3976, 0.0
  %v4095 = vmax.f32 %v3981, 0.0
  %v4096 = vmax.f32 %v3986, 0.0
  %v4097 = vmax.f32 %v3991, 0.0
  %v4098 = vmax.f32 %v3996, 0.0
  %v4099 = vmax.f32 %v4001, 0.0
  %v4100 = vmax.f32 %v4006, 0.0
  %v4101 = vmax.f32 %v4011, 0.0
  %v4102 = vmax.f32 %v4016, 0.0
  %v4103 = vmax.f32 %v4021, 0.0
  %v4104 = vmax.f32 %v4026, 0.0
  %v4105 = vmax.f32 %v4031, 0.0
  %v4106 = vmax.f32 %v4036, 0.0
  %v4107 = vmax.f32 %v4041, 0.0
  %4108 = vst.msk [vmem:[#allocation3] sm:$0xff] %vm3126, %v4044
  %4109 = vst.msk [vmem:[#allocation3 + $0x8] sm:$0xff] %vm3126, %v4045
  %4110 = vst.msk [vmem:[#allocation3 + $0x10] sm:$0xff] %vm3126, %v4046
  %4111 = vst.msk [vmem:[#allocation3 + $0x18] sm:$0xff] %vm3126, %v4047
  %4112 = vst.msk [vmem:[#allocation3 + $0x20] sm:$0xff] %vm3126, %v4048
  %4113 = vst.msk [vmem:[#allocation3 + $0x28] sm:$0xff] %vm3126, %v4049
  %4114 = vst.msk [vmem:[#allocation3 + $0x30] sm:$0xff] %vm3126, %v4050
  %4115 = vst.msk [vmem:[#allocation3 + $0x38] sm:$0xff] %vm3126, %v4051
  %4116 = vst.msk [vmem:[#allocation3 + $0x40] sm:$0xff] %vm3126, %v4052
  %4117 = vst.msk [vmem:[#allocation3 + $0x48] sm:$0xff] %vm3126, %v4053
  %4118 = vst.msk [vmem:[#allocation3 + $0x50] sm:$0xff] %vm3126, %v4054
  %4119 = vst.msk [vmem:[#allocation3 + $0x58] sm:$0xff] %vm3126, %v4055
  %4120 = vst.msk [vmem:[#allocation3 + $0x60] sm:$0xff] %vm3126, %v4056
  %4121 = vst.msk [vmem:[#allocation3 + $0x68] sm:$0xff] %vm3126, %v4057
  %4122 = vst.msk [vmem:[#allocation3 + $0x70] sm:$0xff] %vm3126, %v4058
  %4123 = vst.msk [vmem:[#allocation3 + $0x78] sm:$0xff] %vm3126, %v4059
  %4124 = vst.msk [vmem:[#allocation3 + $0x80] sm:$0xff] %vm3126, %v4060
  %4125 = vst.msk [vmem:[#allocation3 + $0x88] sm:$0xff] %vm3126, %v4061
  %4126 = vst.msk [vmem:[#allocation3 + $0x90] sm:$0xff] %vm3126, %v4062
  %4127 = vst.msk [vmem:[#allocation3 + $0x98] sm:$0xff] %vm3126, %v4063
  %4128 = vst.msk [vmem:[#allocation3 + $0xa0] sm:$0xff] %vm3126, %v4064
  %4129 = vst.msk [vmem:[#allocation3 + $0xa8] sm:$0xff] %vm3126, %v4065
  %4130 = vst.msk [vmem:[#allocation3 + $0xb0] sm:$0xff] %vm3126, %v4066
  %4131 = vst.msk [vmem:[#allocation3 + $0xb8] sm:$0xff] %vm3126, %v4067
  %4132 = vst.msk [vmem:[#allocation3 + $0xc0] sm:$0xff] %vm3126, %v4068
  %4133 = vst.msk [vmem:[#allocation3 + $0xc8] sm:$0xff] %vm3126, %v4069
  %4134 = vst.msk [vmem:[#allocation3 + $0xd0] sm:$0xff] %vm3126, %v4070
  %4135 = vst.msk [vmem:[#allocation3 + $0xd8] sm:$0xff] %vm3126, %v4071
  %4136 = vst.msk [vmem:[#allocation3 + $0xe0] sm:$0xff] %vm3126, %v4072
  %4137 = vst.msk [vmem:[#allocation3 + $0xe8] sm:$0xff] %vm3126, %v4073
  %4138 = vst.msk [vmem:[#allocation3 + $0xf0] sm:$0xff] %vm3126, %v4074
  %4139 = vst.msk [vmem:[#allocation3 + $0xf8] sm:$0xff] %vm3126, %v4075
  %4140 = vst.msk [vmem:[#allocation3 + $0x100] sm:$0xff] %vm3126, %v4076
  %4141 = vst.msk [vmem:[#allocation3 + $0x108] sm:$0xff] %vm3126, %v4077
  %4142 = vst.msk [vmem:[#allocation3 + $0x110] sm:$0xff] %vm3126, %v4078
  %4143 = vst.msk [vmem:[#allocation3 + $0x118] sm:$0xff] %vm3126, %v4079
  %4144 = vst.msk [vmem:[#allocation3 + $0x120] sm:$0xff] %vm3126, %v4080
  %4145 = vst.msk [vmem:[#allocation3 + $0x128] sm:$0xff] %vm3126, %v4081
  %4146 = vst.msk [vmem:[#allocation3 + $0x130] sm:$0xff] %vm3126, %v4082
  %4147 = vst.msk [vmem:[#allocation3 + $0x138] sm:$0xff] %vm3126, %v4083
  %4148 = vst.msk [vmem:[#allocation3 + $0x140] sm:$0xff] %vm3126, %v4084
  %4149 = vst.msk [vmem:[#allocation3 + $0x148] sm:$0xff] %vm3126, %v4085
  %4150 = vst.msk [vmem:[#allocation3 + $0x150] sm:$0xff] %vm3126, %v4086
  %4151 = vst.msk [vmem:[#allocation3 + $0x158] sm:$0xff] %vm3126, %v4087
  %4152 = vst.msk [vmem:[#allocation3 + $0x160] sm:$0xff] %vm3126, %v4088
  %4153 = vst.msk [vmem:[#allocation3 + $0x168] sm:$0xff] %vm3126, %v4089
  %4154 = vst.msk [vmem:[#allocation3 + $0x170] sm:$0xff] %vm3126, %v4090
  %4155 = vst.msk [vmem:[#allocation3 + $0x178] sm:$0xff] %vm3126, %v4091
  %4156 = vst.msk [vmem:[#allocation3 + $0x180] sm:$0xff] %vm3126, %v4092
  %4157 = vst.msk [vmem:[#allocation3 + $0x188] sm:$0xff] %vm3126, %v4093
  %4158 = vst.msk [vmem:[#allocation3 + $0x190] sm:$0xff] %vm3126, %v4094
  %4159 = vst.msk [vmem:[#allocation3 + $0x198] sm:$0xff] %vm3126, %v4095
  %4160 = vst.msk [vmem:[#allocation3 + $0x1a0] sm:$0xff] %vm3126, %v4096
  %4161 = vst.msk [vmem:[#allocation3 + $0x1a8] sm:$0xff] %vm3126, %v4097
  %4162 = vst.msk [vmem:[#allocation3 + $0x1b0] sm:$0xff] %vm3126, %v4098
  %4163 = vst.msk [vmem:[#allocation3 + $0x1b8] sm:$0xff] %vm3126, %v4099
  %4164 = vst.msk [vmem:[#allocation3 + $0x1c0] sm:$0xff] %vm3126, %v4100
  %4165 = vst.msk [vmem:[#allocation3 + $0x1c8] sm:$0xff] %vm3126, %v4101
  %4166 = vst.msk [vmem:[#allocation3 + $0x1d0] sm:$0xff] %vm3126, %v4102
  %4167 = vst.msk [vmem:[#allocation3 + $0x1d8] sm:$0xff] %vm3126, %v4103
  %4168 = vst.msk [vmem:[#allocation3 + $0x1e0] sm:$0xff] %vm3126, %v4104
  %4169 = vst.msk [vmem:[#allocation3 + $0x1e8] sm:$0xff] %vm3126, %v4105
  %4170 = vst.msk [vmem:[#allocation3 + $0x1f0] sm:$0xff] %vm3126, %v4106
  %4171 = vst.msk [vmem:[#allocation3 + $0x1f8] sm:$0xff] %vm3126, %v4107
  %v4172 = vld [vmem:[#allocation3] ss:$2 sm:$0xff]
  %s4173 = scalar_lea.vmem [#allocation3], 16
  %v4174 = vld [vmem:[%s4173] ss:$2 sm:$0xff]
  %s4175 = scalar_lea.vmem [#allocation3], 32
  %v4176 = vld [vmem:[%s4175] ss:$2 sm:$0xff]
  %s4177 = scalar_lea.vmem [#allocation3], 48
  %v4178 = vld [vmem:[%s4177] ss:$2 sm:$0xff]
  %s4179 = scalar_lea.vmem [#allocation3], 64
  %v4180 = vld [vmem:[%s4179] ss:$2 sm:$0xff]
  %s4181 = scalar_lea.vmem [#allocation3], 80
  %v4182 = vld [vmem:[%s4181] ss:$2 sm:$0xff]
  %s4183 = scalar_lea.vmem [#allocation3], 96
  %v4184 = vld [vmem:[%s4183] ss:$2 sm:$0xff]
  %s4185 = scalar_lea.vmem [#allocation3], 112
  %v4186 = vld [vmem:[%s4185] ss:$2 sm:$0xff]
  %s4187 = scalar_lea.vmem [#allocation3], 128
  %v4188 = vld [vmem:[%s4187] ss:$2 sm:$0xff]
  %s4189 = scalar_lea.vmem [#allocation3], 144
  %v4190 = vld [vmem:[%s4189] ss:$2 sm:$0xff]
  %s4191 = scalar_lea.vmem [#allocation3], 160
  %v4192 = vld [vmem:[%s4191] ss:$2 sm:$0xff]
  %s4193 = scalar_lea.vmem [#allocation3], 176
  %v4194 = vld [vmem:[%s4193] ss:$2 sm:$0xff]
  %s4195 = scalar_lea.vmem [#allocation3], 192
  %v4196 = vld [vmem:[%s4195] ss:$2 sm:$0xff]
  %s4197 = scalar_lea.vmem [#allocation3], 208
  %v4198 = vld [vmem:[%s4197] ss:$2 sm:$0xff]
  %s4199 = scalar_lea.vmem [#allocation3], 224
  %v4200 = vld [vmem:[%s4199] ss:$2 sm:$0xff]
  %s4201 = scalar_lea.vmem [#allocation3], 240
  %v4202 = vld [vmem:[%s4201] ss:$2 sm:$0xff]
  %s4203 = scalar_lea.vmem [#allocation3], 256
  %v4204 = vld [vmem:[%s4203] ss:$2 sm:$0xff]
  %s4205 = scalar_lea.vmem [#allocation3], 272
  %v4206 = vld [vmem:[%s4205] ss:$2 sm:$0xff]
  %s4207 = scalar_lea.vmem [#allocation3], 288
  %v4208 = vld [vmem:[%s4207] ss:$2 sm:$0xff]
  %s4209 = scalar_lea.vmem [#allocation3], 304
  %v4210 = vld [vmem:[%s4209] ss:$2 sm:$0xff]
  %s4211 = scalar_lea.vmem [#allocation3], 320
  %v4212 = vld [vmem:[%s4211] ss:$2 sm:$0xff]
  %s4213 = scalar_lea.vmem [#allocation3], 336
  %v4214 = vld [vmem:[%s4213] ss:$2 sm:$0xff]
  %s4215 = scalar_lea.vmem [#allocation3], 352
  %v4216 = vld [vmem:[%s4215] ss:$2 sm:$0xff]
  %s4217 = scalar_lea.vmem [#allocation3], 368
  %v4218 = vld [vmem:[%s4217] ss:$2 sm:$0xff]
  %s4219 = scalar_lea.vmem [#allocation3], 384
  %v4220 = vld [vmem:[%s4219] ss:$2 sm:$0xff]
  %s4221 = scalar_lea.vmem [#allocation3], 400
  %v4222 = vld [vmem:[%s4221] ss:$2 sm:$0xff]
  %s4223 = scalar_lea.vmem [#allocation3], 416
  %v4224 = vld [vmem:[%s4223] ss:$2 sm:$0xff]
  %s4225 = scalar_lea.vmem [#allocation3], 432
  %v4226 = vld [vmem:[%s4225] ss:$2 sm:$0xff]
  %s4227 = scalar_lea.vmem [#allocation3], 448
  %v4228 = vld [vmem:[%s4227] ss:$2 sm:$0xff]
  %s4229 = scalar_lea.vmem [#allocation3], 464
  %v4230 = vld [vmem:[%s4229] ss:$2 sm:$0xff]
  %s4231 = scalar_lea.vmem [#allocation3], 480
  %v4232 = vld [vmem:[%s4231] ss:$2 sm:$0xff]
  %s4233 = scalar_lea.vmem [#allocation3], 496
  %v4234 = vld [vmem:[%s4233] ss:$2 sm:$0xff]
  %s4235 = scalar_lea.vmem [#allocation3], 1
  %v4236 = vld [vmem:[%s4235] ss:$2 sm:$0xff]
  %s4237 = scalar_lea.vmem [#allocation3], 17
  %v4238 = vld [vmem:[%s4237] ss:$2 sm:$0xff]
  %s4239 = scalar_lea.vmem [#allocation3], 33
  %v4240 = vld [vmem:[%s4239] ss:$2 sm:$0xff]
  %s4241 = scalar_lea.vmem [#allocation3], 49
  %v4242 = vld [vmem:[%s4241] ss:$2 sm:$0xff]
  %s4243 = scalar_lea.vmem [#allocation3], 65
  %v4244 = vld [vmem:[%s4243] ss:$2 sm:$0xff]
  %s4245 = scalar_lea.vmem [#allocation3], 81
  %v4246 = vld [vmem:[%s4245] ss:$2 sm:$0xff]
  %s4247 = scalar_lea.vmem [#allocation3], 97
  %v4248 = vld [vmem:[%s4247] ss:$2 sm:$0xff]
  %s4249 = scalar_lea.vmem [#allocation3], 113
  %v4250 = vld [vmem:[%s4249] ss:$2 sm:$0xff]
  %s4251 = scalar_lea.vmem [#allocation3], 129
  %v4252 = vld [vmem:[%s4251] ss:$2 sm:$0xff]
  %s4253 = scalar_lea.vmem [#allocation3], 145
  %v4254 = vld [vmem:[%s4253] ss:$2 sm:$0xff]
  %s4255 = scalar_lea.vmem [#allocation3], 161
  %v4256 = vld [vmem:[%s4255] ss:$2 sm:$0xff]
  %s4257 = scalar_lea.vmem [#allocation3], 177
  %v4258 = vld [vmem:[%s4257] ss:$2 sm:$0xff]
  %s4259 = scalar_lea.vmem [#allocation3], 193
  %v4260 = vld [vmem:[%s4259] ss:$2 sm:$0xff]
  %s4261 = scalar_lea.vmem [#allocation3], 209
  %v4262 = vld [vmem:[%s4261] ss:$2 sm:$0xff]
  %s4263 = scalar_lea.vmem [#allocation3], 225
  %v4264 = vld [vmem:[%s4263] ss:$2 sm:$0xff]
  %s4265 = scalar_lea.vmem [#allocation3], 241
  %v4266 = vld [vmem:[%s4265] ss:$2 sm:$0xff]
  %s4267 = scalar_lea.vmem [#allocation3], 257
  %v4268 = vld [vmem:[%s4267] ss:$2 sm:$0xff]
  %s4269 = scalar_lea.vmem [#allocation3], 273
  %v4270 = vld [vmem:[%s4269] ss:$2 sm:$0xff]
  %s4271 = scalar_lea.vmem [#allocation3], 289
  %v4272 = vld [vmem:[%s4271] ss:$2 sm:$0xff]
  %s4273 = scalar_lea.vmem [#allocation3], 305
  %v4274 = vld [vmem:[%s4273] ss:$2 sm:$0xff]
  %s4275 = scalar_lea.vmem [#allocation3], 321
  %v4276 = vld [vmem:[%s4275] ss:$2 sm:$0xff]
  %s4277 = scalar_lea.vmem [#allocation3], 337
  %v4278 = vld [vmem:[%s4277] ss:$2 sm:$0xff]
  %s4279 = scalar_lea.vmem [#allocation3], 353
  %v4280 = vld [vmem:[%s4279] ss:$2 sm:$0xff]
  %s4281 = scalar_lea.vmem [#allocation3], 369
  %v4282 = vld [vmem:[%s4281] ss:$2 sm:$0xff]
  %s4283 = scalar_lea.vmem [#allocation3], 385
  %v4284 = vld [vmem:[%s4283] ss:$2 sm:$0xff]
  %s4285 = scalar_lea.vmem [#allocation3], 401
  %v4286 = vld [vmem:[%s4285] ss:$2 sm:$0xff]
  %s4287 = scalar_lea.vmem [#allocation3], 417
  %v4288 = vld [vmem:[%s4287] ss:$2 sm:$0xff]
  %s4289 = scalar_lea.vmem [#allocation3], 433
  %v4290 = vld [vmem:[%s4289] ss:$2 sm:$0xff]
  %s4291 = scalar_lea.vmem [#allocation3], 449
  %v4292 = vld [vmem:[%s4291] ss:$2 sm:$0xff]
  %s4293 = scalar_lea.vmem [#allocation3], 465
  %v4294 = vld [vmem:[%s4293] ss:$2 sm:$0xff]
  %s4295 = scalar_lea.vmem [#allocation3], 481
  %v4296 = vld [vmem:[%s4295] ss:$2 sm:$0xff]
  %s4297 = scalar_lea.vmem [#allocation3], 497
  %v4298 = vld [vmem:[%s4297] ss:$2 sm:$0xff]
  %v4299 = vmax.f32 %v4172, %v4236
  %v4300 = vmax.f32 %v4174, %v4238
  %v4301 = vmax.f32 %v4176, %v4240
  %v4302 = vmax.f32 %v4178, %v4242
  %v4303 = vmax.f32 %v4180, %v4244
  %v4304 = vmax.f32 %v4182, %v4246
  %v4305 = vmax.f32 %v4184, %v4248
  %v4306 = vmax.f32 %v4186, %v4250
  %v4307 = vmax.f32 %v4188, %v4252
  %v4308 = vmax.f32 %v4190, %v4254
  %v4309 = vmax.f32 %v4192, %v4256
  %v4310 = vmax.f32 %v4194, %v4258
  %v4311 = vmax.f32 %v4196, %v4260
  %v4312 = vmax.f32 %v4198, %v4262
  %v4313 = vmax.f32 %v4200, %v4264
  %v4314 = vmax.f32 %v4202, %v4266
  %v4315 = vmax.f32 %v4204, %v4268
  %v4316 = vmax.f32 %v4206, %v4270
  %v4317 = vmax.f32 %v4208, %v4272
  %v4318 = vmax.f32 %v4210, %v4274
  %v4319 = vmax.f32 %v4212, %v4276
  %v4320 = vmax.f32 %v4214, %v4278
  %v4321 = vmax.f32 %v4216, %v4280
  %v4322 = vmax.f32 %v4218, %v4282
  %v4323 = vmax.f32 %v4220, %v4284
  %v4324 = vmax.f32 %v4222, %v4286
  %v4325 = vmax.f32 %v4224, %v4288
  %v4326 = vmax.f32 %v4226, %v4290
  %v4327 = vmax.f32 %v4228, %v4292
  %v4328 = vmax.f32 %v4230, %v4294
  %v4329 = vmax.f32 %v4232, %v4296
  %v4330 = vmax.f32 %v4234, %v4298
  %v4331 = vmax.f32 %v4299, %v4300
  %v4332 = vmax.f32 %v4301, %v4302
  %v4333 = vmax.f32 %v4303, %v4304
  %v4334 = vmax.f32 %v4305, %v4306
  %v4335 = vmax.f32 %v4307, %v4308
  %v4336 = vmax.f32 %v4309, %v4310
  %v4337 = vmax.f32 %v4311, %v4312
  %v4338 = vmax.f32 %v4313, %v4314
  %v4339 = vmax.f32 %v4315, %v4316
  %v4340 = vmax.f32 %v4317, %v4318
  %v4341 = vmax.f32 %v4319, %v4320
  %v4342 = vmax.f32 %v4321, %v4322
  %v4343 = vmax.f32 %v4323, %v4324
  %v4344 = vmax.f32 %v4325, %v4326
  %v4345 = vmax.f32 %v4327, %v4328
  %v4346 = vmax.f32 %v4329, %v4330
  %4347 = vst.msk [vmem:[#allocation4] sm:$0xff] %vm3126, 0.0
  %4348 = vst.msk [vmem:[#allocation4 + $0x8] sm:$0xff] %vm3126, 0.0
  %vm4349 = vcmask 90112
  %4350 = vst.msk [vmem:[#allocation4 + $0x10] sm:$0x1] %vm4349, 0.0
  %4351 = vst.msk [vmem:[#allocation4 + $0x18] sm:$0xff] %vm3126, 0.0
  %4352 = vst.msk [vmem:[#allocation4 + $0x20] sm:$0xff] %vm3126, 0.0
  %4353 = vst.msk [vmem:[#allocation4 + $0x28] sm:$0x1] %vm4349, 0.0
  %4354 = vst.msk [vmem:[#allocation4 + $0x30] sm:$0xff] %vm3126, 0.0
  %4355 = vst.msk [vmem:[#allocation4 + $0x38] sm:$0xff] %vm3126, 0.0
  %4356 = vst.msk [vmem:[#allocation4 + $0x40] sm:$0x1] %vm4349, 0.0
  %4357 = vst.msk [vmem:[#allocation4 + $0x48] sm:$0xff] %vm3126, 0.0
  %4358 = vst.msk [vmem:[#allocation4 + $0x50] sm:$0xff] %vm3126, 0.0
  %4359 = vst.msk [vmem:[#allocation4 + $0x58] sm:$0x1] %vm4349, 0.0
  %4360 = vst.msk [vmem:[#allocation4 + $0x60] sm:$0xff] %vm3126, 0.0
  %4361 = vst.msk [vmem:[#allocation4 + $0x68] sm:$0xff] %vm3126, 0.0
  %4362 = vst.msk [vmem:[#allocation4 + $0x70] sm:$0x1] %vm4349, 0.0
  %4363 = vst.msk [vmem:[#allocation4 + $0x78] sm:$0xff] %vm3126, 0.0
  %4364 = vst.msk [vmem:[#allocation4 + $0x80] sm:$0xff] %vm3126, 0.0
  %4365 = vst.msk [vmem:[#allocation4 + $0x88] sm:$0x1] %vm4349, 0.0
  %4366 = vst.msk [vmem:[#allocation4 + $0x90] sm:$0xff] %vm3126, 0.0
  %4367 = vst.msk [vmem:[#allocation4 + $0x98] sm:$0xff] %vm3126, 0.0
  %4368 = vst.msk [vmem:[#allocation4 + $0xa0] sm:$0x1] %vm4349, 0.0
  %4369 = vst.msk [vmem:[#allocation4 + $0xa8] sm:$0xff] %vm3126, 0.0
  %4370 = vst.msk [vmem:[#allocation4 + $0xb0] sm:$0xff] %vm3126, 0.0
  %4371 = vst.msk [vmem:[#allocation4 + $0xb8] sm:$0x1] %vm4349, 0.0
  %4372 = vst.msk [vmem:[#allocation4 + $0xc0] sm:$0xff] %vm3126, 0.0
  %4373 = vst.msk [vmem:[#allocation4 + $0xc8] sm:$0xff] %vm3126, 0.0
  %4374 = vst.msk [vmem:[#allocation4 + $0xd0] sm:$0x1] %vm4349, 0.0
  %4375 = vst.msk [vmem:[#allocation4 + $0xd8] sm:$0xff] %vm3126, 0.0
  %4376 = vst.msk [vmem:[#allocation4 + $0xe0] sm:$0xff] %vm3126, 0.0
  %4377 = vst.msk [vmem:[#allocation4 + $0xe8] sm:$0x1] %vm4349, 0.0
  %4378 = vst.msk [vmem:[#allocation4 + $0xf0] sm:$0xff] %vm3126, 0.0
  %4379 = vst.msk [vmem:[#allocation4 + $0xf8] sm:$0xff] %vm3126, 0.0
  %4380 = vst.msk [vmem:[#allocation4 + $0x100] sm:$0x1] %vm4349, 0.0
  %4381 = vst.msk [vmem:[#allocation4 + $0x108] sm:$0xff] %vm3126, 0.0
  %4382 = vst.msk [vmem:[#allocation4 + $0x110] sm:$0xff] %vm3126, 0.0
  %4383 = vst.msk [vmem:[#allocation4 + $0x118] sm:$0x1] %vm4349, 0.0
  %4384 = vst.msk [vmem:[#allocation4 + $0x120] sm:$0xff] %vm3126, 0.0
  %4385 = vst.msk [vmem:[#allocation4 + $0x128] sm:$0xff] %vm3126, 0.0
  %4386 = vst.msk [vmem:[#allocation4 + $0x130] sm:$0x1] %vm4349, 0.0
  %4387 = vst.msk [vmem:[#allocation4 + $0x138] sm:$0xff] %vm3126, 0.0
  %4388 = vst.msk [vmem:[#allocation4 + $0x140] sm:$0xff] %vm3126, 0.0
  %4389 = vst.msk [vmem:[#allocation4 + $0x148] sm:$0x1] %vm4349, 0.0
  %4390 = vst.msk [vmem:[#allocation4 + $0x150] sm:$0xff] %vm3126, 0.0
  %4391 = vst.msk [vmem:[#allocation4 + $0x158] sm:$0xff] %vm3126, 0.0
  %4392 = vst.msk [vmem:[#allocation4 + $0x160] sm:$0x1] %vm4349, 0.0
  %4393 = vst.msk [vmem:[#allocation4 + $0x168] sm:$0xff] %vm3126, 0.0
  %4394 = vst.msk [vmem:[#allocation4 + $0x170] sm:$0xff] %vm3126, 0.0
  %4395 = vst.msk [vmem:[#allocation4 + $0x178] sm:$0x1] %vm4349, 0.0
  %4396 = vst.msk [vmem:[#allocation4 + $0x180] sm:$0xff] %vm3126, 0.0
  %4397 = vst.msk [vmem:[#allocation4 + $0x188] sm:$0xff] %vm3126, 0.0
  %4398 = vst.msk [vmem:[#allocation4 + $0x190] sm:$0x1] %vm4349, 0.0
  %4399 = vst.msk [vmem:[#allocation4 + $0x198] sm:$0xff] %vm3126, 0.0
  %4400 = vst.msk [vmem:[#allocation4 + $0x1a0] sm:$0xff] %vm3126, 0.0
  %4401 = vst.msk [vmem:[#allocation4 + $0x1a8] sm:$0x1] %vm4349, 0.0
  %4402 = vst.msk [vmem:[#allocation4 + $0x1b0] sm:$0xff] %vm3126, 0.0
  %4403 = vst.msk [vmem:[#allocation4 + $0x1b8] sm:$0xff] %vm3126, 0.0
  %4404 = vst.msk [vmem:[#allocation4 + $0x1c0] sm:$0x1] %vm4349, 0.0
  %4405 = vst.msk [vmem:[#allocation4 + $0x1c8] sm:$0xff] %vm3126, 0.0
  %4406 = vst.msk [vmem:[#allocation4 + $0x1d0] sm:$0xff] %vm3126, 0.0
  %4407 = vst.msk [vmem:[#allocation4 + $0x1d8] sm:$0x1] %vm4349, 0.0
  %s4408 = scalar_lea.vmem [#allocation4], 24
  %4409 = vst.msk [vmem:[%s4408 + $0x8] sm:$0xff] %vm3126, %v4331
  %4410 = vst.msk [vmem:[%s4408 + $0x20] sm:$0xff] %vm3126, %v4332
  %4411 = vst.msk [vmem:[%s4408 + $0x38] sm:$0xff] %vm3126, %v4333
  %4412 = vst.msk [vmem:[%s4408 + $0x50] sm:$0xff] %vm3126, %v4334
  %4413 = vst.msk [vmem:[%s4408 + $0x68] sm:$0xff] %vm3126, %v4335
  %4414 = vst.msk [vmem:[%s4408 + $0x80] sm:$0xff] %vm3126, %v4336
  %4415 = vst.msk [vmem:[%s4408 + $0x98] sm:$0xff] %vm3126, %v4337
  %4416 = vst.msk [vmem:[%s4408 + $0xb0] sm:$0xff] %vm3126, %v4338
  %4417 = vst.msk [vmem:[%s4408 + $0xf8] sm:$0xff] %vm3126, %v4339
  %4418 = vst.msk [vmem:[%s4408 + $0x110] sm:$0xff] %vm3126, %v4340
  %4419 = vst.msk [vmem:[%s4408 + $0x128] sm:$0xff] %vm3126, %v4341
  %4420 = vst.msk [vmem:[%s4408 + $0x140] sm:$0xff] %vm3126, %v4342
  %4421 = vst.msk [vmem:[%s4408 + $0x158] sm:$0xff] %vm3126, %v4343
  %4422 = vst.msk [vmem:[%s4408 + $0x170] sm:$0xff] %vm3126, %v4344
  %4423 = vst.msk [vmem:[%s4408 + $0x188] sm:$0xff] %vm3126, %v4345
  %4424 = vst.msk [vmem:[%s4408 + $0x1a0] sm:$0xff] %vm3126, %v4346
  %v4425 = vld [vmem:[#allocation4 + $0x7] sm:$0xff]
  %v4426 = vld [vmem:[#allocation4 + $0x1f] sm:$0xff]
  %v4427 = vld [vmem:[#allocation4 + $0x37] sm:$0xff]
  %v4428 = vld [vmem:[#allocation4 + $0x4f] sm:$0xff]
  %v4429 = vld [vmem:[#allocation4 + $0x67] sm:$0xff]
  %v4430 = vld [vmem:[#allocation4 + $0x7f] sm:$0xff]
  %v4431 = vld [vmem:[#allocation4 + $0x97] sm:$0xff]
  %v4432 = vld [vmem:[#allocation4 + $0xaf] sm:$0xff]
  %v4433 = vld [vmem:[#allocation4 + $0xf7] sm:$0xff]
  %v4434 = vld [vmem:[#allocation4 + $0x10f] sm:$0xff]
  %v4435 = vld [vmem:[#allocation4 + $0x127] sm:$0xff]
  %v4436 = vld [vmem:[#allocation4 + $0x13f] sm:$0xff]
  %v4437 = vld [vmem:[#allocation4 + $0x157] sm:$0xff]
  %v4438 = vld [vmem:[#allocation4 + $0x16f] sm:$0xff]
  %v4439 = vld [vmem:[#allocation4 + $0x187] sm:$0xff]
  %v4440 = vld [vmem:[#allocation4 + $0x19f] sm:$0xff]
  %v4441 = vld [vmem:[#allocation4 + $0x8] sm:$0xff]
  %v4442 = vld [vmem:[#allocation4 + $0x20] sm:$0xff]
  %v4443 = vld [vmem:[#allocation4 + $0x38] sm:$0xff]
  %v4444 = vld [vmem:[#allocation4 + $0x50] sm:$0xff]
  %v4445 = vld [vmem:[#allocation4 + $0x68] sm:$0xff]
  %v4446 = vld [vmem:[#allocation4 + $0x80] sm:$0xff]
  %v4447 = vld [vmem:[#allocation4 + $0x98] sm:$0xff]
  %v4448 = vld [vmem:[#allocation4 + $0xb0] sm:$0xff]
  %v4449 = vld [vmem:[#allocation4 + $0xf8] sm:$0xff]
  %v4450 = vld [vmem:[#allocation4 + $0x110] sm:$0xff]
  %v4451 = vld [vmem:[#allocation4 + $0x128] sm:$0xff]
  %v4452 = vld [vmem:[#allocation4 + $0x140] sm:$0xff]
  %v4453 = vld [vmem:[#allocation4 + $0x158] sm:$0xff]
  %v4454 = vld [vmem:[#allocation4 + $0x170] sm:$0xff]
  %v4455 = vld [vmem:[#allocation4 + $0x188] sm:$0xff]
  %v4456 = vld [vmem:[#allocation4 + $0x1a0] sm:$0xff]
  %v4457 = vld [vmem:[#allocation4 + $0x9] sm:$0xff]
  %v4458 = vld [vmem:[#allocation4 + $0x21] sm:$0xff]
  %v4459 = vld [vmem:[#allocation4 + $0x39] sm:$0xff]
  %v4460 = vld [vmem:[#allocation4 + $0x51] sm:$0xff]
  %v4461 = vld [vmem:[#allocation4 + $0x69] sm:$0xff]
  %v4462 = vld [vmem:[#allocation4 + $0x81] sm:$0xff]
  %v4463 = vld [vmem:[#allocation4 + $0x99] sm:$0xff]
  %v4464 = vld [vmem:[#allocation4 + $0xb1] sm:$0xff]
  %v4465 = vld [vmem:[#allocation4 + $0xf9] sm:$0xff]
  %v4466 = vld [vmem:[#allocation4 + $0x111] sm:$0xff]
  %v4467 = vld [vmem:[#allocation4 + $0x129] sm:$0xff]
  %v4468 = vld [vmem:[#allocation4 + $0x141] sm:$0xff]
  %v4469 = vld [vmem:[#allocation4 + $0x159] sm:$0xff]
  %v4470 = vld [vmem:[#allocation4 + $0x171] sm:$0xff]
  %v4471 = vld [vmem:[#allocation4 + $0x189] sm:$0xff]
  %v4472 = vld [vmem:[#allocation4 + $0x1a1] sm:$0xff]
  %v4473 = vld [vmem:[%s4408 + $0x7] sm:$0xff]
  %v4474 = vld [vmem:[%s4408 + $0x1f] sm:$0xff]
  %v4475 = vld [vmem:[%s4408 + $0x37] sm:$0xff]
  %v4476 = vld [vmem:[%s4408 + $0x4f] sm:$0xff]
  %v4477 = vld [vmem:[%s4408 + $0x67] sm:$0xff]
  %v4478 = vld [vmem:[%s4408 + $0x7f] sm:$0xff]
  %v4479 = vld [vmem:[%s4408 + $0x97] sm:$0xff]
  %v4480 = vld [vmem:[%s4408 + $0xaf] sm:$0xff]
  %v4481 = vld [vmem:[%s4408 + $0xf7] sm:$0xff]
  %v4482 = vld [vmem:[%s4408 + $0x10f] sm:$0xff]
  %v4483 = vld [vmem:[%s4408 + $0x127] sm:$0xff]
  %v4484 = vld [vmem:[%s4408 + $0x13f] sm:$0xff]
  %v4485 = vld [vmem:[%s4408 + $0x157] sm:$0xff]
  %v4486 = vld [vmem:[%s4408 + $0x16f] sm:$0xff]
  %v4487 = vld [vmem:[%s4408 + $0x187] sm:$0xff]
  %v4488 = vld [vmem:[%s4408 + $0x19f] sm:$0xff]
  %v4489 = vld [vmem:[%s4408 + $0x8] sm:$0xff]
  %v4490 = vld [vmem:[%s4408 + $0x20] sm:$0xff]
  %v4491 = vld [vmem:[%s4408 + $0x38] sm:$0xff]
  %v4492 = vld [vmem:[%s4408 + $0x50] sm:$0xff]
  %v4493 = vld [vmem:[%s4408 + $0x68] sm:$0xff]
  %v4494 = vld [vmem:[%s4408 + $0x80] sm:$0xff]
  %v4495 = vld [vmem:[%s4408 + $0x98] sm:$0xff]
  %v4496 = vld [vmem:[%s4408 + $0xb0] sm:$0xff]
  %v4497 = vld [vmem:[%s4408 + $0xf8] sm:$0xff]
  %v4498 = vld [vmem:[%s4408 + $0x110] sm:$0xff]
  %v4499 = vld [vmem:[%s4408 + $0x128] sm:$0xff]
  %v4500 = vld [vmem:[%s4408 + $0x140] sm:$0xff]
  %v4501 = vld [vmem:[%s4408 + $0x158] sm:$0xff]
  %v4502 = vld [vmem:[%s4408 + $0x170] sm:$0xff]
  %v4503 = vld [vmem:[%s4408 + $0x188] sm:$0xff]
  %v4504 = vld [vmem:[%s4408 + $0x1a0] sm:$0xff]
  %v4505 = vld [vmem:[%s4408 + $0x9] sm:$0xff]
  %v4506 = vld [vmem:[%s4408 + $0x21] sm:$0xff]
  %v4507 = vld [vmem:[%s4408 + $0x39] sm:$0xff]
  %v4508 = vld [vmem:[%s4408 + $0x51] sm:$0xff]
  %v4509 = vld [vmem:[%s4408 + $0x69] sm:$0xff]
  %v4510 = vld [vmem:[%s4408 + $0x81] sm:$0xff]
  %v4511 = vld [vmem:[%s4408 + $0x99] sm:$0xff]
  %v4512 = vld [vmem:[%s4408 + $0xb1] sm:$0xff]
  %v4513 = vld [vmem:[%s4408 + $0xf9] sm:$0xff]
  %v4514 = vld [vmem:[%s4408 + $0x111] sm:$0xff]
  %v4515 = vld [vmem:[%s4408 + $0x129] sm:$0xff]
  %v4516 = vld [vmem:[%s4408 + $0x141] sm:$0xff]
  %v4517 = vld [vmem:[%s4408 + $0x159] sm:$0xff]
  %v4518 = vld [vmem:[%s4408 + $0x171] sm:$0xff]
  %v4519 = vld [vmem:[%s4408 + $0x189] sm:$0xff]
  %v4520 = vld [vmem:[%s4408 + $0x1a1] sm:$0xff]
  %s4521 = scalar_lea.vmem [#allocation4], 48
  %v4522 = vld [vmem:[%s4521 + $0x7] sm:$0xff]
  %v4523 = vld [vmem:[%s4521 + $0x1f] sm:$0xff]
  %v4524 = vld [vmem:[%s4521 + $0x37] sm:$0xff]
  %v4525 = vld [vmem:[%s4521 + $0x4f] sm:$0xff]
  %v4526 = vld [vmem:[%s4521 + $0x67] sm:$0xff]
  %v4527 = vld [vmem:[%s4521 + $0x7f] sm:$0xff]
  %v4528 = vld [vmem:[%s4521 + $0x97] sm:$0xff]
  %v4529 = vld [vmem:[%s4521 + $0xaf] sm:$0xff]
  %v4530 = vld [vmem:[%s4521 + $0xf7] sm:$0xff]
  %v4531 = vld [vmem:[%s4521 + $0x10f] sm:$0xff]
  %v4532 = vld [vmem:[%s4521 + $0x127] sm:$0xff]
  %v4533 = vld [vmem:[%s4521 + $0x13f] sm:$0xff]
  %v4534 = vld [vmem:[%s4521 + $0x157] sm:$0xff]
  %v4535 = vld [vmem:[%s4521 + $0x16f] sm:$0xff]
  %v4536 = vld [vmem:[%s4521 + $0x187] sm:$0xff]
  %v4537 = vld [vmem:[%s4521 + $0x19f] sm:$0xff]
  %v4538 = vld [vmem:[%s4521 + $0x8] sm:$0xff]
  %v4539 = vld [vmem:[%s4521 + $0x20] sm:$0xff]
  %v4540 = vld [vmem:[%s4521 + $0x38] sm:$0xff]
  %v4541 = vld [vmem:[%s4521 + $0x50] sm:$0xff]
  %v4542 = vld [vmem:[%s4521 + $0x68] sm:$0xff]
  %v4543 = vld [vmem:[%s4521 + $0x80] sm:$0xff]
  %v4544 = vld [vmem:[%s4521 + $0x98] sm:$0xff]
  %v4545 = vld [vmem:[%s4521 + $0xb0] sm:$0xff]
  %v4546 = vld [vmem:[%s4521 + $0xf8] sm:$0xff]
  %v4547 = vld [vmem:[%s4521 + $0x110] sm:$0xff]
  %v4548 = vld [vmem:[%s4521 + $0x128] sm:$0xff]
  %v4549 = vld [vmem:[%s4521 + $0x140] sm:$0xff]
  %v4550 = vld [vmem:[%s4521 + $0x158] sm:$0xff]
  %v4551 = vld [vmem:[%s4521 + $0x170] sm:$0xff]
  %v4552 = vld [vmem:[%s4521 + $0x188] sm:$0xff]
  %v4553 = vld [vmem:[%s4521 + $0x1a0] sm:$0xff]
  %v4554 = vld [vmem:[%s4521 + $0x9] sm:$0xff]
  %v4555 = vld [vmem:[%s4521 + $0x21] sm:$0xff]
  %v4556 = vld [vmem:[%s4521 + $0x39] sm:$0xff]
  %v4557 = vld [vmem:[%s4521 + $0x51] sm:$0xff]
  %v4558 = vld [vmem:[%s4521 + $0x69] sm:$0xff]
  %v4559 = vld [vmem:[%s4521 + $0x81] sm:$0xff]
  %v4560 = vld [vmem:[%s4521 + $0x99] sm:$0xff]
  %v4561 = vld [vmem:[%s4521 + $0xb1] sm:$0xff]
  %v4562 = vld [vmem:[%s4521 + $0xf9] sm:$0xff]
  %v4563 = vld [vmem:[%s4521 + $0x111] sm:$0xff]
  %v4564 = vld [vmem:[%s4521 + $0x129] sm:$0xff]
  %v4565 = vld [vmem:[%s4521 + $0x141] sm:$0xff]
  %v4566 = vld [vmem:[%s4521 + $0x159] sm:$0xff]
  %v4567 = vld [vmem:[%s4521 + $0x171] sm:$0xff]
  %v4568 = vld [vmem:[%s4521 + $0x189] sm:$0xff]
  %v4569 = vld [vmem:[%s4521 + $0x1a1] sm:$0xff]
  %4586 = vrot.lane.b32.xlu0 %v4441, 12
  %v4587 = vpop.permute.xlu0 %4586
  %4588 = vrot.lane.b32.xlu0 %v4442, 12
  %v4589 = vpop.permute.xlu0 %4588
  %4590 = vrot.lane.b32.xlu0 %v4443, 12
  %v4591 = vpop.permute.xlu0 %4590
  %4592 = vrot.lane.b32.xlu0 %v4444, 12
  %v4593 = vpop.permute.xlu0 %4592
  %4594 = vrot.lane.b32.xlu0 %v4445, 12
  %v4595 = vpop.permute.xlu0 %4594
  %4596 = vrot.lane.b32.xlu0 %v4446, 12
  %v4597 = vpop.permute.xlu0 %4596
  %4598 = vrot.lane.b32.xlu0 %v4447, 12
  %v4599 = vpop.permute.xlu0 %4598
  %4600 = vrot.lane.b32.xlu0 %v4448, 12
  %v4601 = vpop.permute.xlu0 %4600
  %4602 = vrot.lane.b32.xlu0 %v4449, 12
  %v4603 = vpop.permute.xlu0 %4602
  %4604 = vrot.lane.b32.xlu0 %v4450, 12
  %v4605 = vpop.permute.xlu0 %4604
  %4606 = vrot.lane.b32.xlu0 %v4451, 12
  %v4607 = vpop.permute.xlu0 %4606
  %4608 = vrot.lane.b32.xlu0 %v4452, 12
  %v4609 = vpop.permute.xlu0 %4608
  %4610 = vrot.lane.b32.xlu0 %v4453, 12
  %v4611 = vpop.permute.xlu0 %4610
  %4612 = vrot.lane.b32.xlu0 %v4454, 12
  %v4613 = vpop.permute.xlu0 %4612
  %4614 = vrot.lane.b32.xlu0 %v4455, 12
  %v4615 = vpop.permute.xlu0 %4614
  %4616 = vrot.lane.b32.xlu0 %v4456, 12
  %v4617 = vpop.permute.xlu0 %4616
  %4650 = vrot.lane.b32.xlu0 %v4457, 24
  %v4651 = vpop.permute.xlu0 %4650
  %4652 = vrot.lane.b32.xlu0 %v4458, 24
  %v4653 = vpop.permute.xlu0 %4652
  %4654 = vrot.lane.b32.xlu0 %v4459, 24
  %v4655 = vpop.permute.xlu0 %4654
  %4656 = vrot.lane.b32.xlu0 %v4460, 24
  %v4657 = vpop.permute.xlu0 %4656
  %4658 = vrot.lane.b32.xlu0 %v4461, 24
  %v4659 = vpop.permute.xlu0 %4658
  %4660 = vrot.lane.b32.xlu0 %v4462, 24
  %v4661 = vpop.permute.xlu0 %4660
  %4662 = vrot.lane.b32.xlu0 %v4463, 24
  %v4663 = vpop.permute.xlu0 %4662
  %4664 = vrot.lane.b32.xlu0 %v4464, 24
  %v4665 = vpop.permute.xlu0 %4664
  %4666 = vrot.lane.b32.xlu0 %v4465, 24
  %v4667 = vpop.permute.xlu0 %4666
  %4668 = vrot.lane.b32.xlu0 %v4466, 24
  %v4669 = vpop.permute.xlu0 %4668
  %4670 = vrot.lane.b32.xlu0 %v4467, 24
  %v4671 = vpop.permute.xlu0 %4670
  %4672 = vrot.lane.b32.xlu0 %v4468, 24
  %v4673 = vpop.permute.xlu0 %4672
  %4674 = vrot.lane.b32.xlu0 %v4469, 24
  %v4675 = vpop.permute.xlu0 %4674
  %4676 = vrot.lane.b32.xlu0 %v4470, 24
  %v4677 = vpop.permute.xlu0 %4676
  %4678 = vrot.lane.b32.xlu0 %v4471, 24
  %v4679 = vpop.permute.xlu0 %4678
  %4680 = vrot.lane.b32.xlu0 %v4472, 24
  %v4681 = vpop.permute.xlu0 %4680
  %4714 = vrot.lane.b32.xlu0 %v4473, 36
  %v4715 = vpop.permute.xlu0 %4714
  %4716 = vrot.lane.b32.xlu0 %v4474, 36
  %v4717 = vpop.permute.xlu0 %4716
  %4718 = vrot.lane.b32.xlu0 %v4475, 36
  %v4719 = vpop.permute.xlu0 %4718
  %4720 = vrot.lane.b32.xlu0 %v4476, 36
  %v4721 = vpop.permute.xlu0 %4720
  %4722 = vrot.lane.b32.xlu0 %v4477, 36
  %v4723 = vpop.permute.xlu0 %4722
  %4724 = vrot.lane.b32.xlu0 %v4478, 36
  %v4725 = vpop.permute.xlu0 %4724
  %4726 = vrot.lane.b32.xlu0 %v4479, 36
  %v4727 = vpop.permute.xlu0 %4726
  %4728 = vrot.lane.b32.xlu0 %v4480, 36
  %v4729 = vpop.permute.xlu0 %4728
  %4730 = vrot.lane.b32.xlu0 %v4481, 36
  %v4731 = vpop.permute.xlu0 %4730
  %4732 = vrot.lane.b32.xlu0 %v4482, 36
  %v4733 = vpop.permute.xlu0 %4732
  %4734 = vrot.lane.b32.xlu0 %v4483, 36
  %v4735 = vpop.permute.xlu0 %4734
  %4736 = vrot.lane.b32.xlu0 %v4484, 36
  %v4737 = vpop.permute.xlu0 %4736
  %4738 = vrot.lane.b32.xlu0 %v4485, 36
  %v4739 = vpop.permute.xlu0 %4738
  %4740 = vrot.lane.b32.xlu0 %v4486, 36
  %v4741 = vpop.permute.xlu0 %4740
  %4742 = vrot.lane.b32.xlu0 %v4487, 36
  %v4743 = vpop.permute.xlu0 %4742
  %4744 = vrot.lane.b32.xlu0 %v4488, 36
  %v4745 = vpop.permute.xlu0 %4744
  %4778 = vrot.lane.b32.xlu0 %v4489, 48
  %v4779 = vpop.permute.xlu0 %4778
  %4780 = vrot.lane.b32.xlu0 %v4490, 48
  %v4781 = vpop.permute.xlu0 %4780
  %4782 = vrot.lane.b32.xlu0 %v4491, 48
  %v4783 = vpop.permute.xlu0 %4782
  %4784 = vrot.lane.b32.xlu0 %v4492, 48
  %v4785 = vpop.permute.xlu0 %4784
  %4786 = vrot.lane.b32.xlu0 %v4493, 48
  %v4787 = vpop.permute.xlu0 %4786
  %4788 = vrot.lane.b32.xlu0 %v4494, 48
  %v4789 = vpop.permute.xlu0 %4788
  %4790 = vrot.lane.b32.xlu0 %v4495, 48
  %v4791 = vpop.permute.xlu0 %4790
  %4792 = vrot.lane.b32.xlu0 %v4496, 48
  %v4793 = vpop.permute.xlu0 %4792
  %4794 = vrot.lane.b32.xlu0 %v4497, 48
  %v4795 = vpop.permute.xlu0 %4794
  %4796 = vrot.lane.b32.xlu0 %v4498, 48
  %v4797 = vpop.permute.xlu0 %4796
  %4798 = vrot.lane.b32.xlu0 %v4499, 48
  %v4799 = vpop.permute.xlu0 %4798
  %4800 = vrot.lane.b32.xlu0 %v4500, 48
  %v4801 = vpop.permute.xlu0 %4800
  %4802 = vrot.lane.b32.xlu0 %v4501, 48
  %v4803 = vpop.permute.xlu0 %4802
  %4804 = vrot.lane.b32.xlu0 %v4502, 48
  %v4805 = vpop.permute.xlu0 %4804
  %4806 = vrot.lane.b32.xlu0 %v4503, 48
  %v4807 = vpop.permute.xlu0 %4806
  %4808 = vrot.lane.b32.xlu0 %v4504, 48
  %v4809 = vpop.permute.xlu0 %4808
  %4842 = vrot.lane.b32.xlu0 %v4505, 60
  %v4843 = vpop.permute.xlu0 %4842
  %4844 = vrot.lane.b32.xlu0 %v4506, 60
  %v4845 = vpop.permute.xlu0 %4844
  %4846 = vrot.lane.b32.xlu0 %v4507, 60
  %v4847 = vpop.permute.xlu0 %4846
  %4848 = vrot.lane.b32.xlu0 %v4508, 60
  %v4849 = vpop.permute.xlu0 %4848
  %4850 = vrot.lane.b32.xlu0 %v4509, 60
  %v4851 = vpop.permute.xlu0 %4850
  %4852 = vrot.lane.b32.xlu0 %v4510, 60
  %v4853 = vpop.permute.xlu0 %4852
  %4854 = vrot.lane.b32.xlu0 %v4511, 60
  %v4855 = vpop.permute.xlu0 %4854
  %4856 = vrot.lane.b32.xlu0 %v4512, 60
  %v4857 = vpop.permute.xlu0 %4856
  %4858 = vrot.lane.b32.xlu0 %v4513, 60
  %v4859 = vpop.permute.xlu0 %4858
  %4860 = vrot.lane.b32.xlu0 %v4514, 60
  %v4861 = vpop.permute.xlu0 %4860
  %4862 = vrot.lane.b32.xlu0 %v4515, 60
  %v4863 = vpop.permute.xlu0 %4862
  %4864 = vrot.lane.b32.xlu0 %v4516, 60
  %v4865 = vpop.permute.xlu0 %4864
  %4866 = vrot.lane.b32.xlu0 %v4517, 60
  %v4867 = vpop.permute.xlu0 %4866
  %4868 = vrot.lane.b32.xlu0 %v4518, 60
  %v4869 = vpop.permute.xlu0 %4868
  %4870 = vrot.lane.b32.xlu0 %v4519, 60
  %v4871 = vpop.permute.xlu0 %4870
  %4872 = vrot.lane.b32.xlu0 %v4520, 60
  %v4873 = vpop.permute.xlu0 %4872
  %4906 = vrot.lane.b32.xlu0 %v4522, 72
  %v4907 = vpop.permute.xlu0 %4906
  %4908 = vrot.lane.b32.xlu0 %v4523, 72
  %v4909 = vpop.permute.xlu0 %4908
  %4910 = vrot.lane.b32.xlu0 %v4524, 72
  %v4911 = vpop.permute.xlu0 %4910
  %4912 = vrot.lane.b32.xlu0 %v4525, 72
  %v4913 = vpop.permute.xlu0 %4912
  %4914 = vrot.lane.b32.xlu0 %v4526, 72
  %v4915 = vpop.permute.xlu0 %4914
  %4916 = vrot.lane.b32.xlu0 %v4527, 72
  %v4917 = vpop.permute.xlu0 %4916
  %4918 = vrot.lane.b32.xlu0 %v4528, 72
  %v4919 = vpop.permute.xlu0 %4918
  %4920 = vrot.lane.b32.xlu0 %v4529, 72
  %v4921 = vpop.permute.xlu0 %4920
  %4922 = vrot.lane.b32.xlu0 %v4530, 72
  %v4923 = vpop.permute.xlu0 %4922
  %4924 = vrot.lane.b32.xlu0 %v4531, 72
  %v4925 = vpop.permute.xlu0 %4924
  %4926 = vrot.lane.b32.xlu0 %v4532, 72
  %v4927 = vpop.permute.xlu0 %4926
  %4928 = vrot.lane.b32.xlu0 %v4533, 72
  %v4929 = vpop.permute.xlu0 %4928
  %4930 = vrot.lane.b32.xlu0 %v4534, 72
  %v4931 = vpop.permute.xlu0 %4930
  %4932 = vrot.lane.b32.xlu0 %v4535, 72
  %v4933 = vpop.permute.xlu0 %4932
  %4934 = vrot.lane.b32.xlu0 %v4536, 72
  %v4935 = vpop.permute.xlu0 %4934
  %4936 = vrot.lane.b32.xlu0 %v4537, 72
  %v4937 = vpop.permute.xlu0 %4936
  %4970 = vrot.lane.b32.xlu0 %v4538, 84
  %v4971 = vpop.permute.xlu0 %4970
  %4972 = vrot.lane.b32.xlu0 %v4539, 84
  %v4973 = vpop.permute.xlu0 %4972
  %4974 = vrot.lane.b32.xlu0 %v4540, 84
  %v4975 = vpop.permute.xlu0 %4974
  %4976 = vrot.lane.b32.xlu0 %v4541, 84
  %v4977 = vpop.permute.xlu0 %4976
  %4978 = vrot.lane.b32.xlu0 %v4542, 84
  %v4979 = vpop.permute.xlu0 %4978
  %4980 = vrot.lane.b32.xlu0 %v4543, 84
  %v4981 = vpop.permute.xlu0 %4980
  %4982 = vrot.lane.b32.xlu0 %v4544, 84
  %v4983 = vpop.permute.xlu0 %4982
  %4984 = vrot.lane.b32.xlu0 %v4545, 84
  %v4985 = vpop.permute.xlu0 %4984
  %4986 = vrot.lane.b32.xlu0 %v4546, 84
  %v4987 = vpop.permute.xlu0 %4986
  %4988 = vrot.lane.b32.xlu0 %v4547, 84
  %v4989 = vpop.permute.xlu0 %4988
  %4990 = vrot.lane.b32.xlu0 %v4548, 84
  %v4991 = vpop.permute.xlu0 %4990
  %4992 = vrot.lane.b32.xlu0 %v4549, 84
  %v4993 = vpop.permute.xlu0 %4992
  %4994 = vrot.lane.b32.xlu0 %v4550, 84
  %v4995 = vpop.permute.xlu0 %4994
  %4996 = vrot.lane.b32.xlu0 %v4551, 84
  %v4997 = vpop.permute.xlu0 %4996
  %4998 = vrot.lane.b32.xlu0 %v4552, 84
  %v4999 = vpop.permute.xlu0 %4998
  %5000 = vrot.lane.b32.xlu0 %v4553, 84
  %v5001 = vpop.permute.xlu0 %5000
  %5034 = vrot.lane.b32.xlu0 %v4554, 96
  %v5035 = vpop.permute.xlu0 %5034
  %5036 = vrot.lane.b32.xlu0 %v4555, 96
  %v5037 = vpop.permute.xlu0 %5036
  %5038 = vrot.lane.b32.xlu0 %v4556, 96
  %v5039 = vpop.permute.xlu0 %5038
  %5040 = vrot.lane.b32.xlu0 %v4557, 96
  %v5041 = vpop.permute.xlu0 %5040
  %5042 = vrot.lane.b32.xlu0 %v4558, 96
  %v5043 = vpop.permute.xlu0 %5042
  %5044 = vrot.lane.b32.xlu0 %v4559, 96
  %v5045 = vpop.permute.xlu0 %5044
  %5046 = vrot.lane.b32.xlu0 %v4560, 96
  %v5047 = vpop.permute.xlu0 %5046
  %5048 = vrot.lane.b32.xlu0 %v4561, 96
  %v5049 = vpop.permute.xlu0 %5048
  %5050 = vrot.lane.b32.xlu0 %v4562, 96
  %v5051 = vpop.permute.xlu0 %5050
  %5052 = vrot.lane.b32.xlu0 %v4563, 96
  %v5053 = vpop.permute.xlu0 %5052
  %5054 = vrot.lane.b32.xlu0 %v4564, 96
  %v5055 = vpop.permute.xlu0 %5054
  %5056 = vrot.lane.b32.xlu0 %v4565, 96
  %v5057 = vpop.permute.xlu0 %5056
  %5058 = vrot.lane.b32.xlu0 %v4566, 96
  %v5059 = vpop.permute.xlu0 %5058
  %5060 = vrot.lane.b32.xlu0 %v4567, 96
  %v5061 = vpop.permute.xlu0 %5060
  %5062 = vrot.lane.b32.xlu0 %v4568, 96
  %v5063 = vpop.permute.xlu0 %5062
  %5064 = vrot.lane.b32.xlu0 %v4569, 96
  %v5065 = vpop.permute.xlu0 %5064
  %v5082 = vsel %vm3126, %v4425, %v4587
  %v5083 = vsel %vm3126, %v4426, %v4589
  %v5084 = vsel %vm3126, %v4427, %v4591
  %v5085 = vsel %vm3126, %v4428, %v4593
  %v5086 = vsel %vm3126, %v4429, %v4595
  %v5087 = vsel %vm3126, %v4430, %v4597
  %v5088 = vsel %vm3126, %v4431, %v4599
  %v5089 = vsel %vm3126, %v4432, %v4601
  %v5090 = vsel %vm3126, %v4433, %v4603
  %v5091 = vsel %vm3126, %v4434, %v4605
  %v5092 = vsel %vm3126, %v4435, %v4607
  %v5093 = vsel %vm3126, %v4436, %v4609
  %v5094 = vsel %vm3126, %v4437, %v4611
  %v5095 = vsel %vm3126, %v4438, %v4613
  %v5096 = vsel %vm3126, %v4439, %v4615
  %v5097 = vsel %vm3126, %v4440, %v4617
  %v5098 = vsel %vm3386, %v5082, %v4651
  %v5099 = vsel %vm3386, %v5083, %v4653
  %v5100 = vsel %vm3386, %v5084, %v4655
  %v5101 = vsel %vm3386, %v5085, %v4657
  %v5102 = vsel %vm3386, %v5086, %v4659
  %v5103 = vsel %vm3386, %v5087, %v4661
  %v5104 = vsel %vm3386, %v5088, %v4663
  %v5105 = vsel %vm3386, %v5089, %v4665
  %v5106 = vsel %vm3386, %v5090, %v4667
  %v5107 = vsel %vm3386, %v5091, %v4669
  %v5108 = vsel %vm3386, %v5092, %v4671
  %v5109 = vsel %vm3386, %v5093, %v4673
  %v5110 = vsel %vm3386, %v5094, %v4675
  %v5111 = vsel %vm3386, %v5095, %v4677
  %v5112 = vsel %vm3386, %v5096, %v4679
  %v5113 = vsel %vm3386, %v5097, %v4681
  %vm5114 = vcmask 293888
  %v5115 = vsel %vm5114, %v5098, %v4715
  %v5116 = vsel %vm5114, %v5099, %v4717
  %v5117 = vsel %vm5114, %v5100, %v4719
  %v5118 = vsel %vm5114, %v5101, %v4721
  %v5119 = vsel %vm5114, %v5102, %v4723
  %v5120 = vsel %vm5114, %v5103, %v4725
  %v5121 = vsel %vm5114, %v5104, %v4727
  %v5122 = vsel %vm5114, %v5105, %v4729
  %v5123 = vsel %vm5114, %v5106, %v4731
  %v5124 = vsel %vm5114, %v5107, %v4733
  %v5125 = vsel %vm5114, %v5108, %v4735
  %v5126 = vsel %vm5114, %v5109, %v4737
  %v5127 = vsel %vm5114, %v5110, %v4739
  %v5128 = vsel %vm5114, %v5111, %v4741
  %v5129 = vsel %vm5114, %v5112, %v4743
  %v5130 = vsel %vm5114, %v5113, %v4745
  %vm5131 = vcmask 392192
  %v5132 = vsel %vm5131, %v5115, %v4779
  %v5133 = vsel %vm5131, %v5116, %v4781
  %v5134 = vsel %vm5131, %v5117, %v4783
  %v5135 = vsel %vm5131, %v5118, %v4785
  %v5136 = vsel %vm5131, %v5119, %v4787
  %v5137 = vsel %vm5131, %v5120, %v4789
  %v5138 = vsel %vm5131, %v5121, %v4791
  %v5139 = vsel %vm5131, %v5122, %v4793
  %v5140 = vsel %vm5131, %v5123, %v4795
  %v5141 = vsel %vm5131, %v5124, %v4797
  %v5142 = vsel %vm5131, %v5125, %v4799
  %v5143 = vsel %vm5131, %v5126, %v4801
  %v5144 = vsel %vm5131, %v5127, %v4803
  %v5145 = vsel %vm5131, %v5128, %v4805
  %v5146 = vsel %vm5131, %v5129, %v4807
  %v5147 = vsel %vm5131, %v5130, %v4809
  %vm5148 = vcmask 490496
  %v5149 = vsel %vm5148, %v5132, %v4843
  %v5150 = vsel %vm5148, %v5133, %v4845
  %v5151 = vsel %vm5148, %v5134, %v4847
  %v5152 = vsel %vm5148, %v5135, %v4849
  %v5153 = vsel %vm5148, %v5136, %v4851
  %v5154 = vsel %vm5148, %v5137, %v4853
  %v5155 = vsel %vm5148, %v5138, %v4855
  %v5156 = vsel %vm5148, %v5139, %v4857
  %v5157 = vsel %vm5148, %v5140, %v4859
  %v5158 = vsel %vm5148, %v5141, %v4861
  %v5159 = vsel %vm5148, %v5142, %v4863
  %v5160 = vsel %vm5148, %v5143, %v4865
  %v5161 = vsel %vm5148, %v5144, %v4867
  %v5162 = vsel %vm5148, %v5145, %v4869
  %v5163 = vsel %vm5148, %v5146, %v4871
  %v5164 = vsel %vm5148, %v5147, %v4873
  %vm5165 = vcmask 588800
  %v5166 = vsel %vm5165, %v5149, %v4907
  %v5167 = vsel %vm5165, %v5150, %v4909
  %v5168 = vsel %vm5165, %v5151, %v4911
  %v5169 = vsel %vm5165, %v5152, %v4913
  %v5170 = vsel %vm5165, %v5153, %v4915
  %v5171 = vsel %vm5165, %v5154, %v4917
  %v5172 = vsel %vm5165, %v5155, %v4919
  %v5173 = vsel %vm5165, %v5156, %v4921
  %v5174 = vsel %vm5165, %v5157, %v4923
  %v5175 = vsel %vm5165, %v5158, %v4925
  %v5176 = vsel %vm5165, %v5159, %v4927
  %v5177 = vsel %vm5165, %v5160, %v4929
  %v5178 = vsel %vm5165, %v5161, %v4931
  %v5179 = vsel %vm5165, %v5162, %v4933
  %v5180 = vsel %vm5165, %v5163, %v4935
  %v5181 = vsel %vm5165, %v5164, %v4937
  %vm5182 = vcmask 687104
  %v5183 = vsel %vm5182, %v5166, %v4971
  %v5184 = vsel %vm5182, %v5167, %v4973
  %v5185 = vsel %vm5182, %v5168, %v4975
  %v5186 = vsel %vm5182, %v5169, %v4977
  %v5187 = vsel %vm5182, %v5170, %v4979
  %v5188 = vsel %vm5182, %v5171, %v4981
  %v5189 = vsel %vm5182, %v5172, %v4983
  %v5190 = vsel %vm5182, %v5173, %v4985
  %v5191 = vsel %vm5182, %v5174, %v4987
  %v5192 = vsel %vm5182, %v5175, %v4989
  %v5193 = vsel %vm5182, %v5176, %v4991
  %v5194 = vsel %vm5182, %v5177, %v4993
  %v5195 = vsel %vm5182, %v5178, %v4995
  %v5196 = vsel %vm5182, %v5179, %v4997
  %v5197 = vsel %vm5182, %v5180, %v4999
  %v5198 = vsel %vm5182, %v5181, %v5001
  %vm5199 = vcmask 785408
  %v5200 = vsel %vm5199, %v5183, %v5035
  %v5201 = vsel %vm5199, %v5184, %v5037
  %v5202 = vsel %vm5199, %v5185, %v5039
  %v5203 = vsel %vm5199, %v5186, %v5041
  %v5204 = vsel %vm5199, %v5187, %v5043
  %v5205 = vsel %vm5199, %v5188, %v5045
  %v5206 = vsel %vm5199, %v5189, %v5047
  %v5207 = vsel %vm5199, %v5190, %v5049
  %v5208 = vsel %vm5199, %v5191, %v5051
  %v5209 = vsel %vm5199, %v5192, %v5053
  %v5210 = vsel %vm5199, %v5193, %v5055
  %v5211 = vsel %vm5199, %v5194, %v5057
  %v5212 = vsel %vm5199, %v5195, %v5059
  %v5213 = vsel %vm5199, %v5196, %v5061
  %v5214 = vsel %vm5199, %v5197, %v5063
  %v5215 = vsel %vm5199, %v5198, %v5065
  %v5216 = vld [vmem:[%s3] sm:$0xff]
  %v5217 = vld [vmem:[%s3 + $0x8] sm:$0xff]
  %v5218 = vld [vmem:[%s3 + $0x10] sm:$0xff]
  %v5219 = vld [vmem:[%s3 + $0x18] sm:$0xff]
  %v5220 = vld [vmem:[%s3 + $0x20] sm:$0xff]
  %v5221 = vld [vmem:[%s3 + $0x28] sm:$0xff]
  %v5222 = vld [vmem:[%s3 + $0x30] sm:$0xff]
  %v5223 = vld [vmem:[%s3 + $0x38] sm:$0xff]
  %v5224 = vld [vmem:[%s3 + $0x40] sm:$0xff]
  %v5225 = vld [vmem:[%s3 + $0x48] sm:$0xff]
  %v5226 = vld [vmem:[%s3 + $0x50] sm:$0xff]
  %v5227 = vld [vmem:[%s3 + $0x58] sm:$0xff]
  %v5228 = vld [vmem:[%s3 + $0x60] sm:$0xff]
  %v5229 = vld [vmem:[%s3 + $0x68] sm:$0xf]
  %v5230 = vld [vmem:[%s4] sm:$0x1]
  %v5232 = vlaneseq
  %v5233 = vshrl.u32 %v5232, 7
  %v5234 = vsub.s32 0, %v5233
  %v5235 = vrot.slane %v5230, %v5234
  %vm5237 = vcmask 883712
  %v5239 = vsel %vm5237, %v5200, 0
  %v5242 = vsel %vm5237, %v5201, 0
  %v5245 = vsel %vm5237, %v5202, 0
  %v5248 = vsel %vm5237, %v5203, 0
  %v5251 = vsel %vm5237, %v5204, 0
  %v5254 = vsel %vm5237, %v5205, 0
  %v5257 = vsel %vm5237, %v5206, 0
  %v5260 = vsel %vm5237, %v5207, 0
  %v5263 = vsel %vm5237, %v5208, 0
  %v5266 = vsel %vm5237, %v5209, 0
  %v5269 = vsel %vm5237, %v5210, 0
  %v5272 = vsel %vm5237, %v5211, 0
  %v5275 = vsel %vm5237, %v5212, 0
  %v5278 = vsel %vm5237, %v5213, 0
  %v5281 = vsel %vm5237, %v5214, 0
  %v5284 = vsel %vm5237, %v5215, 0
  %vm5286 = vcmask 1043456
  %v5288 = vsel %vm5286, %v5229, 0
  %5290 = vmatprep.subr.mxu0 0.0
  %5291 = vmatpush1.msra.mxu0 %v5216
  %5292 = vmatprep.subr.mxu0 0.0
  %5293 = vmatpush1.msra.mxu0 %v5217
  %5294 = vmatprep.subr.mxu0 0.0
  %5295 = vmatpush1.msra.mxu0 %v5218
  %5296 = vmatprep.subr.mxu0 0.0
  %5297 = vmatpush1.msra.mxu0 %v5219
  %5298 = vmatprep.subr.mxu0 0.0
  %5299 = vmatpush1.msra.mxu0 %v5220
  %5300 = vmatprep.subr.mxu0 0.0
  %5301 = vmatpush1.msra.mxu0 %v5221
  %5302 = vmatprep.subr.mxu0 0.0
  %5303 = vmatpush1.msra.mxu0 %v5222
  %5304 = vmatprep.subr.mxu0 0.0
  %5305 = vmatpush1.msra.mxu0 %v5223
  %5306 = vmatprep.subr.mxu0 0.0
  %5307 = vmatpush1.msra.mxu0 %v5224
  %5308 = vmatprep.subr.mxu0 0.0
  %5309 = vmatpush1.msra.mxu0 %v5225
  %5310 = vmatprep.subr.mxu0 0.0
  %5311 = vmatpush1.msra.mxu0 %v5226
  %5312 = vmatprep.subr.mxu0 0.0
  %5313 = vmatpush1.msra.mxu0 %v5227
  %5314 = vmatprep.subr.mxu0 0.0
  %5315 = vmatpush1.msra.mxu0 %v5228
  %5316 = vmatprep.subr.mxu0 0.0
  %5317 = vmatpush1.msra.mxu0 %v5288
  %5318 = vmatprep.subr.mxu0 0.0
  %5319 = vmatpush1.msra.mxu0 0.0
  %5320 = vmatprep.subr.mxu0 0.0
  %5321 = vmatpush1.msra.mxu0 0.0
  %5322 = vmatprep.subr.mxu0 0.0
  %5323 = vmatpush1.msra.mxu0 0.0
  %5324 = vmatprep.subr.mxu0 0.0
  %5325 = vmatpush1.msra.mxu0 0.0
  %5326 = vmatprep.subr.mxu0 0.0
  %5327 = vmatpush1.msra.mxu0 0.0
  %5328 = vmatprep.subr.mxu0 0.0
  %5329 = vmatpush1.msra.mxu0 0.0
  %5330 = vmatprep.subr.mxu0 0.0
  %5331 = vmatpush1.msra.mxu0 0.0
  %5332 = vmatprep.subr.mxu0 0.0
  %5333 = vmatpush1.msra.mxu0 0.0
  %5334 = vmatprep.subr.mxu0 0.0
  %5335 = vmatpush1.msra.mxu0 0.0
  %5336 = vmatprep.subr.mxu0 0.0
  %5337 = vmatpush1.msra.mxu0 0.0
  %5338 = vmatprep.subr.mxu0 0.0
  %5339 = vmatpush1.msra.mxu0 0.0
  %5340 = vmatprep.subr.mxu0 0.0
  %5341 = vmatpush1.msra.mxu0 0.0
  %5342 = vmatprep.subr.mxu0 0.0
  %5343 = vmatpush1.msra.mxu0 0.0
  %5344 = vmatprep.subr.mxu0 0.0
  %5345 = vmatpush1.msra.mxu0 0.0
  %5346 = vmatprep.subr.mxu0 0.0
  %5347 = vmatpush1.msra.mxu0 0.0
  %5348 = vmatprep.subr.mxu0 0.0
  %5349 = vmatpush1.msra.mxu0 0.0
  %5350 = vmatprep.subr.mxu0 0.0
  %5351 = vmatpush1.msra.mxu0 0.0
  %5352 = vmatprep.subr.mxu0 0.0
  %5353 = vmatpush1.msra.mxu0 0.0
  %5354 = vmatprep.mubr.f32.mxu0 0.0
  %5355 = vmatmul.mubr.f32.gmra.mrb[0].mxu0 %v5239
  %v5356 = vpop.f32.mrb[0].mxu0
  %v5357 = vadd.f32 %v5235, %v5356
  %v5358 = vpop.f32.mrb[0].mxu0
  %5359 = vmatprep.mubr.f32.mxu0 0.0
  %5360 = vmatmul.mubr.f32.gmra.mrb[0].mxu0 %v5242
  %v5361 = vpop.f32.mrb[0].mxu0
  %v5362 = vadd.f32 %v5235, %v5361
  %v5363 = vpop.f32.mrb[0].mxu0
  %5364 = vmatprep.mubr.f32.mxu0 0.0
  %5365 = vmatmul.mubr.f32.gmra.mrb[0].mxu0 %v5245
  %v5366 = vpop.f32.mrb[0].mxu0
  %v5367 = vadd.f32 %v5235, %v5366
  %v5368 = vpop.f32.mrb[0].mxu0
  %5369 = vmatprep.mubr.f32.mxu0 0.0
  %5370 = vmatmul.mubr.f32.gmra.mrb[0].mxu0 %v5248
  %v5371 = vpop.f32.mrb[0].mxu0
  %v5372 = vadd.f32 %v5235, %v5371
  %v5373 = vpop.f32.mrb[0].mxu0
  %5374 = vmatprep.mubr.f32.mxu0 0.0
  %5375 = vmatmul.mubr.f32.gmra.mrb[0].mxu0 %v5251
  %v5376 = vpop.f32.mrb[0].mxu0
  %v5377 = vadd.f32 %v5235, %v5376
  %v5378 = vpop.f32.mrb[0].mxu0
  %5379 = vmatprep.mubr.f32.mxu0 0.0
  %5380 = vmatmul.mubr.f32.gmra.mrb[0].mxu0 %v5254
  %v5381 = vpop.f32.mrb[0].mxu0
  %v5382 = vadd.f32 %v5235, %v5381
  %v5383 = vpop.f32.mrb[0].mxu0
  %5384 = vmatprep.mubr.f32.mxu0 0.0
  %5385 = vmatmul.mubr.f32.gmra.mrb[0].mxu0 %v5257
  %v5386 = vpop.f32.mrb[0].mxu0
  %v5387 = vadd.f32 %v5235, %v5386
  %v5388 = vpop.f32.mrb[0].mxu0
  %5389 = vmatprep.mubr.f32.mxu0 0.0
  %5390 = vmatmul.mubr.f32.gmra.mrb[0].mxu0 %v5260
  %v5391 = vpop.f32.mrb[0].mxu0
  %v5392 = vadd.f32 %v5235, %v5391
  %v5393 = vpop.f32.mrb[0].mxu0
  %5394 = vmatprep.mubr.f32.mxu0 0.0
  %5395 = vmatmul.mubr.f32.gmra.mrb[0].mxu0 %v5263
  %v5396 = vpop.f32.mrb[0].mxu0
  %v5397 = vadd.f32 %v5235, %v5396
  %v5398 = vpop.f32.mrb[0].mxu0
  %5399 = vmatprep.mubr.f32.mxu0 0.0
  %5400 = vmatmul.mubr.f32.gmra.mrb[0].mxu0 %v5266
  %v5401 = vpop.f32.mrb[0].mxu0
  %v5402 = vadd.f32 %v5235, %v5401
  %v5403 = vpop.f32.mrb[0].mxu0
  %5404 = vmatprep.mubr.f32.mxu0 0.0
  %5405 = vmatmul.mubr.f32.gmra.mrb[0].mxu0 %v5269
  %v5406 = vpop.f32.mrb[0].mxu0
  %v5407 = vadd.f32 %v5235, %v5406
  %v5408 = vpop.f32.mrb[0].mxu0
  %5409 = vmatprep.mubr.f32.mxu0 0.0
  %5410 = vmatmul.mubr.f32.gmra.mrb[0].mxu0 %v5272
  %v5411 = vpop.f32.mrb[0].mxu0
  %v5412 = vadd.f32 %v5235, %v5411
  %v5413 = vpop.f32.mrb[0].mxu0
  %5414 = vmatprep.mubr.f32.mxu0 0.0
  %5415 = vmatmul.mubr.f32.gmra.mrb[0].mxu0 %v5275
  %v5416 = vpop.f32.mrb[0].mxu0
  %v5417 = vadd.f32 %v5235, %v5416
  %v5418 = vpop.f32.mrb[0].mxu0
  %5419 = vmatprep.mubr.f32.mxu0 0.0
  %5420 = vmatmul.mubr.f32.gmra.mrb[0].mxu0 %v5278
  %v5421 = vpop.f32.mrb[0].mxu0
  %v5422 = vadd.f32 %v5235, %v5421
  %v5423 = vpop.f32.mrb[0].mxu0
  %5424 = vmatprep.mubr.f32.mxu0 0.0
  %5425 = vmatmul.mubr.f32.gmra.mrb[0].mxu0 %v5281
  %v5426 = vpop.f32.mrb[0].mxu0
  %v5427 = vadd.f32 %v5235, %v5426
  %v5428 = vpop.f32.mrb[0].mxu0
  %5429 = vmatprep.mubr.f32.mxu0 0.0
  %5430 = vmatmul.mubr.f32.gmra.mrb[0].mxu0 %v5284
  %v5431 = vpop.f32.mrb[0].mxu0
  %v5432 = vadd.f32 %v5235, %v5431
  %v5433 = vpop.f32.mrb[0].mxu0
  %5434 = vdwg.mxu0
  %v5435 = vmax.f32 %v5357, 0.0
  %v5436 = vmax.f32 %v5362, 0.0
  %v5437 = vmax.f32 %v5367, 0.0
  %v5438 = vmax.f32 %v5372, 0.0
  %v5439 = vmax.f32 %v5377, 0.0
  %v5440 = vmax.f32 %v5382, 0.0
  %v5441 = vmax.f32 %v5387, 0.0
  %v5442 = vmax.f32 %v5392, 0.0
  %v5443 = vmax.f32 %v5397, 0.0
  %v5444 = vmax.f32 %v5402, 0.0
  %v5445 = vmax.f32 %v5407, 0.0
  %v5446 = vmax.f32 %v5412, 0.0
  %v5447 = vmax.f32 %v5417, 0.0
  %v5448 = vmax.f32 %v5422, 0.0
  %v5449 = vmax.f32 %v5427, 0.0
  %v5450 = vmax.f32 %v5432, 0.0
  %vm5451 = vcmask 162816
  %5452 = vst.msk [vmem:[#allocation5] sm:$0xff] %vm5451, 0.0
  %5453 = vst.msk [vmem:[#allocation5 + $0x8] sm:$0xff] %vm5451, 0.0
  %vm5454 = vcmask 155648
  %5455 = vst.msk [vmem:[#allocation5 + $0x10] sm:$0x1] %vm5454, 0.0
  %5456 = vst.msk [vmem:[#allocation5 + $0x18] sm:$0xff] %vm5451, 0.0
  %5457 = vst.msk [vmem:[#allocation5 + $0x20] sm:$0xff] %vm5451, 0.0
  %5458 = vst.msk [vmem:[#allocation5 + $0x28] sm:$0x1] %vm5454, 0.0
  %5459 = vst.msk [vmem:[#allocation5 + $0x30] sm:$0xff] %vm5451, 0.0
  %5460 = vst.msk [vmem:[#allocation5 + $0x38] sm:$0xff] %vm5451, 0.0
  %5461 = vst.msk [vmem:[#allocation5 + $0x40] sm:$0x1] %vm5454, 0.0
  %5462 = vst.msk [vmem:[#allocation5 + $0x48] sm:$0xff] %vm5451, 0.0
  %5463 = vst.msk [vmem:[#allocation5 + $0x50] sm:$0xff] %vm5451, 0.0
  %5464 = vst.msk [vmem:[#allocation5 + $0x58] sm:$0x1] %vm5454, 0.0
  %5465 = vst.msk [vmem:[#allocation5 + $0x60] sm:$0xff] %vm5451, 0.0
  %5466 = vst.msk [vmem:[#allocation5 + $0x68] sm:$0xff] %vm5451, 0.0
  %5467 = vst.msk [vmem:[#allocation5 + $0x70] sm:$0x1] %vm5454, 0.0
  %5468 = vst.msk [vmem:[#allocation5 + $0x78] sm:$0xff] %vm5451, 0.0
  %5469 = vst.msk [vmem:[#allocation5 + $0x80] sm:$0xff] %vm5451, 0.0
  %5470 = vst.msk [vmem:[#allocation5 + $0x88] sm:$0x1] %vm5454, 0.0
  %5471 = vst.msk [vmem:[#allocation5 + $0x90] sm:$0xff] %vm5451, 0.0
  %5472 = vst.msk [vmem:[#allocation5 + $0x98] sm:$0xff] %vm5451, 0.0
  %5473 = vst.msk [vmem:[#allocation5 + $0xa0] sm:$0x1] %vm5454, 0.0
  %5474 = vst.msk [vmem:[#allocation5 + $0xa8] sm:$0xff] %vm5451, 0.0
  %5475 = vst.msk [vmem:[#allocation5 + $0xb0] sm:$0xff] %vm5451, 0.0
  %5476 = vst.msk [vmem:[#allocation5 + $0xb8] sm:$0x1] %vm5454, 0.0
  %5477 = vst.msk [vmem:[#allocation5 + $0xc0] sm:$0xff] %vm5451, 0.0
  %5478 = vst.msk [vmem:[#allocation5 + $0xc8] sm:$0xff] %vm5451, 0.0
  %5479 = vst.msk [vmem:[#allocation5 + $0xd0] sm:$0x1] %vm5454, 0.0
  %5480 = vst.msk [vmem:[#allocation5 + $0xd8] sm:$0xff] %vm5451, 0.0
  %5481 = vst.msk [vmem:[#allocation5 + $0xe0] sm:$0xff] %vm5451, 0.0
  %5482 = vst.msk [vmem:[#allocation5 + $0xe8] sm:$0x1] %vm5454, 0.0
  %5483 = vst.msk [vmem:[#allocation5 + $0xf0] sm:$0xff] %vm5451, 0.0
  %5484 = vst.msk [vmem:[#allocation5 + $0xf8] sm:$0xff] %vm5451, 0.0
  %5485 = vst.msk [vmem:[#allocation5 + $0x100] sm:$0x1] %vm5454, 0.0
  %5486 = vst.msk [vmem:[#allocation5 + $0x108] sm:$0xff] %vm5451, 0.0
  %5487 = vst.msk [vmem:[#allocation5 + $0x110] sm:$0xff] %vm5451, 0.0
  %5488 = vst.msk [vmem:[#allocation5 + $0x118] sm:$0x1] %vm5454, 0.0
  %5489 = vst.msk [vmem:[#allocation5 + $0x120] sm:$0xff] %vm5451, 0.0
  %5490 = vst.msk [vmem:[#allocation5 + $0x128] sm:$0xff] %vm5451, 0.0
  %5491 = vst.msk [vmem:[#allocation5 + $0x130] sm:$0x1] %vm5454, 0.0
  %5492 = vst.msk [vmem:[#allocation5 + $0x138] sm:$0xff] %vm5451, 0.0
  %5493 = vst.msk [vmem:[#allocation5 + $0x140] sm:$0xff] %vm5451, 0.0
  %5494 = vst.msk [vmem:[#allocation5 + $0x148] sm:$0x1] %vm5454, 0.0
  %5495 = vst.msk [vmem:[#allocation5 + $0x150] sm:$0xff] %vm5451, 0.0
  %5496 = vst.msk [vmem:[#allocation5 + $0x158] sm:$0xff] %vm5451, 0.0
  %5497 = vst.msk [vmem:[#allocation5 + $0x160] sm:$0x1] %vm5454, 0.0
  %5498 = vst.msk [vmem:[#allocation5 + $0x168] sm:$0xff] %vm5451, 0.0
  %5499 = vst.msk [vmem:[#allocation5 + $0x170] sm:$0xff] %vm5451, 0.0
  %5500 = vst.msk [vmem:[#allocation5 + $0x178] sm:$0x1] %vm5454, 0.0
  %5501 = vst.msk [vmem:[#allocation5 + $0x180] sm:$0xff] %vm5451, 0.0
  %5502 = vst.msk [vmem:[#allocation5 + $0x188] sm:$0xff] %vm5451, 0.0
  %5503 = vst.msk [vmem:[#allocation5 + $0x190] sm:$0x1] %vm5454, 0.0
  %5504 = vst.msk [vmem:[#allocation5 + $0x198] sm:$0xff] %vm5451, 0.0
  %5505 = vst.msk [vmem:[#allocation5 + $0x1a0] sm:$0xff] %vm5451, 0.0
  %5506 = vst.msk [vmem:[#allocation5 + $0x1a8] sm:$0x1] %vm5454, 0.0
  %5507 = vst.msk [vmem:[#allocation5 + $0x1b0] sm:$0xff] %vm5451, 0.0
  %5508 = vst.msk [vmem:[#allocation5 + $0x1b8] sm:$0xff] %vm5451, 0.0
  %5509 = vst.msk [vmem:[#allocation5 + $0x1c0] sm:$0x1] %vm5454, 0.0
  %5510 = vst.msk [vmem:[#allocation5 + $0x1c8] sm:$0xff] %vm5451, 0.0
  %5511 = vst.msk [vmem:[#allocation5 + $0x1d0] sm:$0xff] %vm5451, 0.0
  %5512 = vst.msk [vmem:[#allocation5 + $0x1d8] sm:$0x1] %vm5454, 0.0
  %s5513 = scalar_lea.vmem [#allocation5], 24
  %5514 = vst.msk [vmem:[%s5513 + $0x8] sm:$0xff] %vm5451, %v5435
  %5515 = vst.msk [vmem:[%s5513 + $0x20] sm:$0xff] %vm5451, %v5436
  %5516 = vst.msk [vmem:[%s5513 + $0x38] sm:$0xff] %vm5451, %v5437
  %5517 = vst.msk [vmem:[%s5513 + $0x50] sm:$0xff] %vm5451, %v5438
  %5518 = vst.msk [vmem:[%s5513 + $0x68] sm:$0xff] %vm5451, %v5439
  %5519 = vst.msk [vmem:[%s5513 + $0x80] sm:$0xff] %vm5451, %v5440
  %5520 = vst.msk [vmem:[%s5513 + $0x98] sm:$0xff] %vm5451, %v5441
  %5521 = vst.msk [vmem:[%s5513 + $0xb0] sm:$0xff] %vm5451, %v5442
  %5522 = vst.msk [vmem:[%s5513 + $0xf8] sm:$0xff] %vm5451, %v5443
  %5523 = vst.msk [vmem:[%s5513 + $0x110] sm:$0xff] %vm5451, %v5444
  %5524 = vst.msk [vmem:[%s5513 + $0x128] sm:$0xff] %vm5451, %v5445
  %5525 = vst.msk [vmem:[%s5513 + $0x140] sm:$0xff] %vm5451, %v5446
  %5526 = vst.msk [vmem:[%s5513 + $0x158] sm:$0xff] %vm5451, %v5447
  %5527 = vst.msk [vmem:[%s5513 + $0x170] sm:$0xff] %vm5451, %v5448
  %5528 = vst.msk [vmem:[%s5513 + $0x188] sm:$0xff] %vm5451, %v5449
  %5529 = vst.msk [vmem:[%s5513 + $0x1a0] sm:$0xff] %vm5451, %v5450
  %v5530 = vld [vmem:[#allocation5 + $0x7] sm:$0xff]
  %v5531 = vld [vmem:[#allocation5 + $0x1f] sm:$0xff]
  %v5532 = vld [vmem:[#allocation5 + $0x37] sm:$0xff]
  %v5533 = vld [vmem:[#allocation5 + $0x4f] sm:$0xff]
  %v5534 = vld [vmem:[#allocation5 + $0x67] sm:$0xff]
  %v5535 = vld [vmem:[#allocation5 + $0x7f] sm:$0xff]
  %v5536 = vld [vmem:[#allocation5 + $0x97] sm:$0xff]
  %v5537 = vld [vmem:[#allocation5 + $0xaf] sm:$0xff]
  %v5538 = vld [vmem:[#allocation5 + $0xf7] sm:$0xff]
  %v5539 = vld [vmem:[#allocation5 + $0x10f] sm:$0xff]
  %v5540 = vld [vmem:[#allocation5 + $0x127] sm:$0xff]
  %v5541 = vld [vmem:[#allocation5 + $0x13f] sm:$0xff]
  %v5542 = vld [vmem:[#allocation5 + $0x157] sm:$0xff]
  %v5543 = vld [vmem:[#allocation5 + $0x16f] sm:$0xff]
  %v5544 = vld [vmem:[#allocation5 + $0x187] sm:$0xff]
  %v5545 = vld [vmem:[#allocation5 + $0x19f] sm:$0xff]
  %v5546 = vld [vmem:[#allocation5 + $0x8] sm:$0xff]
  %v5547 = vld [vmem:[#allocation5 + $0x20] sm:$0xff]
  %v5548 = vld [vmem:[#allocation5 + $0x38] sm:$0xff]
  %v5549 = vld [vmem:[#allocation5 + $0x50] sm:$0xff]
  %v5550 = vld [vmem:[#allocation5 + $0x68] sm:$0xff]
  %v5551 = vld [vmem:[#allocation5 + $0x80] sm:$0xff]
  %v5552 = vld [vmem:[#allocation5 + $0x98] sm:$0xff]
  %v5553 = vld [vmem:[#allocation5 + $0xb0] sm:$0xff]
  %v5554 = vld [vmem:[#allocation5 + $0xf8] sm:$0xff]
  %v5555 = vld [vmem:[#allocation5 + $0x110] sm:$0xff]
  %v5556 = vld [vmem:[#allocation5 + $0x128] sm:$0xff]
  %v5557 = vld [vmem:[#allocation5 + $0x140] sm:$0xff]
  %v5558 = vld [vmem:[#allocation5 + $0x158] sm:$0xff]
  %v5559 = vld [vmem:[#allocation5 + $0x170] sm:$0xff]
  %v5560 = vld [vmem:[#allocation5 + $0x188] sm:$0xff]
  %v5561 = vld [vmem:[#allocation5 + $0x1a0] sm:$0xff]
  %v5562 = vld [vmem:[#allocation5 + $0x9] sm:$0xff]
  %v5563 = vld [vmem:[#allocation5 + $0x21] sm:$0xff]
  %v5564 = vld [vmem:[#allocation5 + $0x39] sm:$0xff]
  %v5565 = vld [vmem:[#allocation5 + $0x51] sm:$0xff]
  %v5566 = vld [vmem:[#allocation5 + $0x69] sm:$0xff]
  %v5567 = vld [vmem:[#allocation5 + $0x81] sm:$0xff]
  %v5568 = vld [vmem:[#allocation5 + $0x99] sm:$0xff]
  %v5569 = vld [vmem:[#allocation5 + $0xb1] sm:$0xff]
  %v5570 = vld [vmem:[#allocation5 + $0xf9] sm:$0xff]
  %v5571 = vld [vmem:[#allocation5 + $0x111] sm:$0xff]
  %v5572 = vld [vmem:[#allocation5 + $0x129] sm:$0xff]
  %v5573 = vld [vmem:[#allocation5 + $0x141] sm:$0xff]
  %v5574 = vld [vmem:[#allocation5 + $0x159] sm:$0xff]
  %v5575 = vld [vmem:[#allocation5 + $0x171] sm:$0xff]
  %v5576 = vld [vmem:[#allocation5 + $0x189] sm:$0xff]
  %v5577 = vld [vmem:[#allocation5 + $0x1a1] sm:$0xff]
  %v5578 = vld [vmem:[%s5513 + $0x7] sm:$0xff]
  %v5579 = vld [vmem:[%s5513 + $0x1f] sm:$0xff]
  %v5580 = vld [vmem:[%s5513 + $0x37] sm:$0xff]
  %v5581 = vld [vmem:[%s5513 + $0x4f] sm:$0xff]
  %v5582 = vld [vmem:[%s5513 + $0x67] sm:$0xff]
  %v5583 = vld [vmem:[%s5513 + $0x7f] sm:$0xff]
  %v5584 = vld [vmem:[%s5513 + $0x97] sm:$0xff]
  %v5585 = vld [vmem:[%s5513 + $0xaf] sm:$0xff]
  %v5586 = vld [vmem:[%s5513 + $0xf7] sm:$0xff]
  %v5587 = vld [vmem:[%s5513 + $0x10f] sm:$0xff]
  %v5588 = vld [vmem:[%s5513 + $0x127] sm:$0xff]
  %v5589 = vld [vmem:[%s5513 + $0x13f] sm:$0xff]
  %v5590 = vld [vmem:[%s5513 + $0x157] sm:$0xff]
  %v5591 = vld [vmem:[%s5513 + $0x16f] sm:$0xff]
  %v5592 = vld [vmem:[%s5513 + $0x187] sm:$0xff]
  %v5593 = vld [vmem:[%s5513 + $0x19f] sm:$0xff]
  %v5594 = vld [vmem:[%s5513 + $0x8] sm:$0xff]
  %v5595 = vld [vmem:[%s5513 + $0x20] sm:$0xff]
  %v5596 = vld [vmem:[%s5513 + $0x38] sm:$0xff]
  %v5597 = vld [vmem:[%s5513 + $0x50] sm:$0xff]
  %v5598 = vld [vmem:[%s5513 + $0x68] sm:$0xff]
  %v5599 = vld [vmem:[%s5513 + $0x80] sm:$0xff]
  %v5600 = vld [vmem:[%s5513 + $0x98] sm:$0xff]
  %v5601 = vld [vmem:[%s5513 + $0xb0] sm:$0xff]
  %v5602 = vld [vmem:[%s5513 + $0xf8] sm:$0xff]
  %v5603 = vld [vmem:[%s5513 + $0x110] sm:$0xff]
  %v5604 = vld [vmem:[%s5513 + $0x128] sm:$0xff]
  %v5605 = vld [vmem:[%s5513 + $0x140] sm:$0xff]
  %v5606 = vld [vmem:[%s5513 + $0x158] sm:$0xff]
  %v5607 = vld [vmem:[%s5513 + $0x170] sm:$0xff]
  %v5608 = vld [vmem:[%s5513 + $0x188] sm:$0xff]
  %v5609 = vld [vmem:[%s5513 + $0x1a0] sm:$0xff]
  %v5610 = vld [vmem:[%s5513 + $0x9] sm:$0xff]
  %v5611 = vld [vmem:[%s5513 + $0x21] sm:$0xff]
  %v5612 = vld [vmem:[%s5513 + $0x39] sm:$0xff]
  %v5613 = vld [vmem:[%s5513 + $0x51] sm:$0xff]
  %v5614 = vld [vmem:[%s5513 + $0x69] sm:$0xff]
  %v5615 = vld [vmem:[%s5513 + $0x81] sm:$0xff]
  %v5616 = vld [vmem:[%s5513 + $0x99] sm:$0xff]
  %v5617 = vld [vmem:[%s5513 + $0xb1] sm:$0xff]
  %v5618 = vld [vmem:[%s5513 + $0xf9] sm:$0xff]
  %v5619 = vld [vmem:[%s5513 + $0x111] sm:$0xff]
  %v5620 = vld [vmem:[%s5513 + $0x129] sm:$0xff]
  %v5621 = vld [vmem:[%s5513 + $0x141] sm:$0xff]
  %v5622 = vld [vmem:[%s5513 + $0x159] sm:$0xff]
  %v5623 = vld [vmem:[%s5513 + $0x171] sm:$0xff]
  %v5624 = vld [vmem:[%s5513 + $0x189] sm:$0xff]
  %v5625 = vld [vmem:[%s5513 + $0x1a1] sm:$0xff]
  %s5626 = scalar_lea.vmem [#allocation5], 48
  %v5627 = vld [vmem:[%s5626 + $0x7] sm:$0xff]
  %v5628 = vld [vmem:[%s5626 + $0x1f] sm:$0xff]
  %v5629 = vld [vmem:[%s5626 + $0x37] sm:$0xff]
  %v5630 = vld [vmem:[%s5626 + $0x4f] sm:$0xff]
  %v5631 = vld [vmem:[%s5626 + $0x67] sm:$0xff]
  %v5632 = vld [vmem:[%s5626 + $0x7f] sm:$0xff]
  %v5633 = vld [vmem:[%s5626 + $0x97] sm:$0xff]
  %v5634 = vld [vmem:[%s5626 + $0xaf] sm:$0xff]
  %v5635 = vld [vmem:[%s5626 + $0xf7] sm:$0xff]
  %v5636 = vld [vmem:[%s5626 + $0x10f] sm:$0xff]
  %v5637 = vld [vmem:[%s5626 + $0x127] sm:$0xff]
  %v5638 = vld [vmem:[%s5626 + $0x13f] sm:$0xff]
  %v5639 = vld [vmem:[%s5626 + $0x157] sm:$0xff]
  %v5640 = vld [vmem:[%s5626 + $0x16f] sm:$0xff]
  %v5641 = vld [vmem:[%s5626 + $0x187] sm:$0xff]
  %v5642 = vld [vmem:[%s5626 + $0x19f] sm:$0xff]
  %v5643 = vld [vmem:[%s5626 + $0x8] sm:$0xff]
  %v5644 = vld [vmem:[%s5626 + $0x20] sm:$0xff]
  %v5645 = vld [vmem:[%s5626 + $0x38] sm:$0xff]
  %v5646 = vld [vmem:[%s5626 + $0x50] sm:$0xff]
  %v5647 = vld [vmem:[%s5626 + $0x68] sm:$0xff]
  %v5648 = vld [vmem:[%s5626 + $0x80] sm:$0xff]
  %v5649 = vld [vmem:[%s5626 + $0x98] sm:$0xff]
  %v5650 = vld [vmem:[%s5626 + $0xb0] sm:$0xff]
  %v5651 = vld [vmem:[%s5626 + $0xf8] sm:$0xff]
  %v5652 = vld [vmem:[%s5626 + $0x110] sm:$0xff]
  %v5653 = vld [vmem:[%s5626 + $0x128] sm:$0xff]
  %v5654 = vld [vmem:[%s5626 + $0x140] sm:$0xff]
  %v5655 = vld [vmem:[%s5626 + $0x158] sm:$0xff]
  %v5656 = vld [vmem:[%s5626 + $0x170] sm:$0xff]
  %v5657 = vld [vmem:[%s5626 + $0x188] sm:$0xff]
  %v5658 = vld [vmem:[%s5626 + $0x1a0] sm:$0xff]
  %v5659 = vld [vmem:[%s5626 + $0x9] sm:$0xff]
  %v5660 = vld [vmem:[%s5626 + $0x21] sm:$0xff]
  %v5661 = vld [vmem:[%s5626 + $0x39] sm:$0xff]
  %v5662 = vld [vmem:[%s5626 + $0x51] sm:$0xff]
  %v5663 = vld [vmem:[%s5626 + $0x69] sm:$0xff]
  %v5664 = vld [vmem:[%s5626 + $0x81] sm:$0xff]
  %v5665 = vld [vmem:[%s5626 + $0x99] sm:$0xff]
  %v5666 = vld [vmem:[%s5626 + $0xb1] sm:$0xff]
  %v5667 = vld [vmem:[%s5626 + $0xf9] sm:$0xff]
  %v5668 = vld [vmem:[%s5626 + $0x111] sm:$0xff]
  %v5669 = vld [vmem:[%s5626 + $0x129] sm:$0xff]
  %v5670 = vld [vmem:[%s5626 + $0x141] sm:$0xff]
  %v5671 = vld [vmem:[%s5626 + $0x159] sm:$0xff]
  %v5672 = vld [vmem:[%s5626 + $0x171] sm:$0xff]
  %v5673 = vld [vmem:[%s5626 + $0x189] sm:$0xff]
  %v5674 = vld [vmem:[%s5626 + $0x1a1] sm:$0xff]
  %5691 = vrot.lane.b32.xlu0 %v5546, 20
  %v5692 = vpop.permute.xlu0 %5691
  %5693 = vrot.lane.b32.xlu0 %v5547, 20
  %v5694 = vpop.permute.xlu0 %5693
  %5695 = vrot.lane.b32.xlu0 %v5548, 20
  %v5696 = vpop.permute.xlu0 %5695
  %5697 = vrot.lane.b32.xlu0 %v5549, 20
  %v5698 = vpop.permute.xlu0 %5697
  %5699 = vrot.lane.b32.xlu0 %v5550, 20
  %v5700 = vpop.permute.xlu0 %5699
  %5701 = vrot.lane.b32.xlu0 %v5551, 20
  %v5702 = vpop.permute.xlu0 %5701
  %5703 = vrot.lane.b32.xlu0 %v5552, 20
  %v5704 = vpop.permute.xlu0 %5703
  %5705 = vrot.lane.b32.xlu0 %v5553, 20
  %v5706 = vpop.permute.xlu0 %5705
  %5707 = vrot.lane.b32.xlu0 %v5554, 20
  %v5708 = vpop.permute.xlu0 %5707
  %5709 = vrot.lane.b32.xlu0 %v5555, 20
  %v5710 = vpop.permute.xlu0 %5709
  %5711 = vrot.lane.b32.xlu0 %v5556, 20
  %v5712 = vpop.permute.xlu0 %5711
  %5713 = vrot.lane.b32.xlu0 %v5557, 20
  %v5714 = vpop.permute.xlu0 %5713
  %5715 = vrot.lane.b32.xlu0 %v5558, 20
  %v5716 = vpop.permute.xlu0 %5715
  %5717 = vrot.lane.b32.xlu0 %v5559, 20
  %v5718 = vpop.permute.xlu0 %5717
  %5719 = vrot.lane.b32.xlu0 %v5560, 20
  %v5720 = vpop.permute.xlu0 %5719
  %5721 = vrot.lane.b32.xlu0 %v5561, 20
  %v5722 = vpop.permute.xlu0 %5721
  %5755 = vrot.lane.b32.xlu0 %v5562, 40
  %v5756 = vpop.permute.xlu0 %5755
  %5757 = vrot.lane.b32.xlu0 %v5563, 40
  %v5758 = vpop.permute.xlu0 %5757
  %5759 = vrot.lane.b32.xlu0 %v5564, 40
  %v5760 = vpop.permute.xlu0 %5759
  %5761 = vrot.lane.b32.xlu0 %v5565, 40
  %v5762 = vpop.permute.xlu0 %5761
  %5763 = vrot.lane.b32.xlu0 %v5566, 40
  %v5764 = vpop.permute.xlu0 %5763
  %5765 = vrot.lane.b32.xlu0 %v5567, 40
  %v5766 = vpop.permute.xlu0 %5765
  %5767 = vrot.lane.b32.xlu0 %v5568, 40
  %v5768 = vpop.permute.xlu0 %5767
  %5769 = vrot.lane.b32.xlu0 %v5569, 40
  %v5770 = vpop.permute.xlu0 %5769
  %5771 = vrot.lane.b32.xlu0 %v5570, 40
  %v5772 = vpop.permute.xlu0 %5771
  %5773 = vrot.lane.b32.xlu0 %v5571, 40
  %v5774 = vpop.permute.xlu0 %5773
  %5775 = vrot.lane.b32.xlu0 %v5572, 40
  %v5776 = vpop.permute.xlu0 %5775
  %5777 = vrot.lane.b32.xlu0 %v5573, 40
  %v5778 = vpop.permute.xlu0 %5777
  %5779 = vrot.lane.b32.xlu0 %v5574, 40
  %v5780 = vpop.permute.xlu0 %5779
  %5781 = vrot.lane.b32.xlu0 %v5575, 40
  %v5782 = vpop.permute.xlu0 %5781
  %5783 = vrot.lane.b32.xlu0 %v5576, 40
  %v5784 = vpop.permute.xlu0 %5783
  %5785 = vrot.lane.b32.xlu0 %v5577, 40
  %v5786 = vpop.permute.xlu0 %5785
  %5819 = vrot.lane.b32.xlu0 %v5578, 60
  %v5820 = vpop.permute.xlu0 %5819
  %5821 = vrot.lane.b32.xlu0 %v5579, 60
  %v5822 = vpop.permute.xlu0 %5821
  %5823 = vrot.lane.b32.xlu0 %v5580, 60
  %v5824 = vpop.permute.xlu0 %5823
  %5825 = vrot.lane.b32.xlu0 %v5581, 60
  %v5826 = vpop.permute.xlu0 %5825
  %5827 = vrot.lane.b32.xlu0 %v5582, 60
  %v5828 = vpop.permute.xlu0 %5827
  %5829 = vrot.lane.b32.xlu0 %v5583, 60
  %v5830 = vpop.permute.xlu0 %5829
  %5831 = vrot.lane.b32.xlu0 %v5584, 60
  %v5832 = vpop.permute.xlu0 %5831
  %5833 = vrot.lane.b32.xlu0 %v5585, 60
  %v5834 = vpop.permute.xlu0 %5833
  %5835 = vrot.lane.b32.xlu0 %v5586, 60
  %v5836 = vpop.permute.xlu0 %5835
  %5837 = vrot.lane.b32.xlu0 %v5587, 60
  %v5838 = vpop.permute.xlu0 %5837
  %5839 = vrot.lane.b32.xlu0 %v5588, 60
  %v5840 = vpop.permute.xlu0 %5839
  %5841 = vrot.lane.b32.xlu0 %v5589, 60
  %v5842 = vpop.permute.xlu0 %5841
  %5843 = vrot.lane.b32.xlu0 %v5590, 60
  %v5844 = vpop.permute.xlu0 %5843
  %5845 = vrot.lane.b32.xlu0 %v5591, 60
  %v5846 = vpop.permute.xlu0 %5845
  %5847 = vrot.lane.b32.xlu0 %v5592, 60
  %v5848 = vpop.permute.xlu0 %5847
  %5849 = vrot.lane.b32.xlu0 %v5593, 60
  %v5850 = vpop.permute.xlu0 %5849
  %5883 = vrot.lane.b32.xlu0 %v5594, 80
  %v5884 = vpop.permute.xlu0 %5883
  %5885 = vrot.lane.b32.xlu0 %v5595, 80
  %v5886 = vpop.permute.xlu0 %5885
  %5887 = vrot.lane.b32.xlu0 %v5596, 80
  %v5888 = vpop.permute.xlu0 %5887
  %5889 = vrot.lane.b32.xlu0 %v5597, 80
  %v5890 = vpop.permute.xlu0 %5889
  %5891 = vrot.lane.b32.xlu0 %v5598, 80
  %v5892 = vpop.permute.xlu0 %5891
  %5893 = vrot.lane.b32.xlu0 %v5599, 80
  %v5894 = vpop.permute.xlu0 %5893
  %5895 = vrot.lane.b32.xlu0 %v5600, 80
  %v5896 = vpop.permute.xlu0 %5895
  %5897 = vrot.lane.b32.xlu0 %v5601, 80
  %v5898 = vpop.permute.xlu0 %5897
  %5899 = vrot.lane.b32.xlu0 %v5602, 80
  %v5900 = vpop.permute.xlu0 %5899
  %5901 = vrot.lane.b32.xlu0 %v5603, 80
  %v5902 = vpop.permute.xlu0 %5901
  %5903 = vrot.lane.b32.xlu0 %v5604, 80
  %v5904 = vpop.permute.xlu0 %5903
  %5905 = vrot.lane.b32.xlu0 %v5605, 80
  %v5906 = vpop.permute.xlu0 %5905
  %5907 = vrot.lane.b32.xlu0 %v5606, 80
  %v5908 = vpop.permute.xlu0 %5907
  %5909 = vrot.lane.b32.xlu0 %v5607, 80
  %v5910 = vpop.permute.xlu0 %5909
  %5911 = vrot.lane.b32.xlu0 %v5608, 80
  %v5912 = vpop.permute.xlu0 %5911
  %5913 = vrot.lane.b32.xlu0 %v5609, 80
  %v5914 = vpop.permute.xlu0 %5913
  %5947 = vrot.lane.b32.xlu0 %v5610, 100
  %v5948 = vpop.permute.xlu0 %5947
  %5949 = vrot.lane.b32.xlu0 %v5611, 100
  %v5950 = vpop.permute.xlu0 %5949
  %5951 = vrot.lane.b32.xlu0 %v5612, 100
  %v5952 = vpop.permute.xlu0 %5951
  %5953 = vrot.lane.b32.xlu0 %v5613, 100
  %v5954 = vpop.permute.xlu0 %5953
  %5955 = vrot.lane.b32.xlu0 %v5614, 100
  %v5956 = vpop.permute.xlu0 %5955
  %5957 = vrot.lane.b32.xlu0 %v5615, 100
  %v5958 = vpop.permute.xlu0 %5957
  %5959 = vrot.lane.b32.xlu0 %v5616, 100
  %v5960 = vpop.permute.xlu0 %5959
  %5961 = vrot.lane.b32.xlu0 %v5617, 100
  %v5962 = vpop.permute.xlu0 %5961
  %5963 = vrot.lane.b32.xlu0 %v5618, 100
  %v5964 = vpop.permute.xlu0 %5963
  %5965 = vrot.lane.b32.xlu0 %v5619, 100
  %v5966 = vpop.permute.xlu0 %5965
  %5967 = vrot.lane.b32.xlu0 %v5620, 100
  %v5968 = vpop.permute.xlu0 %5967
  %5969 = vrot.lane.b32.xlu0 %v5621, 100
  %v5970 = vpop.permute.xlu0 %5969
  %5971 = vrot.lane.b32.xlu0 %v5622, 100
  %v5972 = vpop.permute.xlu0 %5971
  %5973 = vrot.lane.b32.xlu0 %v5623, 100
  %v5974 = vpop.permute.xlu0 %5973
  %5975 = vrot.lane.b32.xlu0 %v5624, 100
  %v5976 = vpop.permute.xlu0 %5975
  %5977 = vrot.lane.b32.xlu0 %v5625, 100
  %v5978 = vpop.permute.xlu0 %5977
  %6011 = vrot.lane.b32.xlu0 %v5627, 120
  %v6012 = vpop.permute.xlu0 %6011
  %6013 = vrot.lane.b32.xlu0 %v5628, 120
  %v6014 = vpop.permute.xlu0 %6013
  %6015 = vrot.lane.b32.xlu0 %v5629, 120
  %v6016 = vpop.permute.xlu0 %6015
  %6017 = vrot.lane.b32.xlu0 %v5630, 120
  %v6018 = vpop.permute.xlu0 %6017
  %6019 = vrot.lane.b32.xlu0 %v5631, 120
  %v6020 = vpop.permute.xlu0 %6019
  %6021 = vrot.lane.b32.xlu0 %v5632, 120
  %v6022 = vpop.permute.xlu0 %6021
  %6023 = vrot.lane.b32.xlu0 %v5633, 120
  %v6024 = vpop.permute.xlu0 %6023
  %6025 = vrot.lane.b32.xlu0 %v5634, 120
  %v6026 = vpop.permute.xlu0 %6025
  %6027 = vrot.lane.b32.xlu0 %v5635, 120
  %v6028 = vpop.permute.xlu0 %6027
  %6029 = vrot.lane.b32.xlu0 %v5636, 120
  %v6030 = vpop.permute.xlu0 %6029
  %6031 = vrot.lane.b32.xlu0 %v5637, 120
  %v6032 = vpop.permute.xlu0 %6031
  %6033 = vrot.lane.b32.xlu0 %v5638, 120
  %v6034 = vpop.permute.xlu0 %6033
  %6035 = vrot.lane.b32.xlu0 %v5639, 120
  %v6036 = vpop.permute.xlu0 %6035
  %6037 = vrot.lane.b32.xlu0 %v5640, 120
  %v6038 = vpop.permute.xlu0 %6037
  %6039 = vrot.lane.b32.xlu0 %v5641, 120
  %v6040 = vpop.permute.xlu0 %6039
  %6041 = vrot.lane.b32.xlu0 %v5642, 120
  %v6042 = vpop.permute.xlu0 %6041
  %6075 = vrot.lane.b32.xlu0 %v5643, 12
  %v6076 = vpop.permute.xlu0 %6075
  %6077 = vrot.lane.b32.xlu0 %v5644, 12
  %v6078 = vpop.permute.xlu0 %6077
  %6079 = vrot.lane.b32.xlu0 %v5645, 12
  %v6080 = vpop.permute.xlu0 %6079
  %6081 = vrot.lane.b32.xlu0 %v5646, 12
  %v6082 = vpop.permute.xlu0 %6081
  %6083 = vrot.lane.b32.xlu0 %v5647, 12
  %v6084 = vpop.permute.xlu0 %6083
  %6085 = vrot.lane.b32.xlu0 %v5648, 12
  %v6086 = vpop.permute.xlu0 %6085
  %6087 = vrot.lane.b32.xlu0 %v5649, 12
  %v6088 = vpop.permute.xlu0 %6087
  %6089 = vrot.lane.b32.xlu0 %v5650, 12
  %v6090 = vpop.permute.xlu0 %6089
  %6091 = vrot.lane.b32.xlu0 %v5651, 12
  %v6092 = vpop.permute.xlu0 %6091
  %6093 = vrot.lane.b32.xlu0 %v5652, 12
  %v6094 = vpop.permute.xlu0 %6093
  %6095 = vrot.lane.b32.xlu0 %v5653, 12
  %v6096 = vpop.permute.xlu0 %6095
  %6097 = vrot.lane.b32.xlu0 %v5654, 12
  %v6098 = vpop.permute.xlu0 %6097
  %6099 = vrot.lane.b32.xlu0 %v5655, 12
  %v6100 = vpop.permute.xlu0 %6099
  %6101 = vrot.lane.b32.xlu0 %v5656, 12
  %v6102 = vpop.permute.xlu0 %6101
  %6103 = vrot.lane.b32.xlu0 %v5657, 12
  %v6104 = vpop.permute.xlu0 %6103
  %6105 = vrot.lane.b32.xlu0 %v5658, 12
  %v6106 = vpop.permute.xlu0 %6105
  %6139 = vrot.lane.b32.xlu0 %v5659, 32
  %v6140 = vpop.permute.xlu0 %6139
  %6141 = vrot.lane.b32.xlu0 %v5660, 32
  %v6142 = vpop.permute.xlu0 %6141
  %6143 = vrot.lane.b32.xlu0 %v5661, 32
  %v6144 = vpop.permute.xlu0 %6143
  %6145 = vrot.lane.b32.xlu0 %v5662, 32
  %v6146 = vpop.permute.xlu0 %6145
  %6147 = vrot.lane.b32.xlu0 %v5663, 32
  %v6148 = vpop.permute.xlu0 %6147
  %6149 = vrot.lane.b32.xlu0 %v5664, 32
  %v6150 = vpop.permute.xlu0 %6149
  %6151 = vrot.lane.b32.xlu0 %v5665, 32
  %v6152 = vpop.permute.xlu0 %6151
  %6153 = vrot.lane.b32.xlu0 %v5666, 32
  %v6154 = vpop.permute.xlu0 %6153
  %6155 = vrot.lane.b32.xlu0 %v5667, 32
  %v6156 = vpop.permute.xlu0 %6155
  %6157 = vrot.lane.b32.xlu0 %v5668, 32
  %v6158 = vpop.permute.xlu0 %6157
  %6159 = vrot.lane.b32.xlu0 %v5669, 32
  %v6160 = vpop.permute.xlu0 %6159
  %6161 = vrot.lane.b32.xlu0 %v5670, 32
  %v6162 = vpop.permute.xlu0 %6161
  %6163 = vrot.lane.b32.xlu0 %v5671, 32
  %v6164 = vpop.permute.xlu0 %6163
  %6165 = vrot.lane.b32.xlu0 %v5672, 32
  %v6166 = vpop.permute.xlu0 %6165
  %6167 = vrot.lane.b32.xlu0 %v5673, 32
  %v6168 = vpop.permute.xlu0 %6167
  %6169 = vrot.lane.b32.xlu0 %v5674, 32
  %v6170 = vpop.permute.xlu0 %6169
  %v6187 = vsel %vm5451, %v5530, %v5692
  %v6188 = vsel %vm5451, %v5531, %v5694
  %v6189 = vsel %vm5451, %v5532, %v5696
  %v6190 = vsel %vm5451, %v5533, %v5698
  %v6191 = vsel %vm5451, %v5534, %v5700
  %v6192 = vsel %vm5451, %v5535, %v5702
  %v6193 = vsel %vm5451, %v5536, %v5704
  %v6194 = vsel %vm5451, %v5537, %v5706
  %v6195 = vsel %vm5451, %v5538, %v5708
  %v6196 = vsel %vm5451, %v5539, %v5710
  %v6197 = vsel %vm5451, %v5540, %v5712
  %v6198 = vsel %vm5451, %v5541, %v5714
  %v6199 = vsel %vm5451, %v5542, %v5716
  %v6200 = vsel %vm5451, %v5543, %v5718
  %v6201 = vsel %vm5451, %v5544, %v5720
  %v6202 = vsel %vm5451, %v5545, %v5722
  %vm6203 = vcmask 326656
  %v6204 = vsel %vm6203, %v6187, %v5756
  %v6205 = vsel %vm6203, %v6188, %v5758
  %v6206 = vsel %vm6203, %v6189, %v5760
  %v6207 = vsel %vm6203, %v6190, %v5762
  %v6208 = vsel %vm6203, %v6191, %v5764
  %v6209 = vsel %vm6203, %v6192, %v5766
  %v6210 = vsel %vm6203, %v6193, %v5768
  %v6211 = vsel %vm6203, %v6194, %v5770
  %v6212 = vsel %vm6203, %v6195, %v5772
  %v6213 = vsel %vm6203, %v6196, %v5774
  %v6214 = vsel %vm6203, %v6197, %v5776
  %v6215 = vsel %vm6203, %v6198, %v5778
  %v6216 = vsel %vm6203, %v6199, %v5780
  %v6217 = vsel %vm6203, %v6200, %v5782
  %v6218 = vsel %vm6203, %v6201, %v5784
  %v6219 = vsel %vm6203, %v6202, %v5786
  %v6220 = vsel %vm5148, %v6204, %v5820
  %v6221 = vsel %vm5148, %v6205, %v5822
  %v6222 = vsel %vm5148, %v6206, %v5824
  %v6223 = vsel %vm5148, %v6207, %v5826
  %v6224 = vsel %vm5148, %v6208, %v5828
  %v6225 = vsel %vm5148, %v6209, %v5830
  %v6226 = vsel %vm5148, %v6210, %v5832
  %v6227 = vsel %vm5148, %v6211, %v5834
  %v6228 = vsel %vm5148, %v6212, %v5836
  %v6229 = vsel %vm5148, %v6213, %v5838
  %v6230 = vsel %vm5148, %v6214, %v5840
  %v6231 = vsel %vm5148, %v6215, %v5842
  %v6232 = vsel %vm5148, %v6216, %v5844
  %v6233 = vsel %vm5148, %v6217, %v5846
  %v6234 = vsel %vm5148, %v6218, %v5848
  %v6235 = vsel %vm5148, %v6219, %v5850
  %vm6236 = vcmask 654336
  %v6237 = vsel %vm6236, %v6220, %v5884
  %v6238 = vsel %vm6236, %v6221, %v5886
  %v6239 = vsel %vm6236, %v6222, %v5888
  %v6240 = vsel %vm6236, %v6223, %v5890
  %v6241 = vsel %vm6236, %v6224, %v5892
  %v6242 = vsel %vm6236, %v6225, %v5894
  %v6243 = vsel %vm6236, %v6226, %v5896
  %v6244 = vsel %vm6236, %v6227, %v5898
  %v6245 = vsel %vm6236, %v6228, %v5900
  %v6246 = vsel %vm6236, %v6229, %v5902
  %v6247 = vsel %vm6236, %v6230, %v5904
  %v6248 = vsel %vm6236, %v6231, %v5906
  %v6249 = vsel %vm6236, %v6232, %v5908
  %v6250 = vsel %vm6236, %v6233, %v5910
  %v6251 = vsel %vm6236, %v6234, %v5912
  %v6252 = vsel %vm6236, %v6235, %v5914
  %vm6253 = vcmask 818176
  %v6254 = vsel %vm6253, %v6237, %v5948
  %v6255 = vsel %vm6253, %v6238, %v5950
  %v6256 = vsel %vm6253, %v6239, %v5952
  %v6257 = vsel %vm6253, %v6240, %v5954
  %v6258 = vsel %vm6253, %v6241, %v5956
  %v6259 = vsel %vm6253, %v6242, %v5958
  %v6260 = vsel %vm6253, %v6243, %v5960
  %v6261 = vsel %vm6253, %v6244, %v5962
  %v6262 = vsel %vm6253, %v6245, %v5964
  %v6263 = vsel %vm6253, %v6246, %v5966
  %v6264 = vsel %vm6253, %v6247, %v5968
  %v6265 = vsel %vm6253, %v6248, %v5970
  %v6266 = vsel %vm6253, %v6249, %v5972
  %v6267 = vsel %vm6253, %v6250, %v5974
  %v6268 = vsel %vm6253, %v6251, %v5976
  %v6269 = vsel %vm6253, %v6252, %v5978
  %vm6270 = vcmask 982016
  %v6271 = vsel %vm6270, %v6254, %v6012
  %v6272 = vsel %vm6270, %v6255, %v6014
  %v6273 = vsel %vm6270, %v6256, %v6016
  %v6274 = vsel %vm6270, %v6257, %v6018
  %v6275 = vsel %vm6270, %v6258, %v6020
  %v6276 = vsel %vm6270, %v6259, %v6022
  %v6277 = vsel %vm6270, %v6260, %v6024
  %v6278 = vsel %vm6270, %v6261, %v6026
  %v6279 = vsel %vm6270, %v6262, %v6028
  %v6280 = vsel %vm6270, %v6263, %v6030
  %v6281 = vsel %vm6270, %v6264, %v6032
  %v6282 = vsel %vm6270, %v6265, %v6034
  %v6283 = vsel %vm6270, %v6266, %v6036
  %v6284 = vsel %vm6270, %v6267, %v6038
  %v6285 = vsel %vm6270, %v6268, %v6040
  %v6286 = vsel %vm6270, %v6269, %v6042
  %v6287 = vsel %vm3126, %v6012, %v6076
  %v6288 = vsel %vm3126, %v6014, %v6078
  %v6289 = vsel %vm3126, %v6016, %v6080
  %v6290 = vsel %vm3126, %v6018, %v6082
  %v6291 = vsel %vm3126, %v6020, %v6084
  %v6292 = vsel %vm3126, %v6022, %v6086
  %v6293 = vsel %vm3126, %v6024, %v6088
  %v6294 = vsel %vm3126, %v6026, %v6090
  %v6295 = vsel %vm3126, %v6028, %v6092
  %v6296 = vsel %vm3126, %v6030, %v6094
  %v6297 = vsel %vm3126, %v6032, %v6096
  %v6298 = vsel %vm3126, %v6034, %v6098
  %v6299 = vsel %vm3126, %v6036, %v6100
  %v6300 = vsel %vm3126, %v6038, %v6102
  %v6301 = vsel %vm3126, %v6040, %v6104
  %v6302 = vsel %vm3126, %v6042, %v6106
  %vm6303 = vcmask 261120
  %v6304 = vsel %vm6303, %v6287, %v6140
  %v6305 = vsel %vm6303, %v6288, %v6142
  %v6306 = vsel %vm6303, %v6289, %v6144
  %v6307 = vsel %vm6303, %v6290, %v6146
  %v6308 = vsel %vm6303, %v6291, %v6148
  %v6309 = vsel %vm6303, %v6292, %v6150
  %v6310 = vsel %vm6303, %v6293, %v6152
  %v6311 = vsel %vm6303, %v6294, %v6154
  %v6312 = vsel %vm6303, %v6295, %v6156
  %v6313 = vsel %vm6303, %v6296, %v6158
  %v6314 = vsel %vm6303, %v6297, %v6160
  %v6315 = vsel %vm6303, %v6298, %v6162
  %v6316 = vsel %vm6303, %v6299, %v6164
  %v6317 = vsel %vm6303, %v6300, %v6166
  %v6318 = vsel %vm6303, %v6301, %v6168
  %v6319 = vsel %vm6303, %v6302, %v6170
  %v6320 = vld [vmem:[%s5] sm:$0xff]
  %v6321 = vld [vmem:[%s5 + $0x8] sm:$0xff]
  %v6322 = vld [vmem:[%s5 + $0x10] sm:$0xff]
  %v6323 = vld [vmem:[%s5 + $0x18] sm:$0xff]
  %v6324 = vld [vmem:[%s5 + $0x20] sm:$0xff]
  %v6325 = vld [vmem:[%s5 + $0x28] sm:$0xff]
  %v6326 = vld [vmem:[%s5 + $0x30] sm:$0xff]
  %v6327 = vld [vmem:[%s5 + $0x38] sm:$0xff]
  %v6328 = vld [vmem:[%s5 + $0x40] sm:$0xff]
  %v6329 = vld [vmem:[%s5 + $0x48] sm:$0xff]
  %v6330 = vld [vmem:[%s5 + $0x50] sm:$0xff]
  %v6331 = vld [vmem:[%s5 + $0x58] sm:$0xff]
  %v6332 = vld [vmem:[%s5 + $0x60] sm:$0xff]
  %v6333 = vld [vmem:[%s5 + $0x68] sm:$0xff]
  %v6334 = vld [vmem:[%s5 + $0x70] sm:$0xff]
  %v6335 = vld [vmem:[%s5 + $0x78] sm:$0xff]
  %v6336 = vld [vmem:[%s5 + $0x80] sm:$0xff]
  %v6337 = vld [vmem:[%s5 + $0x88] sm:$0xff]
  %v6338 = vld [vmem:[%s5 + $0x90] sm:$0xff]
  %v6339 = vld [vmem:[%s5 + $0x98] sm:$0xff]
  %v6340 = vld [vmem:[%s5 + $0xa0] sm:$0xff]
  %v6341 = vld [vmem:[%s5 + $0xa8] sm:$0xff]
  %v6342 = vld [vmem:[%s5 + $0xb0] sm:$0xf]
  %v6343 = vld [vmem:[%s6] sm:$0x1]
  %v6345 = vlaneseq
  %v6346 = vshrl.u32 %v6345, 7
  %v6347 = vsub.s32 0, %v6346
  %v6348 = vrot.slane %v6343, %v6347
  %vm6350 = vcmask 424960
  %v6352 = vsel %vm6350, %v6304, 0
  %v6355 = vsel %vm6350, %v6305, 0
  %v6358 = vsel %vm6350, %v6306, 0
  %v6361 = vsel %vm6350, %v6307, 0
  %v6364 = vsel %vm6350, %v6308, 0
  %v6367 = vsel %vm6350, %v6309, 0
  %v6370 = vsel %vm6350, %v6310, 0
  %v6373 = vsel %vm6350, %v6311, 0
  %v6376 = vsel %vm6350, %v6312, 0
  %v6379 = vsel %vm6350, %v6313, 0
  %v6382 = vsel %vm6350, %v6314, 0
  %v6385 = vsel %vm6350, %v6315, 0
  %v6388 = vsel %vm6350, %v6316, 0
  %v6391 = vsel %vm6350, %v6317, 0
  %v6394 = vsel %vm6350, %v6318, 0
  %v6397 = vsel %vm6350, %v6319, 0
  %v6400 = vsel %vm5286, %v6342, 0
  %6402 = vmatprep.subr.mxu0 0.0
  %6403 = vmatpush1.msra.mxu0 %v6320
  %6404 = vmatprep.subr.mxu0 0.0
  %6405 = vmatpush1.msra.mxu0 %v6321
  %6406 = vmatprep.subr.mxu0 0.0
  %6407 = vmatpush1.msra.mxu0 %v6322
  %6408 = vmatprep.subr.mxu0 0.0
  %6409 = vmatpush1.msra.mxu0 %v6323
  %6410 = vmatprep.subr.mxu0 0.0
  %6411 = vmatpush1.msra.mxu0 %v6324
  %6412 = vmatprep.subr.mxu0 0.0
  %6413 = vmatpush1.msra.mxu0 %v6325
  %6414 = vmatprep.subr.mxu0 0.0
  %6415 = vmatpush1.msra.mxu0 %v6326
  %6416 = vmatprep.subr.mxu0 0.0
  %6417 = vmatpush1.msra.mxu0 %v6327
  %6418 = vmatprep.subr.mxu0 0.0
  %6419 = vmatpush1.msra.mxu0 %v6328
  %6420 = vmatprep.subr.mxu0 0.0
  %6421 = vmatpush1.msra.mxu0 %v6329
  %6422 = vmatprep.subr.mxu0 0.0
  %6423 = vmatpush1.msra.mxu0 %v6330
  %6424 = vmatprep.subr.mxu0 0.0
  %6425 = vmatpush1.msra.mxu0 %v6331
  %6426 = vmatprep.subr.mxu0 0.0
  %6427 = vmatpush1.msra.mxu0 %v6332
  %6428 = vmatprep.subr.mxu0 0.0
  %6429 = vmatpush1.msra.mxu0 %v6333
  %6430 = vmatprep.subr.mxu0 0.0
  %6431 = vmatpush1.msra.mxu0 %v6334
  %6432 = vmatprep.subr.mxu0 0.0
  %6433 = vmatpush1.msra.mxu0 %v6335
  %6434 = vmatprep.subr.mxu0 0.0
  %6435 = vmatpush1.msra.mxu0 %v6336
  %6436 = vmatprep.subr.mxu0 0.0
  %6437 = vmatpush1.msra.mxu0 %v6337
  %6438 = vmatprep.subr.mxu0 0.0
  %6439 = vmatpush1.msra.mxu0 %v6338
  %6440 = vmatprep.subr.mxu0 0.0
  %6441 = vmatpush1.msra.mxu0 %v6339
  %6442 = vmatprep.subr.mxu0 0.0
  %6443 = vmatpush1.msra.mxu0 %v6340
  %6444 = vmatprep.subr.mxu0 0.0
  %6445 = vmatpush1.msra.mxu0 %v6341
  %6446 = vmatprep.subr.mxu0 0.0
  %6447 = vmatpush1.msra.mxu0 %v6400
  %6448 = vmatprep.subr.mxu0 0.0
  %6449 = vmatpush1.msra.mxu0 0.0
  %6450 = vmatprep.subr.mxu0 0.0
  %6451 = vmatpush1.msra.mxu0 0.0
  %6452 = vmatprep.subr.mxu0 0.0
  %6453 = vmatpush1.msra.mxu0 0.0
  %6454 = vmatprep.subr.mxu0 0.0
  %6455 = vmatpush1.msra.mxu0 0.0
  %6456 = vmatprep.subr.mxu0 0.0
  %6457 = vmatpush1.msra.mxu0 0.0
  %6458 = vmatprep.subr.mxu0 0.0
  %6459 = vmatpush1.msra.mxu0 0.0
  %6460 = vmatprep.subr.mxu0 0.0
  %6461 = vmatpush1.msra.mxu0 0.0
  %6462 = vmatprep.subr.mxu0 0.0
  %6463 = vmatpush1.msra.mxu0 0.0
  %6464 = vmatprep.subr.mxu0 0.0
  %6465 = vmatpush1.msra.mxu0 0.0
  %6466 = vmatprep.mubr.f32.mxu0 %v6352
  %6467 = vmatmul.mubr.f32.gmra.mrb[0].mxu0 %v6271
  %v6468 = vpop.f32.mrb[0].mxu0
  %v6469 = vadd.f32 %v6348, %v6468
  %v6470 = vpop.f32.mrb[0].mxu0
  %6471 = vmatprep.mubr.f32.mxu0 %v6355
  %6472 = vmatmul.mubr.f32.gmra.mrb[0].mxu0 %v6272
  %v6473 = vpop.f32.mrb[0].mxu0
  %v6474 = vadd.f32 %v6348, %v6473
  %v6475 = vpop.f32.mrb[0].mxu0
  %6476 = vmatprep.mubr.f32.mxu0 %v6358
  %6477 = vmatmul.mubr.f32.gmra.mrb[0].mxu0 %v6273
  %v6478 = vpop.f32.mrb[0].mxu0
  %v6479 = vadd.f32 %v6348, %v6478
  %v6480 = vpop.f32.mrb[0].mxu0
  %6481 = vmatprep.mubr.f32.mxu0 %v6361
  %6482 = vmatmul.mubr.f32.gmra.mrb[0].mxu0 %v6274
  %v6483 = vpop.f32.mrb[0].mxu0
  %v6484 = vadd.f32 %v6348, %v6483
  %v6485 = vpop.f32.mrb[0].mxu0
  %6486 = vmatprep.mubr.f32.mxu0 %v6364
  %6487 = vmatmul.mubr.f32.gmra.mrb[0].mxu0 %v6275
  %v6488 = vpop.f32.mrb[0].mxu0
  %v6489 = vadd.f32 %v6348, %v6488
  %v6490 = vpop.f32.mrb[0].mxu0
  %6491 = vmatprep.mubr.f32.mxu0 %v6367
  %6492 = vmatmul.mubr.f32.gmra.mrb[0].mxu0 %v6276
  %v6493 = vpop.f32.mrb[0].mxu0
  %v6494 = vadd.f32 %v6348, %v6493
  %v6495 = vpop.f32.mrb[0].mxu0
  %6496 = vmatprep.mubr.f32.mxu0 %v6370
  %6497 = vmatmul.mubr.f32.gmra.mrb[0].mxu0 %v6277
  %v6498 = vpop.f32.mrb[0].mxu0
  %v6499 = vadd.f32 %v6348, %v6498
  %v6500 = vpop.f32.mrb[0].mxu0
  %6501 = vmatprep.mubr.f32.mxu0 %v6373
  %6502 = vmatmul.mubr.f32.gmra.mrb[0].mxu0 %v6278
  %v6503 = vpop.f32.mrb[0].mxu0
  %v6504 = vadd.f32 %v6348, %v6503
  %v6505 = vpop.f32.mrb[0].mxu0
  %6506 = vmatprep.mubr.f32.mxu0 %v6376
  %6507 = vmatmul.mubr.f32.gmra.mrb[0].mxu0 %v6279
  %v6508 = vpop.f32.mrb[0].mxu0
  %v6509 = vadd.f32 %v6348, %v6508
  %v6510 = vpop.f32.mrb[0].mxu0
  %6511 = vmatprep.mubr.f32.mxu0 %v6379
  %6512 = vmatmul.mubr.f32.gmra.mrb[0].mxu0 %v6280
  %v6513 = vpop.f32.mrb[0].mxu0
  %v6514 = vadd.f32 %v6348, %v6513
  %v6515 = vpop.f32.mrb[0].mxu0
  %6516 = vmatprep.mubr.f32.mxu0 %v6382
  %6517 = vmatmul.mubr.f32.gmra.mrb[0].mxu0 %v6281
  %v6518 = vpop.f32.mrb[0].mxu0
  %v6519 = vadd.f32 %v6348, %v6518
  %v6520 = vpop.f32.mrb[0].mxu0
  %6521 = vmatprep.mubr.f32.mxu0 %v6385
  %6522 = vmatmul.mubr.f32.gmra.mrb[0].mxu0 %v6282
  %v6523 = vpop.f32.mrb[0].mxu0
  %v6524 = vadd.f32 %v6348, %v6523
  %v6525 = vpop.f32.mrb[0].mxu0
  %6526 = vmatprep.mubr.f32.mxu0 %v6388
  %6527 = vmatmul.mubr.f32.gmra.mrb[0].mxu0 %v6283
  %v6528 = vpop.f32.mrb[0].mxu0
  %v6529 = vadd.f32 %v6348, %v6528
  %v6530 = vpop.f32.mrb[0].mxu0
  %6531 = vmatprep.mubr.f32.mxu0 %v6391
  %6532 = vmatmul.mubr.f32.gmra.mrb[0].mxu0 %v6284
  %v6533 = vpop.f32.mrb[0].mxu0
  %v6534 = vadd.f32 %v6348, %v6533
  %v6535 = vpop.f32.mrb[0].mxu0
  %6536 = vmatprep.mubr.f32.mxu0 %v6394
  %6537 = vmatmul.mubr.f32.gmra.mrb[0].mxu0 %v6285
  %v6538 = vpop.f32.mrb[0].mxu0
  %v6539 = vadd.f32 %v6348, %v6538
  %v6540 = vpop.f32.mrb[0].mxu0
  %6541 = vmatprep.mubr.f32.mxu0 %v6397
  %6542 = vmatmul.mubr.f32.gmra.mrb[0].mxu0 %v6286
  %v6543 = vpop.f32.mrb[0].mxu0
  %v6544 = vadd.f32 %v6348, %v6543
  %v6545 = vpop.f32.mrb[0].mxu0
  %6546 = vdwg.mxu0
  %v6547 = vmax.f32 %v6469, 0.0
  %v6548 = vmax.f32 %v6474, 0.0
  %v6549 = vmax.f32 %v6479, 0.0
  %v6550 = vmax.f32 %v6484, 0.0
  %v6551 = vmax.f32 %v6489, 0.0
  %v6552 = vmax.f32 %v6494, 0.0
  %v6553 = vmax.f32 %v6499, 0.0
  %v6554 = vmax.f32 %v6504, 0.0
  %v6555 = vmax.f32 %v6509, 0.0
  %v6556 = vmax.f32 %v6514, 0.0
  %v6557 = vmax.f32 %v6519, 0.0
  %v6558 = vmax.f32 %v6524, 0.0
  %v6559 = vmax.f32 %v6529, 0.0
  %v6560 = vmax.f32 %v6534, 0.0
  %v6561 = vmax.f32 %v6539, 0.0
  %v6562 = vmax.f32 %v6544, 0.0
  %v6563 = vld [vmem:[%s7] sm:$0xff]
  %v6564 = vld [vmem:[%s7 + $0x8] sm:$0xff]
  %v6565 = vld [vmem:[%s7 + $0x10] sm:$0xff]
  %v6566 = vld [vmem:[%s7 + $0x18] sm:$0xff]
  %v6567 = vld [vmem:[%s7 + $0x20] sm:$0xff]
  %v6568 = vld [vmem:[%s7 + $0x28] sm:$0xff]
  %v6569 = vld [vmem:[%s7 + $0x30] sm:$0xff]
  %v6570 = vld [vmem:[%s7 + $0x38] sm:$0xff]
  %v6571 = vmul.f32 %v6547, %v6563
  %v6572 = vmul.f32 %v6548, %v6564
  %v6573 = vmul.f32 %v6549, %v6565
  %v6574 = vmul.f32 %v6550, %v6566
  %v6575 = vmul.f32 %v6551, %v6567
  %v6576 = vmul.f32 %v6552, %v6568
  %v6577 = vmul.f32 %v6553, %v6569
  %v6578 = vmul.f32 %v6554, %v6570
  %v6579 = vsel %vm6303, %v6571, 0.0
  %6580 = vadd.xlane.f32.xlu0 %v6579
  %v6581 = vpop.xlane.xlu0 %6580
  %v6582 = vsel %vm6303, %v6572, 0.0
  %6583 = vadd.xlane.f32.xlu0 %v6582
  %v6584 = vpop.xlane.xlu0 %6583
  %v6585 = vsel %vm6303, %v6573, 0.0
  %6586 = vadd.xlane.f32.xlu0 %v6585
  %v6587 = vpop.xlane.xlu0 %6586
  %v6588 = vsel %vm6303, %v6574, 0.0
  %6589 = vadd.xlane.f32.xlu0 %v6588
  %v6590 = vpop.xlane.xlu0 %6589
  %v6591 = vsel %vm6303, %v6575, 0.0
  %6592 = vadd.xlane.f32.xlu0 %v6591
  %v6593 = vpop.xlane.xlu0 %6592
  %v6594 = vsel %vm6303, %v6576, 0.0
  %6595 = vadd.xlane.f32.xlu0 %v6594
  %v6596 = vpop.xlane.xlu0 %6595
  %v6597 = vsel %vm6303, %v6577, 0.0
  %6598 = vadd.xlane.f32.xlu0 %v6597
  %v6599 = vpop.xlane.xlu0 %6598
  %v6600 = vsel %vm6303, %v6578, 0.0
  %6601 = vadd.xlane.f32.xlu0 %v6600
  %v6602 = vpop.xlane.xlu0 %6601
  %v6603 = vadd.f32 %v6581, %v6584
  %v6604 = vadd.f32 %v6603, %v6587
  %v6605 = vadd.f32 %v6604, %v6590
  %v6606 = vadd.f32 %v6605, %v6593
  %v6607 = vadd.f32 %v6606, %v6596
  %v6608 = vadd.f32 %v6607, %v6599
  %v6609 = vadd.f32 %v6608, %v6602
  %v6610 = vrot.slane %v6609, 4
  %v6611 = vadd.f32 %v6609, %v6610
  %v6612 = vrot.slane %v6611, 2
  %v6613 = vadd.f32 %v6611, %v6612
  %v6614 = vrot.slane %v6613, 1
  %v6615 = vadd.f32 %v6613, %v6614
  %v6616 = vld [vmem:[%s8] sm:$0x1]
  %v6617 = vadd.f32 %v6615, %v6616
  %vm6618 = vcmask 0
  %6619 = vst.msk [vmem:[%s9] sm:$0x1] %vm6618, %v6617
  %s6620 = scalar_lea.vmem %s7, 64
  %v6621 = vld [vmem:[%s6620] sm:$0xff]
  %v6622 = vld [vmem:[%s6620 + $0x8] sm:$0xff]
  %v6623 = vld [vmem:[%s6620 + $0x10] sm:$0xff]
  %v6624 = vld [vmem:[%s6620 + $0x18] sm:$0xff]
  %v6625 = vld [vmem:[%s6620 + $0x20] sm:$0xff]
  %v6626 = vld [vmem:[%s6620 + $0x28] sm:$0xff]
  %v6627 = vld [vmem:[%s6620 + $0x30] sm:$0xff]
  %v6628 = vld [vmem:[%s6620 + $0x38] sm:$0xff]
  %v6629 = vmul.f32 %v6547, %v6621
  %v6630 = vmul.f32 %v6548, %v6622
  %v6631 = vmul.f32 %v6549, %v6623
  %v6632 = vmul.f32 %v6550, %v6624
  %v6633 = vmul.f32 %v6551, %v6625
  %v6634 = vmul.f32 %v6552, %v6626
  %v6635 = vmul.f32 %v6553, %v6627
  %v6636 = vmul.f32 %v6554, %v6628
  %v6637 = vsel %vm6303, %v6629, 0.0
  %6638 = vadd.xlane.f32.xlu0 %v6637
  %v6639 = vpop.xlane.xlu0 %6638
  %v6640 = vsel %vm6303, %v6630, 0.0
  %6641 = vadd.xlane.f32.xlu0 %v6640
  %v6642 = vpop.xlane.xlu0 %6641
  %v6643 = vsel %vm6303, %v6631, 0.0
  %6644 = vadd.xlane.f32.xlu0 %v6643
  %v6645 = vpop.xlane.xlu0 %6644
  %v6646 = vsel %vm6303, %v6632, 0.0
  %6647 = vadd.xlane.f32.xlu0 %v6646
  %v6648 = vpop.xlane.xlu0 %6647
  %v6649 = vsel %vm6303, %v6633, 0.0
  %6650 = vadd.xlane.f32.xlu0 %v6649
  %v6651 = vpop.xlane.xlu0 %6650
  %v6652 = vsel %vm6303, %v6634, 0.0
  %6653 = vadd.xlane.f32.xlu0 %v6652
  %v6654 = vpop.xlane.xlu0 %6653
  %v6655 = vsel %vm6303, %v6635, 0.0
  %6656 = vadd.xlane.f32.xlu0 %v6655
  %v6657 = vpop.xlane.xlu0 %6656
  %v6658 = vsel %vm6303, %v6636, 0.0
  %6659 = vadd.xlane.f32.xlu0 %v6658
  %v6660 = vpop.xlane.xlu0 %6659
  %v6661 = vadd.f32 %v6639, %v6642
  %v6662 = vadd.f32 %v6661, %v6645
  %v6663 = vadd.f32 %v6662, %v6648
  %v6664 = vadd.f32 %v6663, %v6651
  %v6665 = vadd.f32 %v6664, %v6654
  %v6666 = vadd.f32 %v6665, %v6657
  %v6667 = vadd.f32 %v6666, %v6660
  %v6668 = vrot.slane %v6667, 4
  %v6669 = vadd.f32 %v6667, %v6668
  %v6670 = vrot.slane %v6669, 2
  %v6671 = vadd.f32 %v6669, %v6670
  %v6672 = vrot.slane %v6671, 1
  %v6673 = vadd.f32 %v6671, %v6672
  %v6674 = vld [vmem:[%s8 + $0x1] sm:$0x1]
  %v6675 = vadd.f32 %v6673, %v6674
  %6676 = vst.msk [vmem:[%s9 + $0x1] sm:$0x1] %vm6618, %v6675
  %s6677 = scalar_lea.vmem %s7, 128
  %v6678 = vld [vmem:[%s6677] sm:$0xff]
  %v6679 = vld [vmem:[%s6677 + $0x8] sm:$0xff]
  %v6680 = vld [vmem:[%s6677 + $0x10] sm:$0xff]
  %v6681 = vld [vmem:[%s6677 + $0x18] sm:$0xff]
  %v6682 = vld [vmem:[%s6677 + $0x20] sm:$0xff]
  %v6683 = vld [vmem:[%s6677 + $0x28] sm:$0xff]
  %v6684 = vld [vmem:[%s6677 + $0x30] sm:$0xff]
  %v6685 = vld [vmem:[%s6677 + $0x38] sm:$0xff]
  %v6686 = vmul.f32 %v6547, %v6678
  %v6687 = vmul.f32 %v6548, %v6679
  %v6688 = vmul.f32 %v6549, %v6680
  %v6689 = vmul.f32 %v6550, %v6681
  %v6690 = vmul.f32 %v6551, %v6682
  %v6691 = vmul.f32 %v6552, %v6683
  %v6692 = vmul.f32 %v6553, %v6684
  %v6693 = vmul.f32 %v6554, %v6685
  %v6694 = vsel %vm6303, %v6686, 0.0
  %6695 = vadd.xlane.f32.xlu0 %v6694
  %v6696 = vpop.xlane.xlu0 %6695
  %v6697 = vsel %vm6303, %v6687, 0.0
  %6698 = vadd.xlane.f32.xlu0 %v6697
  %v6699 = vpop.xlane.xlu0 %6698
  %v6700 = vsel %vm6303, %v6688, 0.0
  %6701 = vadd.xlane.f32.xlu0 %v6700
  %v6702 = vpop.xlane.xlu0 %6701
  %v6703 = vsel %vm6303, %v6689, 0.0
  %6704 = vadd.xlane.f32.xlu0 %v6703
  %v6705 = vpop.xlane.xlu0 %6704
  %v6706 = vsel %vm6303, %v6690, 0.0
  %6707 = vadd.xlane.f32.xlu0 %v6706
  %v6708 = vpop.xlane.xlu0 %6707
  %v6709 = vsel %vm6303, %v6691, 0.0
  %6710 = vadd.xlane.f32.xlu0 %v6709
  %v6711 = vpop.xlane.xlu0 %6710
  %v6712 = vsel %vm6303, %v6692, 0.0
  %6713 = vadd.xlane.f32.xlu0 %v6712
  %v6714 = vpop.xlane.xlu0 %6713
  %v6715 = vsel %vm6303, %v6693, 0.0
  %6716 = vadd.xlane.f32.xlu0 %v6715
  %v6717 = vpop.xlane.xlu0 %6716
  %v6718 = vadd.f32 %v6696, %v6699
  %v6719 = vadd.f32 %v6718, %v6702
  %v6720 = vadd.f32 %v6719, %v6705
  %v6721 = vadd.f32 %v6720, %v6708
  %v6722 = vadd.f32 %v6721, %v6711
  %v6723 = vadd.f32 %v6722, %v6714
  %v6724 = vadd.f32 %v6723, %v6717
  %v6725 = vrot.slane %v6724, 4
  %v6726 = vadd.f32 %v6724, %v6725
  %v6727 = vrot.slane %v6726, 2
  %v6728 = vadd.f32 %v6726, %v6727
  %v6729 = vrot.slane %v6728, 1
  %v6730 = vadd.f32 %v6728, %v6729
  %v6731 = vld [vmem:[%s8 + $0x2] sm:$0x1]
  %v6732 = vadd.f32 %v6730, %v6731
  %6733 = vst.msk [vmem:[%s9 + $0x2] sm:$0x1] %vm6618, %v6732
  %v6734 = vld [vmem:[%s7] sm:$0xff]
  %v6735 = vld [vmem:[%s7 + $0x8] sm:$0xff]
  %v6736 = vld [vmem:[%s7 + $0x10] sm:$0xff]
  %v6737 = vld [vmem:[%s7 + $0x18] sm:$0xff]
  %v6738 = vld [vmem:[%s7 + $0x20] sm:$0xff]
  %v6739 = vld [vmem:[%s7 + $0x28] sm:$0xff]
  %v6740 = vld [vmem:[%s7 + $0x30] sm:$0xff]
  %v6741 = vld [vmem:[%s7 + $0x38] sm:$0xff]
  %v6742 = vmul.f32 %v6555, %v6734
  %v6743 = vmul.f32 %v6556, %v6735
  %v6744 = vmul.f32 %v6557, %v6736
  %v6745 = vmul.f32 %v6558, %v6737
  %v6746 = vmul.f32 %v6559, %v6738
  %v6747 = vmul.f32 %v6560, %v6739
  %v6748 = vmul.f32 %v6561, %v6740
  %v6749 = vmul.f32 %v6562, %v6741
  %v6750 = vsel %vm6303, %v6742, 0.0
  %6751 = vadd.xlane.f32.xlu0 %v6750
  %v6752 = vpop.xlane.xlu0 %6751
  %v6753 = vsel %vm6303, %v6743, 0.0
  %6754 = vadd.xlane.f32.xlu0 %v6753
  %v6755 = vpop.xlane.xlu0 %6754
  %v6756 = vsel %vm6303, %v6744, 0.0
  %6757 = vadd.xlane.f32.xlu0 %v6756
  %v6758 = vpop.xlane.xlu0 %6757
  %v6759 = vsel %vm6303, %v6745, 0.0
  %6760 = vadd.xlane.f32.xlu0 %v6759
  %v6761 = vpop.xlane.xlu0 %6760
  %v6762 = vsel %vm6303, %v6746, 0.0
  %6763 = vadd.xlane.f32.xlu0 %v6762
  %v6764 = vpop.xlane.xlu0 %6763
  %v6765 = vsel %vm6303, %v6747, 0.0
  %6766 = vadd.xlane.f32.xlu0 %v6765
  %v6767 = vpop.xlane.xlu0 %6766
  %v6768 = vsel %vm6303, %v6748, 0.0
  %6769 = vadd.xlane.f32.xlu0 %v6768
  %v6770 = vpop.xlane.xlu0 %6769
  %v6771 = vsel %vm6303, %v6749, 0.0
  %6772 = vadd.xlane.f32.xlu0 %v6771
  %v6773 = vpop.xlane.xlu0 %6772
  %v6774 = vadd.f32 %v6752, %v6755
  %v6775 = vadd.f32 %v6774, %v6758
  %v6776 = vadd.f32 %v6775, %v6761
  %v6777 = vadd.f32 %v6776, %v6764
  %v6778 = vadd.f32 %v6777, %v6767
  %v6779 = vadd.f32 %v6778, %v6770
  %v6780 = vadd.f32 %v6779, %v6773
  %v6781 = vrot.slane %v6780, 4
  %v6782 = vadd.f32 %v6780, %v6781
  %v6783 = vrot.slane %v6782, 2
  %v6784 = vadd.f32 %v6782, %v6783
  %v6785 = vrot.slane %v6784, 1
  %v6786 = vadd.f32 %v6784, %v6785
  %v6787 = vld [vmem:[%s8] sm:$0x1]
  %v6788 = vadd.f32 %v6786, %v6787
  %6790 = vrot.lane.b32.xlu0 %v6788, 1
  %v6791 = vpop.permute.xlu0 %6790
  %vm6793 = vcmask 8200
  %6794 = vst.msk [vmem:[%s9] sm:$0x1] %vm6793, %v6791
  %v6795 = vld [vmem:[%s6620] sm:$0xff]
  %v6796 = vld [vmem:[%s6620 + $0x8] sm:$0xff]
  %v6797 = vld [vmem:[%s6620 + $0x10] sm:$0xff]
  %v6798 = vld [vmem:[%s6620 + $0x18] sm:$0xff]
  %v6799 = vld [vmem:[%s6620 + $0x20] sm:$0xff]
  %v6800 = vld [vmem:[%s6620 + $0x28] sm:$0xff]
  %v6801 = vld [vmem:[%s6620 + $0x30] sm:$0xff]
  %v6802 = vld [vmem:[%s6620 + $0x38] sm:$0xff]
  %v6803 = vmul.f32 %v6555, %v6795
  %v6804 = vmul.f32 %v6556, %v6796
  %v6805 = vmul.f32 %v6557, %v6797
  %v6806 = vmul.f32 %v6558, %v6798
  %v6807 = vmul.f32 %v6559, %v6799
  %v6808 = vmul.f32 %v6560, %v6800
  %v6809 = vmul.f32 %v6561, %v6801
  %v6810 = vmul.f32 %v6562, %v6802
  %v6811 = vsel %vm6303, %v6803, 0.0
  %6812 = vadd.xlane.f32.xlu0 %v6811
  %v6813 = vpop.xlane.xlu0 %6812
  %v6814 = vsel %vm6303, %v6804, 0.0
  %6815 = vadd.xlane.f32.xlu0 %v6814
  %v6816 = vpop.xlane.xlu0 %6815
  %v6817 = vsel %vm6303, %v6805, 0.0
  %6818 = vadd.xlane.f32.xlu0 %v6817
  %v6819 = vpop.xlane.xlu0 %6818
  %v6820 = vsel %vm6303, %v6806, 0.0
  %6821 = vadd.xlane.f32.xlu0 %v6820
  %v6822 = vpop.xlane.xlu0 %6821
  %v6823 = vsel %vm6303, %v6807, 0.0
  %6824 = vadd.xlane.f32.xlu0 %v6823
  %v6825 = vpop.xlane.xlu0 %6824
  %v6826 = vsel %vm6303, %v6808, 0.0
  %6827 = vadd.xlane.f32.xlu0 %v6826
  %v6828 = vpop.xlane.xlu0 %6827
  %v6829 = vsel %vm6303, %v6809, 0.0
  %6830 = vadd.xlane.f32.xlu0 %v6829
  %v6831 = vpop.xlane.xlu0 %6830
  %v6832 = vsel %vm6303, %v6810, 0.0
  %6833 = vadd.xlane.f32.xlu0 %v6832
  %v6834 = vpop.xlane.xlu0 %6833
  %v6835 = vadd.f32 %v6813, %v6816
  %v6836 = vadd.f32 %v6835, %v6819
  %v6837 = vadd.f32 %v6836, %v6822
  %v6838 = vadd.f32 %v6837, %v6825
  %v6839 = vadd.f32 %v6838, %v6828
  %v6840 = vadd.f32 %v6839, %v6831
  %v6841 = vadd.f32 %v6840, %v6834
  %v6842 = vrot.slane %v6841, 4
  %v6843 = vadd.f32 %v6841, %v6842
  %v6844 = vrot.slane %v6843, 2
  %v6845 = vadd.f32 %v6843, %v6844
  %v6846 = vrot.slane %v6845, 1
  %v6847 = vadd.f32 %v6845, %v6846
  %v6848 = vld [vmem:[%s8 + $0x1] sm:$0x1]
  %v6849 = vadd.f32 %v6847, %v6848
  %6851 = vrot.lane.b32.xlu0 %v6849, 1
  %v6852 = vpop.permute.xlu0 %6851
  %6854 = vst.msk [vmem:[%s9 + $0x1] sm:$0x1] %vm6793, %v6852
  %v6855 = vld [vmem:[%s6677] sm:$0xff]
  %v6856 = vld [vmem:[%s6677 + $0x8] sm:$0xff]
  %v6857 = vld [vmem:[%s6677 + $0x10] sm:$0xff]
  %v6858 = vld [vmem:[%s6677 + $0x18] sm:$0xff]
  %v6859 = vld [vmem:[%s6677 + $0x20] sm:$0xff]
  %v6860 = vld [vmem:[%s6677 + $0x28] sm:$0xff]
  %v6861 = vld [vmem:[%s6677 + $0x30] sm:$0xff]
  %v6862 = vld [vmem:[%s6677 + $0x38] sm:$0xff]
  %v6863 = vmul.f32 %v6555, %v6855
  %v6864 = vmul.f32 %v6556, %v6856
  %v6865 = vmul.f32 %v6557, %v6857
  %v6866 = vmul.f32 %v6558, %v6858
  %v6867 = vmul.f32 %v6559, %v6859
  %v6868 = vmul.f32 %v6560, %v6860
  %v6869 = vmul.f32 %v6561, %v6861
  %v6870 = vmul.f32 %v6562, %v6862
  %v6871 = vsel %vm6303, %v6863, 0.0
  %6872 = vadd.xlane.f32.xlu0 %v6871
  %v6873 = vpop.xlane.xlu0 %6872
  %v6874 = vsel %vm6303, %v6864, 0.0
  %6875 = vadd.xlane.f32.xlu0 %v6874
  %v6876 = vpop.xlane.xlu0 %6875
  %v6877 = vsel %vm6303, %v6865, 0.0
  %6878 = vadd.xlane.f32.xlu0 %v6877
  %v6879 = vpop.xlane.xlu0 %6878
  %v6880 = vsel %vm6303, %v6866, 0.0
  %6881 = vadd.xlane.f32.xlu0 %v6880
  %v6882 = vpop.xlane.xlu0 %6881
  %v6883 = vsel %vm6303, %v6867, 0.0
  %6884 = vadd.xlane.f32.xlu0 %v6883
  %v6885 = vpop.xlane.xlu0 %6884
  %v6886 = vsel %vm6303, %v6868, 0.0
  %6887 = vadd.xlane.f32.xlu0 %v6886
  %v6888 = vpop.xlane.xlu0 %6887
  %v6889 = vsel %vm6303, %v6869, 0.0
  %6890 = vadd.xlane.f32.xlu0 %v6889
  %v6891 = vpop.xlane.xlu0 %6890
  %v6892 = vsel %vm6303, %v6870, 0.0
  %6893 = vadd.xlane.f32.xlu0 %v6892
  %v6894 = vpop.xlane.xlu0 %6893
  %v6895 = vadd.f32 %v6873, %v6876
  %v6896 = vadd.f32 %v6895, %v6879
  %v6897 = vadd.f32 %v6896, %v6882
  %v6898 = vadd.f32 %v6897, %v6885
  %v6899 = vadd.f32 %v6898, %v6888
  %v6900 = vadd.f32 %v6899, %v6891
  %v6901 = vadd.f32 %v6900, %v6894
  %v6902 = vrot.slane %v6901, 4
  %v6903 = vadd.f32 %v6901, %v6902
  %v6904 = vrot.slane %v6903, 2
  %v6905 = vadd.f32 %v6903, %v6904
  %v6906 = vrot.slane %v6905, 1
  %v6907 = vadd.f32 %v6905, %v6906
  %v6908 = vld [vmem:[%s8 + $0x2] sm:$0x1]
  %v6909 = vadd.f32 %v6907, %v6908
  %6911 = vrot.lane.b32.xlu0 %v6909, 1
  %v6912 = vpop.permute.xlu0 %6911
  %6914 = vst.msk [vmem:[%s9 + $0x2] sm:$0x1] %vm6793, %v6912
  // Predicated region
  $region38: #{ourcnn_forward.1} parent=0 // pred_check
    _
  $region39: #{ourcnn_forward.1} parent=0 // pred_check_branch
    %6916 = sbr.rel (0) target = $region41
  $region40: #{ourcnn_forward.1} parent=0 // pred_region
    _
  $region41: #{ourcnn_forward.1} parent=0 // pred_fallthru
    _
  // Predicated region
  $region42: #{ourcnn_forward.1} parent=0 // pred_check
    _
  $region43: #{ourcnn_forward.1} parent=0 // pred_check_branch
    %6918 = sbr.rel (0) target = $region45
  $region44: #{ourcnn_forward.1} parent=0 // pred_region
    _
  $region45: #{ourcnn_forward.1} parent=0 // pred_fallthru
    _

</llo_original>
